<compile_context>
chip_gen: v6e
topology: v6e:2x2x1
jax: 0.10.0
libtpu: 0.0.40
codegen_flags: <defaults>
</compile_context>

<pallas_src>
import math
import functools

import jax
import jax.numpy as jnp
from jax.experimental import pallas as pl
from jax.experimental.pallas import tpu as pltpu

_LN_EPS = 1e-5
_NEG_INF = -1e30


# ----------------------------- config ---------------------------------------
class GPTConfig:
    def __init__(self, block_size=32, vocab_size=256, n_layer=2, n_head=4, n_embd=128):
        assert n_embd % n_head == 0
        self.block_size = block_size
        self.vocab_size = vocab_size
        self.n_layer = n_layer
        self.n_head = n_head
        self.n_embd = n_embd


# ----------------------------- small helpers ---------------------------------
def _layernorm(x, w, b):
    # x: (T, C) f32; w, b: (C,) f32 — keep LN math in f32 (v5e has no bf16 VPU).
    mu = jnp.mean(x, axis=-1, keepdims=True)
    var = jnp.mean((x - mu) ** 2, axis=-1, keepdims=True)
    return (x - mu) * jax.lax.rsqrt(var + _LN_EPS) * w + b


def _gelu_tanh(x):
    return 0.5 * x * (1.0 + jnp.tanh(math.sqrt(2.0 / math.pi) * (x + 0.044715 * x ** 3)))


def _mm(a, w):
    # MXU matmul: bf16 inputs, f32 accumulation.
    return jnp.dot(a.astype(jnp.bfloat16), w.astype(jnp.bfloat16),
                   preferred_element_type=jnp.float32)


# ----------------------------- kernels ---------------------------------------
def embed_kernel(ids_ref, wte_ref, wpe_ref, out_ref, *, B, T):
    # ids_ref: (B*T,) int32 in SMEM; wte_ref: (V, C) f32 VMEM; wpe_ref: (T, C) f32.
    # Unrolled row gather: each iteration is one dynamic-index (C,)-lane load +
    # add + store; the adds co-issue with the loads in the same bundles.
    # TODO(synk): at real vocab sizes (50k) wte does not fit VMEM — switch to a
    # scalar-prefetch / manual-DMA row-gather from HBM instead of a VMEM table.
    for i in range(B * T):
        b, t = divmod(i, T)
        out_ref[b, t, :] = wte_ref[ids_ref[i], :] + wpe_ref[t, :]


def blocks_kernel(x_ref, ln1w_ref, ln1b_ref, wqkv_ref, bqkv_ref, wo_ref, bo_ref,
                  ln2w_ref, ln2b_ref, wfc_ref, bfc_ref, wpr_ref, bpr_ref,
                  lnfw_ref, lnfb_ref, o_ref, acc_ref, *, n_head, n_layer):
    layer = pl.program_id(1)

    @pl.when(layer == 0)
    def _():
        acc_ref[...] = x_ref[0]                 # load the residual stream once per batch row

    x = acc_ref[...]                            # (T, C) f32, VMEM-resident across layers
    T, C = x.shape
    hd = C // n_head
    scale = 1.0 / math.sqrt(hd)

    # additive causal bias (finite, built once per step — cheap (T,T) iota work)
    row = jax.lax.broadcasted_iota(jnp.int32, (T, T), 0)
    col = jax.lax.broadcasted_iota(jnp.int32, (T, T), 1)
    causal_bias = jnp.where(col <= row, 0.0, _NEG_INF).astype(jnp.float32)[None]  # (1,T,T)

    # ---- attention branch ----
    h = _layernorm(x, ln1w_ref[0, 0], ln1b_ref[0, 0])
    qkv = _mm(h, wqkv_ref[0]) + bqkv_ref[0, 0]                       # (T, 3C) f32
    q = qkv[:, 0 * C:1 * C].reshape(T, n_head, hd).astype(jnp.bfloat16)
    k = qkv[:, 1 * C:2 * C].reshape(T, n_head, hd).astype(jnp.bfloat16)
    v = qkv[:, 2 * C:3 * C].reshape(T, n_head, hd).astype(jnp.bfloat16)
    att = jnp.einsum('qhd,khd->hqk', q, k,
                     preferred_element_type=jnp.float32) * scale + causal_bias
    m = jnp.max(att, axis=-1, keepdims=True)
    e = jnp.exp(att - m)
    p = e * pl.reciprocal(jnp.sum(e, axis=-1, keepdims=True), approx=True)
    y = jnp.einsum('hqk,khd->qhd', p.astype(jnp.bfloat16), v,
                   preferred_element_type=jnp.float32).reshape(T, C)
    x = x + _mm(y, wo_ref[0]) + bo_ref[0, 0]

    # ---- MLP branch ----
    h2 = _layernorm(x, ln2w_ref[0, 0], ln2b_ref[0, 0])
    f = _gelu_tanh(_mm(h2, wfc_ref[0]) + bfc_ref[0, 0])
    x = x + _mm(f, wpr_ref[0]) + bpr_ref[0, 0]

    acc_ref[...] = x

    @pl.when(layer == n_layer - 1)
    def _():
        # final LayerNorm folded into the last layer iteration
        o_ref[0] = _layernorm(x, lnfw_ref[0], lnfb_ref[0])


def head_kernel(x_ref, wlm_ref, out_ref):
    # (M, C) @ (C, TN) -> (M, TN) lane-dense logits tile (TN is a multiple of 128)
    out_ref[...] = jnp.dot(x_ref[...].astype(jnp.bfloat16), wlm_ref[...],
                           preferred_element_type=jnp.float32)


# ----------------------------- forward ----------------------------------------
def gpt_forward(ids, params, cfg: GPTConfig, targets=None):
    B, T = ids.shape
    assert T <= cfg.block_size
    C, V, L, NH = cfg.n_embd, cfg.vocab_size, cfg.n_layer, cfg.n_head

    ids_flat = ids.reshape(-1).astype(jnp.int32)

    # 1) token gather + positional add (ids in SMEM, wte resident in VMEM)
    x = pl.pallas_call(
        functools.partial(embed_kernel, B=B, T=T),
        out_shape=jax.ShapeDtypeStruct((B, T, C), jnp.float32),
        in_specs=[pl.BlockSpec(memory_space=pltpu.MemorySpace.SMEM),
                  pl.BlockSpec(memory_space=pltpu.MemorySpace.VMEM),
                  pl.BlockSpec(memory_space=pltpu.MemorySpace.VMEM)],
        out_specs=pl.BlockSpec(memory_space=pltpu.MemorySpace.VMEM),
    )(ids_flat, params['wte'], params['wpe'][:T])

    # 2) all transformer blocks + final LayerNorm in ONE pallas_call
    def w_spec(*shape):
        return pl.BlockSpec((1,) + shape, lambda b, l: (l, 0, 0))

    xf = pl.pallas_call(
        functools.partial(blocks_kernel, n_head=NH, n_layer=L),
        out_shape=jax.ShapeDtypeStruct((B, T, C), jnp.float32),
        grid=(B, L),
        in_specs=[
            pl.BlockSpec((1, T, C), lambda b, l: (b, 0, 0)),   # x (resident per batch row)
            w_spec(1, C),                                      # ln1_w
            w_spec(1, C),                                      # ln1_b
            w_spec(C, 3 * C),                                  # w_qkv
            w_spec(1, 3 * C),                                  # b_qkv
            w_spec(C, C),                                      # w_attn_proj
            w_spec(1, C),                                      # b_attn_proj
            w_spec(1, C),                                      # ln2_w
            w_spec(1, C),                                      # ln2_b
            w_spec(C, 4 * C),                                  # w_fc
            w_spec(1, 4 * C),                                  # b_fc
            w_spec(4 * C, C),                                  # w_mlp_proj
            w_spec(1, C),                                      # b_mlp_proj
            pl.BlockSpec((1, C), lambda b, l: (0, 0)),         # lnf_w
            pl.BlockSpec((1, C), lambda b, l: (0, 0)),         # lnf_b
        ],
        out_specs=pl.BlockSpec((1, T, C), lambda b, l: (b, 0, 0)),
        scratch_shapes=[pltpu.VMEM((T, C), jnp.float32)],
        compiler_params=pltpu.CompilerParams(
            dimension_semantics=("parallel", "arbitrary")),
    )(x,
      params['ln1_w'], params['ln1_b'],
      params['w_qkv'], params['b_qkv'],
      params['w_attn_proj'], params['b_attn_proj'],
      params['ln2_w'], params['ln2_b'],
      params['w_fc'], params['b_fc'],
      params['w_mlp_proj'], params['b_mlp_proj'],
      params['lnf_w'], params['lnf_b'])

    # 3) lm_head, tiled over the vocab axis (lane-dense 128-wide output tiles)
    TN = 128 if V % 128 == 0 else V
    M = B * T
    logits = pl.pallas_call(
        head_kernel,
        out_shape=jax.ShapeDtypeStruct((M, V), jnp.float32),
        grid=(V // TN,),
        in_specs=[pl.BlockSpec((M, C), lambda j: (0, 0)),
                  pl.BlockSpec((C, TN), lambda j: (0, j))],
        out_specs=pl.BlockSpec((M, TN), lambda j: (0, j)),
        compiler_params=pltpu.CompilerParams(dimension_semantics=("parallel",)),
    )(xf.reshape(M, C), params['w_lm'])
    logits = logits.reshape(B, T, V)

    loss = None
    if targets is not None:
        # glue: cross entropy in plain JAX (matches F.cross_entropy mean reduction)
        logp = jax.nn.log_softmax(logits.reshape(-1, V), axis=-1)
        loss = -jnp.mean(jnp.take_along_axis(
            logp, targets.reshape(-1, 1).astype(jnp.int32), axis=1))
    return logits, loss


# ----------------------------- pure-JAX reference ------------------------------
def gpt_forward_ref(ids, params, cfg: GPTConfig):
    C, NH, L = cfg.n_embd, cfg.n_head, cfg.n_layer
    hd = C // NH
    B, T = ids.shape
    f32 = lambda a: a.astype(jnp.float32)

    def ln(h, w, b):
        mu = jnp.mean(h, -1, keepdims=True)
        var = jnp.mean((h - mu) ** 2, -1, keepdims=True)
        return (h - mu) * jax.lax.rsqrt(var + _LN_EPS) * w + b

    x = params['wte'][ids] + params['wpe'][:T][None]
    mask = jnp.tril(jnp.ones((T, T), bool))
    for l in range(L):
        h = ln(x, params['ln1_w'][l, 0], params['ln1_b'][l, 0])
        qkv = h @ f32(params['w_qkv'][l]) + params['b_qkv'][l, 0]
        q, k, v = jnp.split(qkv, 3, axis=-1)
        q = q.reshape(B, T, NH, hd).transpose(0, 2, 1, 3)
        k = k.reshape(B, T, NH, hd).transpose(0, 2, 1, 3)
        v = v.reshape(B, T, NH, hd).transpose(0, 2, 1, 3)
        att = (q @ k.transpose(0, 1, 3, 2)) / math.sqrt(hd)
        att = jnp.where(mask[None, None], att, -jnp.inf)
        att = jax.nn.softmax(att, axis=-1)
        y = (att @ v).transpose(0, 2, 1, 3).reshape(B, T, C)
        x = x + y @ f32(params['w_attn_proj'][l]) + params['b_attn_proj'][l, 0]
        h2 = ln(x, params['ln2_w'][l, 0], params['ln2_b'][l, 0])
        f = h2 @ f32(params['w_fc'][l]) + params['b_fc'][l, 0]
        f = 0.5 * f * (1.0 + jnp.tanh(math.sqrt(2.0 / math.pi) * (f + 0.044715 * f ** 3)))
        x = x + f @ f32(params['w_mlp_proj'][l]) + params['b_mlp_proj'][l, 0]
    xf = ln(x, params['lnf_w'][0], params['lnf_b'][0])
    return xf @ f32(params['w_lm'])


# ----------------------------- params init ------------------------------------
def init_params(key, cfg: GPTConfig):
    C, V, L = cfg.n_embd, cfg.vocab_size, cfg.n_layer
    H = 4 * C
    ks = jax.random.split(key, 12)

    def dense(k, fan_in, shape, dtype=jnp.bfloat16):
        bound = 1.0 / math.sqrt(fan_in)
        return jax.random.uniform(k, shape, jnp.float32, -bound, bound).astype(dtype)

    # matmul weights stored in bf16 (halves HBM/VMEM traffic); embeddings, LN
    # params and biases stay f32.
    return {
        'wte': (0.02 * jax.random.normal(ks[0], (V, C))).astype(jnp.float32),
        'wpe': (0.02 * jax.random.normal(ks[1], (cfg.block_size, C))).astype(jnp.float32),
        'ln1_w': jnp.ones((L, 1, C), jnp.float32),
        'ln1_b': jnp.zeros((L, 1, C), jnp.float32),
        'w_qkv': dense(ks[2], C, (L, C, 3 * C)),
        'b_qkv': dense(ks[3], C, (L, 1, 3 * C), jnp.float32),
        'w_attn_proj': dense(ks[4], C, (L, C, C)),
        'b_attn_proj': dense(ks[5], C, (L, 1, C), jnp.float32),
        'ln2_w': jnp.ones((L, 1, C), jnp.float32),
        'ln2_b': jnp.zeros((L, 1, C), jnp.float32),
        'w_fc': dense(ks[6], C, (L, C, H)),
        'b_fc': dense(ks[7], C, (L, 1, H), jnp.float32),
        'w_mlp_proj': dense(ks[8], H, (L, H, C)),
        'b_mlp_proj': dense(ks[9], H, (L, 1, C), jnp.float32),
        'lnf_w': jnp.ones((1, C), jnp.float32),
        'lnf_b': jnp.zeros((1, C), jnp.float32),
        'w_lm': dense(ks[10], C, (C, V)),
    }


# ----------------------------- main --------------------------------------------
if __name__ == "__main__":
    cfg = GPTConfig(block_size=32, vocab_size=256, n_layer=2, n_head=4, n_embd=128)
    key = jax.random.PRNGKey(0)
    k_ids, k_tgt, k_params = jax.random.split(key, 3)

    B, T = 2, 16
    ids = jax.random.randint(k_ids, (B, T), 0, cfg.vocab_size, dtype=jnp.int32)
    tgt = jax.random.randint(k_tgt, (B, T), 0, cfg.vocab_size, dtype=jnp.int32)
    params = init_params(k_params, cfg)

    # whole forward (Pallas calls + cross-entropy glue) under one jit
    fwd = jax.jit(lambda i, p, t: gpt_forward(i, p, cfg, targets=t))
    logits, loss = fwd(ids, params, tgt)
    logits = jax.block_until_ready(logits)
    loss = jax.block_until_ready(loss)

    # correctness check against a pure-JAX f32 reference of the same math
    # (tolerance accounts for bf16 matmul inputs + approx reciprocal in-kernel)
    ref_logits = jax.block_until_ready(gpt_forward_ref(ids, params, cfg))
    assert logits.shape == (B, T, cfg.vocab_size)
    assert bool(jnp.isfinite(loss))
    max_err = float(jnp.max(jnp.abs(logits - ref_logits)))
    assert jnp.allclose(logits, ref_logits, rtol=5e-2, atol=8e-2), max_err

    print("KERNEL_OK")
</pallas_src>

<mosaic_0001>
module attributes {stable_mosaic.version = 11 : i64} {
  func.func @blocks_kernel(%arg0: i32, %arg1: i32, %arg2: memref<1x16x128xf32, #tpu.memory_space<vmem>>, %arg3: memref<1x1x128xf32, #tpu.memory_space<vmem>>, %arg4: memref<1x1x128xf32, #tpu.memory_space<vmem>>, %arg5: memref<1x128x384xbf16, #tpu.memory_space<vmem>>, %arg6: memref<1x1x384xf32, #tpu.memory_space<vmem>>, %arg7: memref<1x128x128xbf16, #tpu.memory_space<vmem>>, %arg8: memref<1x1x128xf32, #tpu.memory_space<vmem>>, %arg9: memref<1x1x128xf32, #tpu.memory_space<vmem>>, %arg10: memref<1x1x128xf32, #tpu.memory_space<vmem>>, %arg11: memref<1x128x512xbf16, #tpu.memory_space<vmem>>, %arg12: memref<1x1x512xf32, #tpu.memory_space<vmem>>, %arg13: memref<1x512x128xbf16, #tpu.memory_space<vmem>>, %arg14: memref<1x1x128xf32, #tpu.memory_space<vmem>>, %arg15: memref<1x128xf32, #tpu.memory_space<vmem>>, %arg16: memref<1x128xf32, #tpu.memory_space<vmem>>, %arg17: memref<1x16x128xf32, #tpu.memory_space<vmem>>, %arg18: memref<16x128xf32, #tpu.memory_space<vmem>>) attributes {dimension_semantics = [#tpu.dimension_semantics<parallel>, #tpu.dimension_semantics<arbitrary>], iteration_bounds = array<i64: 2, 2>, scalar_prefetch = 0 : i64, scratch_operands = 1 : i64, tpu.core_type = #tpu.core_type<tc>, window_params = [{transform_indices = @transform_0, window_bounds = array<i64: 1, 16, 128>}, {transform_indices = @transform_1, window_bounds = array<i64: 1, 1, 128>}, {transform_indices = @transform_2, window_bounds = array<i64: 1, 1, 128>}, {transform_indices = @transform_3, window_bounds = array<i64: 1, 128, 384>}, {transform_indices = @transform_4, window_bounds = array<i64: 1, 1, 384>}, {transform_indices = @transform_5, window_bounds = array<i64: 1, 128, 128>}, {transform_indices = @transform_6, window_bounds = array<i64: 1, 1, 128>}, {transform_indices = @transform_7, window_bounds = array<i64: 1, 1, 128>}, {transform_indices = @transform_8, window_bounds = array<i64: 1, 1, 128>}, {transform_indices = @transform_9, window_bounds = array<i64: 1, 128, 512>}, {transform_indices = @transform_10, window_bounds = array<i64: 1, 1, 512>}, {transform_indices = @transform_11, window_bounds = array<i64: 1, 512, 128>}, {transform_indices = @transform_12, window_bounds = array<i64: 1, 1, 128>}, {pipeline_mode = #tpu.pipeline_mode<synchronous>, transform_indices = @transform_13, window_bounds = array<i64: 1, 128>}, {pipeline_mode = #tpu.pipeline_mode<synchronous>, transform_indices = @transform_14, window_bounds = array<i64: 1, 128>}, {transform_indices = @transform_15, window_bounds = array<i64: 1, 16, 128>}]} {
    %c0_i32 = arith.constant 0 : i32
    %0 = arith.cmpi eq, %arg1, %c0_i32 : i32
    %1 = arith.extui %0 : i1 to i32
    %c0_i32_0 = arith.constant 0 : i32
    %2 = arith.cmpi ne, %1, %c0_i32_0 : i32
    scf.if %2 {
      %c0_65 = arith.constant 0 : index
      %c0_66 = arith.constant 0 : index
      %c0_67 = arith.constant 0 : index
      %150 = vector.load %arg2[%c0_65, %c0_66, %c0_67] : memref<1x16x128xf32, #tpu.memory_space<vmem>>, vector<1x16x128xf32>
      %151 = vector.shape_cast %150 : vector<1x16x128xf32> to vector<16x128xf32>
      %c0_68 = arith.constant 0 : index
      %c0_69 = arith.constant 0 : index
      %152 = vector.load %arg18[%c0_68, %c0_69] : memref<16x128xf32, #tpu.memory_space<vmem>>, vector<16x128xf32>
      tpu.vector_store %arg18[%c0_68, %c0_69], %151 {strides = array<i32>} : memref<16x128xf32, #tpu.memory_space<vmem>>, vector<16x128xf32>,
    } else {
    }
    %c0 = arith.constant 0 : index
    %c0_1 = arith.constant 0 : index
    %3 = vector.load %arg18[%c0, %c0_1] : memref<16x128xf32, #tpu.memory_space<vmem>>, vector<16x128xf32>
    %4 = tpu.iota {dimensions = array<i32: 0>} : vector<16x16xi32>
    %5 = tpu.iota {dimensions = array<i32: 1>} : vector<16x16xi32>
    %6 = arith.cmpi sle, %5, %4 : vector<16x16xi32>
    %cst = arith.constant 0.000000e+00 : f32
    %cst_2 = arith.constant -1.000000e+30 : f32
    %7 = vector.broadcast %cst : f32 to vector<16x16xf32>
    %8 = vector.broadcast %cst_2 : f32 to vector<16x16xf32>
    %9 = arith.select %6, %7, %8 : vector<16x16xi1>, vector<16x16xf32>
    %10 = vector.shape_cast %9 : vector<16x16xf32> to vector<1x16x16xf32>
    %c0_3 = arith.constant 0 : index
    %c0_4 = arith.constant 0 : index
    %c0_5 = arith.constant 0 : index
    %11 = vector.load %arg3[%c0_3, %c0_4, %c0_5] : memref<1x1x128xf32, #tpu.memory_space<vmem>>, vector<1x1x128xf32>
    %12 = vector.shape_cast %11 : vector<1x1x128xf32> to vector<128xf32>
    %c0_6 = arith.constant 0 : index
    %c0_7 = arith.constant 0 : index
    %c0_8 = arith.constant 0 : index
    %13 = vector.load %arg4[%c0_6, %c0_7, %c0_8] : memref<1x1x128xf32, #tpu.memory_space<vmem>>, vector<1x1x128xf32>
    %14 = vector.shape_cast %13 : vector<1x1x128xf32> to vector<128xf32>
    %cst_9 = arith.constant dense<0.000000e+00> : vector<16xf32>
    %15 = vector.multi_reduction <add>, %3, %cst_9 [1] : vector<16x128xf32> to vector<16xf32>
    %16 = vector.shape_cast %15 : vector<16xf32> to vector<16x1xf32>
    %cst_10 = arith.constant 1.280000e+02 : f32
    %17 = vector.broadcast %cst_10 : f32 to vector<16x1xf32>
    %18 = arith.divf %16, %17 : vector<16x1xf32>
    %19 = vector.broadcast %18 : vector<16x1xf32> to vector<16x128xf32>
    %20 = arith.subf %3, %19 : vector<16x128xf32>
    %21 = arith.mulf %20, %20 : vector<16x128xf32>
    %cst_11 = arith.constant dense<0.000000e+00> : vector<16xf32>
    %22 = vector.multi_reduction <add>, %21, %cst_11 [1] : vector<16x128xf32> to vector<16xf32>
    %23 = vector.shape_cast %22 : vector<16xf32> to vector<16x1xf32>
    %cst_12 = arith.constant 1.280000e+02 : f32
    %24 = vector.broadcast %cst_12 : f32 to vector<16x1xf32>
    %25 = arith.divf %23, %24 : vector<16x1xf32>
    %26 = vector.broadcast %18 : vector<16x1xf32> to vector<16x128xf32>
    %27 = arith.subf %3, %26 : vector<16x128xf32>
    %cst_13 = arith.constant 9.99999974E-6 : f32
    %28 = vector.broadcast %cst_13 : f32 to vector<16x1xf32>
    %29 = arith.addf %25, %28 : vector<16x1xf32>
    %30 = math.rsqrt %29 : vector<16x1xf32>
    %31 = vector.broadcast %30 : vector<16x1xf32> to vector<16x128xf32>
    %32 = arith.mulf %27, %31 : vector<16x128xf32>
    %33 = vector.shape_cast %12 : vector<128xf32> to vector<1x128xf32>
    %34 = vector.broadcast %33 : vector<1x128xf32> to vector<16x128xf32>
    %35 = arith.mulf %32, %34 : vector<16x128xf32>
    %36 = vector.shape_cast %14 : vector<128xf32> to vector<1x128xf32>
    %37 = vector.broadcast %36 : vector<1x128xf32> to vector<16x128xf32>
    %38 = arith.addf %35, %37 : vector<16x128xf32>
    %c0_14 = arith.constant 0 : index
    %c0_15 = arith.constant 0 : index
    %c0_16 = arith.constant 0 : index
    %39 = vector.load %arg5[%c0_14, %c0_15, %c0_16] : memref<1x128x384xbf16, #tpu.memory_space<vmem>>, vector<1x128x384xbf16>
    %40 = vector.shape_cast %39 : vector<1x128x384xbf16> to vector<128x384xbf16>
    %41 = arith.truncf %38 : vector<16x128xf32> to vector<16x128xbf16>
    %cst_17 = arith.constant dense<0.000000e+00> : vector<16x384xf32>
    %42 = tpu.matmul %41, %40, %cst_17 {dimension_numbers = #tpu.dot_dimension_numbers<[1], [0], [0], [1], [0, 0, 1, 1], [], []>} : vector<16x128xbf16>, vector<128x384xbf16>, vector<16x384xf32> -> vector<16x384xf32>
    %c0_18 = arith.constant 0 : index
    %c0_19 = arith.constant 0 : index
    %c0_20 = arith.constant 0 : index
    %43 = vector.load %arg6[%c0_18, %c0_19, %c0_20] : memref<1x1x384xf32, #tpu.memory_space<vmem>>, vector<1x1x384xf32>
    %44 = vector.shape_cast %43 : vector<1x1x384xf32> to vector<384xf32>
    %45 = vector.shape_cast %44 : vector<384xf32> to vector<1x384xf32>
    %46 = vector.broadcast %45 : vector<1x384xf32> to vector<16x384xf32>
    %47 = arith.addf %42, %46 : vector<16x384xf32>
    %48 = vector.extract_strided_slice %47 {offsets = [0, 0], sizes = [16, 128], strides = [1, 1]} : vector<16x384xf32> to vector<16x128xf32>
    %49 = vector.shape_cast %48 : vector<16x128xf32> to vector<16x4x32xf32>
    %50 = arith.truncf %49 : vector<16x4x32xf32> to vector<16x4x32xbf16>
    %51 = vector.extract_strided_slice %47 {offsets = [0, 128], sizes = [16, 128], strides = [1, 1]} : vector<16x384xf32> to vector<16x128xf32>
    %52 = vector.shape_cast %51 : vector<16x128xf32> to vector<16x4x32xf32>
    %53 = arith.truncf %52 : vector<16x4x32xf32> to vector<16x4x32xbf16>
    %54 = vector.extract_strided_slice %47 {offsets = [0, 256], sizes = [16, 128], strides = [1, 1]} : vector<16x384xf32> to vector<16x128xf32>
    %55 = vector.shape_cast %54 : vector<16x128xf32> to vector<16x4x32xf32>
    %56 = arith.truncf %55 : vector<16x4x32xf32> to vector<16x4x32xbf16>
    "tpu.trace_start"() <{level = 10 : i32, message = "qhd,khd->hqk"}> : () -> ()
    %cst_21 = arith.constant dense<0.000000e+00> : vector<4x16x16xf32>
    %57 = tpu.matmul %50, %53, %cst_21 {dimension_numbers = #tpu.dot_dimension_numbers<[2], [2], [0], [0], [0, 1, 0, 0, 1, 0], [1], [1]>} : vector<16x4x32xbf16>, vector<16x4x32xbf16>, vector<4x16x16xf32> -> vector<4x16x16xf32>
    "tpu.trace_stop"() : () -> ()
    %cst_22 = arith.constant 0.176776692 : f32
    %58 = vector.broadcast %cst_22 : f32 to vector<4x16x16xf32>
    %59 = arith.mulf %57, %58 : vector<4x16x16xf32>
    %60 = vector.broadcast %10 : vector<1x16x16xf32> to vector<4x16x16xf32>
    %61 = arith.addf %59, %60 : vector<4x16x16xf32>
    %cst_23 = arith.constant dense<0xFF800000> : vector<4x16xf32>
    %62 = vector.multi_reduction <maximumf>, %61, %cst_23 [2] : vector<4x16x16xf32> to vector<4x16xf32>
    %63 = vector.shape_cast %62 : vector<4x16xf32> to vector<4x16x1xf32>
    %64 = vector.broadcast %63 : vector<4x16x1xf32> to vector<4x16x16xf32>
    %65 = arith.subf %61, %64 : vector<4x16x16xf32>
    %66 = math.exp %65 : vector<4x16x16xf32>
    %cst_24 = arith.constant dense<0.000000e+00> : vector<4x16xf32>
    %67 = vector.multi_reduction <add>, %66, %cst_24 [2] : vector<4x16x16xf32> to vector<4x16xf32>
    %68 = vector.shape_cast %67 : vector<4x16xf32> to vector<4x16x1xf32>
    %69 = tpu.reciprocal %68 {approx = true} : vector<4x16x1xf32> -> vector<4x16x1xf32>
    %70 = vector.broadcast %69 : vector<4x16x1xf32> to vector<4x16x16xf32>
    %71 = arith.mulf %66, %70 : vector<4x16x16xf32>
    %72 = arith.truncf %71 : vector<4x16x16xf32> to vector<4x16x16xbf16>
    "tpu.trace_start"() <{level = 10 : i32, message = "hqk,khd->qhd"}> : () -> ()
    %cst_25 = arith.constant dense<0.000000e+00> : vector<4x32x16xf32>
    %73 = tpu.matmul %56, %72, %cst_25 {dimension_numbers = #tpu.dot_dimension_numbers<[0], [2], [2], [1], [0, 1, 0, 2, 1, 1], [1], [0]>} : vector<16x4x32xbf16>, vector<4x16x16xbf16>, vector<4x32x16xf32> -> vector<4x32x16xf32>
    %74 = tpu.transpose %73, [2, 0, 1] : vector<4x32x16xf32> -> vector<16x4x32xf32>
    "tpu.trace_stop"() : () -> ()
    %75 = vector.shape_cast %74 : vector<16x4x32xf32> to vector<16x128xf32>
    %c0_26 = arith.constant 0 : index
    %c0_27 = arith.constant 0 : index
    %c0_28 = arith.constant 0 : index
    %76 = vector.load %arg7[%c0_26, %c0_27, %c0_28] : memref<1x128x128xbf16, #tpu.memory_space<vmem>>, vector<1x128x128xbf16>
    %77 = vector.shape_cast %76 : vector<1x128x128xbf16> to vector<128x128xbf16>
    %78 = arith.truncf %75 : vector<16x128xf32> to vector<16x128xbf16>
    %cst_29 = arith.constant dense<0.000000e+00> : vector<16x128xf32>
    %79 = tpu.matmul %78, %77, %cst_29 {dimension_numbers = #tpu.dot_dimension_numbers<[1], [0], [0], [1], [0, 0, 1, 1], [], []>} : vector<16x128xbf16>, vector<128x128xbf16>, vector<16x128xf32> -> vector<16x128xf32>
    %80 = arith.addf %3, %79 : vector<16x128xf32>
    %c0_30 = arith.constant 0 : index
    %c0_31 = arith.constant 0 : index
    %c0_32 = arith.constant 0 : index
    %81 = vector.load %arg8[%c0_30, %c0_31, %c0_32] : memref<1x1x128xf32, #tpu.memory_space<vmem>>, vector<1x1x128xf32>
    %82 = vector.shape_cast %81 : vector<1x1x128xf32> to vector<128xf32>
    %83 = vector.shape_cast %82 : vector<128xf32> to vector<1x128xf32>
    %84 = vector.broadcast %83 : vector<1x128xf32> to vector<16x128xf32>
    %85 = arith.addf %80, %84 : vector<16x128xf32>
    %c0_33 = arith.constant 0 : index
    %c0_34 = arith.constant 0 : index
    %c0_35 = arith.constant 0 : index
    %86 = vector.load %arg9[%c0_33, %c0_34, %c0_35] : memref<1x1x128xf32, #tpu.memory_space<vmem>>, vector<1x1x128xf32>
    %87 = vector.shape_cast %86 : vector<1x1x128xf32> to vector<128xf32>
    %c0_36 = arith.constant 0 : index
    %c0_37 = arith.constant 0 : index
    %c0_38 = arith.constant 0 : index
    %88 = vector.load %arg10[%c0_36, %c0_37, %c0_38] : memref<1x1x128xf32, #tpu.memory_space<vmem>>, vector<1x1x128xf32>
    %89 = vector.shape_cast %88 : vector<1x1x128xf32> to vector<128xf32>
    %cst_39 = arith.constant dense<0.000000e+00> : vector<16xf32>
    %90 = vector.multi_reduction <add>, %85, %cst_39 [1] : vector<16x128xf32> to vector<16xf32>
    %91 = vector.shape_cast %90 : vector<16xf32> to vector<16x1xf32>
    %cst_40 = arith.constant 1.280000e+02 : f32
    %92 = vector.broadcast %cst_40 : f32 to vector<16x1xf32>
    %93 = arith.divf %91, %92 : vector<16x1xf32>
    %94 = vector.broadcast %93 : vector<16x1xf32> to vector<16x128xf32>
    %95 = arith.subf %85, %94 : vector<16x128xf32>
    %96 = arith.mulf %95, %95 : vector<16x128xf32>
    %cst_41 = arith.constant dense<0.000000e+00> : vector<16xf32>
    %97 = vector.multi_reduction <add>, %96, %cst_41 [1] : vector<16x128xf32> to vector<16xf32>
    %98 = vector.shape_cast %97 : vector<16xf32> to vector<16x1xf32>
    %cst_42 = arith.constant 1.280000e+02 : f32
    %99 = vector.broadcast %cst_42 : f32 to vector<16x1xf32>
    %100 = arith.divf %98, %99 : vector<16x1xf32>
    %101 = vector.broadcast %93 : vector<16x1xf32> to vector<16x128xf32>
    %102 = arith.subf %85, %101 : vector<16x128xf32>
    %cst_43 = arith.constant 9.99999974E-6 : f32
    %103 = vector.broadcast %cst_43 : f32 to vector<16x1xf32>
    %104 = arith.addf %100, %103 : vector<16x1xf32>
    %105 = math.rsqrt %104 : vector<16x1xf32>
    %106 = vector.broadcast %105 : vector<16x1xf32> to vector<16x128xf32>
    %107 = arith.mulf %102, %106 : vector<16x128xf32>
    %108 = vector.shape_cast %87 : vector<128xf32> to vector<1x128xf32>
    %109 = vector.broadcast %108 : vector<1x128xf32> to vector<16x128xf32>
    %110 = arith.mulf %107, %109 : vector<16x128xf32>
    %111 = vector.shape_cast %89 : vector<128xf32> to vector<1x128xf32>
    %112 = vector.broadcast %111 : vector<1x128xf32> to vector<16x128xf32>
    %113 = arith.addf %110, %112 : vector<16x128xf32>
    %c0_44 = arith.constant 0 : index
    %c0_45 = arith.constant 0 : index
    %c0_46 = arith.constant 0 : index
    %114 = vector.load %arg11[%c0_44, %c0_45, %c0_46] : memref<1x128x512xbf16, #tpu.memory_space<vmem>>, vector<1x128x512xbf16>
    %115 = vector.shape_cast %114 : vector<1x128x512xbf16> to vector<128x512xbf16>
    %116 = arith.truncf %113 : vector<16x128xf32> to vector<16x128xbf16>
    %cst_47 = arith.constant dense<0.000000e+00> : vector<16x512xf32>
    %117 = tpu.matmul %116, %115, %cst_47 {dimension_numbers = #tpu.dot_dimension_numbers<[1], [0], [0], [1], [0, 0, 1, 1], [], []>} : vector<16x128xbf16>, vector<128x512xbf16>, vector<16x512xf32> -> vector<16x512xf32>
    %c0_48 = arith.constant 0 : index
    %c0_49 = arith.constant 0 : index
    %c0_50 = arith.constant 0 : index
    %118 = vector.load %arg12[%c0_48, %c0_49, %c0_50] : memref<1x1x512xf32, #tpu.memory_space<vmem>>, vector<1x1x512xf32>
    %119 = vector.shape_cast %118 : vector<1x1x512xf32> to vector<512xf32>
    %120 = vector.shape_cast %119 : vector<512xf32> to vector<1x512xf32>
    %121 = vector.broadcast %120 : vector<1x512xf32> to vector<16x512xf32>
    %122 = arith.addf %117, %121 : vector<16x512xf32>
    %cst_51 = arith.constant 5.000000e-01 : f32
    %123 = vector.broadcast %cst_51 : f32 to vector<16x512xf32>
    %124 = arith.mulf %123, %122 : vector<16x512xf32>
    %125 = arith.mulf %122, %122 : vector<16x512xf32>
    %126 = arith.mulf %122, %125 : vector<16x512xf32>
    %cst_52 = arith.constant 4.471500e-02 : f32
    %127 = vector.broadcast %cst_52 : f32 to vector<16x512xf32>
    %128 = arith.mulf %127, %126 : vector<16x512xf32>
    %129 = arith.addf %122, %128 : vector<16x512xf32>
    %cst_53 = arith.constant 0.797884583 : f32
    %130 = vector.broadcast %cst_53 : f32 to vector<16x512xf32>
    %131 = arith.mulf %130, %129 : vector<16x512xf32>
    %132 = math.tanh %131 : vector<16x512xf32>
    %cst_54 = arith.constant 1.000000e+00 : f32
    %133 = vector.broadcast %cst_54 : f32 to vector<16x512xf32>
    %134 = arith.addf %133, %132 : vector<16x512xf32>
    %135 = arith.mulf %124, %134 : vector<16x512xf32>
    %c0_55 = arith.constant 0 : index
    %c0_56 = arith.constant 0 : index
    %c0_57 = arith.constant 0 : index
    %136 = vector.load %arg13[%c0_55, %c0_56, %c0_57] : memref<1x512x128xbf16, #tpu.memory_space<vmem>>, vector<1x512x128xbf16>
    %137 = vector.shape_cast %136 : vector<1x512x128xbf16> to vector<512x128xbf16>
    %138 = arith.truncf %135 : vector<16x512xf32> to vector<16x512xbf16>
    %cst_58 = arith.constant dense<0.000000e+00> : vector<16x128xf32>
    %139 = tpu.matmul %138, %137, %cst_58 {dimension_numbers = #tpu.dot_dimension_numbers<[1], [0], [0], [1], [0, 0, 1, 1], [], []>} : vector<16x512xbf16>, vector<512x128xbf16>, vector<16x128xf32> -> vector<16x128xf32>
    %140 = arith.addf %85, %139 : vector<16x128xf32>
    %c0_59 = arith.constant 0 : index
    %c0_60 = arith.constant 0 : index
    %c0_61 = arith.constant 0 : index
    %141 = vector.load %arg14[%c0_59, %c0_60, %c0_61] : memref<1x1x128xf32, #tpu.memory_space<vmem>>, vector<1x1x128xf32>
    %142 = vector.shape_cast %141 : vector<1x1x128xf32> to vector<128xf32>
    %143 = vector.shape_cast %142 : vector<128xf32> to vector<1x128xf32>
    %144 = vector.broadcast %143 : vector<1x128xf32> to vector<16x128xf32>
    %145 = arith.addf %140, %144 : vector<16x128xf32>
    %c0_62 = arith.constant 0 : index
    %c0_63 = arith.constant 0 : index
    %146 = vector.load %arg18[%c0_62, %c0_63] : memref<16x128xf32, #tpu.memory_space<vmem>>, vector<16x128xf32>
    tpu.vector_store %arg18[%c0_62, %c0_63], %145 {strides = array<i32>} : memref<16x128xf32, #tpu.memory_space<vmem>>, vector<16x128xf32>,
    %c1_i32 = arith.constant 1 : i32
    %147 = arith.cmpi eq, %arg1, %c1_i32 : i32
    %148 = arith.extui %147 : i1 to i32
    %c0_i32_64 = arith.constant 0 : i32
    %149 = arith.cmpi ne, %148, %c0_i32_64 : i32
    scf.if %149 {
      %c0_65 = arith.constant 0 : index
      %c0_66 = arith.constant 0 : index
      %150 = vector.load %arg15[%c0_65, %c0_66] : memref<1x128xf32, #tpu.memory_space<vmem>>, vector<1x128xf32>
      %151 = vector.shape_cast %150 : vector<1x128xf32> to vector<128xf32>
      %c0_67 = arith.constant 0 : index
      %c0_68 = arith.constant 0 : index
      %152 = vector.load %arg16[%c0_67, %c0_68] : memref<1x128xf32, #tpu.memory_space<vmem>>, vector<1x128xf32>
      %153 = vector.shape_cast %152 : vector<1x128xf32> to vector<128xf32>
      %cst_69 = arith.constant dense<0.000000e+00> : vector<16xf32>
      %154 = vector.multi_reduction <add>, %145, %cst_69 [1] : vector<16x128xf32> to vector<16xf32>
      %155 = vector.shape_cast %154 : vector<16xf32> to vector<16x1xf32>
      %cst_70 = arith.constant 1.280000e+02 : f32
      %156 = vector.broadcast %cst_70 : f32 to vector<16x1xf32>
      %157 = arith.divf %155, %156 : vector<16x1xf32>
      %158 = vector.broadcast %157 : vector<16x1xf32> to vector<16x128xf32>
      %159 = arith.subf %145, %158 : vector<16x128xf32>
      %160 = arith.mulf %159, %159 : vector<16x128xf32>
      %cst_71 = arith.constant dense<0.000000e+00> : vector<16xf32>
      %161 = vector.multi_reduction <add>, %160, %cst_71 [1] : vector<16x128xf32> to vector<16xf32>
      %162 = vector.shape_cast %161 : vector<16xf32> to vector<16x1xf32>
      %cst_72 = arith.constant 1.280000e+02 : f32
      %163 = vector.broadcast %cst_72 : f32 to vector<16x1xf32>
      %164 = arith.divf %162, %163 : vector<16x1xf32>
      %165 = vector.broadcast %157 : vector<16x1xf32> to vector<16x128xf32>
      %166 = arith.subf %145, %165 : vector<16x128xf32>
      %cst_73 = arith.constant 9.99999974E-6 : f32
      %167 = vector.broadcast %cst_73 : f32 to vector<16x1xf32>
      %168 = arith.addf %164, %167 : vector<16x1xf32>
      %169 = math.rsqrt %168 : vector<16x1xf32>
      %170 = vector.broadcast %169 : vector<16x1xf32> to vector<16x128xf32>
      %171 = arith.mulf %166, %170 : vector<16x128xf32>
      %172 = vector.shape_cast %151 : vector<128xf32> to vector<1x128xf32>
      %173 = vector.broadcast %172 : vector<1x128xf32> to vector<16x128xf32>
      %174 = arith.mulf %171, %173 : vector<16x128xf32>
      %175 = vector.shape_cast %153 : vector<128xf32> to vector<1x128xf32>
      %176 = vector.broadcast %175 : vector<1x128xf32> to vector<16x128xf32>
      %177 = arith.addf %174, %176 : vector<16x128xf32>
      %c0_74 = arith.constant 0 : index
      %c0_75 = arith.constant 0 : index
      %c0_76 = arith.constant 0 : index
      %178 = vector.load %arg17[%c0_74, %c0_75, %c0_76] : memref<1x16x128xf32, #tpu.memory_space<vmem>>, vector<1x16x128xf32>
      %179 = vector.shape_cast %178 : vector<1x16x128xf32> to vector<16x128xf32>
      %180 = vector.shape_cast %177 : vector<16x128xf32> to vector<1x16x128xf32>
      tpu.vector_store %arg17[%c0_74, %c0_75, %c0_76], %180 {strides = array<i32>} : memref<1x16x128xf32, #tpu.memory_space<vmem>>, vector<1x16x128xf32>,
    } else {
    }
    return
  }
  func.func @transform_0(%arg0: i32, %arg1: i32) -> (i32, i32, i32) {
    %c0_i32 = arith.constant 0 : i32
    %c0_i32_0 = arith.constant 0 : i32
    %c0_i32_1 = arith.constant 0 : i32
    return %arg0, %c0_i32, %c0_i32_0 : i32, i32, i32
  }
  func.func @transform_1(%arg0: i32, %arg1: i32) -> (i32, i32, i32) {
    %c0_i32 = arith.constant 0 : i32
    %c0_i32_0 = arith.constant 0 : i32
    %c0_i32_1 = arith.constant 0 : i32
    return %arg1, %c0_i32, %c0_i32_0 : i32, i32, i32
  }
  func.func @transform_2(%arg0: i32, %arg1: i32) -> (i32, i32, i32) {
    %c0_i32 = arith.constant 0 : i32
    %c0_i32_0 = arith.constant 0 : i32
    %c0_i32_1 = arith.constant 0 : i32
    return %arg1, %c0_i32, %c0_i32_0 : i32, i32, i32
  }
  func.func @transform_3(%arg0: i32, %arg1: i32) -> (i32, i32, i32) {
    %c0_i32 = arith.constant 0 : i32
    %c0_i32_0 = arith.constant 0 : i32
    %c0_i32_1 = arith.constant 0 : i32
    return %arg1, %c0_i32, %c0_i32_0 : i32, i32, i32
  }
  func.func @transform_4(%arg0: i32, %arg1: i32) -> (i32, i32, i32) {
    %c0_i32 = arith.constant 0 : i32
    %c0_i32_0 = arith.constant 0 : i32
    %c0_i32_1 = arith.constant 0 : i32
    return %arg1, %c0_i32, %c0_i32_0 : i32, i32, i32
  }
  func.func @transform_5(%arg0: i32, %arg1: i32) -> (i32, i32, i32) {
    %c0_i32 = arith.constant 0 : i32
    %c0_i32_0 = arith.constant 0 : i32
    %c0_i32_1 = arith.constant 0 : i32
    return %arg1, %c0_i32, %c0_i32_0 : i32, i32, i32
  }
  func.func @transform_6(%arg0: i32, %arg1: i32) -> (i32, i32, i32) {
    %c0_i32 = arith.constant 0 : i32
    %c0_i32_0 = arith.constant 0 : i32
    %c0_i32_1 = arith.constant 0 : i32
    return %arg1, %c0_i32, %c0_i32_0 : i32, i32, i32
  }
  func.func @transform_7(%arg0: i32, %arg1: i32) -> (i32, i32, i32) {
    %c0_i32 = arith.constant 0 : i32
    %c0_i32_0 = arith.constant 0 : i32
    %c0_i32_1 = arith.constant 0 : i32
    return %arg1, %c0_i32, %c0_i32_0 : i32, i32, i32
  }
  func.func @transform_8(%arg0: i32, %arg1: i32) -> (i32, i32, i32) {
    %c0_i32 = arith.constant 0 : i32
    %c0_i32_0 = arith.constant 0 : i32
    %c0_i32_1 = arith.constant 0 : i32
    return %arg1, %c0_i32, %c0_i32_0 : i32, i32, i32
  }
  func.func @transform_9(%arg0: i32, %arg1: i32) -> (i32, i32, i32) {
    %c0_i32 = arith.constant 0 : i32
    %c0_i32_0 = arith.constant 0 : i32
    %c0_i32_1 = arith.constant 0 : i32
    return %arg1, %c0_i32, %c0_i32_0 : i32, i32, i32
  }
  func.func @transform_10(%arg0: i32, %arg1: i32) -> (i32, i32, i32) {
    %c0_i32 = arith.constant 0 : i32
    %c0_i32_0 = arith.constant 0 : i32
    %c0_i32_1 = arith.constant 0 : i32
    return %arg1, %c0_i32, %c0_i32_0 : i32, i32, i32
  }
  func.func @transform_11(%arg0: i32, %arg1: i32) -> (i32, i32, i32) {
    %c0_i32 = arith.constant 0 : i32
    %c0_i32_0 = arith.constant 0 : i32
    %c0_i32_1 = arith.constant 0 : i32
    return %arg1, %c0_i32, %c0_i32_0 : i32, i32, i32
  }
  func.func @transform_12(%arg0: i32, %arg1: i32) -> (i32, i32, i32) {
    %c0_i32 = arith.constant 0 : i32
    %c0_i32_0 = arith.constant 0 : i32
    %c0_i32_1 = arith.constant 0 : i32
    return %arg1, %c0_i32, %c0_i32_0 : i32, i32, i32
  }
  func.func @transform_13(%arg0: i32, %arg1: i32) -> (i32, i32) {
    %c0_i32 = arith.constant 0 : i32
    %c0_i32_0 = arith.constant 0 : i32
    %c0_i32_1 = arith.constant 0 : i32
    return %c0_i32, %c0_i32_0 : i32, i32
  }
  func.func @transform_14(%arg0: i32, %arg1: i32) -> (i32, i32) {
    %c0_i32 = arith.constant 0 : i32
    %c0_i32_0 = arith.constant 0 : i32
    %c0_i32_1 = arith.constant 0 : i32
    return %c0_i32, %c0_i32_0 : i32, i32
  }
  func.func @transform_15(%arg0: i32, %arg1: i32) -> (i32, i32, i32) {
    %c0_i32 = arith.constant 0 : i32
    %c0_i32_0 = arith.constant 0 : i32
    %c0_i32_1 = arith.constant 0 : i32
    return %arg0, %c0_i32, %c0_i32_0 : i32, i32, i32
  }
}

module attributes {stable_mosaic.version = 11 : i64} {
  func.func @head_kernel(%arg0: i32, %arg1: memref<32x128xf32, #tpu.memory_space<vmem>>, %arg2: memref<128x128xbf16, #tpu.memory_space<vmem>>, %arg3: memref<32x128xf32, #tpu.memory_space<vmem>>) attributes {dimension_semantics = [#tpu.dimension_semantics<parallel>], iteration_bounds = array<i64: 2>, scalar_prefetch = 0 : i64, scratch_operands = 0 : i64, tpu.core_type = #tpu.core_type<tc>, window_params = [{pipeline_mode = #tpu.pipeline_mode<synchronous>, transform_indices = @transform_0, window_bounds = array<i64: 32, 128>}, {transform_indices = @transform_1, window_bounds = array<i64: 128, 128>}, {transform_indices = @transform_2, window_bounds = array<i64: 32, 128>}]} {
    %c0 = arith.constant 0 : index
    %c0_0 = arith.constant 0 : index
    %0 = vector.load %arg1[%c0, %c0_0] : memref<32x128xf32, #tpu.memory_space<vmem>>, vector<32x128xf32>
    %1 = arith.truncf %0 : vector<32x128xf32> to vector<32x128xbf16>
    %c0_1 = arith.constant 0 : index
    %c0_2 = arith.constant 0 : index
    %2 = vector.load %arg2[%c0_1, %c0_2] : memref<128x128xbf16, #tpu.memory_space<vmem>>, vector<128x128xbf16>
    %cst = arith.constant dense<0.000000e+00> : vector<32x128xf32>
    %3 = tpu.matmul %1, %2, %cst {dimension_numbers = #tpu.dot_dimension_numbers<[1], [0], [0], [1], [0, 0, 1, 1], [], []>} : vector<32x128xbf16>, vector<128x128xbf16>, vector<32x128xf32> -> vector<32x128xf32>
    %c0_3 = arith.constant 0 : index
    %c0_4 = arith.constant 0 : index
    %4 = vector.load %arg3[%c0_3, %c0_4] : memref<32x128xf32, #tpu.memory_space<vmem>>, vector<32x128xf32>
    tpu.vector_store %arg3[%c0_3, %c0_4], %3 {strides = array<i32>} : memref<32x128xf32, #tpu.memory_space<vmem>>, vector<32x128xf32>,
    return
  }
  func.func @transform_0(%arg0: i32) -> (i32, i32) {
    %c0_i32 = arith.constant 0 : i32
    %c0_i32_0 = arith.constant 0 : i32
    %c0_i32_1 = arith.constant 0 : i32
    return %c0_i32, %c0_i32_0 : i32, i32
  }
  func.func @transform_1(%arg0: i32) -> (i32, i32) {
    %c0_i32 = arith.constant 0 : i32
    %c0_i32_0 = arith.constant 0 : i32
    return %c0_i32, %arg0 : i32, i32
  }
  func.func @transform_2(%arg0: i32) -> (i32, i32) {
    %c0_i32 = arith.constant 0 : i32
    %c0_i32_0 = arith.constant 0 : i32
    return %c0_i32, %arg0 : i32, i32
  }
}

module attributes {stable_mosaic.version = 11 : i64} {
  func.func @embed_kernel(%arg0: memref<32xi32, #tpu.memory_space<smem>>, %arg1: memref<256x128xf32, #tpu.memory_space<vmem>>, %arg2: memref<16x128xf32, #tpu.memory_space<vmem>>, %arg3: memref<2x16x128xf32, #tpu.memory_space<vmem>>) attributes {dimension_semantics = [], scalar_prefetch = 0 : i64, scratch_operands = 0 : i64, tpu.core_type = #tpu.core_type<tc>} {
    %c0 = arith.constant 0 : index
    %0 = memref.load %arg0[%c0] : memref<32xi32, #tpu.memory_space<smem>>
    %1 = arith.index_cast %0 : i32 to index
    %c0_0 = arith.constant 0 : index
    %2 = vector.load %arg1[%1, %c0_0] : memref<256x128xf32, #tpu.memory_space<vmem>>, vector<1x128xf32>
    %3 = vector.shape_cast %2 : vector<1x128xf32> to vector<128xf32>
    %c0_1 = arith.constant 0 : index
    %c0_2 = arith.constant 0 : index
    %4 = vector.load %arg2[%c0_1, %c0_2] : memref<16x128xf32, #tpu.memory_space<vmem>>, vector<1x128xf32>
    %5 = vector.shape_cast %4 : vector<1x128xf32> to vector<128xf32>
    %6 = arith.addf %3, %5 : vector<128xf32>
    %c0_3 = arith.constant 0 : index
    %c0_4 = arith.constant 0 : index
    %c0_5 = arith.constant 0 : index
    %7 = vector.load %arg3[%c0_3, %c0_4, %c0_5] : memref<2x16x128xf32, #tpu.memory_space<vmem>>, vector<1x1x128xf32>
    %8 = vector.shape_cast %7 : vector<1x1x128xf32> to vector<128xf32>
    %9 = vector.shape_cast %6 : vector<128xf32> to vector<1x1x128xf32>
    tpu.vector_store %arg3[%c0_3, %c0_4, %c0_5], %9 {strides = array<i32>} : memref<2x16x128xf32, #tpu.memory_space<vmem>>, vector<1x1x128xf32>,
    %c1 = arith.constant 1 : index
    %10 = memref.load %arg0[%c1] : memref<32xi32, #tpu.memory_space<smem>>
    %11 = arith.index_cast %10 : i32 to index
    %c0_6 = arith.constant 0 : index
    %12 = vector.load %arg1[%11, %c0_6] : memref<256x128xf32, #tpu.memory_space<vmem>>, vector<1x128xf32>
    %13 = vector.shape_cast %12 : vector<1x128xf32> to vector<128xf32>
    %c1_7 = arith.constant 1 : index
    %c0_8 = arith.constant 0 : index
    %14 = vector.load %arg2[%c1_7, %c0_8] : memref<16x128xf32, #tpu.memory_space<vmem>>, vector<1x128xf32>
    %15 = vector.shape_cast %14 : vector<1x128xf32> to vector<128xf32>
    %16 = arith.addf %13, %15 : vector<128xf32>
    %c0_9 = arith.constant 0 : index
    %c1_10 = arith.constant 1 : index
    %c0_11 = arith.constant 0 : index
    %17 = vector.load %arg3[%c0_9, %c1_10, %c0_11] : memref<2x16x128xf32, #tpu.memory_space<vmem>>, vector<1x1x128xf32>
    %18 = vector.shape_cast %17 : vector<1x1x128xf32> to vector<128xf32>
    %19 = vector.shape_cast %16 : vector<128xf32> to vector<1x1x128xf32>
    tpu.vector_store %arg3[%c0_9, %c1_10, %c0_11], %19 {strides = array<i32>} : memref<2x16x128xf32, #tpu.memory_space<vmem>>, vector<1x1x128xf32>,
    %c2 = arith.constant 2 : index
    %20 = memref.load %arg0[%c2] : memref<32xi32, #tpu.memory_space<smem>>
    %21 = arith.index_cast %20 : i32 to index
    %c0_12 = arith.constant 0 : index
    %22 = vector.load %arg1[%21, %c0_12] : memref<256x128xf32, #tpu.memory_space<vmem>>, vector<1x128xf32>
    %23 = vector.shape_cast %22 : vector<1x128xf32> to vector<128xf32>
    %c2_13 = arith.constant 2 : index
    %c0_14 = arith.constant 0 : index
    %24 = vector.load %arg2[%c2_13, %c0_14] : memref<16x128xf32, #tpu.memory_space<vmem>>, vector<1x128xf32>
    %25 = vector.shape_cast %24 : vector<1x128xf32> to vector<128xf32>
    %26 = arith.addf %23, %25 : vector<128xf32>
    %c0_15 = arith.constant 0 : index
    %c2_16 = arith.constant 2 : index
    %c0_17 = arith.constant 0 : index
    %27 = vector.load %arg3[%c0_15, %c2_16, %c0_17] : memref<2x16x128xf32, #tpu.memory_space<vmem>>, vector<1x1x128xf32>
    %28 = vector.shape_cast %27 : vector<1x1x128xf32> to vector<128xf32>
    %29 = vector.shape_cast %26 : vector<128xf32> to vector<1x1x128xf32>
    tpu.vector_store %arg3[%c0_15, %c2_16, %c0_17], %29 {strides = array<i32>} : memref<2x16x128xf32, #tpu.memory_space<vmem>>, vector<1x1x128xf32>,
    %c3 = arith.constant 3 : index
    %30 = memref.load %arg0[%c3] : memref<32xi32, #tpu.memory_space<smem>>
    %31 = arith.index_cast %30 : i32 to index
    %c0_18 = arith.constant 0 : index
    %32 = vector.load %arg1[%31, %c0_18] : memref<256x128xf32, #tpu.memory_space<vmem>>, vector<1x128xf32>
    %33 = vector.shape_cast %32 : vector<1x128xf32> to vector<128xf32>
    %c3_19 = arith.constant 3 : index
    %c0_20 = arith.constant 0 : index
    %34 = vector.load %arg2[%c3_19, %c0_20] : memref<16x128xf32, #tpu.memory_space<vmem>>, vector<1x128xf32>
    %35 = vector.shape_cast %34 : vector<1x128xf32> to vector<128xf32>
    %36 = arith.addf %33, %35 : vector<128xf32>
    %c0_21 = arith.constant 0 : index
    %c3_22 = arith.constant 3 : index
    %c0_23 = arith.constant 0 : index
    %37 = vector.load %arg3[%c0_21, %c3_22, %c0_23] : memref<2x16x128xf32, #tpu.memory_space<vmem>>, vector<1x1x128xf32>
    %38 = vector.shape_cast %37 : vector<1x1x128xf32> to vector<128xf32>
    %39 = vector.shape_cast %36 : vector<128xf32> to vector<1x1x128xf32>
    tpu.vector_store %arg3[%c0_21, %c3_22, %c0_23], %39 {strides = array<i32>} : memref<2x16x128xf32, #tpu.memory_space<vmem>>, vector<1x1x128xf32>,
    %c4 = arith.constant 4 : index
    %40 = memref.load %arg0[%c4] : memref<32xi32, #tpu.memory_space<smem>>
    %41 = arith.index_cast %40 : i32 to index
    %c0_24 = arith.constant 0 : index
    %42 = vector.load %arg1[%41, %c0_24] : memref<256x128xf32, #tpu.memory_space<vmem>>, vector<1x128xf32>
    %43 = vector.shape_cast %42 : vector<1x128xf32> to vector<128xf32>
    %c4_25 = arith.constant 4 : index
    %c0_26 = arith.constant 0 : index
    %44 = vector.load %arg2[%c4_25, %c0_26] : memref<16x128xf32, #tpu.memory_space<vmem>>, vector<1x128xf32>
    %45 = vector.shape_cast %44 : vector<1x128xf32> to vector<128xf32>
    %46 = arith.addf %43, %45 : vector<128xf32>
    %c0_27 = arith.constant 0 : index
    %c4_28 = arith.constant 4 : index
    %c0_29 = arith.constant 0 : index
    %47 = vector.load %arg3[%c0_27, %c4_28, %c0_29] : memref<2x16x128xf32, #tpu.memory_space<vmem>>, vector<1x1x128xf32>
    %48 = vector.shape_cast %47 : vector<1x1x128xf32> to vector<128xf32>
    %49 = vector.shape_cast %46 : vector<128xf32> to vector<1x1x128xf32>
    tpu.vector_store %arg3[%c0_27, %c4_28, %c0_29], %49 {strides = array<i32>} : memref<2x16x128xf32, #tpu.memory_space<vmem>>, vector<1x1x128xf32>,
    %c5 = arith.constant 5 : index
    %50 = memref.load %arg0[%c5] : memref<32xi32, #tpu.memory_space<smem>>
    %51 = arith.index_cast %50 : i32 to index
    %c0_30 = arith.constant 0 : index
    %52 = vector.load %arg1[%51, %c0_30] : memref<256x128xf32, #tpu.memory_space<vmem>>, vector<1x128xf32>
    %53 = vector.shape_cast %52 : vector<1x128xf32> to vector<128xf32>
    %c5_31 = arith.constant 5 : index
    %c0_32 = arith.constant 0 : index
    %54 = vector.load %arg2[%c5_31, %c0_32] : memref<16x128xf32, #tpu.memory_space<vmem>>, vector<1x128xf32>
    %55 = vector.shape_cast %54 : vector<1x128xf32> to vector<128xf32>
    %56 = arith.addf %53, %55 : vector<128xf32>
    %c0_33 = arith.constant 0 : index
    %c5_34 = arith.constant 5 : index
    %c0_35 = arith.constant 0 : index
    %57 = vector.load %arg3[%c0_33, %c5_34, %c0_35] : memref<2x16x128xf32, #tpu.memory_space<vmem>>, vector<1x1x128xf32>
    %58 = vector.shape_cast %57 : vector<1x1x128xf32> to vector<128xf32>
    %59 = vector.shape_cast %56 : vector<128xf32> to vector<1x1x128xf32>
    tpu.vector_store %arg3[%c0_33, %c5_34, %c0_35], %59 {strides = array<i32>} : memref<2x16x128xf32, #tpu.memory_space<vmem>>, vector<1x1x128xf32>,
    %c6 = arith.constant 6 : index
    %60 = memref.load %arg0[%c6] : memref<32xi32, #tpu.memory_space<smem>>
    %61 = arith.index_cast %60 : i32 to index
    %c0_36 = arith.constant 0 : index
    %62 = vector.load %arg1[%61, %c0_36] : memref<256x128xf32, #tpu.memory_space<vmem>>, vector<1x128xf32>
    %63 = vector.shape_cast %62 : vector<1x128xf32> to vector<128xf32>
    %c6_37 = arith.constant 6 : index
    %c0_38 = arith.constant 0 : index
    %64 = vector.load %arg2[%c6_37, %c0_38] : memref<16x128xf32, #tpu.memory_space<vmem>>, vector<1x128xf32>
    %65 = vector.shape_cast %64 : vector<1x128xf32> to vector<128xf32>
    %66 = arith.addf %63, %65 : vector<128xf32>
    %c0_39 = arith.constant 0 : index
    %c6_40 = arith.constant 6 : index
    %c0_41 = arith.constant 0 : index
    %67 = vector.load %arg3[%c0_39, %c6_40, %c0_41] : memref<2x16x128xf32, #tpu.memory_space<vmem>>, vector<1x1x128xf32>
    %68 = vector.shape_cast %67 : vector<1x1x128xf32> to vector<128xf32>
    %69 = vector.shape_cast %66 : vector<128xf32> to vector<1x1x128xf32>
    tpu.vector_store %arg3[%c0_39, %c6_40, %c0_41], %69 {strides = array<i32>} : memref<2x16x128xf32, #tpu.memory_space<vmem>>, vector<1x1x128xf32>,
    %c7 = arith.constant 7 : index
    %70 = memref.load %arg0[%c7] : memref<32xi32, #tpu.memory_space<smem>>
    %71 = arith.index_cast %70 : i32 to index
    %c0_42 = arith.constant 0 : index
    %72 = vector.load %arg1[%71, %c0_42] : memref<256x128xf32, #tpu.memory_space<vmem>>, vector<1x128xf32>
    %73 = vector.shape_cast %72 : vector<1x128xf32> to vector<128xf32>
    %c7_43 = arith.constant 7 : index
    %c0_44 = arith.constant 0 : index
    %74 = vector.load %arg2[%c7_43, %c0_44] : memref<16x128xf32, #tpu.memory_space<vmem>>, vector<1x128xf32>
    %75 = vector.shape_cast %74 : vector<1x128xf32> to vector<128xf32>
    %76 = arith.addf %73, %75 : vector<128xf32>
    %c0_45 = arith.constant 0 : index
    %c7_46 = arith.constant 7 : index
    %c0_47 = arith.constant 0 : index
    %77 = vector.load %arg3[%c0_45, %c7_46, %c0_47] : memref<2x16x128xf32, #tpu.memory_space<vmem>>, vector<1x1x128xf32>
    %78 = vector.shape_cast %77 : vector<1x1x128xf32> to vector<128xf32>
    %79 = vector.shape_cast %76 : vector<128xf32> to vector<1x1x128xf32>
    tpu.vector_store %arg3[%c0_45, %c7_46, %c0_47], %79 {strides = array<i32>} : memref<2x16x128xf32, #tpu.memory_space<vmem>>, vector<1x1x128xf32>,
    %c8 = arith.constant 8 : index
    %80 = memref.load %arg0[%c8] : memref<32xi32, #tpu.memory_space<smem>>
    %81 = arith.index_cast %80 : i32 to index
    %c0_48 = arith.constant 0 : index
    %82 = vector.load %arg1[%81, %c0_48] : memref<256x128xf32, #tpu.memory_space<vmem>>, vector<1x128xf32>
    %83 = vector.shape_cast %82 : vector<1x128xf32> to vector<128xf32>
    %c8_49 = arith.constant 8 : index
    %c0_50 = arith.constant 0 : index
    %84 = vector.load %arg2[%c8_49, %c0_50] : memref<16x128xf32, #tpu.memory_space<vmem>>, vector<1x128xf32>
    %85 = vector.shape_cast %84 : vector<1x128xf32> to vector<128xf32>
    %86 = arith.addf %83, %85 : vector<128xf32>
    %c0_51 = arith.constant 0 : index
    %c8_52 = arith.constant 8 : index
    %c0_53 = arith.constant 0 : index
    %87 = vector.load %arg3[%c0_51, %c8_52, %c0_53] : memref<2x16x128xf32, #tpu.memory_space<vmem>>, vector<1x1x128xf32>
    %88 = vector.shape_cast %87 : vector<1x1x128xf32> to vector<128xf32>
    %89 = vector.shape_cast %86 : vector<128xf32> to vector<1x1x128xf32>
    tpu.vector_store %arg3[%c0_51, %c8_52, %c0_53], %89 {strides = array<i32>} : memref<2x16x128xf32, #tpu.memory_space<vmem>>, vector<1x1x128xf32>,
    %c9 = arith.constant 9 : index
    %90 = memref.load %arg0[%c9] : memref<32xi32, #tpu.memory_space<smem>>
    %91 = arith.index_cast %90 : i32 to index
    %c0_54 = arith.constant 0 : index
    %92 = vector.load %arg1[%91, %c0_54] : memref<256x128xf32, #tpu.memory_space<vmem>>, vector<1x128xf32>
    %93 = vector.shape_cast %92 : vector<1x128xf32> to vector<128xf32>
    %c9_55 = arith.constant 9 : index
    %c0_56 = arith.constant 0 : index
    %94 = vector.load %arg2[%c9_55, %c0_56] : memref<16x128xf32, #tpu.memory_space<vmem>>, vector<1x128xf32>
    %95 = vector.shape_cast %94 : vector<1x128xf32> to vector<128xf32>
    %96 = arith.addf %93, %95 : vector<128xf32>
    %c0_57 = arith.constant 0 : index
    %c9_58 = arith.constant 9 : index
    %c0_59 = arith.constant 0 : index
    %97 = vector.load %arg3[%c0_57, %c9_58, %c0_59] : memref<2x16x128xf32, #tpu.memory_space<vmem>>, vector<1x1x128xf32>
    %98 = vector.shape_cast %97 : vector<1x1x128xf32> to vector<128xf32>
    %99 = vector.shape_cast %96 : vector<128xf32> to vector<1x1x128xf32>
    tpu.vector_store %arg3[%c0_57, %c9_58, %c0_59], %99 {strides = array<i32>} : memref<2x16x128xf32, #tpu.memory_space<vmem>>, vector<1x1x128xf32>,
    %c10 = arith.constant 10 : index
    %100 = memref.load %arg0[%c10] : memref<32xi32, #tpu.memory_space<smem>>
    %101 = arith.index_cast %100 : i32 to index
    %c0_60 = arith.constant 0 : index
    %102 = vector.load %arg1[%101, %c0_60] : memref<256x128xf32, #tpu.memory_space<vmem>>, vector<1x128xf32>
    %103 = vector.shape_cast %102 : vector<1x128xf32> to vector<128xf32>
    %c10_61 = arith.constant 10 : index
    %c0_62 = arith.constant 0 : index
    %104 = vector.load %arg2[%c10_61, %c0_62] : memref<16x128xf32, #tpu.memory_space<vmem>>, vector<1x128xf32>
    %105 = vector.shape_cast %104 : vector<1x128xf32> to vector<128xf32>
    %106 = arith.addf %103, %105 : vector<128xf32>
    %c0_63 = arith.constant 0 : index
    %c10_64 = arith.constant 10 : index
    %c0_65 = arith.constant 0 : index
    %107 = vector.load %arg3[%c0_63, %c10_64, %c0_65] : memref<2x16x128xf32, #tpu.memory_space<vmem>>, vector<1x1x128xf32>
    %108 = vector.shape_cast %107 : vector<1x1x128xf32> to vector<128xf32>
    %109 = vector.shape_cast %106 : vector<128xf32> to vector<1x1x128xf32>
    tpu.vector_store %arg3[%c0_63, %c10_64, %c0_65], %109 {strides = array<i32>} : memref<2x16x128xf32, #tpu.memory_space<vmem>>, vector<1x1x128xf32>,
    %c11 = arith.constant 11 : index
    %110 = memref.load %arg0[%c11] : memref<32xi32, #tpu.memory_space<smem>>
    %111 = arith.index_cast %110 : i32 to index
    %c0_66 = arith.constant 0 : index
    %112 = vector.load %arg1[%111, %c0_66] : memref<256x128xf32, #tpu.memory_space<vmem>>, vector<1x128xf32>
    %113 = vector.shape_cast %112 : vector<1x128xf32> to vector<128xf32>
    %c11_67 = arith.constant 11 : index
    %c0_68 = arith.constant 0 : index
    %114 = vector.load %arg2[%c11_67, %c0_68] : memref<16x128xf32, #tpu.memory_space<vmem>>, vector<1x128xf32>
    %115 = vector.shape_cast %114 : vector<1x128xf32> to vector<128xf32>
    %116 = arith.addf %113, %115 : vector<128xf32>
    %c0_69 = arith.constant 0 : index
    %c11_70 = arith.constant 11 : index
    %c0_71 = arith.constant 0 : index
    %117 = vector.load %arg3[%c0_69, %c11_70, %c0_71] : memref<2x16x128xf32, #tpu.memory_space<vmem>>, vector<1x1x128xf32>
    %118 = vector.shape_cast %117 : vector<1x1x128xf32> to vector<128xf32>
    %119 = vector.shape_cast %116 : vector<128xf32> to vector<1x1x128xf32>
    tpu.vector_store %arg3[%c0_69, %c11_70, %c0_71], %119 {strides = array<i32>} : memref<2x16x128xf32, #tpu.memory_space<vmem>>, vector<1x1x128xf32>,
    %c12 = arith.constant 12 : index
    %120 = memref.load %arg0[%c12] : memref<32xi32, #tpu.memory_space<smem>>
    %121 = arith.index_cast %120 : i32 to index
    %c0_72 = arith.constant 0 : index
    %122 = vector.load %arg1[%121, %c0_72] : memref<256x128xf32, #tpu.memory_space<vmem>>, vector<1x128xf32>
    %123 = vector.shape_cast %122 : vector<1x128xf32> to vector<128xf32>
    %c12_73 = arith.constant 12 : index
    %c0_74 = arith.constant 0 : index
    %124 = vector.load %arg2[%c12_73, %c0_74] : memref<16x128xf32, #tpu.memory_space<vmem>>, vector<1x128xf32>
    %125 = vector.shape_cast %124 : vector<1x128xf32> to vector<128xf32>
    %126 = arith.addf %123, %125 : vector<128xf32>
    %c0_75 = arith.constant 0 : index
    %c12_76 = arith.constant 12 : index
    %c0_77 = arith.constant 0 : index
    %127 = vector.load %arg3[%c0_75, %c12_76, %c0_77] : memref<2x16x128xf32, #tpu.memory_space<vmem>>, vector<1x1x128xf32>
    %128 = vector.shape_cast %127 : vector<1x1x128xf32> to vector<128xf32>
    %129 = vector.shape_cast %126 : vector<128xf32> to vector<1x1x128xf32>
    tpu.vector_store %arg3[%c0_75, %c12_76, %c0_77], %129 {strides = array<i32>} : memref<2x16x128xf32, #tpu.memory_space<vmem>>, vector<1x1x128xf32>,
    %c13 = arith.constant 13 : index
    %130 = memref.load %arg0[%c13] : memref<32xi32, #tpu.memory_space<smem>>
    %131 = arith.index_cast %130 : i32 to index
    %c0_78 = arith.constant 0 : index
    %132 = vector.load %arg1[%131, %c0_78] : memref<256x128xf32, #tpu.memory_space<vmem>>, vector<1x128xf32>
    %133 = vector.shape_cast %132 : vector<1x128xf32> to vector<128xf32>
    %c13_79 = arith.constant 13 : index
    %c0_80 = arith.constant 0 : index
    %134 = vector.load %arg2[%c13_79, %c0_80] : memref<16x128xf32, #tpu.memory_space<vmem>>, vector<1x128xf32>
    %135 = vector.shape_cast %134 : vector<1x128xf32> to vector<128xf32>
    %136 = arith.addf %133, %135 : vector<128xf32>
    %c0_81 = arith.constant 0 : index
    %c13_82 = arith.constant 13 : index
    %c0_83 = arith.constant 0 : index
    %137 = vector.load %arg3[%c0_81, %c13_82, %c0_83] : memref<2x16x128xf32, #tpu.memory_space<vmem>>, vector<1x1x128xf32>
    %138 = vector.shape_cast %137 : vector<1x1x128xf32> to vector<128xf32>
    %139 = vector.shape_cast %136 : vector<128xf32> to vector<1x1x128xf32>
    tpu.vector_store %arg3[%c0_81, %c13_82, %c0_83], %139 {strides = array<i32>} : memref<2x16x128xf32, #tpu.memory_space<vmem>>, vector<1x1x128xf32>,
    %c14 = arith.constant 14 : index
    %140 = memref.load %arg0[%c14] : memref<32xi32, #tpu.memory_space<smem>>
    %141 = arith.index_cast %140 : i32 to index
    %c0_84 = arith.constant 0 : index
    %142 = vector.load %arg1[%141, %c0_84] : memref<256x128xf32, #tpu.memory_space<vmem>>, vector<1x128xf32>
    %143 = vector.shape_cast %142 : vector<1x128xf32> to vector<128xf32>
    %c14_85 = arith.constant 14 : index
    %c0_86 = arith.constant 0 : index
    %144 = vector.load %arg2[%c14_85, %c0_86] : memref<16x128xf32, #tpu.memory_space<vmem>>, vector<1x128xf32>
    %145 = vector.shape_cast %144 : vector<1x128xf32> to vector<128xf32>
    %146 = arith.addf %143, %145 : vector<128xf32>
    %c0_87 = arith.constant 0 : index
    %c14_88 = arith.constant 14 : index
    %c0_89 = arith.constant 0 : index
    %147 = vector.load %arg3[%c0_87, %c14_88, %c0_89] : memref<2x16x128xf32, #tpu.memory_space<vmem>>, vector<1x1x128xf32>
    %148 = vector.shape_cast %147 : vector<1x1x128xf32> to vector<128xf32>
    %149 = vector.shape_cast %146 : vector<128xf32> to vector<1x1x128xf32>
    tpu.vector_store %arg3[%c0_87, %c14_88, %c0_89], %149 {strides = array<i32>} : memref<2x16x128xf32, #tpu.memory_space<vmem>>, vector<1x1x128xf32>,
    %c15 = arith.constant 15 : index
    %150 = memref.load %arg0[%c15] : memref<32xi32, #tpu.memory_space<smem>>
    %151 = arith.index_cast %150 : i32 to index
    %c0_90 = arith.constant 0 : index
    %152 = vector.load %arg1[%151, %c0_90] : memref<256x128xf32, #tpu.memory_space<vmem>>, vector<1x128xf32>
    %153 = vector.shape_cast %152 : vector<1x128xf32> to vector<128xf32>
    %c15_91 = arith.constant 15 : index
    %c0_92 = arith.constant 0 : index
    %154 = vector.load %arg2[%c15_91, %c0_92] : memref<16x128xf32, #tpu.memory_space<vmem>>, vector<1x128xf32>
    %155 = vector.shape_cast %154 : vector<1x128xf32> to vector<128xf32>
    %156 = arith.addf %153, %155 : vector<128xf32>
    %c0_93 = arith.constant 0 : index
    %c15_94 = arith.constant 15 : index
    %c0_95 = arith.constant 0 : index
    %157 = vector.load %arg3[%c0_93, %c15_94, %c0_95] : memref<2x16x128xf32, #tpu.memory_space<vmem>>, vector<1x1x128xf32>
    %158 = vector.shape_cast %157 : vector<1x1x128xf32> to vector<128xf32>
    %159 = vector.shape_cast %156 : vector<128xf32> to vector<1x1x128xf32>
    tpu.vector_store %arg3[%c0_93, %c15_94, %c0_95], %159 {strides = array<i32>} : memref<2x16x128xf32, #tpu.memory_space<vmem>>, vector<1x1x128xf32>,
    %c16 = arith.constant 16 : index
    %160 = memref.load %arg0[%c16] : memref<32xi32, #tpu.memory_space<smem>>
    %161 = arith.index_cast %160 : i32 to index
    %c0_96 = arith.constant 0 : index
    %162 = vector.load %arg1[%161, %c0_96] : memref<256x128xf32, #tpu.memory_space<vmem>>, vector<1x128xf32>
    %163 = vector.shape_cast %162 : vector<1x128xf32> to vector<128xf32>
    %c0_97 = arith.constant 0 : index
    %c0_98 = arith.constant 0 : index
    %164 = vector.load %arg2[%c0_97, %c0_98] : memref<16x128xf32, #tpu.memory_space<vmem>>, vector<1x128xf32>
    %165 = vector.shape_cast %164 : vector<1x128xf32> to vector<128xf32>
    %166 = arith.addf %163, %165 : vector<128xf32>
    %c1_99 = arith.constant 1 : index
    %c0_100 = arith.constant 0 : index
    %c0_101 = arith.constant 0 : index
    %167 = vector.load %arg3[%c1_99, %c0_100, %c0_101] : memref<2x16x128xf32, #tpu.memory_space<vmem>>, vector<1x1x128xf32>
    %168 = vector.shape_cast %167 : vector<1x1x128xf32> to vector<128xf32>
    %169 = vector.shape_cast %166 : vector<128xf32> to vector<1x1x128xf32>
    tpu.vector_store %arg3[%c1_99, %c0_100, %c0_101], %169 {strides = array<i32>} : memref<2x16x128xf32, #tpu.memory_space<vmem>>, vector<1x1x128xf32>,
    %c17 = arith.constant 17 : index
    %170 = memref.load %arg0[%c17] : memref<32xi32, #tpu.memory_space<smem>>
    %171 = arith.index_cast %170 : i32 to index
    %c0_102 = arith.constant 0 : index
    %172 = vector.load %arg1[%171, %c0_102] : memref<256x128xf32, #tpu.memory_space<vmem>>, vector<1x128xf32>
    %173 = vector.shape_cast %172 : vector<1x128xf32> to vector<128xf32>
    %c1_103 = arith.constant 1 : index
    %c0_104 = arith.constant 0 : index
    %174 = vector.load %arg2[%c1_103, %c0_104] : memref<16x128xf32, #tpu.memory_space<vmem>>, vector<1x128xf32>
    %175 = vector.shape_cast %174 : vector<1x128xf32> to vector<128xf32>
    %176 = arith.addf %173, %175 : vector<128xf32>
    %c1_105 = arith.constant 1 : index
    %c1_106 = arith.constant 1 : index
    %c0_107 = arith.constant 0 : index
    %177 = vector.load %arg3[%c1_105, %c1_106, %c0_107] : memref<2x16x128xf32, #tpu.memory_space<vmem>>, vector<1x1x128xf32>
    %178 = vector.shape_cast %177 : vector<1x1x128xf32> to vector<128xf32>
    %179 = vector.shape_cast %176 : vector<128xf32> to vector<1x1x128xf32>
    tpu.vector_store %arg3[%c1_105, %c1_106, %c0_107], %179 {strides = array<i32>} : memref<2x16x128xf32, #tpu.memory_space<vmem>>, vector<1x1x128xf32>,
    %c18 = arith.constant 18 : index
    %180 = memref.load %arg0[%c18] : memref<32xi32, #tpu.memory_space<smem>>
    %181 = arith.index_cast %180 : i32 to index
    %c0_108 = arith.constant 0 : index
    %182 = vector.load %arg1[%181, %c0_108] : memref<256x128xf32, #tpu.memory_space<vmem>>, vector<1x128xf32>
    %183 = vector.shape_cast %182 : vector<1x128xf32> to vector<128xf32>
    %c2_109 = arith.constant 2 : index
    %c0_110 = arith.constant 0 : index
    %184 = vector.load %arg2[%c2_109, %c0_110] : memref<16x128xf32, #tpu.memory_space<vmem>>, vector<1x128xf32>
    %185 = vector.shape_cast %184 : vector<1x128xf32> to vector<128xf32>
    %186 = arith.addf %183, %185 : vector<128xf32>
    %c1_111 = arith.constant 1 : index
    %c2_112 = arith.constant 2 : index
    %c0_113 = arith.constant 0 : index
    %187 = vector.load %arg3[%c1_111, %c2_112, %c0_113] : memref<2x16x128xf32, #tpu.memory_space<vmem>>, vector<1x1x128xf32>
    %188 = vector.shape_cast %187 : vector<1x1x128xf32> to vector<128xf32>
    %189 = vector.shape_cast %186 : vector<128xf32> to vector<1x1x128xf32>
    tpu.vector_store %arg3[%c1_111, %c2_112, %c0_113], %189 {strides = array<i32>} : memref<2x16x128xf32, #tpu.memory_space<vmem>>, vector<1x1x128xf32>,
    %c19 = arith.constant 19 : index
    %190 = memref.load %arg0[%c19] : memref<32xi32, #tpu.memory_space<smem>>
    %191 = arith.index_cast %190 : i32 to index
    %c0_114 = arith.constant 0 : index
    %192 = vector.load %arg1[%191, %c0_114] : memref<256x128xf32, #tpu.memory_space<vmem>>, vector<1x128xf32>
    %193 = vector.shape_cast %192 : vector<1x128xf32> to vector<128xf32>
    %c3_115 = arith.constant 3 : index
    %c0_116 = arith.constant 0 : index
    %194 = vector.load %arg2[%c3_115, %c0_116] : memref<16x128xf32, #tpu.memory_space<vmem>>, vector<1x128xf32>
    %195 = vector.shape_cast %194 : vector<1x128xf32> to vector<128xf32>
    %196 = arith.addf %193, %195 : vector<128xf32>
    %c1_117 = arith.constant 1 : index
    %c3_118 = arith.constant 3 : index
    %c0_119 = arith.constant 0 : index
    %197 = vector.load %arg3[%c1_117, %c3_118, %c0_119] : memref<2x16x128xf32, #tpu.memory_space<vmem>>, vector<1x1x128xf32>
    %198 = vector.shape_cast %197 : vector<1x1x128xf32> to vector<128xf32>
    %199 = vector.shape_cast %196 : vector<128xf32> to vector<1x1x128xf32>
    tpu.vector_store %arg3[%c1_117, %c3_118, %c0_119], %199 {strides = array<i32>} : memref<2x16x128xf32, #tpu.memory_space<vmem>>, vector<1x1x128xf32>,
    %c20 = arith.constant 20 : index
    %200 = memref.load %arg0[%c20] : memref<32xi32, #tpu.memory_space<smem>>
    %201 = arith.index_cast %200 : i32 to index
    %c0_120 = arith.constant 0 : index
    %202 = vector.load %arg1[%201, %c0_120] : memref<256x128xf32, #tpu.memory_space<vmem>>, vector<1x128xf32>
    %203 = vector.shape_cast %202 : vector<1x128xf32> to vector<128xf32>
    %c4_121 = arith.constant 4 : index
    %c0_122 = arith.constant 0 : index
    %204 = vector.load %arg2[%c4_121, %c0_122] : memref<16x128xf32, #tpu.memory_space<vmem>>, vector<1x128xf32>
    %205 = vector.shape_cast %204 : vector<1x128xf32> to vector<128xf32>
    %206 = arith.addf %203, %205 : vector<128xf32>
    %c1_123 = arith.constant 1 : index
    %c4_124 = arith.constant 4 : index
    %c0_125 = arith.constant 0 : index
    %207 = vector.load %arg3[%c1_123, %c4_124, %c0_125] : memref<2x16x128xf32, #tpu.memory_space<vmem>>, vector<1x1x128xf32>
    %208 = vector.shape_cast %207 : vector<1x1x128xf32> to vector<128xf32>
    %209 = vector.shape_cast %206 : vector<128xf32> to vector<1x1x128xf32>
    tpu.vector_store %arg3[%c1_123, %c4_124, %c0_125], %209 {strides = array<i32>} : memref<2x16x128xf32, #tpu.memory_space<vmem>>, vector<1x1x128xf32>,
    %c21 = arith.constant 21 : index
    %210 = memref.load %arg0[%c21] : memref<32xi32, #tpu.memory_space<smem>>
    %211 = arith.index_cast %210 : i32 to index
    %c0_126 = arith.constant 0 : index
    %212 = vector.load %arg1[%211, %c0_126] : memref<256x128xf32, #tpu.memory_space<vmem>>, vector<1x128xf32>
    %213 = vector.shape_cast %212 : vector<1x128xf32> to vector<128xf32>
    %c5_127 = arith.constant 5 : index
    %c0_128 = arith.constant 0 : index
    %214 = vector.load %arg2[%c5_127, %c0_128] : memref<16x128xf32, #tpu.memory_space<vmem>>, vector<1x128xf32>
    %215 = vector.shape_cast %214 : vector<1x128xf32> to vector<128xf32>
    %216 = arith.addf %213, %215 : vector<128xf32>
    %c1_129 = arith.constant 1 : index
    %c5_130 = arith.constant 5 : index
    %c0_131 = arith.constant 0 : index
    %217 = vector.load %arg3[%c1_129, %c5_130, %c0_131] : memref<2x16x128xf32, #tpu.memory_space<vmem>>, vector<1x1x128xf32>
    %218 = vector.shape_cast %217 : vector<1x1x128xf32> to vector<128xf32>
    %219 = vector.shape_cast %216 : vector<128xf32> to vector<1x1x128xf32>
    tpu.vector_store %arg3[%c1_129, %c5_130, %c0_131], %219 {strides = array<i32>} : memref<2x16x128xf32, #tpu.memory_space<vmem>>, vector<1x1x128xf32>,
    %c22 = arith.constant 22 : index
    %220 = memref.load %arg0[%c22] : memref<32xi32, #tpu.memory_space<smem>>
    %221 = arith.index_cast %220 : i32 to index
    %c0_132 = arith.constant 0 : index
    %222 = vector.load %arg1[%221, %c0_132] : memref<256x128xf32, #tpu.memory_space<vmem>>, vector<1x128xf32>
    %223 = vector.shape_cast %222 : vector<1x128xf32> to vector<128xf32>
    %c6_133 = arith.constant 6 : index
    %c0_134 = arith.constant 0 : index
    %224 = vector.load %arg2[%c6_133, %c0_134] : memref<16x128xf32, #tpu.memory_space<vmem>>, vector<1x128xf32>
    %225 = vector.shape_cast %224 : vector<1x128xf32> to vector<128xf32>
    %226 = arith.addf %223, %225 : vector<128xf32>
    %c1_135 = arith.constant 1 : index
    %c6_136 = arith.constant 6 : index
    %c0_137 = arith.constant 0 : index
    %227 = vector.load %arg3[%c1_135, %c6_136, %c0_137] : memref<2x16x128xf32, #tpu.memory_space<vmem>>, vector<1x1x128xf32>
    %228 = vector.shape_cast %227 : vector<1x1x128xf32> to vector<128xf32>
    %229 = vector.shape_cast %226 : vector<128xf32> to vector<1x1x128xf32>
    tpu.vector_store %arg3[%c1_135, %c6_136, %c0_137], %229 {strides = array<i32>} : memref<2x16x128xf32, #tpu.memory_space<vmem>>, vector<1x1x128xf32>,
    %c23 = arith.constant 23 : index
    %230 = memref.load %arg0[%c23] : memref<32xi32, #tpu.memory_space<smem>>
    %231 = arith.index_cast %230 : i32 to index
    %c0_138 = arith.constant 0 : index
    %232 = vector.load %arg1[%231, %c0_138] : memref<256x128xf32, #tpu.memory_space<vmem>>, vector<1x128xf32>
    %233 = vector.shape_cast %232 : vector<1x128xf32> to vector<128xf32>
    %c7_139 = arith.constant 7 : index
    %c0_140 = arith.constant 0 : index
    %234 = vector.load %arg2[%c7_139, %c0_140] : memref<16x128xf32, #tpu.memory_space<vmem>>, vector<1x128xf32>
    %235 = vector.shape_cast %234 : vector<1x128xf32> to vector<128xf32>
    %236 = arith.addf %233, %235 : vector<128xf32>
    %c1_141 = arith.constant 1 : index
    %c7_142 = arith.constant 7 : index
    %c0_143 = arith.constant 0 : index
    %237 = vector.load %arg3[%c1_141, %c7_142, %c0_143] : memref<2x16x128xf32, #tpu.memory_space<vmem>>, vector<1x1x128xf32>
    %238 = vector.shape_cast %237 : vector<1x1x128xf32> to vector<128xf32>
    %239 = vector.shape_cast %236 : vector<128xf32> to vector<1x1x128xf32>
    tpu.vector_store %arg3[%c1_141, %c7_142, %c0_143], %239 {strides = array<i32>} : memref<2x16x128xf32, #tpu.memory_space<vmem>>, vector<1x1x128xf32>,
    %c24 = arith.constant 24 : index
    %240 = memref.load %arg0[%c24] : memref<32xi32, #tpu.memory_space<smem>>
    %241 = arith.index_cast %240 : i32 to index
    %c0_144 = arith.constant 0 : index
    %242 = vector.load %arg1[%241, %c0_144] : memref<256x128xf32, #tpu.memory_space<vmem>>, vector<1x128xf32>
    %243 = vector.shape_cast %242 : vector<1x128xf32> to vector<128xf32>
    %c8_145 = arith.constant 8 : index
    %c0_146 = arith.constant 0 : index
    %244 = vector.load %arg2[%c8_145, %c0_146] : memref<16x128xf32, #tpu.memory_space<vmem>>, vector<1x128xf32>
    %245 = vector.shape_cast %244 : vector<1x128xf32> to vector<128xf32>
    %246 = arith.addf %243, %245 : vector<128xf32>
    %c1_147 = arith.constant 1 : index
    %c8_148 = arith.constant 8 : index
    %c0_149 = arith.constant 0 : index
    %247 = vector.load %arg3[%c1_147, %c8_148, %c0_149] : memref<2x16x128xf32, #tpu.memory_space<vmem>>, vector<1x1x128xf32>
    %248 = vector.shape_cast %247 : vector<1x1x128xf32> to vector<128xf32>
    %249 = vector.shape_cast %246 : vector<128xf32> to vector<1x1x128xf32>
    tpu.vector_store %arg3[%c1_147, %c8_148, %c0_149], %249 {strides = array<i32>} : memref<2x16x128xf32, #tpu.memory_space<vmem>>, vector<1x1x128xf32>,
    %c25 = arith.constant 25 : index
    %250 = memref.load %arg0[%c25] : memref<32xi32, #tpu.memory_space<smem>>
    %251 = arith.index_cast %250 : i32 to index
    %c0_150 = arith.constant 0 : index
    %252 = vector.load %arg1[%251, %c0_150] : memref<256x128xf32, #tpu.memory_space<vmem>>, vector<1x128xf32>
    %253 = vector.shape_cast %252 : vector<1x128xf32> to vector<128xf32>
    %c9_151 = arith.constant 9 : index
    %c0_152 = arith.constant 0 : index
    %254 = vector.load %arg2[%c9_151, %c0_152] : memref<16x128xf32, #tpu.memory_space<vmem>>, vector<1x128xf32>
    %255 = vector.shape_cast %254 : vector<1x128xf32> to vector<128xf32>
    %256 = arith.addf %253, %255 : vector<128xf32>
    %c1_153 = arith.constant 1 : index
    %c9_154 = arith.constant 9 : index
    %c0_155 = arith.constant 0 : index
    %257 = vector.load %arg3[%c1_153, %c9_154, %c0_155] : memref<2x16x128xf32, #tpu.memory_space<vmem>>, vector<1x1x128xf32>
    %258 = vector.shape_cast %257 : vector<1x1x128xf32> to vector<128xf32>
    %259 = vector.shape_cast %256 : vector<128xf32> to vector<1x1x128xf32>
    tpu.vector_store %arg3[%c1_153, %c9_154, %c0_155], %259 {strides = array<i32>} : memref<2x16x128xf32, #tpu.memory_space<vmem>>, vector<1x1x128xf32>,
    %c26 = arith.constant 26 : index
    %260 = memref.load %arg0[%c26] : memref<32xi32, #tpu.memory_space<smem>>
    %261 = arith.index_cast %260 : i32 to index
    %c0_156 = arith.constant 0 : index
    %262 = vector.load %arg1[%261, %c0_156] : memref<256x128xf32, #tpu.memory_space<vmem>>, vector<1x128xf32>
    %263 = vector.shape_cast %262 : vector<1x128xf32> to vector<128xf32>
    %c10_157 = arith.constant 10 : index
    %c0_158 = arith.constant 0 : index
    %264 = vector.load %arg2[%c10_157, %c0_158] : memref<16x128xf32, #tpu.memory_space<vmem>>, vector<1x128xf32>
    %265 = vector.shape_cast %264 : vector<1x128xf32> to vector<128xf32>
    %266 = arith.addf %263, %265 : vector<128xf32>
    %c1_159 = arith.constant 1 : index
    %c10_160 = arith.constant 10 : index
    %c0_161 = arith.constant 0 : index
    %267 = vector.load %arg3[%c1_159, %c10_160, %c0_161] : memref<2x16x128xf32, #tpu.memory_space<vmem>>, vector<1x1x128xf32>
    %268 = vector.shape_cast %267 : vector<1x1x128xf32> to vector<128xf32>
    %269 = vector.shape_cast %266 : vector<128xf32> to vector<1x1x128xf32>
    tpu.vector_store %arg3[%c1_159, %c10_160, %c0_161], %269 {strides = array<i32>} : memref<2x16x128xf32, #tpu.memory_space<vmem>>, vector<1x1x128xf32>,
    %c27 = arith.constant 27 : index
    %270 = memref.load %arg0[%c27] : memref<32xi32, #tpu.memory_space<smem>>
    %271 = arith.index_cast %270 : i32 to index
    %c0_162 = arith.constant 0 : index
    %272 = vector.load %arg1[%271, %c0_162] : memref<256x128xf32, #tpu.memory_space<vmem>>, vector<1x128xf32>
    %273 = vector.shape_cast %272 : vector<1x128xf32> to vector<128xf32>
    %c11_163 = arith.constant 11 : index
    %c0_164 = arith.constant 0 : index
    %274 = vector.load %arg2[%c11_163, %c0_164] : memref<16x128xf32, #tpu.memory_space<vmem>>, vector<1x128xf32>
    %275 = vector.shape_cast %274 : vector<1x128xf32> to vector<128xf32>
    %276 = arith.addf %273, %275 : vector<128xf32>
    %c1_165 = arith.constant 1 : index
    %c11_166 = arith.constant 11 : index
    %c0_167 = arith.constant 0 : index
    %277 = vector.load %arg3[%c1_165, %c11_166, %c0_167] : memref<2x16x128xf32, #tpu.memory_space<vmem>>, vector<1x1x128xf32>
    %278 = vector.shape_cast %277 : vector<1x1x128xf32> to vector<128xf32>
    %279 = vector.shape_cast %276 : vector<128xf32> to vector<1x1x128xf32>
    tpu.vector_store %arg3[%c1_165, %c11_166, %c0_167], %279 {strides = array<i32>} : memref<2x16x128xf32, #tpu.memory_space<vmem>>, vector<1x1x128xf32>,
    %c28 = arith.constant 28 : index
    %280 = memref.load %arg0[%c28] : memref<32xi32, #tpu.memory_space<smem>>
    %281 = arith.index_cast %280 : i32 to index
    %c0_168 = arith.constant 0 : index
    %282 = vector.load %arg1[%281, %c0_168] : memref<256x128xf32, #tpu.memory_space<vmem>>, vector<1x128xf32>
    %283 = vector.shape_cast %282 : vector<1x128xf32> to vector<128xf32>
    %c12_169 = arith.constant 12 : index
    %c0_170 = arith.constant 0 : index
    %284 = vector.load %arg2[%c12_169, %c0_170] : memref<16x128xf32, #tpu.memory_space<vmem>>, vector<1x128xf32>
    %285 = vector.shape_cast %284 : vector<1x128xf32> to vector<128xf32>
    %286 = arith.addf %283, %285 : vector<128xf32>
    %c1_171 = arith.constant 1 : index
    %c12_172 = arith.constant 12 : index
    %c0_173 = arith.constant 0 : index
    %287 = vector.load %arg3[%c1_171, %c12_172, %c0_173] : memref<2x16x128xf32, #tpu.memory_space<vmem>>, vector<1x1x128xf32>
    %288 = vector.shape_cast %287 : vector<1x1x128xf32> to vector<128xf32>
    %289 = vector.shape_cast %286 : vector<128xf32> to vector<1x1x128xf32>
    tpu.vector_store %arg3[%c1_171, %c12_172, %c0_173], %289 {strides = array<i32>} : memref<2x16x128xf32, #tpu.memory_space<vmem>>, vector<1x1x128xf32>,
    %c29 = arith.constant 29 : index
    %290 = memref.load %arg0[%c29] : memref<32xi32, #tpu.memory_space<smem>>
    %291 = arith.index_cast %290 : i32 to index
    %c0_174 = arith.constant 0 : index
    %292 = vector.load %arg1[%291, %c0_174] : memref<256x128xf32, #tpu.memory_space<vmem>>, vector<1x128xf32>
    %293 = vector.shape_cast %292 : vector<1x128xf32> to vector<128xf32>
    %c13_175 = arith.constant 13 : index
    %c0_176 = arith.constant 0 : index
    %294 = vector.load %arg2[%c13_175, %c0_176] : memref<16x128xf32, #tpu.memory_space<vmem>>, vector<1x128xf32>
    %295 = vector.shape_cast %294 : vector<1x128xf32> to vector<128xf32>
    %296 = arith.addf %293, %295 : vector<128xf32>
    %c1_177 = arith.constant 1 : index
    %c13_178 = arith.constant 13 : index
    %c0_179 = arith.constant 0 : index
    %297 = vector.load %arg3[%c1_177, %c13_178, %c0_179] : memref<2x16x128xf32, #tpu.memory_space<vmem>>, vector<1x1x128xf32>
    %298 = vector.shape_cast %297 : vector<1x1x128xf32> to vector<128xf32>
    %299 = vector.shape_cast %296 : vector<128xf32> to vector<1x1x128xf32>
    tpu.vector_store %arg3[%c1_177, %c13_178, %c0_179], %299 {strides = array<i32>} : memref<2x16x128xf32, #tpu.memory_space<vmem>>, vector<1x1x128xf32>,
    %c30 = arith.constant 30 : index
    %300 = memref.load %arg0[%c30] : memref<32xi32, #tpu.memory_space<smem>>
    %301 = arith.index_cast %300 : i32 to index
    %c0_180 = arith.constant 0 : index
    %302 = vector.load %arg1[%301, %c0_180] : memref<256x128xf32, #tpu.memory_space<vmem>>, vector<1x128xf32>
    %303 = vector.shape_cast %302 : vector<1x128xf32> to vector<128xf32>
    %c14_181 = arith.constant 14 : index
    %c0_182 = arith.constant 0 : index
    %304 = vector.load %arg2[%c14_181, %c0_182] : memref<16x128xf32, #tpu.memory_space<vmem>>, vector<1x128xf32>
    %305 = vector.shape_cast %304 : vector<1x128xf32> to vector<128xf32>
    %306 = arith.addf %303, %305 : vector<128xf32>
    %c1_183 = arith.constant 1 : index
    %c14_184 = arith.constant 14 : index
    %c0_185 = arith.constant 0 : index
    %307 = vector.load %arg3[%c1_183, %c14_184, %c0_185] : memref<2x16x128xf32, #tpu.memory_space<vmem>>, vector<1x1x128xf32>
    %308 = vector.shape_cast %307 : vector<1x1x128xf32> to vector<128xf32>
    %309 = vector.shape_cast %306 : vector<128xf32> to vector<1x1x128xf32>
    tpu.vector_store %arg3[%c1_183, %c14_184, %c0_185], %309 {strides = array<i32>} : memref<2x16x128xf32, #tpu.memory_space<vmem>>, vector<1x1x128xf32>,
    %c31 = arith.constant 31 : index
    %310 = memref.load %arg0[%c31] : memref<32xi32, #tpu.memory_space<smem>>
    %311 = arith.index_cast %310 : i32 to index
    %c0_186 = arith.constant 0 : index
    %312 = vector.load %arg1[%311, %c0_186] : memref<256x128xf32, #tpu.memory_space<vmem>>, vector<1x128xf32>
    %313 = vector.shape_cast %312 : vector<1x128xf32> to vector<128xf32>
    %c15_187 = arith.constant 15 : index
    %c0_188 = arith.constant 0 : index
    %314 = vector.load %arg2[%c15_187, %c0_188] : memref<16x128xf32, #tpu.memory_space<vmem>>, vector<1x128xf32>
    %315 = vector.shape_cast %314 : vector<1x128xf32> to vector<128xf32>
    %316 = arith.addf %313, %315 : vector<128xf32>
    %c1_189 = arith.constant 1 : index
    %c15_190 = arith.constant 15 : index
    %c0_191 = arith.constant 0 : index
    %317 = vector.load %arg3[%c1_189, %c15_190, %c0_191] : memref<2x16x128xf32, #tpu.memory_space<vmem>>, vector<1x1x128xf32>
    %318 = vector.shape_cast %317 : vector<1x1x128xf32> to vector<128xf32>
    %319 = vector.shape_cast %316 : vector<128xf32> to vector<1x1x128xf32>
    tpu.vector_store %arg3[%c1_189, %c15_190, %c0_191], %319 {strides = array<i32>} : memref<2x16x128xf32, #tpu.memory_space<vmem>>, vector<1x1x128xf32>,
    return
  }
}

</mosaic_0001>

<llo_original>
// kernel: _lambda_.5
$region0: #{_lambda_.5}
  #allocation0 [shape = 'u32[]', space=smem, size = 0x4, offset = 0x4, fixed_abs, tag = 'smem constant byte address 0x4 - core index']
  #allocation1 [shape = 'u32[144,128]{1,0:T(1,128)}', space=vmem, size = 0x12000, scoped, tag = 'internal scratch']
  %s0 = inlined_call_operand.vmem [shape: f32[32,128], index: 0, kind: input, shape index: {}]
  %s1 = inlined_call_operand.vmem [shape: bf16[128,256], index: 1, kind: input, shape index: {}]
  %s2 = inlined_call_operand.vmem [shape: f32[32,256], index: 2, kind: output, shape index: {}]
  %s3 = sld [smem:[#allocation0]]
  $region116: #{_lambda_.5} parent=0
    _
  %s5 = ssub.s32 1, %s3
  %s6 = scalar_select 0, %s5, %s3
  $region1: #{_lambda_.5} parent=0
    #allocation2 [shape = 'u8[65536]{0}', space=vmem, size = 0x10000, scoped, tag = 'input window, operand 1']
    #allocation3 [shape = 'u8[32768]{0}', space=vmem, size = 0x8000, scoped, tag = 'output window, operand 0']
    loop: start=0, step=1, limit=4
    $region2: #{_lambda_.5} parent=1 // loop_pre_header
      _
    $region3: #{_lambda_.5} parent=1 // loop_header
      %s8 = sphi 0, %s12
      %p9 = scmp.ge.s32.totalorder %s8, 4
      %s16 = sphi 0, %s16
      %s18 = sphi 0, %s16
      %s19 = sphi 0, %s18
      %s33 = sphi 0, %s19
      %s39 = sphi 0, %s41
      %s42 = sphi 0, %s39
      %s43 = sphi 0, %s42
      %s59 = sphi 0, %s43
      %s65 = sphi 0, %s67
      %s68 = sphi 0, %s65
      %s69 = sphi 0, %s68
      %s85 = sphi 0, %s69
    $region4: #{_lambda_.5} parent=1 // loop_header_branch
      %11 = sbr.rel (%p9) target = $region8
    $region5: #{_lambda_.5} parent=1 // loop_body
      %s13 = ssub.s32 %s8, 1
      %s14 = ssub.s32 %s8, 2
      %s15 = sadd.s32 %s8, 1
      %s17 = sadd.s32 %s16, 1
      %p20 = scmp.eq.s32.totalorder %s8, 1
      %p21 = scmp.ne.s32.totalorder %s16, %s18
      %p22 = scmp.eq.s32.totalorder %s8, 0
      %p23 = por %p21, %p22
      %p24 = scmp.ne.s32.totalorder %s16, %s18
      %p25 = scmp.eq.s32.totalorder %s13, 1
      %p26 = por %p24, %p25
      %p27 = scmp.ne.s32.totalorder %s18, %s19
      %p28 = scmp.eq.s32.totalorder %s13, 0
      %p29 = por %p27, %p28
      %p30 = scmp.ne.s32.totalorder %s18, %s19
      %p31 = scmp.eq.s32.totalorder %s14, 1
      %p32 = por %p30, %p31
      %p34 = scmp.ne.s32.totalorder %s19, %s33
      %p35 = scmp.eq.s32.totalorder %s14, 0
      %p36 = por %p34, %p35
      %s37 = ssub.s32 %s8, %s15
      %p38 = scmp.eq.s32.totalorder %s37, 0
      %s40 = sadd.s32 %s39, 1
      %s41 = scalar_select %p38, %s39, %s40
      %p44 = pneg %p38
      %p45 = scmp.eq.s32.totalorder %s8, 1
      %p46 = por %p44, %p45
      %p47 = scmp.ne.s32.totalorder %s39, %s42
      %p48 = scmp.eq.s32.totalorder %s8, 0
      %p49 = por %p47, %p48
      %p50 = scmp.ne.s32.totalorder %s39, %s42
      %p51 = scmp.eq.s32.totalorder %s13, 1
      %p52 = por %p50, %p51
      %p53 = scmp.ne.s32.totalorder %s42, %s43
      %p54 = scmp.eq.s32.totalorder %s13, 0
      %p55 = por %p53, %p54
      %p56 = scmp.ne.s32.totalorder %s42, %s43
      %p57 = scmp.eq.s32.totalorder %s14, 1
      %p58 = por %p56, %p57
      %p60 = scmp.ne.s32.totalorder %s43, %s59
      %p61 = scmp.eq.s32.totalorder %s14, 0
      %p62 = por %p60, %p61
      %s63 = ssub.s32 %s8, %s15
      %p64 = scmp.eq.s32.totalorder %s63, 0
      %s66 = sadd.s32 %s65, 1
      %s67 = scalar_select %p64, %s65, %s66
      %p70 = pneg %p64
      %p71 = scmp.eq.s32.totalorder %s8, 1
      %p72 = por %p70, %p71
      %p73 = scmp.ne.s32.totalorder %s65, %s68
      %p74 = scmp.eq.s32.totalorder %s8, 0
      %p75 = por %p73, %p74
      %p76 = scmp.ne.s32.totalorder %s65, %s68
      %p77 = scmp.eq.s32.totalorder %s13, 1
      %p78 = por %p76, %p77
      %p79 = scmp.ne.s32.totalorder %s68, %s69
      %p80 = scmp.eq.s32.totalorder %s13, 0
      %p81 = por %p79, %p80
      %p82 = scmp.ne.s32.totalorder %s68, %s69
      %p83 = scmp.eq.s32.totalorder %s14, 1
      %p84 = por %p82, %p83
      %p86 = scmp.ne.s32.totalorder %s69, %s85
      %p87 = scmp.eq.s32.totalorder %s14, 0
      %p88 = por %p86, %p87
      %p89 = scmp.le.s32.totalorder 1, %s8
      %p90 = scmp.lt.s32.totalorder %s8, 3
      %p91 = pnand %p89, %p90
      %p92 = pneg %p91
      // Predicated region
      $region9: #{_lambda_.5} parent=5 // pred_check
        _
      $region10: #{_lambda_.5} parent=5 // pred_check_branch
        %94 = sbr.rel (%p91) target = $region12
      $region11: #{_lambda_.5} parent=5 // pred_region
        %s95 = ssub.s32 %s8, 1
        // Predicated region
        $region13: #{_lambda_.5} parent=11 // pred_check
          %p96 = pneg %p29
        $region14: #{_lambda_.5} parent=11 // pred_check_branch
          %98 = sbr.rel (%p96) target = $region16
        $region15: #{_lambda_.5} parent=11 // pred_region
          _
        $region16: #{_lambda_.5} parent=11 // pred_fallthru
          _
      $region12: #{_lambda_.5} parent=5 // pred_fallthru
        _
      %p99 = scmp.lt.s32.totalorder %s8, 2
      // Predicated region
      $region17: #{_lambda_.5} parent=5 // pred_check
        %p100 = pneg %p99
      $region18: #{_lambda_.5} parent=5 // pred_check_branch
        %102 = sbr.rel (%p100) target = $region20
      $region19: #{_lambda_.5} parent=5 // pred_region
        // Predicated region
        $region21: #{_lambda_.5} parent=19 // pred_check
          %p103 = pneg %p49
        $region22: #{_lambda_.5} parent=19 // pred_check_branch
          %105 = sbr.rel (%p103) target = $region24
        $region23: #{_lambda_.5} parent=19 // pred_region
          %s106 = sand.u32 %s39, 1
          %s107 = sand.u32 %s39, 1
          %s108 = smul.addr %s107, 64
          %s109 = scalar_lea.vmem [#allocation2], %s108
          %s110 = smul.addr %s8, 4
          %s111 = scalar_lea.vmem %s1, %s110
          // Predicated region
          $region25: #{_lambda_.5} parent=23 // pred_check
            _
          $region26: #{_lambda_.5} parent=23 // pred_check_branch
            %113 = sbr.rel (0) target = $region28
          $region27: #{_lambda_.5} parent=23 // pred_region
            // Predicated region
            $region29: #{_lambda_.5} parent=27 // pred_check
              _
            $region30: #{_lambda_.5} parent=27 // pred_check_branch
              %115 = sbr.rel target = $region32
            $region31: #{_lambda_.5} parent=27 // pred_region
              // Predicated region
              $region44: #{_lambda_.5} parent=31 // pred_check
                _
              $region45: #{_lambda_.5} parent=31 // pred_check_branch
                %161 = sbr.rel (0) target = $region47
              $region46: #{_lambda_.5} parent=31 // pred_region
                loop: start=0, step=1, limit=1
                $region48: #{_lambda_.5} parent=46 // loop_pre_header
                  _
                $region49: #{_lambda_.5} parent=46 // loop_header
                  %s163 = sphi 0, %s167
                  %p164 = scmp.ge.s32.totalorder %s163, 1
                  %s168 = sphi %s111, %s111
                  %s169 = sphi %s109, %s109
                $region50: #{_lambda_.5} parent=46 // loop_header_branch
                  %166 = sbr.rel (%p164) target = $region54
                $region51: #{_lambda_.5} parent=46 // loop_body
                  _
                $region52: #{_lambda_.5} parent=46 // loop_footer
                  %s167 = sadd.s32 1, %s163
                $region53: #{_lambda_.5} parent=46 // loop_footer_branch
                  %162 = sbr.rel target = $region49
                $region54: #{_lambda_.5} parent=46 // loop_exit
                  _
                %s171 = ssub.s32 16, 1
                loop: start=0, step=1, limit=1
                $region55: #{_lambda_.5} parent=46 // loop_pre_header
                  _
                $region56: #{_lambda_.5} parent=46 // loop_header
                  %s173 = sphi 0, %s177
                  %p174 = scmp.ge.s32.totalorder %s173, 1
                  %s178 = sphi %s111, %s111
                  %s179 = sphi %s109, %s109
                $region57: #{_lambda_.5} parent=46 // loop_header_branch
                  %176 = sbr.rel (%p174) target = $region61
                $region58: #{_lambda_.5} parent=46 // loop_body
                  %v180 = vld [vmem:[%s178] sm:%s171]
                  %181 = vst [vmem:[%s179] sm:%s171] %v180
                  %v182 = vld [vmem:[%s178 + $0x8] sm:%s171]
                  %183 = vst [vmem:[%s179 + $0x4] sm:%s171] %v182
                  %v184 = vld [vmem:[%s178 + $0x10] sm:%s171]
                  %185 = vst [vmem:[%s179 + $0x8] sm:%s171] %v184
                  %v186 = vld [vmem:[%s178 + $0x18] sm:%s171]
                  %187 = vst [vmem:[%s179 + $0xc] sm:%s171] %v186
                  %v188 = vld [vmem:[%s178 + $0x20] sm:%s171]
                  %189 = vst [vmem:[%s179 + $0x10] sm:%s171] %v188
                  %v190 = vld [vmem:[%s178 + $0x28] sm:%s171]
                  %191 = vst [vmem:[%s179 + $0x14] sm:%s171] %v190
                  %v192 = vld [vmem:[%s178 + $0x30] sm:%s171]
                  %193 = vst [vmem:[%s179 + $0x18] sm:%s171] %v192
                  %v194 = vld [vmem:[%s178 + $0x38] sm:%s171]
                  %195 = vst [vmem:[%s179 + $0x1c] sm:%s171] %v194
                  %v196 = vld [vmem:[%s178 + $0x40] sm:%s171]
                  %197 = vst [vmem:[%s179 + $0x20] sm:%s171] %v196
                  %v198 = vld [vmem:[%s178 + $0x48] sm:%s171]
                  %199 = vst [vmem:[%s179 + $0x24] sm:%s171] %v198
                  %v200 = vld [vmem:[%s178 + $0x50] sm:%s171]
                  %201 = vst [vmem:[%s179 + $0x28] sm:%s171] %v200
                  %v202 = vld [vmem:[%s178 + $0x58] sm:%s171]
                  %203 = vst [vmem:[%s179 + $0x2c] sm:%s171] %v202
                  %v204 = vld [vmem:[%s178 + $0x60] sm:%s171]
                  %205 = vst [vmem:[%s179 + $0x30] sm:%s171] %v204
                  %v206 = vld [vmem:[%s178 + $0x68] sm:%s171]
                  %207 = vst [vmem:[%s179 + $0x34] sm:%s171] %v206
                  %v208 = vld [vmem:[%s178 + $0x70] sm:%s171]
                  %209 = vst [vmem:[%s179 + $0x38] sm:%s171] %v208
                  %v210 = vld [vmem:[%s178 + $0x78] sm:%s171]
                  %211 = vst [vmem:[%s179 + $0x3c] sm:%s171] %v210
                $region59: #{_lambda_.5} parent=46 // loop_footer
                  %s177 = sadd.s32 1, %s173
                $region60: #{_lambda_.5} parent=46 // loop_footer_branch
                  %172 = sbr.rel target = $region56
                $region61: #{_lambda_.5} parent=46 // loop_exit
                  _
              $region47: #{_lambda_.5} parent=31 // pred_fallthru
                _
            $region32: #{_lambda_.5} parent=27 // pred_fallthru
              _
            // Predicated region
            $region33: #{_lambda_.5} parent=27 // pred_check
              _
            $region34: #{_lambda_.5} parent=27 // pred_check_branch
              %117 = sbr.rel (0) target = $region36
            $region35: #{_lambda_.5} parent=27 // pred_region
              %s119 = ssub.s32 16, 1
              loop: start=0, step=1, limit=1
              $region37: #{_lambda_.5} parent=35 // loop_pre_header
                _
              $region38: #{_lambda_.5} parent=35 // loop_header
                %s121 = sphi 0, %s125
                %p122 = scmp.ge.s32.totalorder %s121, 1
                %s126 = sphi %s111, %s111
                %s127 = sphi %s109, %s109
              $region39: #{_lambda_.5} parent=35 // loop_header_branch
                %124 = sbr.rel (%p122) target = $region43
              $region40: #{_lambda_.5} parent=35 // loop_body
                %v128 = vld [vmem:[%s126] sm:%s119]
                %129 = vst [vmem:[%s127] sm:%s119] %v128
                %v130 = vld [vmem:[%s126 + $0x8] sm:%s119]
                %131 = vst [vmem:[%s127 + $0x4] sm:%s119] %v130
                %v132 = vld [vmem:[%s126 + $0x10] sm:%s119]
                %133 = vst [vmem:[%s127 + $0x8] sm:%s119] %v132
                %v134 = vld [vmem:[%s126 + $0x18] sm:%s119]
                %135 = vst [vmem:[%s127 + $0xc] sm:%s119] %v134
                %v136 = vld [vmem:[%s126 + $0x20] sm:%s119]
                %137 = vst [vmem:[%s127 + $0x10] sm:%s119] %v136
                %v138 = vld [vmem:[%s126 + $0x28] sm:%s119]
                %139 = vst [vmem:[%s127 + $0x14] sm:%s119] %v138
                %v140 = vld [vmem:[%s126 + $0x30] sm:%s119]
                %141 = vst [vmem:[%s127 + $0x18] sm:%s119] %v140
                %v142 = vld [vmem:[%s126 + $0x38] sm:%s119]
                %143 = vst [vmem:[%s127 + $0x1c] sm:%s119] %v142
                %v144 = vld [vmem:[%s126 + $0x40] sm:%s119]
                %145 = vst [vmem:[%s127 + $0x20] sm:%s119] %v144
                %v146 = vld [vmem:[%s126 + $0x48] sm:%s119]
                %147 = vst [vmem:[%s127 + $0x24] sm:%s119] %v146
                %v148 = vld [vmem:[%s126 + $0x50] sm:%s119]
                %149 = vst [vmem:[%s127 + $0x28] sm:%s119] %v148
                %v150 = vld [vmem:[%s126 + $0x58] sm:%s119]
                %151 = vst [vmem:[%s127 + $0x2c] sm:%s119] %v150
                %v152 = vld [vmem:[%s126 + $0x60] sm:%s119]
                %153 = vst [vmem:[%s127 + $0x30] sm:%s119] %v152
                %v154 = vld [vmem:[%s126 + $0x68] sm:%s119]
                %155 = vst [vmem:[%s127 + $0x34] sm:%s119] %v154
                %v156 = vld [vmem:[%s126 + $0x70] sm:%s119]
                %157 = vst [vmem:[%s127 + $0x38] sm:%s119] %v156
                %v158 = vld [vmem:[%s126 + $0x78] sm:%s119]
                %159 = vst [vmem:[%s127 + $0x3c] sm:%s119] %v158
              $region41: #{_lambda_.5} parent=35 // loop_footer
                %s125 = sadd.s32 1, %s121
              $region42: #{_lambda_.5} parent=35 // loop_footer_branch
                %120 = sbr.rel target = $region38
              $region43: #{_lambda_.5} parent=35 // loop_exit
                _
            $region36: #{_lambda_.5} parent=27 // pred_fallthru
              _
          $region28: #{_lambda_.5} parent=23 // pred_fallthru
            _
          %212 = vnop
        $region24: #{_lambda_.5} parent=19 // pred_fallthru
          _
      $region20: #{_lambda_.5} parent=5 // pred_fallthru
        _
      %p213 = scmp.le.s32.totalorder 1, %s8
      %p214 = scmp.lt.s32.totalorder %s8, 3
      %p215 = pnand %p213, %p214
      %p216 = pneg %p215
      // Predicated region
      $region62: #{_lambda_.5} parent=5 // pred_check
        _
      $region63: #{_lambda_.5} parent=5 // pred_check_branch
        %218 = sbr.rel (%p215) target = $region65
      $region64: #{_lambda_.5} parent=5 // pred_region
        %s219 = ssub.s32 %s8, 1
        %s220 = sand.u32 %s42, 1
        %s221 = sand.u32 %s42, 1
        %s222 = smul.addr %s221, 64
        %s223 = scalar_lea.vmem [#allocation2], %s222
        // Predicated region
        $region66: #{_lambda_.5} parent=64 // pred_check
          %p224 = pneg %p55
        $region67: #{_lambda_.5} parent=64 // pred_check_branch
          %226 = sbr.rel (%p224) target = $region69
        $region68: #{_lambda_.5} parent=64 // pred_region
          _
        $region69: #{_lambda_.5} parent=64 // pred_fallthru
          _
        %p227 = pneg %p29
        %p228 = pneg %p26
        %s229 = sand.u32 %s42, 1
        %s230 = sand.u32 %s42, 1
        %s231 = smul.addr %s230, 64
        %s232 = scalar_lea.vmem [#allocation2], %s231
        %p233 = pneg %p55
        %p234 = pneg %p52
        %p235 = pneg %p81
        %p236 = pneg %p78
        %s237 = sand.u32 %s68, 1
        %s238 = sand.u32 %s68, 1
        %s239 = smul.addr %s238, 32
        %s240 = scalar_lea.vmem [#allocation3], %s239
        %v242 = vld [vmem:[%s0] sm:$0xff]
        %v243 = vld [vmem:[%s0 + $0x8] sm:$0xff]
        %v244 = vld [vmem:[%s0 + $0x10] sm:$0xff]
        %v245 = vld [vmem:[%s0 + $0x18] sm:$0xff]
        %v246 = vpack.c.bf16 %v243, %v242
        %v247 = vpack.c.bf16 %v245, %v244
        %v248 = vld [vmem:[%s223] sm:$0xf]
        %v249 = vld [vmem:[%s223 + $0x4] sm:$0xf]
        %v250 = vld [vmem:[%s223 + $0x8] sm:$0xf]
        %v251 = vld [vmem:[%s223 + $0xc] sm:$0xf]
        %v252 = vld [vmem:[%s223 + $0x10] sm:$0xf]
        %v253 = vld [vmem:[%s223 + $0x14] sm:$0xf]
        %v254 = vld [vmem:[%s223 + $0x18] sm:$0xf]
        %v255 = vld [vmem:[%s223 + $0x1c] sm:$0xf]
        %v256 = vld [vmem:[%s223 + $0x20] sm:$0xf]
        %v257 = vld [vmem:[%s223 + $0x24] sm:$0xf]
        %v258 = vld [vmem:[%s223 + $0x28] sm:$0xf]
        %v259 = vld [vmem:[%s223 + $0x2c] sm:$0xf]
        %v260 = vld [vmem:[%s223 + $0x30] sm:$0xf]
        %v261 = vld [vmem:[%s223 + $0x34] sm:$0xf]
        %v262 = vld [vmem:[%s223 + $0x38] sm:$0xf]
        %v263 = vld [vmem:[%s223 + $0x3c] sm:$0xf]
        %v280 = vunpack.c.l.b16 %v248
        %v281 = vunpack.c.l.b16 %v249
        %v282 = vunpack.c.l.b16 %v250
        %v283 = vunpack.c.l.b16 %v251
        %v284 = vunpack.c.l.b16 %v252
        %v285 = vunpack.c.l.b16 %v253
        %v286 = vunpack.c.l.b16 %v254
        %v287 = vunpack.c.l.b16 %v255
        %v288 = vunpack.c.l.b16 %v256
        %v289 = vunpack.c.l.b16 %v257
        %v290 = vunpack.c.l.b16 %v258
        %v291 = vunpack.c.l.b16 %v259
        %v292 = vunpack.c.l.b16 %v260
        %v293 = vunpack.c.l.b16 %v261
        %v294 = vunpack.c.l.b16 %v262
        %v295 = vunpack.c.l.b16 %v263
        %v296 = vpack.c.b16 %v281, %v280
        %v297 = vpack.c.b16 %v283, %v282
        %v298 = vpack.c.b16 %v285, %v284
        %v299 = vpack.c.b16 %v287, %v286
        %v300 = vpack.c.b16 %v289, %v288
        %v301 = vpack.c.b16 %v291, %v290
        %v302 = vpack.c.b16 %v293, %v292
        %v303 = vpack.c.b16 %v295, %v294
        %312 = vmatprep.subr.bf16.mxu0 0
        %313 = vmatpush1.bf16.msra.mxu0 %v303
        %314 = vmatprep.subr.bf16.mxu0 0
        %315 = vmatpush1.bf16.msra.mxu0 %v302
        %316 = vmatprep.subr.bf16.mxu0 0
        %317 = vmatpush1.bf16.msra.mxu0 %v301
        %318 = vmatprep.subr.bf16.mxu0 0
        %319 = vmatpush1.bf16.msra.mxu0 %v300
        %320 = vmatprep.subr.bf16.mxu0 0
        %321 = vmatpush1.bf16.msra.mxu0 %v299
        %322 = vmatprep.subr.bf16.mxu0 0
        %323 = vmatpush1.bf16.msra.mxu0 %v298
        %324 = vmatprep.subr.bf16.mxu0 0
        %325 = vmatpush1.bf16.msra.mxu0 %v297
        %326 = vmatprep.subr.bf16.mxu0 0
        %327 = vmatpush1.bf16.msra.mxu0 %v296
        %328 = vmatprep.subr.bf16.mxu0 0
        %329 = vmatpush2.bf16.msra.mxu0 0
        %330 = vmatprep.subr.bf16.mxu0 0
        %331 = vmatpush2.bf16.msra.mxu0 0
        %332 = vmatprep.subr.bf16.mxu0 0
        %333 = vmatpush2.bf16.msra.mxu0 0
        %334 = vmatprep.subr.bf16.mxu0 0
        %335 = vmatpush2.bf16.msra.mxu0 0
        %336 = vmatprep.subr.bf16.mxu0 0
        %337 = vmatpush2.bf16.msra.mxu0 0
        %338 = vmatprep.subr.bf16.mxu0 0
        %339 = vmatpush2.bf16.msra.mxu0 0
        %340 = vmatprep.subr.bf16.mxu0 0
        %341 = vmatpush2.bf16.msra.mxu0 0
        %342 = vmatprep.subr.bf16.mxu0 0
        %343 = vmatpush2.bf16.msra.mxu0 0
        %344 = vmatprep.mubr.bf16.mxu0 0
        %345 = vmatmul.mubr.bf16.gmra.mxu0 %v246
        %v346 = vpop.f32.mrf.mxu0
        %v347 = vadd.f32 0.0, %v346
        %v348 = vpop.f32.mrf.mxu0
        %v349 = vpop.f32.mrf.mxu0
        %v350 = vadd.f32 0.0, %v349
        %v351 = vpop.f32.mrf.mxu0
        %352 = vmatprep.mubr.bf16.mxu0 0
        %353 = vmatmul.mubr.bf16.gmra.mxu0 %v247
        %v354 = vpop.f32.mrf.mxu0
        %v355 = vadd.f32 0.0, %v354
        %v356 = vpop.f32.mrf.mxu0
        %v357 = vpop.f32.mrf.mxu0
        %v358 = vadd.f32 0.0, %v357
        %v359 = vpop.f32.mrf.mxu0
        %360 = vdwg.mxu0
        %361 = vst [vmem:[%s240] sm:$0xff] %v347
        %362 = vst [vmem:[%s240 + $0x8] sm:$0xff] %v350
        %363 = vst [vmem:[%s240 + $0x10] sm:$0xff] %v355
        %364 = vst [vmem:[%s240 + $0x18] sm:$0xff] %v358
        %s365 = sand.u32 %s68, 1
        %s366 = sand.u32 %s68, 1
        %s367 = smul.addr %s366, 32
        %s368 = scalar_lea.vmem [#allocation3], %s367
        // Predicated region
        $region70: #{_lambda_.5} parent=64 // pred_check
          %p369 = pneg %p78
        $region71: #{_lambda_.5} parent=64 // pred_check_branch
          %371 = sbr.rel (%p369) target = $region73
        $region72: #{_lambda_.5} parent=64 // pred_region
          %s372 = smul.addr %s13, 8
          %s373 = scalar_lea.vmem %s2, %s372
          // Predicated region
          $region74: #{_lambda_.5} parent=72 // pred_check
            _
          $region75: #{_lambda_.5} parent=72 // pred_check_branch
            %375 = sbr.rel (0) target = $region77
          $region76: #{_lambda_.5} parent=72 // pred_region
            // Predicated region
            $region78: #{_lambda_.5} parent=76 // pred_check
              _
            $region79: #{_lambda_.5} parent=76 // pred_check_branch
              %377 = sbr.rel (0) target = $region81
            $region80: #{_lambda_.5} parent=76 // pred_region
              // Predicated region
              $region93: #{_lambda_.5} parent=80 // pred_check
                _
              $region94: #{_lambda_.5} parent=80 // pred_check_branch
                %399 = sbr.rel (0) target = $region96
              $region95: #{_lambda_.5} parent=80 // pred_region
                loop: start=0, step=1, limit=1
                $region97: #{_lambda_.5} parent=95 // loop_pre_header
                  _
                $region98: #{_lambda_.5} parent=95 // loop_header
                  %s401 = sphi 0, %s405
                  %p402 = scmp.ge.s32.totalorder %s401, 1
                  %s406 = sphi %s368, %s368
                  %s407 = sphi %s373, %s373
                $region99: #{_lambda_.5} parent=95 // loop_header_branch
                  %404 = sbr.rel (%p402) target = $region103
                $region100: #{_lambda_.5} parent=95 // loop_body
                  %v408 = vld [vmem:[%s406] sm:$0xff]
                  %409 = vst [vmem:[%s407] sm:$0xff] %v408
                  %v410 = vld [vmem:[%s406 + $0x8] sm:$0xff]
                  %411 = vst [vmem:[%s407 + $0x10] sm:$0xff] %v410
                  %v412 = vld [vmem:[%s406 + $0x10] sm:$0xff]
                  %413 = vst [vmem:[%s407 + $0x20] sm:$0xff] %v412
                  %v414 = vld [vmem:[%s406 + $0x18] sm:$0xff]
                  %415 = vst [vmem:[%s407 + $0x30] sm:$0xff] %v414
                $region101: #{_lambda_.5} parent=95 // loop_footer
                  %s405 = sadd.s32 1, %s401
                $region102: #{_lambda_.5} parent=95 // loop_footer_branch
                  %400 = sbr.rel target = $region98
                $region103: #{_lambda_.5} parent=95 // loop_exit
                  _
              $region96: #{_lambda_.5} parent=80 // pred_fallthru
                _
              // Predicated region
              $region104: #{_lambda_.5} parent=80 // pred_check
                _
              $region105: #{_lambda_.5} parent=80 // pred_check_branch
                %417 = sbr.rel target = $region107
              $region106: #{_lambda_.5} parent=80 // pred_region
                _
              $region107: #{_lambda_.5} parent=80 // pred_fallthru
                _
            $region81: #{_lambda_.5} parent=76 // pred_fallthru
              _
            // Predicated region
            $region82: #{_lambda_.5} parent=76 // pred_check
              _
            $region83: #{_lambda_.5} parent=76 // pred_check_branch
              %379 = sbr.rel target = $region85
            $region84: #{_lambda_.5} parent=76 // pred_region
              %s381 = ssub.s32 256, 1
              loop: start=0, step=1, limit=1
              $region86: #{_lambda_.5} parent=84 // loop_pre_header
                _
              $region87: #{_lambda_.5} parent=84 // loop_header
                %s383 = sphi 0, %s387
                %p384 = scmp.ge.s32.totalorder %s383, 1
                %s388 = sphi %s368, %s368
                %s389 = sphi %s373, %s373
              $region88: #{_lambda_.5} parent=84 // loop_header_branch
                %386 = sbr.rel (%p384) target = $region92
              $region89: #{_lambda_.5} parent=84 // loop_body
                %v390 = vld [vmem:[%s388] sm:%s381]
                %391 = vst [vmem:[%s389] sm:%s381] %v390
                %v392 = vld [vmem:[%s388 + $0x8] sm:%s381]
                %393 = vst [vmem:[%s389 + $0x10] sm:%s381] %v392
                %v394 = vld [vmem:[%s388 + $0x10] sm:%s381]
                %395 = vst [vmem:[%s389 + $0x20] sm:%s381] %v394
                %v396 = vld [vmem:[%s388 + $0x18] sm:%s381]
                %397 = vst [vmem:[%s389 + $0x30] sm:%s381] %v396
              $region90: #{_lambda_.5} parent=84 // loop_footer
                %s387 = sadd.s32 1, %s383
              $region91: #{_lambda_.5} parent=84 // loop_footer_branch
                %382 = sbr.rel target = $region87
              $region92: #{_lambda_.5} parent=84 // loop_exit
                _
            $region85: #{_lambda_.5} parent=76 // pred_fallthru
              _
          $region77: #{_lambda_.5} parent=72 // pred_fallthru
            _
          %418 = vnop
        $region73: #{_lambda_.5} parent=64 // pred_fallthru
          _
      $region65: #{_lambda_.5} parent=5 // pred_fallthru
        _
      %p419 = scmp.le.s32.totalorder 2, %s8
      // Predicated region
      $region108: #{_lambda_.5} parent=5 // pred_check
        %p420 = pneg %p419
      $region109: #{_lambda_.5} parent=5 // pred_check_branch
        %422 = sbr.rel (%p420) target = $region111
      $region110: #{_lambda_.5} parent=5 // pred_region
        %s423 = ssub.s32 %s8, 2
        // Predicated region
        $region112: #{_lambda_.5} parent=110 // pred_check
          %p424 = pneg %p84
        $region113: #{_lambda_.5} parent=110 // pred_check_branch
          %426 = sbr.rel (%p424) target = $region115
        $region114: #{_lambda_.5} parent=110 // pred_region
          %s427 = sand.u32 %s69, 1
          %s428 = sand.u32 %s69, 1
          %s429 = smul.addr %s428, 32
          %s430 = scalar_lea.vmem [#allocation3], %s429
        $region115: #{_lambda_.5} parent=110 // pred_fallthru
          _
      $region111: #{_lambda_.5} parent=5 // pred_fallthru
        _
    $region6: #{_lambda_.5} parent=1 // loop_footer
      %s12 = sadd.s32 1, %s8
    $region7: #{_lambda_.5} parent=1 // loop_footer_branch
      %7 = sbr.rel target = $region3
    $region8: #{_lambda_.5} parent=1 // loop_exit
      _

// kernel: _lambda_.3
$region0: #{_lambda_.3}
  #allocation0 [shape = 'u32[]', space=smem, size = 0x4, offset = 0x4, fixed_abs, tag = 'smem constant byte address 0x4 - core index']
  #allocation1 [shape = 'u32[144,128]{1,0:T(1,128)}', space=vmem, size = 0x12000, scoped, tag = 'internal scratch']
  %s0 = inlined_call_operand.vmem [shape: s32[32], index: 0, kind: input, shape index: {}]
  %s1 = inlined_call_operand.hbm [shape: f32[256,128], index: 1, kind: input, shape index: {}]
  %s2 = inlined_call_operand.vmem [shape: f32[16,128], index: 2, kind: input, shape index: {}]
  %s3 = inlined_call_operand.vmem [shape: f32[2,16,128], index: 3, kind: output, shape index: {}]
  %s4 = sld [smem:[#allocation0]]
  $region30: #{_lambda_.3} parent=0
    _
  %s6 = ssub.s32 1, %s4
  %s7 = scalar_select 0, %s6, %s4
  $region1: #{_lambda_.3} parent=0
    #allocation2 [shape = 'u8[512]{0}', space=smem, size = 0x200, scoped, tag = 'input window, operand 0, single buffered']
    #allocation3 [shape = 's32[1]{0}', space=sflag, size = 0x4, scoped, tag = 'scoped memory for _lambda_.3']
    #allocation4 [shape = 's32[1]{0}', space=sflag, size = 0x4, scoped, tag = 'scoped memory for _lambda_.3']
    #allocation5 [shape = 'u8[131072]{0}', space=vmem, size = 0x20000, scoped, tag = 'input window, operand 1, single buffered']
    %8 = vsyncpa [#allocation4], 0
    %9 = vsyncpa [#allocation3], 0
    // Predicated region
    $region2: #{_lambda_.3} parent=1 // pred_check
      _
    $region3: #{_lambda_.3} parent=1 // pred_check_branch
      %11 = sbr.rel (0) target = $region5
    $region4: #{_lambda_.3} parent=1 // pred_region
      %s13 = ssub.s32 16, 16
      %14 = vsyncadd [#allocation4], %s13
      %s16 = sshll.u32 %s0, 4
      %s17 = int_to_ptr.vmem [resolvable:$true] %s16
      %19 = dma.vmem_to_smem %s17, 16, [#allocation2], [#allocation4]
    $region5: #{_lambda_.3} parent=1 // pred_fallthru
      _
    // Predicated region
    $region6: #{_lambda_.3} parent=1 // pred_check
      _
    $region7: #{_lambda_.3} parent=1 // pred_check_branch
      %21 = sbr.rel (0) target = $region9
    $region8: #{_lambda_.3} parent=1 // pred_region
      %s23 = ssub.s32 4096, 4096
      %24 = vsyncadd [#allocation3], %s23
      %s25 = sshll.u32 [#allocation5], 4
      %s26 = int_to_ptr.vmem [resolvable:$true] %s25
      %31 = dma.hbm_to_vmem [thread:$0]  %s1, 4096, %s26, [#allocation3], 128, 128, 8
    $region9: #{_lambda_.3} parent=1 // pred_fallthru
      _
    // Predicated region
    $region10: #{_lambda_.3} parent=1 // pred_check
      _
    $region11: #{_lambda_.3} parent=1 // pred_check_branch
      %33 = sbr.rel (0) target = $region13
    $region12: #{_lambda_.3} parent=1 // pred_region
      _
    $region13: #{_lambda_.3} parent=1 // pred_fallthru
      _
    // Predicated region
    $region14: #{_lambda_.3} parent=1 // pred_check
      _
    $region15: #{_lambda_.3} parent=1 // pred_check_branch
      %35 = sbr.rel (0) target = $region17
    $region16: #{_lambda_.3} parent=1 // pred_region
      %36 = dma.done [#allocation4], 16
    $region17: #{_lambda_.3} parent=1 // pred_fallthru
      _
    // Predicated region
    $region18: #{_lambda_.3} parent=1 // pred_check
      _
    $region19: #{_lambda_.3} parent=1 // pred_check_branch
      %38 = sbr.rel (0) target = $region21
    $region20: #{_lambda_.3} parent=1 // pred_region
      %39 = dma.done [#allocation3], 4096
    $region21: #{_lambda_.3} parent=1 // pred_fallthru
      _
    %40 = sfence
    %s41 = sld [smem:[#allocation2]]
    %s42 = scalar_lea.vmem [#allocation5], %s41
    %v43 = vld [vmem:[%s42] sm:$0x1]
    %v44 = vld [vmem:[%s2] sm:$0x1]
    %v45 = vadd.f32 %v43, %v44
    %46 = vst [vmem:[%s3] sm:$0x1] %v45
    %s47 = sld [smem:[#allocation2 + $0x1]]
    %s48 = scalar_lea.vmem [#allocation5], %s47
    %v49 = vld [vmem:[%s48] sm:$0x1]
    %v50 = vld [vmem:[%s2 + $0x1] sm:$0x1]
    %v51 = vadd.f32 %v49, %v50
    %52 = vst [vmem:[%s3 + $0x1] sm:$0x1] %v51
    %s53 = sld [smem:[#allocation2 + $0x2]]
    %s54 = scalar_lea.vmem [#allocation5], %s53
    %v55 = vld [vmem:[%s54] sm:$0x1]
    %v56 = vld [vmem:[%s2 + $0x2] sm:$0x1]
    %v57 = vadd.f32 %v55, %v56
    %58 = vst [vmem:[%s3 + $0x2] sm:$0x1] %v57
    %s59 = sld [smem:[#allocation2 + $0x3]]
    %s60 = scalar_lea.vmem [#allocation5], %s59
    %v61 = vld [vmem:[%s60] sm:$0x1]
    %v62 = vld [vmem:[%s2 + $0x3] sm:$0x1]
    %v63 = vadd.f32 %v61, %v62
    %64 = vst [vmem:[%s3 + $0x3] sm:$0x1] %v63
    %s65 = sld [smem:[#allocation2 + $0x4]]
    %s66 = scalar_lea.vmem [#allocation5], %s65
    %v67 = vld [vmem:[%s66] sm:$0x1]
    %v68 = vld [vmem:[%s2 + $0x4] sm:$0x1]
    %v69 = vadd.f32 %v67, %v68
    %70 = vst [vmem:[%s3 + $0x4] sm:$0x1] %v69
    %s71 = sld [smem:[#allocation2 + $0x5]]
    %s72 = scalar_lea.vmem [#allocation5], %s71
    %v73 = vld [vmem:[%s72] sm:$0x1]
    %v74 = vld [vmem:[%s2 + $0x5] sm:$0x1]
    %v75 = vadd.f32 %v73, %v74
    %76 = vst [vmem:[%s3 + $0x5] sm:$0x1] %v75
    %s77 = sld [smem:[#allocation2 + $0x6]]
    %s78 = scalar_lea.vmem [#allocation5], %s77
    %v79 = vld [vmem:[%s78] sm:$0x1]
    %v80 = vld [vmem:[%s2 + $0x6] sm:$0x1]
    %v81 = vadd.f32 %v79, %v80
    %82 = vst [vmem:[%s3 + $0x6] sm:$0x1] %v81
    %s83 = sld [smem:[#allocation2 + $0x7]]
    %s84 = scalar_lea.vmem [#allocation5], %s83
    %v85 = vld [vmem:[%s84] sm:$0x1]
    %v86 = vld [vmem:[%s2 + $0x7] sm:$0x1]
    %v87 = vadd.f32 %v85, %v86
    %88 = vst [vmem:[%s3 + $0x7] sm:$0x1] %v87
    %s89 = sld [smem:[#allocation2 + $0x8]]
    %s90 = scalar_lea.vmem [#allocation5], %s89
    %v91 = vld [vmem:[%s90] sm:$0x1]
    %v92 = vld [vmem:[%s2 + $0x8] sm:$0x1]
    %v93 = vadd.f32 %v91, %v92
    %94 = vst [vmem:[%s3 + $0x8] sm:$0x1] %v93
    %s95 = sld [smem:[#allocation2 + $0x9]]
    %s96 = scalar_lea.vmem [#allocation5], %s95
    %v97 = vld [vmem:[%s96] sm:$0x1]
    %v98 = vld [vmem:[%s2 + $0x9] sm:$0x1]
    %v99 = vadd.f32 %v97, %v98
    %100 = vst [vmem:[%s3 + $0x9] sm:$0x1] %v99
    %s101 = sld [smem:[#allocation2 + $0xa]]
    %s102 = scalar_lea.vmem [#allocation5], %s101
    %v103 = vld [vmem:[%s102] sm:$0x1]
    %v104 = vld [vmem:[%s2 + $0xa] sm:$0x1]
    %v105 = vadd.f32 %v103, %v104
    %106 = vst [vmem:[%s3 + $0xa] sm:$0x1] %v105
    %s107 = sld [smem:[#allocation2 + $0xb]]
    %s108 = scalar_lea.vmem [#allocation5], %s107
    %v109 = vld [vmem:[%s108] sm:$0x1]
    %v110 = vld [vmem:[%s2 + $0xb] sm:$0x1]
    %v111 = vadd.f32 %v109, %v110
    %112 = vst [vmem:[%s3 + $0xb] sm:$0x1] %v111
    %s113 = sld [smem:[#allocation2 + $0xc]]
    %s114 = scalar_lea.vmem [#allocation5], %s113
    %v115 = vld [vmem:[%s114] sm:$0x1]
    %v116 = vld [vmem:[%s2 + $0xc] sm:$0x1]
    %v117 = vadd.f32 %v115, %v116
    %118 = vst [vmem:[%s3 + $0xc] sm:$0x1] %v117
    %s119 = sld [smem:[#allocation2 + $0xd]]
    %s120 = scalar_lea.vmem [#allocation5], %s119
    %v121 = vld [vmem:[%s120] sm:$0x1]
    %v122 = vld [vmem:[%s2 + $0xd] sm:$0x1]
    %v123 = vadd.f32 %v121, %v122
    %124 = vst [vmem:[%s3 + $0xd] sm:$0x1] %v123
    %s125 = sld [smem:[#allocation2 + $0xe]]
    %s126 = scalar_lea.vmem [#allocation5], %s125
    %v127 = vld [vmem:[%s126] sm:$0x1]
    %v128 = vld [vmem:[%s2 + $0xe] sm:$0x1]
    %v129 = vadd.f32 %v127, %v128
    %130 = vst [vmem:[%s3 + $0xe] sm:$0x1] %v129
    %s131 = sld [smem:[#allocation2 + $0xf]]
    %s132 = scalar_lea.vmem [#allocation5], %s131
    %v133 = vld [vmem:[%s132] sm:$0x1]
    %v134 = vld [vmem:[%s2 + $0xf] sm:$0x1]
    %v135 = vadd.f32 %v133, %v134
    %136 = vst [vmem:[%s3 + $0xf] sm:$0x1] %v135
    %s137 = sld [smem:[#allocation2 + $0x10]]
    %s138 = scalar_lea.vmem [#allocation5], %s137
    %v139 = vld [vmem:[%s138] sm:$0x1]
    %v140 = vld [vmem:[%s2] sm:$0x1]
    %v141 = vadd.f32 %v139, %v140
    %s142 = scalar_lea.vmem %s3, 16
    %143 = vst [vmem:[%s142] sm:$0x1] %v141
    %s144 = sld [smem:[#allocation2 + $0x11]]
    %s145 = scalar_lea.vmem [#allocation5], %s144
    %v146 = vld [vmem:[%s145] sm:$0x1]
    %v147 = vld [vmem:[%s2 + $0x1] sm:$0x1]
    %v148 = vadd.f32 %v146, %v147
    %149 = vst [vmem:[%s142 + $0x1] sm:$0x1] %v148
    %s150 = sld [smem:[#allocation2 + $0x12]]
    %s151 = scalar_lea.vmem [#allocation5], %s150
    %v152 = vld [vmem:[%s151] sm:$0x1]
    %v153 = vld [vmem:[%s2 + $0x2] sm:$0x1]
    %v154 = vadd.f32 %v152, %v153
    %155 = vst [vmem:[%s142 + $0x2] sm:$0x1] %v154
    %s156 = sld [smem:[#allocation2 + $0x13]]
    %s157 = scalar_lea.vmem [#allocation5], %s156
    %v158 = vld [vmem:[%s157] sm:$0x1]
    %v159 = vld [vmem:[%s2 + $0x3] sm:$0x1]
    %v160 = vadd.f32 %v158, %v159
    %161 = vst [vmem:[%s142 + $0x3] sm:$0x1] %v160
    %s162 = sld [smem:[#allocation2 + $0x14]]
    %s163 = scalar_lea.vmem [#allocation5], %s162
    %v164 = vld [vmem:[%s163] sm:$0x1]
    %v165 = vld [vmem:[%s2 + $0x4] sm:$0x1]
    %v166 = vadd.f32 %v164, %v165
    %167 = vst [vmem:[%s142 + $0x4] sm:$0x1] %v166
    %s168 = sld [smem:[#allocation2 + $0x15]]
    %s169 = scalar_lea.vmem [#allocation5], %s168
    %v170 = vld [vmem:[%s169] sm:$0x1]
    %v171 = vld [vmem:[%s2 + $0x5] sm:$0x1]
    %v172 = vadd.f32 %v170, %v171
    %173 = vst [vmem:[%s142 + $0x5] sm:$0x1] %v172
    %s174 = sld [smem:[#allocation2 + $0x16]]
    %s175 = scalar_lea.vmem [#allocation5], %s174
    %v176 = vld [vmem:[%s175] sm:$0x1]
    %v177 = vld [vmem:[%s2 + $0x6] sm:$0x1]
    %v178 = vadd.f32 %v176, %v177
    %179 = vst [vmem:[%s142 + $0x6] sm:$0x1] %v178
    %s180 = sld [smem:[#allocation2 + $0x17]]
    %s181 = scalar_lea.vmem [#allocation5], %s180
    %v182 = vld [vmem:[%s181] sm:$0x1]
    %v183 = vld [vmem:[%s2 + $0x7] sm:$0x1]
    %v184 = vadd.f32 %v182, %v183
    %185 = vst [vmem:[%s142 + $0x7] sm:$0x1] %v184
    %s186 = sld [smem:[#allocation2 + $0x18]]
    %s187 = scalar_lea.vmem [#allocation5], %s186
    %v188 = vld [vmem:[%s187] sm:$0x1]
    %v189 = vld [vmem:[%s2 + $0x8] sm:$0x1]
    %v190 = vadd.f32 %v188, %v189
    %191 = vst [vmem:[%s142 + $0x8] sm:$0x1] %v190
    %s192 = sld [smem:[#allocation2 + $0x19]]
    %s193 = scalar_lea.vmem [#allocation5], %s192
    %v194 = vld [vmem:[%s193] sm:$0x1]
    %v195 = vld [vmem:[%s2 + $0x9] sm:$0x1]
    %v196 = vadd.f32 %v194, %v195
    %197 = vst [vmem:[%s142 + $0x9] sm:$0x1] %v196
    %s198 = sld [smem:[#allocation2 + $0x1a]]
    %s199 = scalar_lea.vmem [#allocation5], %s198
    %v200 = vld [vmem:[%s199] sm:$0x1]
    %v201 = vld [vmem:[%s2 + $0xa] sm:$0x1]
    %v202 = vadd.f32 %v200, %v201
    %203 = vst [vmem:[%s142 + $0xa] sm:$0x1] %v202
    %s204 = sld [smem:[#allocation2 + $0x1b]]
    %s205 = scalar_lea.vmem [#allocation5], %s204
    %v206 = vld [vmem:[%s205] sm:$0x1]
    %v207 = vld [vmem:[%s2 + $0xb] sm:$0x1]
    %v208 = vadd.f32 %v206, %v207
    %209 = vst [vmem:[%s142 + $0xb] sm:$0x1] %v208
    %s210 = sld [smem:[#allocation2 + $0x1c]]
    %s211 = scalar_lea.vmem [#allocation5], %s210
    %v212 = vld [vmem:[%s211] sm:$0x1]
    %v213 = vld [vmem:[%s2 + $0xc] sm:$0x1]
    %v214 = vadd.f32 %v212, %v213
    %215 = vst [vmem:[%s142 + $0xc] sm:$0x1] %v214
    %s216 = sld [smem:[#allocation2 + $0x1d]]
    %s217 = scalar_lea.vmem [#allocation5], %s216
    %v218 = vld [vmem:[%s217] sm:$0x1]
    %v219 = vld [vmem:[%s2 + $0xd] sm:$0x1]
    %v220 = vadd.f32 %v218, %v219
    %221 = vst [vmem:[%s142 + $0xd] sm:$0x1] %v220
    %s222 = sld [smem:[#allocation2 + $0x1e]]
    %s223 = scalar_lea.vmem [#allocation5], %s222
    %v224 = vld [vmem:[%s223] sm:$0x1]
    %v225 = vld [vmem:[%s2 + $0xe] sm:$0x1]
    %v226 = vadd.f32 %v224, %v225
    %227 = vst [vmem:[%s142 + $0xe] sm:$0x1] %v226
    %s228 = sld [smem:[#allocation2 + $0x1f]]
    %s229 = scalar_lea.vmem [#allocation5], %s228
    %v230 = vld [vmem:[%s229] sm:$0x1]
    %v231 = vld [vmem:[%s2 + $0xf] sm:$0x1]
    %v232 = vadd.f32 %v230, %v231
    %233 = vst [vmem:[%s142 + $0xf] sm:$0x1] %v232
    // Predicated region
    $region22: #{_lambda_.3} parent=1 // pred_check
      _
    $region23: #{_lambda_.3} parent=1 // pred_check_branch
      %235 = sbr.rel (0) target = $region25
    $region24: #{_lambda_.3} parent=1 // pred_region
      _
    $region25: #{_lambda_.3} parent=1 // pred_fallthru
      _
    // Predicated region
    $region26: #{_lambda_.3} parent=1 // pred_check
      _
    $region27: #{_lambda_.3} parent=1 // pred_check_branch
      %237 = sbr.rel (0) target = $region29
    $region28: #{_lambda_.3} parent=1 // pred_region
      _
    $region29: #{_lambda_.3} parent=1 // pred_fallthru
      _
    %238 = vsyncpa [#allocation3], 1
    %239 = vsyncpa [#allocation4], 1

// kernel: _lambda_.4
$region0: #{_lambda_.4}
  #allocation0 [shape = 'u32[]', space=smem, size = 0x4, offset = 0x4, fixed_abs, tag = 'smem constant byte address 0x4 - core index']
  #allocation1 [shape = 'u32[144,128]{1,0:T(1,128)}', space=vmem, size = 0x12000, scoped, tag = 'internal scratch']
  #allocation2 [shape = 'f32[16,128]{1,0:T(8,128)}', space=vmem, size = 0x2000, scoped, tag = 'scratch operand']
  %s0 = inlined_call_operand.vmem [shape: f32[2,16,128], index: 0, kind: input, shape index: {}]
  %s1 = inlined_call_operand.vmem [shape: f32[2,1,128], index: 1, kind: input, shape index: {}]
  %s2 = inlined_call_operand.vmem [shape: f32[2,1,128], index: 2, kind: input, shape index: {}]
  %s3 = inlined_call_operand.hbm [shape: bf16[2,128,384], index: 3, kind: input, shape index: {}]
  %s4 = inlined_call_operand.vmem [shape: f32[2,1,384], index: 4, kind: input, shape index: {}]
  %s5 = inlined_call_operand.vmem [shape: bf16[2,128,128], index: 5, kind: input, shape index: {}]
  %s6 = inlined_call_operand.vmem [shape: f32[2,1,128], index: 6, kind: input, shape index: {}]
  %s7 = inlined_call_operand.vmem [shape: f32[2,1,128], index: 7, kind: input, shape index: {}]
  %s8 = inlined_call_operand.vmem [shape: f32[2,1,128], index: 8, kind: input, shape index: {}]
  %s9 = inlined_call_operand.hbm [shape: bf16[2,128,512], index: 9, kind: input, shape index: {}]
  %s10 = inlined_call_operand.vmem [shape: f32[2,1,512], index: 10, kind: input, shape index: {}]
  %s11 = inlined_call_operand.hbm [shape: bf16[2,512,128], index: 11, kind: input, shape index: {}]
  %s12 = inlined_call_operand.vmem [shape: f32[2,1,128], index: 12, kind: input, shape index: {}]
  %s13 = inlined_call_operand.vmem [shape: f32[1,128], index: 13, kind: input, shape index: {}]
  %s14 = inlined_call_operand.vmem [shape: f32[1,128], index: 14, kind: input, shape index: {}]
  %s15 = inlined_call_operand.vmem [shape: f32[2,16,128], index: 15, kind: output, shape index: {}]
  %s16 = sld [smem:[#allocation0]]
  $region113: #{_lambda_.4} parent=0
    _
  %s18 = ssub.s32 1, %s16
  %s19 = scalar_select 0, %s18, %s16
  $region1: #{_lambda_.4} parent=0
    #allocation3 [shape = 'u8[196608]{0}', space=vmem, size = 0x30000, scoped, tag = 'input window, operand 3']
    #allocation4 [shape = 's32[2]{0}', space=sflag, size = 0x8, scoped, tag = 'scoped memory for _lambda_.4']
    #allocation5 [shape = 'u8[262144]{0}', space=vmem, size = 0x40000, scoped, tag = 'input window, operand 9']
    #allocation6 [shape = 's32[2]{0}', space=sflag, size = 0x8, scoped, tag = 'scoped memory for _lambda_.4']
    #allocation7 [shape = 'u8[262144]{0}', space=vmem, size = 0x40000, scoped, tag = 'input window, operand 11']
    %20 = vsyncpa [#allocation4], 0
    %s21 = scalar_lea.sflag [#allocation4], 1
    %22 = vsyncpa %s21, 0
    %23 = vsyncpa [#allocation6], 0
    %s24 = scalar_lea.sflag [#allocation6], 1
    %25 = vsyncpa %s24, 0
    loop: start=0, step=1, limit=6
    $region2: #{_lambda_.4} parent=1 // loop_pre_header
      _
    $region3: #{_lambda_.4} parent=1 // loop_header
      %s27 = sphi 0, %s31
      %p28 = scmp.ge.s32.totalorder %s27, 6
      %s34 = sphi 0, %s46
      %s35 = sphi 0, %s42
      %s36 = sphi 0, %s34
      %s37 = sphi 0, %s35
      %s38 = sphi 0, %s36
      %s39 = sphi 0, %s37
      %s49 = sphi 0, %s51
      %s52 = sphi 0, %s49
      %s53 = sphi 0, %s52
      %s69 = sphi 0, %s53
      %s75 = sphi 0, %s77
      %s78 = sphi 0, %s75
      %s79 = sphi 0, %s78
      %s95 = sphi 0, %s79
      %s101 = sphi 0, %s103
      %s104 = sphi 0, %s101
      %s105 = sphi 0, %s104
      %s121 = sphi 0, %s105
      %s127 = sphi 0, %s129
      %s130 = sphi 0, %s127
      %s131 = sphi 0, %s130
      %s147 = sphi 0, %s131
      %s153 = sphi 0, %s155
      %s156 = sphi 0, %s153
      %s157 = sphi 0, %s156
      %s173 = sphi 0, %s157
      %s179 = sphi 0, %s181
      %s182 = sphi 0, %s179
      %s183 = sphi 0, %s182
      %s199 = sphi 0, %s183
      %s205 = sphi 0, %s207
      %s208 = sphi 0, %s205
      %s209 = sphi 0, %s208
      %s225 = sphi 0, %s209
      %s231 = sphi 0, %s233
      %s234 = sphi 0, %s231
      %s235 = sphi 0, %s234
      %s251 = sphi 0, %s235
      %s257 = sphi 0, %s259
      %s260 = sphi 0, %s257
      %s261 = sphi 0, %s260
      %s277 = sphi 0, %s261
      %s283 = sphi 0, %s285
      %s286 = sphi 0, %s283
      %s287 = sphi 0, %s286
      %s303 = sphi 0, %s287
      %s309 = sphi 0, %s311
      %s312 = sphi 0, %s309
      %s313 = sphi 0, %s312
      %s329 = sphi 0, %s313
      %s335 = sphi 0, %s337
      %s338 = sphi 0, %s335
      %s339 = sphi 0, %s338
      %s355 = sphi 0, %s339
      %s361 = sphi 0, %s363
      %s364 = sphi 0, %s361
      %s365 = sphi 0, %s364
      %s381 = sphi 0, %s365
      %s385 = sphi 0, %s385
      %s387 = sphi 0, %s385
      %s388 = sphi 0, %s387
      %s402 = sphi 0, %s388
      %s406 = sphi 0, %s406
      %s408 = sphi 0, %s406
      %s409 = sphi 0, %s408
      %s423 = sphi 0, %s409
      %s429 = sphi 0, %s431
      %s432 = sphi 0, %s429
      %s433 = sphi 0, %s432
      %s449 = sphi 0, %s433
    $region4: #{_lambda_.4} parent=1 // loop_header_branch
      %30 = sbr.rel (%p28) target = $region8
    $region5: #{_lambda_.4} parent=1 // loop_body
      %s32 = ssub.s32 %s27, 1
      %s33 = ssub.s32 %s27, 2
      %s40 = sadd.s32 1, %s35
      %p41 = scmp.ge.s32.totalorder %s40, 2
      %s42 = scalar_select %p41, 0, %s40
      %s43 = sadd.s32 1, %s34
      %s44 = scalar_select %p41, %s43, %s34
      %p45 = scmp.ge.s32.totalorder %s44, 2
      %s46 = scalar_select %p45, 0, %s44
      %s47 = ssub.s32 %s34, %s46
      %p48 = scmp.eq.s32.totalorder %s47, 0
      %s50 = sadd.s32 %s49, 1
      %s51 = scalar_select %p48, %s49, %s50
      %p54 = pneg %p48
      %p55 = scmp.eq.s32.totalorder %s27, 3
      %p56 = por %p54, %p55
      %p57 = scmp.ne.s32.totalorder %s49, %s52
      %p58 = scmp.eq.s32.totalorder %s27, 0
      %p59 = por %p57, %p58
      %p60 = scmp.ne.s32.totalorder %s49, %s52
      %p61 = scmp.eq.s32.totalorder %s32, 3
      %p62 = por %p60, %p61
      %p63 = scmp.ne.s32.totalorder %s52, %s53
      %p64 = scmp.eq.s32.totalorder %s32, 0
      %p65 = por %p63, %p64
      %p66 = scmp.ne.s32.totalorder %s52, %s53
      %p67 = scmp.eq.s32.totalorder %s33, 3
      %p68 = por %p66, %p67
      %p70 = scmp.ne.s32.totalorder %s53, %s69
      %p71 = scmp.eq.s32.totalorder %s33, 0
      %p72 = por %p70, %p71
      %s73 = ssub.s32 %s35, %s42
      %p74 = scmp.eq.s32.totalorder %s73, 0
      %s76 = sadd.s32 %s75, 1
      %s77 = scalar_select %p74, %s75, %s76
      %p80 = pneg %p74
      %p81 = scmp.eq.s32.totalorder %s27, 3
      %p82 = por %p80, %p81
      %p83 = scmp.ne.s32.totalorder %s75, %s78
      %p84 = scmp.eq.s32.totalorder %s27, 0
      %p85 = por %p83, %p84
      %p86 = scmp.ne.s32.totalorder %s75, %s78
      %p87 = scmp.eq.s32.totalorder %s32, 3
      %p88 = por %p86, %p87
      %p89 = scmp.ne.s32.totalorder %s78, %s79
      %p90 = scmp.eq.s32.totalorder %s32, 0
      %p91 = por %p89, %p90
      %p92 = scmp.ne.s32.totalorder %s78, %s79
      %p93 = scmp.eq.s32.totalorder %s33, 3
      %p94 = por %p92, %p93
      %p96 = scmp.ne.s32.totalorder %s79, %s95
      %p97 = scmp.eq.s32.totalorder %s33, 0
      %p98 = por %p96, %p97
      %s99 = ssub.s32 %s35, %s42
      %p100 = scmp.eq.s32.totalorder %s99, 0
      %s102 = sadd.s32 %s101, 1
      %s103 = scalar_select %p100, %s101, %s102
      %p106 = pneg %p100
      %p107 = scmp.eq.s32.totalorder %s27, 3
      %p108 = por %p106, %p107
      %p109 = scmp.ne.s32.totalorder %s101, %s104
      %p110 = scmp.eq.s32.totalorder %s27, 0
      %p111 = por %p109, %p110
      %p112 = scmp.ne.s32.totalorder %s101, %s104
      %p113 = scmp.eq.s32.totalorder %s32, 3
      %p114 = por %p112, %p113
      %p115 = scmp.ne.s32.totalorder %s104, %s105
      %p116 = scmp.eq.s32.totalorder %s32, 0
      %p117 = por %p115, %p116
      %p118 = scmp.ne.s32.totalorder %s104, %s105
      %p119 = scmp.eq.s32.totalorder %s33, 3
      %p120 = por %p118, %p119
      %p122 = scmp.ne.s32.totalorder %s105, %s121
      %p123 = scmp.eq.s32.totalorder %s33, 0
      %p124 = por %p122, %p123
      %s125 = ssub.s32 %s35, %s42
      %p126 = scmp.eq.s32.totalorder %s125, 0
      %s128 = sadd.s32 %s127, 1
      %s129 = scalar_select %p126, %s127, %s128
      %p132 = pneg %p126
      %p133 = scmp.eq.s32.totalorder %s27, 3
      %p134 = por %p132, %p133
      %p135 = scmp.ne.s32.totalorder %s127, %s130
      %p136 = scmp.eq.s32.totalorder %s27, 0
      %p137 = por %p135, %p136
      %p138 = scmp.ne.s32.totalorder %s127, %s130
      %p139 = scmp.eq.s32.totalorder %s32, 3
      %p140 = por %p138, %p139
      %p141 = scmp.ne.s32.totalorder %s130, %s131
      %p142 = scmp.eq.s32.totalorder %s32, 0
      %p143 = por %p141, %p142
      %p144 = scmp.ne.s32.totalorder %s130, %s131
      %p145 = scmp.eq.s32.totalorder %s33, 3
      %p146 = por %p144, %p145
      %p148 = scmp.ne.s32.totalorder %s131, %s147
      %p149 = scmp.eq.s32.totalorder %s33, 0
      %p150 = por %p148, %p149
      %s151 = ssub.s32 %s35, %s42
      %p152 = scmp.eq.s32.totalorder %s151, 0
      %s154 = sadd.s32 %s153, 1
      %s155 = scalar_select %p152, %s153, %s154
      %p158 = pneg %p152
      %p159 = scmp.eq.s32.totalorder %s27, 3
      %p160 = por %p158, %p159
      %p161 = scmp.ne.s32.totalorder %s153, %s156
      %p162 = scmp.eq.s32.totalorder %s27, 0
      %p163 = por %p161, %p162
      %p164 = scmp.ne.s32.totalorder %s153, %s156
      %p165 = scmp.eq.s32.totalorder %s32, 3
      %p166 = por %p164, %p165
      %p167 = scmp.ne.s32.totalorder %s156, %s157
      %p168 = scmp.eq.s32.totalorder %s32, 0
      %p169 = por %p167, %p168
      %p170 = scmp.ne.s32.totalorder %s156, %s157
      %p171 = scmp.eq.s32.totalorder %s33, 3
      %p172 = por %p170, %p171
      %p174 = scmp.ne.s32.totalorder %s157, %s173
      %p175 = scmp.eq.s32.totalorder %s33, 0
      %p176 = por %p174, %p175
      %s177 = ssub.s32 %s35, %s42
      %p178 = scmp.eq.s32.totalorder %s177, 0
      %s180 = sadd.s32 %s179, 1
      %s181 = scalar_select %p178, %s179, %s180
      %p184 = pneg %p178
      %p185 = scmp.eq.s32.totalorder %s27, 3
      %p186 = por %p184, %p185
      %p187 = scmp.ne.s32.totalorder %s179, %s182
      %p188 = scmp.eq.s32.totalorder %s27, 0
      %p189 = por %p187, %p188
      %p190 = scmp.ne.s32.totalorder %s179, %s182
      %p191 = scmp.eq.s32.totalorder %s32, 3
      %p192 = por %p190, %p191
      %p193 = scmp.ne.s32.totalorder %s182, %s183
      %p194 = scmp.eq.s32.totalorder %s32, 0
      %p195 = por %p193, %p194
      %p196 = scmp.ne.s32.totalorder %s182, %s183
      %p197 = scmp.eq.s32.totalorder %s33, 3
      %p198 = por %p196, %p197
      %p200 = scmp.ne.s32.totalorder %s183, %s199
      %p201 = scmp.eq.s32.totalorder %s33, 0
      %p202 = por %p200, %p201
      %s203 = ssub.s32 %s35, %s42
      %p204 = scmp.eq.s32.totalorder %s203, 0
      %s206 = sadd.s32 %s205, 1
      %s207 = scalar_select %p204, %s205, %s206
      %p210 = pneg %p204
      %p211 = scmp.eq.s32.totalorder %s27, 3
      %p212 = por %p210, %p211
      %p213 = scmp.ne.s32.totalorder %s205, %s208
      %p214 = scmp.eq.s32.totalorder %s27, 0
      %p215 = por %p213, %p214
      %p216 = scmp.ne.s32.totalorder %s205, %s208
      %p217 = scmp.eq.s32.totalorder %s32, 3
      %p218 = por %p216, %p217
      %p219 = scmp.ne.s32.totalorder %s208, %s209
      %p220 = scmp.eq.s32.totalorder %s32, 0
      %p221 = por %p219, %p220
      %p222 = scmp.ne.s32.totalorder %s208, %s209
      %p223 = scmp.eq.s32.totalorder %s33, 3
      %p224 = por %p222, %p223
      %p226 = scmp.ne.s32.totalorder %s209, %s225
      %p227 = scmp.eq.s32.totalorder %s33, 0
      %p228 = por %p226, %p227
      %s229 = ssub.s32 %s35, %s42
      %p230 = scmp.eq.s32.totalorder %s229, 0
      %s232 = sadd.s32 %s231, 1
      %s233 = scalar_select %p230, %s231, %s232
      %p236 = pneg %p230
      %p237 = scmp.eq.s32.totalorder %s27, 3
      %p238 = por %p236, %p237
      %p239 = scmp.ne.s32.totalorder %s231, %s234
      %p240 = scmp.eq.s32.totalorder %s27, 0
      %p241 = por %p239, %p240
      %p242 = scmp.ne.s32.totalorder %s231, %s234
      %p243 = scmp.eq.s32.totalorder %s32, 3
      %p244 = por %p242, %p243
      %p245 = scmp.ne.s32.totalorder %s234, %s235
      %p246 = scmp.eq.s32.totalorder %s32, 0
      %p247 = por %p245, %p246
      %p248 = scmp.ne.s32.totalorder %s234, %s235
      %p249 = scmp.eq.s32.totalorder %s33, 3
      %p250 = por %p248, %p249
      %p252 = scmp.ne.s32.totalorder %s235, %s251
      %p253 = scmp.eq.s32.totalorder %s33, 0
      %p254 = por %p252, %p253
      %s255 = ssub.s32 %s35, %s42
      %p256 = scmp.eq.s32.totalorder %s255, 0
      %s258 = sadd.s32 %s257, 1
      %s259 = scalar_select %p256, %s257, %s258
      %p262 = pneg %p256
      %p263 = scmp.eq.s32.totalorder %s27, 3
      %p264 = por %p262, %p263
      %p265 = scmp.ne.s32.totalorder %s257, %s260
      %p266 = scmp.eq.s32.totalorder %s27, 0
      %p267 = por %p265, %p266
      %p268 = scmp.ne.s32.totalorder %s257, %s260
      %p269 = scmp.eq.s32.totalorder %s32, 3
      %p270 = por %p268, %p269
      %p271 = scmp.ne.s32.totalorder %s260, %s261
      %p272 = scmp.eq.s32.totalorder %s32, 0
      %p273 = por %p271, %p272
      %p274 = scmp.ne.s32.totalorder %s260, %s261
      %p275 = scmp.eq.s32.totalorder %s33, 3
      %p276 = por %p274, %p275
      %p278 = scmp.ne.s32.totalorder %s261, %s277
      %p279 = scmp.eq.s32.totalorder %s33, 0
      %p280 = por %p278, %p279
      %s281 = ssub.s32 %s35, %s42
      %p282 = scmp.eq.s32.totalorder %s281, 0
      %s284 = sadd.s32 %s283, 1
      %s285 = scalar_select %p282, %s283, %s284
      %p288 = pneg %p282
      %p289 = scmp.eq.s32.totalorder %s27, 3
      %p290 = por %p288, %p289
      %p291 = scmp.ne.s32.totalorder %s283, %s286
      %p292 = scmp.eq.s32.totalorder %s27, 0
      %p293 = por %p291, %p292
      %p294 = scmp.ne.s32.totalorder %s283, %s286
      %p295 = scmp.eq.s32.totalorder %s32, 3
      %p296 = por %p294, %p295
      %p297 = scmp.ne.s32.totalorder %s286, %s287
      %p298 = scmp.eq.s32.totalorder %s32, 0
      %p299 = por %p297, %p298
      %p300 = scmp.ne.s32.totalorder %s286, %s287
      %p301 = scmp.eq.s32.totalorder %s33, 3
      %p302 = por %p300, %p301
      %p304 = scmp.ne.s32.totalorder %s287, %s303
      %p305 = scmp.eq.s32.totalorder %s33, 0
      %p306 = por %p304, %p305
      %s307 = ssub.s32 %s35, %s42
      %p308 = scmp.eq.s32.totalorder %s307, 0
      %s310 = sadd.s32 %s309, 1
      %s311 = scalar_select %p308, %s309, %s310
      %p314 = pneg %p308
      %p315 = scmp.eq.s32.totalorder %s27, 3
      %p316 = por %p314, %p315
      %p317 = scmp.ne.s32.totalorder %s309, %s312
      %p318 = scmp.eq.s32.totalorder %s27, 0
      %p319 = por %p317, %p318
      %p320 = scmp.ne.s32.totalorder %s309, %s312
      %p321 = scmp.eq.s32.totalorder %s32, 3
      %p322 = por %p320, %p321
      %p323 = scmp.ne.s32.totalorder %s312, %s313
      %p324 = scmp.eq.s32.totalorder %s32, 0
      %p325 = por %p323, %p324
      %p326 = scmp.ne.s32.totalorder %s312, %s313
      %p327 = scmp.eq.s32.totalorder %s33, 3
      %p328 = por %p326, %p327
      %p330 = scmp.ne.s32.totalorder %s313, %s329
      %p331 = scmp.eq.s32.totalorder %s33, 0
      %p332 = por %p330, %p331
      %s333 = ssub.s32 %s35, %s42
      %p334 = scmp.eq.s32.totalorder %s333, 0
      %s336 = sadd.s32 %s335, 1
      %s337 = scalar_select %p334, %s335, %s336
      %p340 = pneg %p334
      %p341 = scmp.eq.s32.totalorder %s27, 3
      %p342 = por %p340, %p341
      %p343 = scmp.ne.s32.totalorder %s335, %s338
      %p344 = scmp.eq.s32.totalorder %s27, 0
      %p345 = por %p343, %p344
      %p346 = scmp.ne.s32.totalorder %s335, %s338
      %p347 = scmp.eq.s32.totalorder %s32, 3
      %p348 = por %p346, %p347
      %p349 = scmp.ne.s32.totalorder %s338, %s339
      %p350 = scmp.eq.s32.totalorder %s32, 0
      %p351 = por %p349, %p350
      %p352 = scmp.ne.s32.totalorder %s338, %s339
      %p353 = scmp.eq.s32.totalorder %s33, 3
      %p354 = por %p352, %p353
      %p356 = scmp.ne.s32.totalorder %s339, %s355
      %p357 = scmp.eq.s32.totalorder %s33, 0
      %p358 = por %p356, %p357
      %s359 = ssub.s32 %s35, %s42
      %p360 = scmp.eq.s32.totalorder %s359, 0
      %s362 = sadd.s32 %s361, 1
      %s363 = scalar_select %p360, %s361, %s362
      %p366 = pneg %p360
      %p367 = scmp.eq.s32.totalorder %s27, 3
      %p368 = por %p366, %p367
      %p369 = scmp.ne.s32.totalorder %s361, %s364
      %p370 = scmp.eq.s32.totalorder %s27, 0
      %p371 = por %p369, %p370
      %p372 = scmp.ne.s32.totalorder %s361, %s364
      %p373 = scmp.eq.s32.totalorder %s32, 3
      %p374 = por %p372, %p373
      %p375 = scmp.ne.s32.totalorder %s364, %s365
      %p376 = scmp.eq.s32.totalorder %s32, 0
      %p377 = por %p375, %p376
      %p378 = scmp.ne.s32.totalorder %s364, %s365
      %p379 = scmp.eq.s32.totalorder %s33, 3
      %p380 = por %p378, %p379
      %p382 = scmp.ne.s32.totalorder %s365, %s381
      %p383 = scmp.eq.s32.totalorder %s33, 0
      %p384 = por %p382, %p383
      %s386 = sadd.s32 %s385, 1
      %p389 = scmp.eq.s32.totalorder %s27, 3
      %p390 = scmp.ne.s32.totalorder %s385, %s387
      %p391 = scmp.eq.s32.totalorder %s27, 0
      %p392 = por %p390, %p391
      %p393 = scmp.ne.s32.totalorder %s385, %s387
      %p394 = scmp.eq.s32.totalorder %s32, 3
      %p395 = por %p393, %p394
      %p396 = scmp.ne.s32.totalorder %s387, %s388
      %p397 = scmp.eq.s32.totalorder %s32, 0
      %p398 = por %p396, %p397
      %p399 = scmp.ne.s32.totalorder %s387, %s388
      %p400 = scmp.eq.s32.totalorder %s33, 3
      %p401 = por %p399, %p400
      %p403 = scmp.ne.s32.totalorder %s388, %s402
      %p404 = scmp.eq.s32.totalorder %s33, 0
      %p405 = por %p403, %p404
      %s407 = sadd.s32 %s406, 1
      %p410 = scmp.eq.s32.totalorder %s27, 3
      %p411 = scmp.ne.s32.totalorder %s406, %s408
      %p412 = scmp.eq.s32.totalorder %s27, 0
      %p413 = por %p411, %p412
      %p414 = scmp.ne.s32.totalorder %s406, %s408
      %p415 = scmp.eq.s32.totalorder %s32, 3
      %p416 = por %p414, %p415
      %p417 = scmp.ne.s32.totalorder %s408, %s409
      %p418 = scmp.eq.s32.totalorder %s32, 0
      %p419 = por %p417, %p418
      %p420 = scmp.ne.s32.totalorder %s408, %s409
      %p421 = scmp.eq.s32.totalorder %s33, 3
      %p422 = por %p420, %p421
      %p424 = scmp.ne.s32.totalorder %s409, %s423
      %p425 = scmp.eq.s32.totalorder %s33, 0
      %p426 = por %p424, %p425
      %s427 = ssub.s32 %s34, %s46
      %p428 = scmp.eq.s32.totalorder %s427, 0
      %s430 = sadd.s32 %s429, 1
      %s431 = scalar_select %p428, %s429, %s430
      %p434 = pneg %p428
      %p435 = scmp.eq.s32.totalorder %s27, 3
      %p436 = por %p434, %p435
      %p437 = scmp.ne.s32.totalorder %s429, %s432
      %p438 = scmp.eq.s32.totalorder %s27, 0
      %p439 = por %p437, %p438
      %p440 = scmp.ne.s32.totalorder %s429, %s432
      %p441 = scmp.eq.s32.totalorder %s32, 3
      %p442 = por %p440, %p441
      %p443 = scmp.ne.s32.totalorder %s432, %s433
      %p444 = scmp.eq.s32.totalorder %s32, 0
      %p445 = por %p443, %p444
      %p446 = scmp.ne.s32.totalorder %s432, %s433
      %p447 = scmp.eq.s32.totalorder %s33, 3
      %p448 = por %p446, %p447
      %p450 = scmp.ne.s32.totalorder %s433, %s449
      %p451 = scmp.eq.s32.totalorder %s33, 0
      %p452 = por %p450, %p451
      %p453 = scmp.le.s32.totalorder 1, %s27
      %p454 = scmp.lt.s32.totalorder %s27, 5
      %p455 = pnand %p453, %p454
      %p456 = pneg %p455
      // Predicated region
      $region9: #{_lambda_.4} parent=5 // pred_check
        _
      $region10: #{_lambda_.4} parent=5 // pred_check_branch
        %458 = sbr.rel (%p455) target = $region12
      $region11: #{_lambda_.4} parent=5 // pred_region
        %s459 = ssub.s32 %s27, 1
        // Predicated region
        $region13: #{_lambda_.4} parent=11 // pred_check
          %p460 = pneg %p398
        $region14: #{_lambda_.4} parent=11 // pred_check_branch
          %462 = sbr.rel (%p460) target = $region16
        $region15: #{_lambda_.4} parent=11 // pred_region
          _
        $region16: #{_lambda_.4} parent=11 // pred_fallthru
          _
        // Predicated region
        $region17: #{_lambda_.4} parent=11 // pred_check
          %p463 = pneg %p419
        $region18: #{_lambda_.4} parent=11 // pred_check_branch
          %465 = sbr.rel (%p463) target = $region20
        $region19: #{_lambda_.4} parent=11 // pred_region
          _
        $region20: #{_lambda_.4} parent=11 // pred_fallthru
          _
      $region12: #{_lambda_.4} parent=5 // pred_fallthru
        _
      %p466 = scmp.lt.s32.totalorder %s27, 4
      // Predicated region
      $region21: #{_lambda_.4} parent=5 // pred_check
        %p467 = pneg %p466
      $region22: #{_lambda_.4} parent=5 // pred_check_branch
        %469 = sbr.rel (%p467) target = $region24
      $region23: #{_lambda_.4} parent=5 // pred_region
        // Predicated region
        $region25: #{_lambda_.4} parent=23 // pred_check
          %p470 = pneg %p59
        $region26: #{_lambda_.4} parent=23 // pred_check_branch
          %472 = sbr.rel (%p470) target = $region28
        $region27: #{_lambda_.4} parent=23 // pred_region
          %p473 = scmp.lt.s32.totalorder %s34, 1
          %s474 = scalar_select %p473, %s34, 1
          %s475 = smul.addr %s474, 2
          %s476 = smul.addr %s475, 8
          %s477 = scalar_lea.vmem %s0, %s476
        $region28: #{_lambda_.4} parent=23 // pred_fallthru
          _
        // Predicated region
        $region29: #{_lambda_.4} parent=23 // pred_check
          %p478 = pneg %p85
        $region30: #{_lambda_.4} parent=23 // pred_check_branch
          %480 = sbr.rel (%p478) target = $region32
        $region31: #{_lambda_.4} parent=23 // pred_region
          %p481 = scmp.lt.s32.totalorder %s35, 1
          %s482 = scalar_select %p481, %s35, 1
          %s483 = scalar_lea.vmem %s1, %s482
        $region32: #{_lambda_.4} parent=23 // pred_fallthru
          _
        // Predicated region
        $region33: #{_lambda_.4} parent=23 // pred_check
          %p484 = pneg %p111
        $region34: #{_lambda_.4} parent=23 // pred_check_branch
          %486 = sbr.rel (%p484) target = $region36
        $region35: #{_lambda_.4} parent=23 // pred_region
          %p487 = scmp.lt.s32.totalorder %s35, 1
          %s488 = scalar_select %p487, %s35, 1
          %s489 = scalar_lea.vmem %s2, %s488
        $region36: #{_lambda_.4} parent=23 // pred_fallthru
          _
        // Predicated region
        $region37: #{_lambda_.4} parent=23 // pred_check
          %p490 = pneg %p137
        $region38: #{_lambda_.4} parent=23 // pred_check_branch
          %492 = sbr.rel (%p490) target = $region40
        $region39: #{_lambda_.4} parent=23 // pred_region
          %s493 = sand.u32 %s127, 1
          %s494 = scalar_lea.sflag [#allocation4], %s493
          %s495 = sand.u32 %s127, 1
          %s496 = smul.addr %s495, 192
          %s497 = scalar_lea.vmem [#allocation3], %s496
          %s499 = ssub.s32 3072, 3072
          %500 = vsyncadd %s494, %s499
          %s501 = smul.addr %s35, 48
          %s502 = smul.addr %s501, 64
          %s503 = scalar_lea.hbm %s3, %s502
          %s504 = sshll.u32 %s497, 4
          %s505 = int_to_ptr.vmem [resolvable:$true] %s504
          %510 = dma.hbm_to_vmem [thread:$0]  %s503, 3072, %s505, %s494, 192, 192, 12
        $region40: #{_lambda_.4} parent=23 // pred_fallthru
          _
        // Predicated region
        $region41: #{_lambda_.4} parent=23 // pred_check
          %p511 = pneg %p163
        $region42: #{_lambda_.4} parent=23 // pred_check_branch
          %513 = sbr.rel (%p511) target = $region44
        $region43: #{_lambda_.4} parent=23 // pred_region
          %p514 = scmp.lt.s32.totalorder %s35, 1
          %s515 = scalar_select %p514, %s35, 1
          %s516 = smul.addr %s515, 3
          %s517 = scalar_lea.vmem %s4, %s516
        $region44: #{_lambda_.4} parent=23 // pred_fallthru
          _
        // Predicated region
        $region45: #{_lambda_.4} parent=23 // pred_check
          %p518 = pneg %p189
        $region46: #{_lambda_.4} parent=23 // pred_check_branch
          %520 = sbr.rel (%p518) target = $region48
        $region47: #{_lambda_.4} parent=23 // pred_region
          %p521 = scmp.lt.s32.totalorder %s35, 1
          %s522 = scalar_select %p521, %s35, 1
          %s523 = smul.addr %s522, 16
          %s524 = smul.addr %s523, 4
          %s525 = scalar_lea.vmem %s5, %s524
        $region48: #{_lambda_.4} parent=23 // pred_fallthru
          _
        // Predicated region
        $region49: #{_lambda_.4} parent=23 // pred_check
          %p526 = pneg %p215
        $region50: #{_lambda_.4} parent=23 // pred_check_branch
          %528 = sbr.rel (%p526) target = $region52
        $region51: #{_lambda_.4} parent=23 // pred_region
          %p529 = scmp.lt.s32.totalorder %s35, 1
          %s530 = scalar_select %p529, %s35, 1
          %s531 = scalar_lea.vmem %s6, %s530
        $region52: #{_lambda_.4} parent=23 // pred_fallthru
          _
        // Predicated region
        $region53: #{_lambda_.4} parent=23 // pred_check
          %p532 = pneg %p241
        $region54: #{_lambda_.4} parent=23 // pred_check_branch
          %534 = sbr.rel (%p532) target = $region56
        $region55: #{_lambda_.4} parent=23 // pred_region
          %p535 = scmp.lt.s32.totalorder %s35, 1
          %s536 = scalar_select %p535, %s35, 1
          %s537 = scalar_lea.vmem %s7, %s536
        $region56: #{_lambda_.4} parent=23 // pred_fallthru
          _
        // Predicated region
        $region57: #{_lambda_.4} parent=23 // pred_check
          %p538 = pneg %p267
        $region58: #{_lambda_.4} parent=23 // pred_check_branch
          %540 = sbr.rel (%p538) target = $region60
        $region59: #{_lambda_.4} parent=23 // pred_region
          %p541 = scmp.lt.s32.totalorder %s35, 1
          %s542 = scalar_select %p541, %s35, 1
          %s543 = scalar_lea.vmem %s8, %s542
        $region60: #{_lambda_.4} parent=23 // pred_fallthru
          _
        // Predicated region
        $region61: #{_lambda_.4} parent=23 // pred_check
          %p544 = pneg %p293
        $region62: #{_lambda_.4} parent=23 // pred_check_branch
          %546 = sbr.rel (%p544) target = $region64
        $region63: #{_lambda_.4} parent=23 // pred_region
          %s547 = sand.u32 %s27, 1
          %s548 = scalar_lea.sflag [#allocation6], %s547
          %s549 = sand.u32 %s283, 1
          %s550 = smul.addr %s549, 256
          %s551 = scalar_lea.vmem [#allocation5], %s550
          %s553 = ssub.s32 4096, 4096
          %554 = vsyncadd %s548, %s553
          %s555 = smul.addr %s35, 64
          %s556 = smul.addr %s555, 64
          %s557 = scalar_lea.hbm %s9, %s556
          %s558 = sshll.u32 %s551, 4
          %s559 = int_to_ptr.vmem [resolvable:$true] %s558
          %564 = dma.hbm_to_vmem [thread:$0]  %s557, 4096, %s559, %s548, 256, 256, 16
        $region64: #{_lambda_.4} parent=23 // pred_fallthru
          _
        // Predicated region
        $region65: #{_lambda_.4} parent=23 // pred_check
          %p565 = pneg %p319
        $region66: #{_lambda_.4} parent=23 // pred_check_branch
          %567 = sbr.rel (%p565) target = $region68
        $region67: #{_lambda_.4} parent=23 // pred_region
          %p568 = scmp.lt.s32.totalorder %s35, 1
          %s569 = scalar_select %p568, %s35, 1
          %s570 = smul.addr %s569, 4
          %s571 = scalar_lea.vmem %s10, %s570
        $region68: #{_lambda_.4} parent=23 // pred_fallthru
          _
        // Predicated region
        $region69: #{_lambda_.4} parent=23 // pred_check
          %p572 = pneg %p345
        $region70: #{_lambda_.4} parent=23 // pred_check_branch
          %574 = sbr.rel (%p572) target = $region72
        $region71: #{_lambda_.4} parent=23 // pred_region
          %s575 = sand.u32 %s27, 1
          %s576 = scalar_lea.sflag [#allocation6], %s575
          %s577 = sand.u32 %s335, 1
          %s578 = smul.addr %s577, 256
          %s579 = scalar_lea.vmem [#allocation7], %s578
          %s581 = ssub.s32 4096, 4096
          %582 = vsyncadd %s576, %s581
          %s583 = smul.addr %s35, 64
          %s584 = smul.addr %s583, 64
          %s585 = scalar_lea.hbm %s11, %s584
          %s586 = sshll.u32 %s579, 4
          %s587 = int_to_ptr.vmem [resolvable:$true] %s586
          %592 = dma.hbm_to_vmem [thread:$0]  %s585, 4096, %s587, %s576, 64, 64, 4
        $region72: #{_lambda_.4} parent=23 // pred_fallthru
          _
        // Predicated region
        $region73: #{_lambda_.4} parent=23 // pred_check
          %p593 = pneg %p371
        $region74: #{_lambda_.4} parent=23 // pred_check_branch
          %595 = sbr.rel (%p593) target = $region76
        $region75: #{_lambda_.4} parent=23 // pred_region
          %p596 = scmp.lt.s32.totalorder %s35, 1
          %s597 = scalar_select %p596, %s35, 1
          %s598 = scalar_lea.vmem %s12, %s597
        $region76: #{_lambda_.4} parent=23 // pred_fallthru
          _
      $region24: #{_lambda_.4} parent=5 // pred_fallthru
        _
      %p599 = scmp.le.s32.totalorder 1, %s27
      %p600 = scmp.lt.s32.totalorder %s27, 5
      %p601 = pnand %p599, %p600
      %p602 = pneg %p601
      // Predicated region
      $region77: #{_lambda_.4} parent=5 // pred_check
        _
      $region78: #{_lambda_.4} parent=5 // pred_check_branch
        %604 = sbr.rel (%p601) target = $region80
      $region79: #{_lambda_.4} parent=5 // pred_region
        %s605 = ssub.s32 %s27, 1
        %s606 = sand.u32 %s130, 1
        %s607 = scalar_lea.sflag [#allocation4], %s606
        %s608 = sand.u32 %s130, 1
        %s609 = smul.addr %s608, 192
        %s610 = scalar_lea.vmem [#allocation3], %s609
        // Predicated region
        $region81: #{_lambda_.4} parent=79 // pred_check
          %p611 = pneg %p143
        $region82: #{_lambda_.4} parent=79 // pred_check_branch
          %613 = sbr.rel (%p611) target = $region84
        $region83: #{_lambda_.4} parent=79 // pred_region
          %614 = dma.done %s607, 3072
        $region84: #{_lambda_.4} parent=79 // pred_fallthru
          _
        %s615 = sand.u32 %s32, 1
        %s616 = scalar_lea.sflag [#allocation6], %s615
        %s617 = sand.u32 %s286, 1
        %s618 = smul.addr %s617, 256
        %s619 = scalar_lea.vmem [#allocation5], %s618
        // Predicated region
        $region85: #{_lambda_.4} parent=79 // pred_check
          %p620 = pneg %p299
        $region86: #{_lambda_.4} parent=79 // pred_check_branch
          %622 = sbr.rel (%p620) target = $region88
        $region87: #{_lambda_.4} parent=79 // pred_region
          %623 = dma.done %s616, 4096
        $region88: #{_lambda_.4} parent=79 // pred_fallthru
          _
        %s624 = sand.u32 %s32, 1
        %s625 = scalar_lea.sflag [#allocation6], %s624
        %s626 = sand.u32 %s338, 1
        %s627 = smul.addr %s626, 256
        %s628 = scalar_lea.vmem [#allocation7], %s627
        // Predicated region
        $region89: #{_lambda_.4} parent=79 // pred_check
          %p629 = pneg %p351
        $region90: #{_lambda_.4} parent=79 // pred_check_branch
          %631 = sbr.rel (%p629) target = $region92
        $region91: #{_lambda_.4} parent=79 // pred_region
          %632 = dma.done %s625, 4096
        $region92: #{_lambda_.4} parent=79 // pred_fallthru
          _
        %p633 = scmp.lt.s32.totalorder %s36, 1
        %s634 = scalar_select %p633, %s36, 1
        %s635 = smul.addr %s634, 2
        %s636 = smul.addr %s635, 8
        %s637 = scalar_lea.vmem %s0, %s636
        %p638 = pneg %p65
        %p639 = pneg %p62
        %p640 = scmp.lt.s32.totalorder %s37, 1
        %s641 = scalar_select %p640, %s37, 1
        %s642 = scalar_lea.vmem %s1, %s641
        %p643 = pneg %p91
        %p644 = pneg %p88
        %p645 = scmp.lt.s32.totalorder %s37, 1
        %s646 = scalar_select %p645, %s37, 1
        %s647 = scalar_lea.vmem %s2, %s646
        %p648 = pneg %p117
        %p649 = pneg %p114
        %s650 = sand.u32 %s130, 1
        %s651 = scalar_lea.sflag [#allocation4], %s650
        %s652 = sand.u32 %s130, 1
        %s653 = smul.addr %s652, 192
        %s654 = scalar_lea.vmem [#allocation3], %s653
        %p655 = pneg %p143
        %p656 = pneg %p140
        %p657 = scmp.lt.s32.totalorder %s37, 1
        %s658 = scalar_select %p657, %s37, 1
        %s659 = smul.addr %s658, 3
        %s660 = scalar_lea.vmem %s4, %s659
        %p661 = pneg %p169
        %p662 = pneg %p166
        %p663 = scmp.lt.s32.totalorder %s37, 1
        %s664 = scalar_select %p663, %s37, 1
        %s665 = smul.addr %s664, 16
        %s666 = smul.addr %s665, 4
        %s667 = scalar_lea.vmem %s5, %s666
        %p668 = pneg %p195
        %p669 = pneg %p192
        %p670 = scmp.lt.s32.totalorder %s37, 1
        %s671 = scalar_select %p670, %s37, 1
        %s672 = scalar_lea.vmem %s6, %s671
        %p673 = pneg %p221
        %p674 = pneg %p218
        %p675 = scmp.lt.s32.totalorder %s37, 1
        %s676 = scalar_select %p675, %s37, 1
        %s677 = scalar_lea.vmem %s7, %s676
        %p678 = pneg %p247
        %p679 = pneg %p244
        %p680 = scmp.lt.s32.totalorder %s37, 1
        %s681 = scalar_select %p680, %s37, 1
        %s682 = scalar_lea.vmem %s8, %s681
        %p683 = pneg %p273
        %p684 = pneg %p270
        %s685 = sand.u32 %s32, 1
        %s686 = scalar_lea.sflag [#allocation6], %s685
        %s687 = sand.u32 %s286, 1
        %s688 = smul.addr %s687, 256
        %s689 = scalar_lea.vmem [#allocation5], %s688
        %p690 = pneg %p299
        %p691 = pneg %p296
        %p692 = scmp.lt.s32.totalorder %s37, 1
        %s693 = scalar_select %p692, %s37, 1
        %s694 = smul.addr %s693, 4
        %s695 = scalar_lea.vmem %s10, %s694
        %p696 = pneg %p325
        %p697 = pneg %p322
        %s698 = sand.u32 %s32, 1
        %s699 = scalar_lea.sflag [#allocation6], %s698
        %s700 = sand.u32 %s338, 1
        %s701 = smul.addr %s700, 256
        %s702 = scalar_lea.vmem [#allocation7], %s701
        %p703 = pneg %p351
        %p704 = pneg %p348
        %p705 = scmp.lt.s32.totalorder %s37, 1
        %s706 = scalar_select %p705, %s37, 1
        %s707 = scalar_lea.vmem %s12, %s706
        %p708 = pneg %p377
        %p709 = pneg %p374
        %p710 = pneg %p398
        %p711 = pneg %p395
        %p712 = pneg %p419
        %p713 = pneg %p416
        %p714 = pneg %p445
        %p715 = pneg %p442
        %p716 = scmp.lt.s32.totalorder %s36, 1
        %s717 = scalar_select %p716, %s36, 1
        %s718 = smul.addr %s717, 2
        %s719 = smul.addr %s718, 8
        %s720 = scalar_lea.vmem %s15, %s719
        %p721 = scmp.lt.s32.totalorder %s36, 1
        %s722 = scalar_select %p721, %s36, 1
        %s723 = smul.addr %s722, 2
        %s724 = smul.addr %s723, 8
        %s725 = scalar_lea.vmem %s0, %s724
        %p726 = scmp.lt.s32.totalorder %s37, 1
        %s727 = scalar_select %p726, %s37, 1
        %s728 = scalar_lea.vmem %s1, %s727
        %p729 = scmp.lt.s32.totalorder %s37, 1
        %s730 = scalar_select %p729, %s37, 1
        %s731 = scalar_lea.vmem %s2, %s730
        %p732 = scmp.lt.s32.totalorder %s37, 1
        %s733 = scalar_select %p732, %s37, 1
        %s734 = smul.addr %s733, 3
        %s735 = scalar_lea.vmem %s4, %s734
        %p736 = scmp.lt.s32.totalorder %s37, 1
        %s737 = scalar_select %p736, %s37, 1
        %s738 = smul.addr %s737, 16
        %s739 = smul.addr %s738, 4
        %s740 = scalar_lea.vmem %s5, %s739
        %p741 = scmp.lt.s32.totalorder %s37, 1
        %s742 = scalar_select %p741, %s37, 1
        %s743 = scalar_lea.vmem %s6, %s742
        %p744 = scmp.lt.s32.totalorder %s37, 1
        %s745 = scalar_select %p744, %s37, 1
        %s746 = scalar_lea.vmem %s7, %s745
        %p747 = scmp.lt.s32.totalorder %s37, 1
        %s748 = scalar_select %p747, %s37, 1
        %s749 = scalar_lea.vmem %s8, %s748
        %p750 = scmp.lt.s32.totalorder %s37, 1
        %s751 = scalar_select %p750, %s37, 1
        %s752 = smul.addr %s751, 4
        %s753 = scalar_lea.vmem %s10, %s752
        %p754 = scmp.lt.s32.totalorder %s37, 1
        %s755 = scalar_select %p754, %s37, 1
        %s756 = scalar_lea.vmem %s12, %s755
        %p757 = scmp.lt.s32.totalorder %s36, 1
        %s758 = scalar_select %p757, %s36, 1
        %s759 = smul.addr %s758, 2
        %s760 = smul.addr %s759, 8
        %s761 = scalar_lea.vmem %s15, %s760
        %p763 = scmp.eq.s32.totalorder %s37, 0
        // Predicated region
        $region93: #{_lambda_.4} parent=79 // pred_check
          %p764 = pneg %p763
        $region94: #{_lambda_.4} parent=79 // pred_check_branch
          %766 = sbr.rel (%p764) target = $region96
        $region95: #{_lambda_.4} parent=79 // pred_region
          %v767 = vld [vmem:[%s725] sm:$0xff]
          %v768 = vld [vmem:[%s725 + $0x8] sm:$0xff]
          %769 = vst [vmem:[#allocation2] sm:$0xff] %v767
          %770 = vst [vmem:[#allocation2 + $0x8] sm:$0xff] %v768
        $region96: #{_lambda_.4} parent=79 // pred_fallthru
          _
        %v771 = vld [vmem:[#allocation2] sm:$0xff]
        %v772 = vld [vmem:[#allocation2 + $0x8] sm:$0xff]
        %v773 = vlaneseq
        %v774 = vshrl.u32 %v773, 7
        %v775 = vadd.s32 %v774, 8
        %v776 = vlaneseq
        %v777 = vand.u32 %v776, 127
        %vm778 = vcmp.le.s32.totalorder %v777, %v774
        %vm779 = vcmp.le.s32.totalorder %v777, %v775
        %v780 = vsel %vm778, 0.0, -1e+30
        %v781 = vsel %vm779, 0.0, -1e+30
        %v782 = vld [vmem:[%s728] sm:$0x1]
        %v783 = vld [vmem:[%s731] sm:$0x1]
        %784 = vadd.xlane.f32.xlu0 %v771
        %v785 = vpop.xlane.xlu0 %784
        %786 = vadd.xlane.f32.xlu0 %v772
        %v787 = vpop.xlane.xlu0 %786
        %v788 = vrcp.pop 128.0
        %v789 = vmul.f32 %v785, %v788
        %v790 = vmul.f32 %v787, %v788
        %v791 = vsub.f32 %v771, %v789
        %v792 = vsub.f32 %v772, %v790
        %v793 = vmul.f32 %v791, %v791
        %v794 = vmul.f32 %v792, %v792
        %795 = vadd.xlane.f32.xlu0 %v793
        %v796 = vpop.xlane.xlu0 %795
        %797 = vadd.xlane.f32.xlu0 %v794
        %v798 = vpop.xlane.xlu0 %797
        %v799 = vmul.f32 %v796, %v788
        %v800 = vmul.f32 %v798, %v788
        %v801 = vadd.f32 %v799, 1e-05
        %v802 = vadd.f32 %v800, 1e-05
        %v803 = vrsqrt.pop %v801
        %v804 = vrsqrt.pop %v802
        %v805 = vmul.f32 %v791, %v803
        %v806 = vmul.f32 %v792, %v804
        %v808 = vlaneseq
        %v809 = vshrl.u32 %v808, 7
        %v810 = vsub.s32 0, %v809
        %v811 = vrot.slane %v782, %v810
        %v813 = vmul.f32 %v805, %v811
        %v814 = vmul.f32 %v806, %v811
        %v816 = vlaneseq
        %v817 = vshrl.u32 %v816, 7
        %v818 = vsub.s32 0, %v817
        %v819 = vrot.slane %v783, %v818
        %v821 = vadd.f32 %v813, %v819
        %v822 = vadd.f32 %v814, %v819
        %v823 = vld [vmem:[%s610] sm:$0xff]
        %v824 = vld [vmem:[%s610 + $0x8] sm:$0xf]
        %v825 = vld [vmem:[%s610 + $0xc] sm:$0xff]
        %v826 = vld [vmem:[%s610 + $0x14] sm:$0xf]
        %v827 = vld [vmem:[%s610 + $0x18] sm:$0xff]
        %v828 = vld [vmem:[%s610 + $0x20] sm:$0xf]
        %v829 = vld [vmem:[%s610 + $0x24] sm:$0xff]
        %v830 = vld [vmem:[%s610 + $0x2c] sm:$0xf]
        %v831 = vld [vmem:[%s610 + $0x30] sm:$0xff]
        %v832 = vld [vmem:[%s610 + $0x38] sm:$0xf]
        %v833 = vld [vmem:[%s610 + $0x3c] sm:$0xff]
        %v834 = vld [vmem:[%s610 + $0x44] sm:$0xf]
        %v835 = vld [vmem:[%s610 + $0x48] sm:$0xff]
        %v836 = vld [vmem:[%s610 + $0x50] sm:$0xf]
        %v837 = vld [vmem:[%s610 + $0x54] sm:$0xff]
        %v838 = vld [vmem:[%s610 + $0x5c] sm:$0xf]
        %v839 = vld [vmem:[%s610 + $0x60] sm:$0xff]
        %v840 = vld [vmem:[%s610 + $0x68] sm:$0xf]
        %v841 = vld [vmem:[%s610 + $0x6c] sm:$0xff]
        %v842 = vld [vmem:[%s610 + $0x74] sm:$0xf]
        %v843 = vld [vmem:[%s610 + $0x78] sm:$0xff]
        %v844 = vld [vmem:[%s610 + $0x80] sm:$0xf]
        %v845 = vld [vmem:[%s610 + $0x84] sm:$0xff]
        %v846 = vld [vmem:[%s610 + $0x8c] sm:$0xf]
        %v847 = vld [vmem:[%s610 + $0x90] sm:$0xff]
        %v848 = vld [vmem:[%s610 + $0x98] sm:$0xf]
        %v849 = vld [vmem:[%s610 + $0x9c] sm:$0xff]
        %v850 = vld [vmem:[%s610 + $0xa4] sm:$0xf]
        %v851 = vld [vmem:[%s610 + $0xa8] sm:$0xff]
        %v852 = vld [vmem:[%s610 + $0xb0] sm:$0xf]
        %v853 = vld [vmem:[%s610 + $0xb4] sm:$0xff]
        %v854 = vld [vmem:[%s610 + $0xbc] sm:$0xf]
        %v855 = vpack.c.bf16 %v822, %v821
        %v856 = vld [vmem:[%s735] sm:$0x7]
        %v858 = vlaneseq
        %v859 = vshrl.u32 %v858, 7
        %v860 = vsub.s32 0, %v859
        %v861 = vrot.slane %v856, %v860
        %v862 = vlaneseq
        %v863 = vshrl.u32 %v862, 7
        %v864 = vsub.s32 1, %v863
        %v865 = vrot.slane %v856, %v864
        %v866 = vlaneseq
        %v867 = vshrl.u32 %v866, 7
        %v868 = vsub.s32 2, %v867
        %v869 = vrot.slane %v856, %v868
        %v905 = vunpack.c.l.b16 %v823
        %v906 = vunpack.c.h.b16 %v823
        %v907 = vunpack.c.l.b16 %v824
        %v908 = vunpack.c.l.b16 %v825
        %v909 = vunpack.c.h.b16 %v825
        %v910 = vunpack.c.l.b16 %v826
        %v911 = vunpack.c.l.b16 %v827
        %v912 = vunpack.c.h.b16 %v827
        %v913 = vunpack.c.l.b16 %v828
        %v914 = vunpack.c.l.b16 %v829
        %v915 = vunpack.c.h.b16 %v829
        %v916 = vunpack.c.l.b16 %v830
        %v917 = vunpack.c.l.b16 %v831
        %v918 = vunpack.c.h.b16 %v831
        %v919 = vunpack.c.l.b16 %v832
        %v920 = vunpack.c.l.b16 %v833
        %v921 = vunpack.c.h.b16 %v833
        %v922 = vunpack.c.l.b16 %v834
        %v923 = vunpack.c.l.b16 %v835
        %v924 = vunpack.c.h.b16 %v835
        %v925 = vunpack.c.l.b16 %v836
        %v926 = vunpack.c.l.b16 %v837
        %v927 = vunpack.c.h.b16 %v837
        %v928 = vunpack.c.l.b16 %v838
        %v929 = vunpack.c.l.b16 %v839
        %v930 = vunpack.c.h.b16 %v839
        %v931 = vunpack.c.l.b16 %v840
        %v932 = vunpack.c.l.b16 %v841
        %v933 = vunpack.c.h.b16 %v841
        %v934 = vunpack.c.l.b16 %v842
        %v935 = vunpack.c.l.b16 %v843
        %v936 = vunpack.c.h.b16 %v843
        %v937 = vunpack.c.l.b16 %v844
        %v938 = vunpack.c.l.b16 %v845
        %v939 = vunpack.c.h.b16 %v845
        %v940 = vunpack.c.l.b16 %v846
        %v941 = vunpack.c.l.b16 %v847
        %v942 = vunpack.c.h.b16 %v847
        %v943 = vunpack.c.l.b16 %v848
        %v944 = vunpack.c.l.b16 %v849
        %v945 = vunpack.c.h.b16 %v849
        %v946 = vunpack.c.l.b16 %v850
        %v947 = vunpack.c.l.b16 %v851
        %v948 = vunpack.c.h.b16 %v851
        %v949 = vunpack.c.l.b16 %v852
        %v950 = vunpack.c.l.b16 %v853
        %v951 = vunpack.c.h.b16 %v853
        %v952 = vunpack.c.l.b16 %v854
        %v953 = vpack.c.b16 %v908, %v905
        %v954 = vpack.c.b16 %v909, %v906
        %v955 = vpack.c.b16 %v910, %v907
        %v956 = vpack.c.b16 %v914, %v911
        %v957 = vpack.c.b16 %v915, %v912
        %v958 = vpack.c.b16 %v916, %v913
        %v959 = vpack.c.b16 %v920, %v917
        %v960 = vpack.c.b16 %v921, %v918
        %v961 = vpack.c.b16 %v922, %v919
        %v962 = vpack.c.b16 %v926, %v923
        %v963 = vpack.c.b16 %v927, %v924
        %v964 = vpack.c.b16 %v928, %v925
        %v965 = vpack.c.b16 %v932, %v929
        %v966 = vpack.c.b16 %v933, %v930
        %v967 = vpack.c.b16 %v934, %v931
        %v968 = vpack.c.b16 %v938, %v935
        %v969 = vpack.c.b16 %v939, %v936
        %v970 = vpack.c.b16 %v940, %v937
        %v971 = vpack.c.b16 %v944, %v941
        %v972 = vpack.c.b16 %v945, %v942
        %v973 = vpack.c.b16 %v946, %v943
        %v974 = vpack.c.b16 %v950, %v947
        %v975 = vpack.c.b16 %v951, %v948
        %v976 = vpack.c.b16 %v952, %v949
        %1001 = vmatprep.subr.bf16.mxu0 %v975
        %1002 = vmatpush1.bf16.msra.mxu0 %v974
        %1003 = vmatprep.subr.bf16.mxu0 %v972
        %1004 = vmatpush1.bf16.msra.mxu0 %v971
        %1005 = vmatprep.subr.bf16.mxu0 %v969
        %1006 = vmatpush1.bf16.msra.mxu0 %v968
        %1007 = vmatprep.subr.bf16.mxu0 %v966
        %1008 = vmatpush1.bf16.msra.mxu0 %v965
        %1009 = vmatprep.subr.bf16.mxu0 %v963
        %1010 = vmatpush1.bf16.msra.mxu0 %v962
        %1011 = vmatprep.subr.bf16.mxu0 %v960
        %1012 = vmatpush1.bf16.msra.mxu0 %v959
        %1013 = vmatprep.subr.bf16.mxu0 %v957
        %1014 = vmatpush1.bf16.msra.mxu0 %v956
        %1015 = vmatprep.subr.bf16.mxu0 %v954
        %1016 = vmatpush1.bf16.msra.mxu0 %v953
        %1017 = vmatprep.subr.bf16.mxu0 0
        %1018 = vmatpush2.bf16.msra.mxu0 0
        %1019 = vmatprep.subr.bf16.mxu0 0
        %1020 = vmatpush2.bf16.msra.mxu0 0
        %1021 = vmatprep.subr.bf16.mxu0 0
        %1022 = vmatpush2.bf16.msra.mxu0 0
        %1023 = vmatprep.subr.bf16.mxu0 0
        %1024 = vmatpush2.bf16.msra.mxu0 0
        %1025 = vmatprep.subr.bf16.mxu0 0
        %1026 = vmatpush2.bf16.msra.mxu0 0
        %1027 = vmatprep.subr.bf16.mxu0 0
        %1028 = vmatpush2.bf16.msra.mxu0 0
        %1029 = vmatprep.subr.bf16.mxu0 0
        %1030 = vmatpush2.bf16.msra.mxu0 0
        %1031 = vmatprep.subr.bf16.mxu0 0
        %1032 = vmatpush2.bf16.msra.mxu0 0
        %1033 = vmatprep.mubr.bf16.mxu0 0
        %1034 = vmatmul.mubr.bf16.gmra.mxu0 %v855
        %v1035 = vpop.f32.mrf.mxu0
        %v1036 = vadd.f32 %v861, %v1035
        %v1037 = vpop.f32.mrf.mxu0
        %v1038 = vadd.f32 %v865, %v1037
        %v1039 = vpop.f32.mrf.mxu0
        %v1040 = vadd.f32 %v861, %v1039
        %v1041 = vpop.f32.mrf.mxu0
        %v1042 = vadd.f32 %v865, %v1041
        %1043 = vdwg.mxu0
        %1044 = vmatprep.subr.bf16.mxu0 0
        %1045 = vmatpush1.bf16.msra.mxu0 %v976
        %1046 = vmatprep.subr.bf16.mxu0 0
        %1047 = vmatpush1.bf16.msra.mxu0 %v973
        %1048 = vmatprep.subr.bf16.mxu0 0
        %1049 = vmatpush1.bf16.msra.mxu0 %v970
        %1050 = vmatprep.subr.bf16.mxu0 0
        %1051 = vmatpush1.bf16.msra.mxu0 %v967
        %1052 = vmatprep.subr.bf16.mxu0 0
        %1053 = vmatpush1.bf16.msra.mxu0 %v964
        %1054 = vmatprep.subr.bf16.mxu0 0
        %1055 = vmatpush1.bf16.msra.mxu0 %v961
        %1056 = vmatprep.subr.bf16.mxu0 0
        %1057 = vmatpush1.bf16.msra.mxu0 %v958
        %1058 = vmatprep.subr.bf16.mxu0 0
        %1059 = vmatpush1.bf16.msra.mxu0 %v955
        %1060 = vmatprep.subr.bf16.mxu0 0
        %1061 = vmatpush2.bf16.msra.mxu0 0
        %1062 = vmatprep.subr.bf16.mxu0 0
        %1063 = vmatpush2.bf16.msra.mxu0 0
        %1064 = vmatprep.subr.bf16.mxu0 0
        %1065 = vmatpush2.bf16.msra.mxu0 0
        %1066 = vmatprep.subr.bf16.mxu0 0
        %1067 = vmatpush2.bf16.msra.mxu0 0
        %1068 = vmatprep.subr.bf16.mxu0 0
        %1069 = vmatpush2.bf16.msra.mxu0 0
        %1070 = vmatprep.subr.bf16.mxu0 0
        %1071 = vmatpush2.bf16.msra.mxu0 0
        %1072 = vmatprep.subr.bf16.mxu0 0
        %1073 = vmatpush2.bf16.msra.mxu0 0
        %1074 = vmatprep.subr.bf16.mxu0 0
        %1075 = vmatpush2.bf16.msra.mxu0 0
        %1076 = vmatprep.mubr.bf16.mxu0 0
        %1077 = vmatmul.mubr.bf16.gmra.mxu0 %v855
        %v1078 = vpop.f32.mrf.mxu0
        %v1079 = vadd.f32 %v869, %v1078
        %v1080 = vpop.f32.mrf.mxu0
        %v1081 = vpop.f32.mrf.mxu0
        %v1082 = vadd.f32 %v869, %v1081
        %v1083 = vpop.f32.mrf.mxu0
        %1084 = vdwg.mxu0
        %1087 = vrot.lane.b32.xlu0 %v1036, 96
        %v1088 = vpop.permute.xlu0 %1087
        %1089 = vrot.lane.b32.xlu0 %v1040, 96
        %v1090 = vpop.permute.xlu0 %1089
        %1093 = vrot.lane.b32.xlu0 %v1036, 64
        %v1094 = vpop.permute.xlu0 %1093
        %1095 = vrot.lane.b32.xlu0 %v1040, 64
        %v1096 = vpop.permute.xlu0 %1095
        %1099 = vrot.lane.b32.xlu0 %v1036, 32
        %v1100 = vpop.permute.xlu0 %1099
        %1101 = vrot.lane.b32.xlu0 %v1040, 32
        %v1102 = vpop.permute.xlu0 %1101
        %v1105 = vcombine.low %v1036, %v1094
        %v1106 = vcombine.high %v1036, %v1094
        %v1108 = vunpack.c.l.s4 1983009808
        %v1109 = vunpack.c.0.s8 %v1108
        %v1110 = vlaneseq
        %v1111 = vshrl.u32 %v1110, 7
        %v1112 = vsub.s32 %v1109, %v1111
        %v1113 = vrot.slane %v1105, %v1112
        %v1115 = vunpack.c.l.s4 1983009808
        %v1116 = vunpack.c.0.s8 %v1115
        %v1117 = vlaneseq
        %v1118 = vshrl.u32 %v1117, 7
        %v1119 = vsub.s32 %v1116, %v1118
        %v1120 = vrot.slane %v1106, %v1119
        %v1121 = vcombine.low %v1088, %v1100
        %v1122 = vcombine.high %v1088, %v1100
        %v1124 = vunpack.c.l.s4 1983009808
        %v1125 = vunpack.c.0.s8 %v1124
        %v1126 = vlaneseq
        %v1127 = vshrl.u32 %v1126, 7
        %v1128 = vsub.s32 %v1125, %v1127
        %v1129 = vrot.slane %v1121, %v1128
        %v1131 = vunpack.c.l.s4 1983009808
        %v1132 = vunpack.c.0.s8 %v1131
        %v1133 = vlaneseq
        %v1134 = vshrl.u32 %v1133, 7
        %v1135 = vsub.s32 %v1132, %v1134
        %v1136 = vrot.slane %v1122, %v1135
        %v1137 = vcombine.low %v1113, %v1129
        %v1138 = vcombine.high %v1113, %v1129
        %v1140 = vunpack.c.l.s4 1934713408
        %v1141 = vunpack.c.0.s8 %v1140
        %v1142 = vlaneseq
        %v1143 = vshrl.u32 %v1142, 7
        %v1144 = vsub.s32 %v1141, %v1143
        %v1145 = vrot.slane %v1137, %v1144
        %v1147 = vunpack.c.l.s4 1934713408
        %v1148 = vunpack.c.0.s8 %v1147
        %v1149 = vlaneseq
        %v1150 = vshrl.u32 %v1149, 7
        %v1151 = vsub.s32 %v1148, %v1150
        %v1152 = vrot.slane %v1138, %v1151
        %v1153 = vcombine.low %v1120, %v1136
        %v1154 = vcombine.high %v1120, %v1136
        %v1156 = vunpack.c.l.s4 1934713408
        %v1157 = vunpack.c.0.s8 %v1156
        %v1158 = vlaneseq
        %v1159 = vshrl.u32 %v1158, 7
        %v1160 = vsub.s32 %v1157, %v1159
        %v1161 = vrot.slane %v1153, %v1160
        %v1163 = vunpack.c.l.s4 1934713408
        %v1164 = vunpack.c.0.s8 %v1163
        %v1165 = vlaneseq
        %v1166 = vshrl.u32 %v1165, 7
        %v1167 = vsub.s32 %v1164, %v1166
        %v1168 = vrot.slane %v1154, %v1167
        %v1169 = vcombine.high %v1145, 0.0
        %v1170 = vcombine.high %v1152, 0.0
        %v1171 = vcombine.high %v1161, 0.0
        %v1172 = vcombine.high %v1168, 0.0
        %v1173 = vcombine.low %v1040, %v1096
        %v1174 = vcombine.high %v1040, %v1096
        %v1176 = vunpack.c.l.s4 1983009808
        %v1177 = vunpack.c.0.s8 %v1176
        %v1178 = vlaneseq
        %v1179 = vshrl.u32 %v1178, 7
        %v1180 = vsub.s32 %v1177, %v1179
        %v1181 = vrot.slane %v1173, %v1180
        %v1183 = vunpack.c.l.s4 1983009808
        %v1184 = vunpack.c.0.s8 %v1183
        %v1185 = vlaneseq
        %v1186 = vshrl.u32 %v1185, 7
        %v1187 = vsub.s32 %v1184, %v1186
        %v1188 = vrot.slane %v1174, %v1187
        %v1189 = vcombine.low %v1090, %v1102
        %v1190 = vcombine.high %v1090, %v1102
        %v1192 = vunpack.c.l.s4 1983009808
        %v1193 = vunpack.c.0.s8 %v1192
        %v1194 = vlaneseq
        %v1195 = vshrl.u32 %v1194, 7
        %v1196 = vsub.s32 %v1193, %v1195
        %v1197 = vrot.slane %v1189, %v1196
        %v1199 = vunpack.c.l.s4 1983009808
        %v1200 = vunpack.c.0.s8 %v1199
        %v1201 = vlaneseq
        %v1202 = vshrl.u32 %v1201, 7
        %v1203 = vsub.s32 %v1200, %v1202
        %v1204 = vrot.slane %v1190, %v1203
        %v1205 = vcombine.low %v1181, %v1197
        %v1206 = vcombine.high %v1181, %v1197
        %v1208 = vunpack.c.l.s4 1934713408
        %v1209 = vunpack.c.0.s8 %v1208
        %v1210 = vlaneseq
        %v1211 = vshrl.u32 %v1210, 7
        %v1212 = vsub.s32 %v1209, %v1211
        %v1213 = vrot.slane %v1205, %v1212
        %v1215 = vunpack.c.l.s4 1934713408
        %v1216 = vunpack.c.0.s8 %v1215
        %v1217 = vlaneseq
        %v1218 = vshrl.u32 %v1217, 7
        %v1219 = vsub.s32 %v1216, %v1218
        %v1220 = vrot.slane %v1206, %v1219
        %v1221 = vcombine.low %v1188, %v1204
        %v1222 = vcombine.high %v1188, %v1204
        %v1224 = vunpack.c.l.s4 1934713408
        %v1225 = vunpack.c.0.s8 %v1224
        %v1226 = vlaneseq
        %v1227 = vshrl.u32 %v1226, 7
        %v1228 = vsub.s32 %v1225, %v1227
        %v1229 = vrot.slane %v1221, %v1228
        %v1231 = vunpack.c.l.s4 1934713408
        %v1232 = vunpack.c.0.s8 %v1231
        %v1233 = vlaneseq
        %v1234 = vshrl.u32 %v1233, 7
        %v1235 = vsub.s32 %v1232, %v1234
        %v1236 = vrot.slane %v1222, %v1235
        %v1237 = vcombine.high %v1213, 0.0
        %v1238 = vcombine.high %v1220, 0.0
        %v1239 = vcombine.high %v1229, 0.0
        %v1240 = vcombine.high %v1236, 0.0
        %v1241 = vpack.c.bf16 %v1145, %v1145
        %v1242 = vpack.c.bf16 %v1169, %v1169
        %v1243 = vpack.c.bf16 %v1152, %v1152
        %v1244 = vpack.c.bf16 %v1170, %v1170
        %v1245 = vpack.c.bf16 %v1161, %v1161
        %v1246 = vpack.c.bf16 %v1171, %v1171
        %v1247 = vpack.c.bf16 %v1168, %v1168
        %v1248 = vpack.c.bf16 %v1172, %v1172
        %v1249 = vpack.c.bf16 %v1213, %v1213
        %v1250 = vpack.c.bf16 %v1237, %v1237
        %v1251 = vpack.c.bf16 %v1220, %v1220
        %v1252 = vpack.c.bf16 %v1238, %v1238
        %v1253 = vpack.c.bf16 %v1229, %v1229
        %v1254 = vpack.c.bf16 %v1239, %v1239
        %v1255 = vpack.c.bf16 %v1236, %v1236
        %v1256 = vpack.c.bf16 %v1240, %v1240
        %1259 = vrot.lane.b32.xlu0 %v1038, 96
        %v1260 = vpop.permute.xlu0 %1259
        %1261 = vrot.lane.b32.xlu0 %v1042, 96
        %v1262 = vpop.permute.xlu0 %1261
        %1265 = vrot.lane.b32.xlu0 %v1038, 64
        %v1266 = vpop.permute.xlu0 %1265
        %1267 = vrot.lane.b32.xlu0 %v1042, 64
        %v1268 = vpop.permute.xlu0 %1267
        %1271 = vrot.lane.b32.xlu0 %v1038, 32
        %v1272 = vpop.permute.xlu0 %1271
        %1273 = vrot.lane.b32.xlu0 %v1042, 32
        %v1274 = vpop.permute.xlu0 %1273
        %v1277 = vcombine.low %v1038, %v1266
        %v1278 = vcombine.high %v1038, %v1266
        %v1280 = vunpack.c.l.s4 1983009808
        %v1281 = vunpack.c.0.s8 %v1280
        %v1282 = vlaneseq
        %v1283 = vshrl.u32 %v1282, 7
        %v1284 = vsub.s32 %v1281, %v1283
        %v1285 = vrot.slane %v1277, %v1284
        %v1287 = vunpack.c.l.s4 1983009808
        %v1288 = vunpack.c.0.s8 %v1287
        %v1289 = vlaneseq
        %v1290 = vshrl.u32 %v1289, 7
        %v1291 = vsub.s32 %v1288, %v1290
        %v1292 = vrot.slane %v1278, %v1291
        %v1293 = vcombine.low %v1260, %v1272
        %v1294 = vcombine.high %v1260, %v1272
        %v1296 = vunpack.c.l.s4 1983009808
        %v1297 = vunpack.c.0.s8 %v1296
        %v1298 = vlaneseq
        %v1299 = vshrl.u32 %v1298, 7
        %v1300 = vsub.s32 %v1297, %v1299
        %v1301 = vrot.slane %v1293, %v1300
        %v1303 = vunpack.c.l.s4 1983009808
        %v1304 = vunpack.c.0.s8 %v1303
        %v1305 = vlaneseq
        %v1306 = vshrl.u32 %v1305, 7
        %v1307 = vsub.s32 %v1304, %v1306
        %v1308 = vrot.slane %v1294, %v1307
        %v1309 = vcombine.low %v1285, %v1301
        %v1310 = vcombine.high %v1285, %v1301
        %v1312 = vunpack.c.l.s4 1934713408
        %v1313 = vunpack.c.0.s8 %v1312
        %v1314 = vlaneseq
        %v1315 = vshrl.u32 %v1314, 7
        %v1316 = vsub.s32 %v1313, %v1315
        %v1317 = vrot.slane %v1309, %v1316
        %v1319 = vunpack.c.l.s4 1934713408
        %v1320 = vunpack.c.0.s8 %v1319
        %v1321 = vlaneseq
        %v1322 = vshrl.u32 %v1321, 7
        %v1323 = vsub.s32 %v1320, %v1322
        %v1324 = vrot.slane %v1310, %v1323
        %v1325 = vcombine.low %v1292, %v1308
        %v1326 = vcombine.high %v1292, %v1308
        %v1328 = vunpack.c.l.s4 1934713408
        %v1329 = vunpack.c.0.s8 %v1328
        %v1330 = vlaneseq
        %v1331 = vshrl.u32 %v1330, 7
        %v1332 = vsub.s32 %v1329, %v1331
        %v1333 = vrot.slane %v1325, %v1332
        %v1335 = vunpack.c.l.s4 1934713408
        %v1336 = vunpack.c.0.s8 %v1335
        %v1337 = vlaneseq
        %v1338 = vshrl.u32 %v1337, 7
        %v1339 = vsub.s32 %v1336, %v1338
        %v1340 = vrot.slane %v1326, %v1339
        %v1341 = vcombine.high %v1317, 0.0
        %v1342 = vcombine.high %v1324, 0.0
        %v1343 = vcombine.high %v1333, 0.0
        %v1344 = vcombine.high %v1340, 0.0
        %v1345 = vcombine.low %v1042, %v1268
        %v1346 = vcombine.high %v1042, %v1268
        %v1348 = vunpack.c.l.s4 1983009808
        %v1349 = vunpack.c.0.s8 %v1348
        %v1350 = vlaneseq
        %v1351 = vshrl.u32 %v1350, 7
        %v1352 = vsub.s32 %v1349, %v1351
        %v1353 = vrot.slane %v1345, %v1352
        %v1355 = vunpack.c.l.s4 1983009808
        %v1356 = vunpack.c.0.s8 %v1355
        %v1357 = vlaneseq
        %v1358 = vshrl.u32 %v1357, 7
        %v1359 = vsub.s32 %v1356, %v1358
        %v1360 = vrot.slane %v1346, %v1359
        %v1361 = vcombine.low %v1262, %v1274
        %v1362 = vcombine.high %v1262, %v1274
        %v1364 = vunpack.c.l.s4 1983009808
        %v1365 = vunpack.c.0.s8 %v1364
        %v1366 = vlaneseq
        %v1367 = vshrl.u32 %v1366, 7
        %v1368 = vsub.s32 %v1365, %v1367
        %v1369 = vrot.slane %v1361, %v1368
        %v1371 = vunpack.c.l.s4 1983009808
        %v1372 = vunpack.c.0.s8 %v1371
        %v1373 = vlaneseq
        %v1374 = vshrl.u32 %v1373, 7
        %v1375 = vsub.s32 %v1372, %v1374
        %v1376 = vrot.slane %v1362, %v1375
        %v1377 = vcombine.low %v1353, %v1369
        %v1378 = vcombine.high %v1353, %v1369
        %v1380 = vunpack.c.l.s4 1934713408
        %v1381 = vunpack.c.0.s8 %v1380
        %v1382 = vlaneseq
        %v1383 = vshrl.u32 %v1382, 7
        %v1384 = vsub.s32 %v1381, %v1383
        %v1385 = vrot.slane %v1377, %v1384
        %v1387 = vunpack.c.l.s4 1934713408
        %v1388 = vunpack.c.0.s8 %v1387
        %v1389 = vlaneseq
        %v1390 = vshrl.u32 %v1389, 7
        %v1391 = vsub.s32 %v1388, %v1390
        %v1392 = vrot.slane %v1378, %v1391
        %v1393 = vcombine.low %v1360, %v1376
        %v1394 = vcombine.high %v1360, %v1376
        %v1396 = vunpack.c.l.s4 1934713408
        %v1397 = vunpack.c.0.s8 %v1396
        %v1398 = vlaneseq
        %v1399 = vshrl.u32 %v1398, 7
        %v1400 = vsub.s32 %v1397, %v1399
        %v1401 = vrot.slane %v1393, %v1400
        %v1403 = vunpack.c.l.s4 1934713408
        %v1404 = vunpack.c.0.s8 %v1403
        %v1405 = vlaneseq
        %v1406 = vshrl.u32 %v1405, 7
        %v1407 = vsub.s32 %v1404, %v1406
        %v1408 = vrot.slane %v1394, %v1407
        %v1409 = vcombine.high %v1385, 0.0
        %v1410 = vcombine.high %v1392, 0.0
        %v1411 = vcombine.high %v1401, 0.0
        %v1412 = vcombine.high %v1408, 0.0
        %v1413 = vpack.c.bf16 %v1317, %v1317
        %v1414 = vpack.c.bf16 %v1341, %v1341
        %v1415 = vpack.c.bf16 %v1324, %v1324
        %v1416 = vpack.c.bf16 %v1342, %v1342
        %v1417 = vpack.c.bf16 %v1333, %v1333
        %v1418 = vpack.c.bf16 %v1343, %v1343
        %v1419 = vpack.c.bf16 %v1340, %v1340
        %v1420 = vpack.c.bf16 %v1344, %v1344
        %v1421 = vpack.c.bf16 %v1385, %v1385
        %v1422 = vpack.c.bf16 %v1409, %v1409
        %v1423 = vpack.c.bf16 %v1392, %v1392
        %v1424 = vpack.c.bf16 %v1410, %v1410
        %v1425 = vpack.c.bf16 %v1401, %v1401
        %v1426 = vpack.c.bf16 %v1411, %v1411
        %v1427 = vpack.c.bf16 %v1408, %v1408
        %v1428 = vpack.c.bf16 %v1412, %v1412
        %1431 = vrot.lane.b32.xlu0 %v1079, 96
        %v1432 = vpop.permute.xlu0 %1431
        %1433 = vrot.lane.b32.xlu0 %v1082, 96
        %v1434 = vpop.permute.xlu0 %1433
        %1437 = vrot.lane.b32.xlu0 %v1079, 64
        %v1438 = vpop.permute.xlu0 %1437
        %1439 = vrot.lane.b32.xlu0 %v1082, 64
        %v1440 = vpop.permute.xlu0 %1439
        %1443 = vrot.lane.b32.xlu0 %v1079, 32
        %v1444 = vpop.permute.xlu0 %1443
        %1445 = vrot.lane.b32.xlu0 %v1082, 32
        %v1446 = vpop.permute.xlu0 %1445
        %v1449 = vcombine.low %v1079, %v1438
        %v1450 = vcombine.high %v1079, %v1438
        %v1452 = vunpack.c.l.s4 1983009808
        %v1453 = vunpack.c.0.s8 %v1452
        %v1454 = vlaneseq
        %v1455 = vshrl.u32 %v1454, 7
        %v1456 = vsub.s32 %v1453, %v1455
        %v1457 = vrot.slane %v1449, %v1456
        %v1459 = vunpack.c.l.s4 1983009808
        %v1460 = vunpack.c.0.s8 %v1459
        %v1461 = vlaneseq
        %v1462 = vshrl.u32 %v1461, 7
        %v1463 = vsub.s32 %v1460, %v1462
        %v1464 = vrot.slane %v1450, %v1463
        %v1465 = vcombine.low %v1432, %v1444
        %v1466 = vcombine.high %v1432, %v1444
        %v1468 = vunpack.c.l.s4 1983009808
        %v1469 = vunpack.c.0.s8 %v1468
        %v1470 = vlaneseq
        %v1471 = vshrl.u32 %v1470, 7
        %v1472 = vsub.s32 %v1469, %v1471
        %v1473 = vrot.slane %v1465, %v1472
        %v1475 = vunpack.c.l.s4 1983009808
        %v1476 = vunpack.c.0.s8 %v1475
        %v1477 = vlaneseq
        %v1478 = vshrl.u32 %v1477, 7
        %v1479 = vsub.s32 %v1476, %v1478
        %v1480 = vrot.slane %v1466, %v1479
        %v1481 = vcombine.low %v1457, %v1473
        %v1482 = vcombine.high %v1457, %v1473
        %v1484 = vunpack.c.l.s4 1934713408
        %v1485 = vunpack.c.0.s8 %v1484
        %v1486 = vlaneseq
        %v1487 = vshrl.u32 %v1486, 7
        %v1488 = vsub.s32 %v1485, %v1487
        %v1489 = vrot.slane %v1481, %v1488
        %v1491 = vunpack.c.l.s4 1934713408
        %v1492 = vunpack.c.0.s8 %v1491
        %v1493 = vlaneseq
        %v1494 = vshrl.u32 %v1493, 7
        %v1495 = vsub.s32 %v1492, %v1494
        %v1496 = vrot.slane %v1482, %v1495
        %v1497 = vcombine.low %v1464, %v1480
        %v1498 = vcombine.high %v1464, %v1480
        %v1500 = vunpack.c.l.s4 1934713408
        %v1501 = vunpack.c.0.s8 %v1500
        %v1502 = vlaneseq
        %v1503 = vshrl.u32 %v1502, 7
        %v1504 = vsub.s32 %v1501, %v1503
        %v1505 = vrot.slane %v1497, %v1504
        %v1507 = vunpack.c.l.s4 1934713408
        %v1508 = vunpack.c.0.s8 %v1507
        %v1509 = vlaneseq
        %v1510 = vshrl.u32 %v1509, 7
        %v1511 = vsub.s32 %v1508, %v1510
        %v1512 = vrot.slane %v1498, %v1511
        %v1513 = vcombine.high %v1489, 0.0
        %v1514 = vcombine.high %v1496, 0.0
        %v1515 = vcombine.high %v1505, 0.0
        %v1516 = vcombine.high %v1512, 0.0
        %v1517 = vcombine.low %v1082, %v1440
        %v1518 = vcombine.high %v1082, %v1440
        %v1520 = vunpack.c.l.s4 1983009808
        %v1521 = vunpack.c.0.s8 %v1520
        %v1522 = vlaneseq
        %v1523 = vshrl.u32 %v1522, 7
        %v1524 = vsub.s32 %v1521, %v1523
        %v1525 = vrot.slane %v1517, %v1524
        %v1527 = vunpack.c.l.s4 1983009808
        %v1528 = vunpack.c.0.s8 %v1527
        %v1529 = vlaneseq
        %v1530 = vshrl.u32 %v1529, 7
        %v1531 = vsub.s32 %v1528, %v1530
        %v1532 = vrot.slane %v1518, %v1531
        %v1533 = vcombine.low %v1434, %v1446
        %v1534 = vcombine.high %v1434, %v1446
        %v1536 = vunpack.c.l.s4 1983009808
        %v1537 = vunpack.c.0.s8 %v1536
        %v1538 = vlaneseq
        %v1539 = vshrl.u32 %v1538, 7
        %v1540 = vsub.s32 %v1537, %v1539
        %v1541 = vrot.slane %v1533, %v1540
        %v1543 = vunpack.c.l.s4 1983009808
        %v1544 = vunpack.c.0.s8 %v1543
        %v1545 = vlaneseq
        %v1546 = vshrl.u32 %v1545, 7
        %v1547 = vsub.s32 %v1544, %v1546
        %v1548 = vrot.slane %v1534, %v1547
        %v1549 = vcombine.low %v1525, %v1541
        %v1550 = vcombine.high %v1525, %v1541
        %v1552 = vunpack.c.l.s4 1934713408
        %v1553 = vunpack.c.0.s8 %v1552
        %v1554 = vlaneseq
        %v1555 = vshrl.u32 %v1554, 7
        %v1556 = vsub.s32 %v1553, %v1555
        %v1557 = vrot.slane %v1549, %v1556
        %v1559 = vunpack.c.l.s4 1934713408
        %v1560 = vunpack.c.0.s8 %v1559
        %v1561 = vlaneseq
        %v1562 = vshrl.u32 %v1561, 7
        %v1563 = vsub.s32 %v1560, %v1562
        %v1564 = vrot.slane %v1550, %v1563
        %v1565 = vcombine.low %v1532, %v1548
        %v1566 = vcombine.high %v1532, %v1548
        %v1568 = vunpack.c.l.s4 1934713408
        %v1569 = vunpack.c.0.s8 %v1568
        %v1570 = vlaneseq
        %v1571 = vshrl.u32 %v1570, 7
        %v1572 = vsub.s32 %v1569, %v1571
        %v1573 = vrot.slane %v1565, %v1572
        %v1575 = vunpack.c.l.s4 1934713408
        %v1576 = vunpack.c.0.s8 %v1575
        %v1577 = vlaneseq
        %v1578 = vshrl.u32 %v1577, 7
        %v1579 = vsub.s32 %v1576, %v1578
        %v1580 = vrot.slane %v1566, %v1579
        %v1581 = vcombine.high %v1557, 0.0
        %v1582 = vcombine.high %v1564, 0.0
        %v1583 = vcombine.high %v1573, 0.0
        %v1584 = vcombine.high %v1580, 0.0
        %v1585 = vpack.c.bf16 %v1489, %v1489
        %v1586 = vpack.c.bf16 %v1513, %v1513
        %v1587 = vpack.c.bf16 %v1496, %v1496
        %v1588 = vpack.c.bf16 %v1514, %v1514
        %v1589 = vpack.c.bf16 %v1505, %v1505
        %v1590 = vpack.c.bf16 %v1515, %v1515
        %v1591 = vpack.c.bf16 %v1512, %v1512
        %v1592 = vpack.c.bf16 %v1516, %v1516
        %v1593 = vpack.c.bf16 %v1557, %v1557
        %v1594 = vpack.c.bf16 %v1581, %v1581
        %v1595 = vpack.c.bf16 %v1564, %v1564
        %v1596 = vpack.c.bf16 %v1582, %v1582
        %v1597 = vpack.c.bf16 %v1573, %v1573
        %v1598 = vpack.c.bf16 %v1583, %v1583
        %v1599 = vpack.c.bf16 %v1580, %v1580
        %v1600 = vpack.c.bf16 %v1584, %v1584
        %v1601 = vcombine.low %v1241, %v1245
        %v1603 = vunpack.c.l.s4 1983009808
        %v1604 = vunpack.c.0.s8 %v1603
        %v1605 = vlaneseq
        %v1606 = vshrl.u32 %v1605, 7
        %v1607 = vsub.s32 %v1604, %v1606
        %v1608 = vrot.slane %v1601, %v1607
        %v1609 = vcombine.low %v1243, %v1247
        %v1611 = vunpack.c.l.s4 1983009808
        %v1612 = vunpack.c.0.s8 %v1611
        %v1613 = vlaneseq
        %v1614 = vshrl.u32 %v1613, 7
        %v1615 = vsub.s32 %v1612, %v1614
        %v1616 = vrot.slane %v1609, %v1615
        %v1617 = vcombine.low %v1249, %v1253
        %v1619 = vunpack.c.l.s4 1983009808
        %v1620 = vunpack.c.0.s8 %v1619
        %v1621 = vlaneseq
        %v1622 = vshrl.u32 %v1621, 7
        %v1623 = vsub.s32 %v1620, %v1622
        %v1624 = vrot.slane %v1617, %v1623
        %v1625 = vcombine.low %v1251, %v1255
        %v1627 = vunpack.c.l.s4 1983009808
        %v1628 = vunpack.c.0.s8 %v1627
        %v1629 = vlaneseq
        %v1630 = vshrl.u32 %v1629, 7
        %v1631 = vsub.s32 %v1628, %v1630
        %v1632 = vrot.slane %v1625, %v1631
        %v1633 = vcombine.low %v1608, %v1616
        %v1635 = vunpack.c.l.s4 1934713408
        %v1636 = vunpack.c.0.s8 %v1635
        %v1637 = vlaneseq
        %v1638 = vshrl.u32 %v1637, 7
        %v1639 = vsub.s32 %v1636, %v1638
        %v1640 = vrot.slane %v1633, %v1639
        %v1641 = vcombine.low %v1624, %v1632
        %v1643 = vunpack.c.l.s4 1934713408
        %v1644 = vunpack.c.0.s8 %v1643
        %v1645 = vlaneseq
        %v1646 = vshrl.u32 %v1645, 7
        %v1647 = vsub.s32 %v1644, %v1646
        %v1648 = vrot.slane %v1641, %v1647
        %v1649 = vcombine.low %v1640, %v1648
        %v1650 = vcombine.high %v1640, %v1648
        %v1651 = vcombine.low %v1242, %v1246
        %v1653 = vunpack.c.l.s4 1983009808
        %v1654 = vunpack.c.0.s8 %v1653
        %v1655 = vlaneseq
        %v1656 = vshrl.u32 %v1655, 7
        %v1657 = vsub.s32 %v1654, %v1656
        %v1658 = vrot.slane %v1651, %v1657
        %v1659 = vcombine.low %v1244, %v1248
        %v1661 = vunpack.c.l.s4 1983009808
        %v1662 = vunpack.c.0.s8 %v1661
        %v1663 = vlaneseq
        %v1664 = vshrl.u32 %v1663, 7
        %v1665 = vsub.s32 %v1662, %v1664
        %v1666 = vrot.slane %v1659, %v1665
        %v1667 = vcombine.low %v1250, %v1254
        %v1669 = vunpack.c.l.s4 1983009808
        %v1670 = vunpack.c.0.s8 %v1669
        %v1671 = vlaneseq
        %v1672 = vshrl.u32 %v1671, 7
        %v1673 = vsub.s32 %v1670, %v1672
        %v1674 = vrot.slane %v1667, %v1673
        %v1675 = vcombine.low %v1252, %v1256
        %v1677 = vunpack.c.l.s4 1983009808
        %v1678 = vunpack.c.0.s8 %v1677
        %v1679 = vlaneseq
        %v1680 = vshrl.u32 %v1679, 7
        %v1681 = vsub.s32 %v1678, %v1680
        %v1682 = vrot.slane %v1675, %v1681
        %v1683 = vcombine.low %v1658, %v1666
        %v1685 = vunpack.c.l.s4 1934713408
        %v1686 = vunpack.c.0.s8 %v1685
        %v1687 = vlaneseq
        %v1688 = vshrl.u32 %v1687, 7
        %v1689 = vsub.s32 %v1686, %v1688
        %v1690 = vrot.slane %v1683, %v1689
        %v1691 = vcombine.low %v1674, %v1682
        %v1693 = vunpack.c.l.s4 1934713408
        %v1694 = vunpack.c.0.s8 %v1693
        %v1695 = vlaneseq
        %v1696 = vshrl.u32 %v1695, 7
        %v1697 = vsub.s32 %v1694, %v1696
        %v1698 = vrot.slane %v1691, %v1697
        %v1699 = vcombine.low %v1690, %v1698
        %v1700 = vcombine.high %v1690, %v1698
        %v1703 = vpack.i.b16 %v1699, %v1649
        %v1704 = vshrl.u32 %v1649, 16
        %v1705 = vshrl.u32 %v1699, 16
        %v1706 = vpack.i.b16 %v1705, %v1704
        %v1709 = vpack.i.b16 %v1700, %v1650
        %v1710 = vshrl.u32 %v1650, 16
        %v1711 = vshrl.u32 %v1700, 16
        %v1712 = vpack.i.b16 %v1711, %v1710
        %1713 = vxpose.xlu0.c.b16.start [1/8] %v1413, 128
        %1714 = vxpose.xlu0.c.b16.cont [2/8] 0, 128
        %1715 = vxpose.xlu0.c.b16.cont [3/8] 0, 128
        %1716 = vxpose.xlu0.c.b16.cont [4/8] 0, 128
        %1717 = vxpose.xlu0.c.b16.cont [5/8] 0, 128
        %1718 = vxpose.xlu0.c.b16.cont [6/8] 0, 128
        %1719 = vxpose.xlu0.c.b16.cont [7/8] 0, 128
        %1720 = vxpose.xlu0.c.b16.end [8/8] 0, 128
        %v1721 = vpop.trf.xlu0
        %v1722 = vpop.trf.xlu0
        %v1723 = vpop.trf.xlu0
        %v1724 = vpop.trf.xlu0
        %v1725 = vpop.trf.xlu0
        %v1726 = vpop.trf.xlu0
        %v1727 = vpop.trf.xlu0
        %v1728 = vpop.trf.xlu0
        %1729 = vxpose.xlu0.c.b16.start [1/8] %v1414, 128
        %1730 = vxpose.xlu0.c.b16.cont [2/8] 0, 128
        %1731 = vxpose.xlu0.c.b16.cont [3/8] 0, 128
        %1732 = vxpose.xlu0.c.b16.cont [4/8] 0, 128
        %1733 = vxpose.xlu0.c.b16.cont [5/8] 0, 128
        %1734 = vxpose.xlu0.c.b16.cont [6/8] 0, 128
        %1735 = vxpose.xlu0.c.b16.cont [7/8] 0, 128
        %1736 = vxpose.xlu0.c.b16.end [8/8] 0, 128
        %v1737 = vpop.trf.xlu0
        %v1738 = vpop.trf.xlu0
        %v1739 = vpop.trf.xlu0
        %v1740 = vpop.trf.xlu0
        %v1741 = vpop.trf.xlu0
        %v1742 = vpop.trf.xlu0
        %v1743 = vpop.trf.xlu0
        %v1744 = vpop.trf.xlu0
        %1745 = vxpose.xlu0.c.b16.start [1/8] %v1415, 128
        %1746 = vxpose.xlu0.c.b16.cont [2/8] 0, 128
        %1747 = vxpose.xlu0.c.b16.cont [3/8] 0, 128
        %1748 = vxpose.xlu0.c.b16.cont [4/8] 0, 128
        %1749 = vxpose.xlu0.c.b16.cont [5/8] 0, 128
        %1750 = vxpose.xlu0.c.b16.cont [6/8] 0, 128
        %1751 = vxpose.xlu0.c.b16.cont [7/8] 0, 128
        %1752 = vxpose.xlu0.c.b16.end [8/8] 0, 128
        %v1753 = vpop.trf.xlu0
        %v1754 = vpop.trf.xlu0
        %v1755 = vpop.trf.xlu0
        %v1756 = vpop.trf.xlu0
        %v1757 = vpop.trf.xlu0
        %v1758 = vpop.trf.xlu0
        %v1759 = vpop.trf.xlu0
        %v1760 = vpop.trf.xlu0
        %1761 = vxpose.xlu0.c.b16.start [1/8] %v1416, 128
        %1762 = vxpose.xlu0.c.b16.cont [2/8] 0, 128
        %1763 = vxpose.xlu0.c.b16.cont [3/8] 0, 128
        %1764 = vxpose.xlu0.c.b16.cont [4/8] 0, 128
        %1765 = vxpose.xlu0.c.b16.cont [5/8] 0, 128
        %1766 = vxpose.xlu0.c.b16.cont [6/8] 0, 128
        %1767 = vxpose.xlu0.c.b16.cont [7/8] 0, 128
        %1768 = vxpose.xlu0.c.b16.end [8/8] 0, 128
        %v1769 = vpop.trf.xlu0
        %v1770 = vpop.trf.xlu0
        %v1771 = vpop.trf.xlu0
        %v1772 = vpop.trf.xlu0
        %v1773 = vpop.trf.xlu0
        %v1774 = vpop.trf.xlu0
        %v1775 = vpop.trf.xlu0
        %v1776 = vpop.trf.xlu0
        %1777 = vxpose.xlu0.c.b16.start [1/8] %v1417, 128
        %1778 = vxpose.xlu0.c.b16.cont [2/8] 0, 128
        %1779 = vxpose.xlu0.c.b16.cont [3/8] 0, 128
        %1780 = vxpose.xlu0.c.b16.cont [4/8] 0, 128
        %1781 = vxpose.xlu0.c.b16.cont [5/8] 0, 128
        %1782 = vxpose.xlu0.c.b16.cont [6/8] 0, 128
        %1783 = vxpose.xlu0.c.b16.cont [7/8] 0, 128
        %1784 = vxpose.xlu0.c.b16.end [8/8] 0, 128
        %v1785 = vpop.trf.xlu0
        %v1786 = vpop.trf.xlu0
        %v1787 = vpop.trf.xlu0
        %v1788 = vpop.trf.xlu0
        %v1789 = vpop.trf.xlu0
        %v1790 = vpop.trf.xlu0
        %v1791 = vpop.trf.xlu0
        %v1792 = vpop.trf.xlu0
        %1793 = vxpose.xlu0.c.b16.start [1/8] %v1418, 128
        %1794 = vxpose.xlu0.c.b16.cont [2/8] 0, 128
        %1795 = vxpose.xlu0.c.b16.cont [3/8] 0, 128
        %1796 = vxpose.xlu0.c.b16.cont [4/8] 0, 128
        %1797 = vxpose.xlu0.c.b16.cont [5/8] 0, 128
        %1798 = vxpose.xlu0.c.b16.cont [6/8] 0, 128
        %1799 = vxpose.xlu0.c.b16.cont [7/8] 0, 128
        %1800 = vxpose.xlu0.c.b16.end [8/8] 0, 128
        %v1801 = vpop.trf.xlu0
        %v1802 = vpop.trf.xlu0
        %v1803 = vpop.trf.xlu0
        %v1804 = vpop.trf.xlu0
        %v1805 = vpop.trf.xlu0
        %v1806 = vpop.trf.xlu0
        %v1807 = vpop.trf.xlu0
        %v1808 = vpop.trf.xlu0
        %1809 = vxpose.xlu0.c.b16.start [1/8] %v1419, 128
        %1810 = vxpose.xlu0.c.b16.cont [2/8] 0, 128
        %1811 = vxpose.xlu0.c.b16.cont [3/8] 0, 128
        %1812 = vxpose.xlu0.c.b16.cont [4/8] 0, 128
        %1813 = vxpose.xlu0.c.b16.cont [5/8] 0, 128
        %1814 = vxpose.xlu0.c.b16.cont [6/8] 0, 128
        %1815 = vxpose.xlu0.c.b16.cont [7/8] 0, 128
        %1816 = vxpose.xlu0.c.b16.end [8/8] 0, 128
        %v1817 = vpop.trf.xlu0
        %v1818 = vpop.trf.xlu0
        %v1819 = vpop.trf.xlu0
        %v1820 = vpop.trf.xlu0
        %v1821 = vpop.trf.xlu0
        %v1822 = vpop.trf.xlu0
        %v1823 = vpop.trf.xlu0
        %v1824 = vpop.trf.xlu0
        %1825 = vxpose.xlu0.c.b16.start [1/8] %v1420, 128
        %1826 = vxpose.xlu0.c.b16.cont [2/8] 0, 128
        %1827 = vxpose.xlu0.c.b16.cont [3/8] 0, 128
        %1828 = vxpose.xlu0.c.b16.cont [4/8] 0, 128
        %1829 = vxpose.xlu0.c.b16.cont [5/8] 0, 128
        %1830 = vxpose.xlu0.c.b16.cont [6/8] 0, 128
        %1831 = vxpose.xlu0.c.b16.cont [7/8] 0, 128
        %1832 = vxpose.xlu0.c.b16.end [8/8] 0, 128
        %v1833 = vpop.trf.xlu0
        %v1834 = vpop.trf.xlu0
        %v1835 = vpop.trf.xlu0
        %v1836 = vpop.trf.xlu0
        %v1837 = vpop.trf.xlu0
        %v1838 = vpop.trf.xlu0
        %v1839 = vpop.trf.xlu0
        %v1840 = vpop.trf.xlu0
        %1841 = vxpose.xlu0.c.b16.start [1/8] %v1421, 128
        %1842 = vxpose.xlu0.c.b16.cont [2/8] 0, 128
        %1843 = vxpose.xlu0.c.b16.cont [3/8] 0, 128
        %1844 = vxpose.xlu0.c.b16.cont [4/8] 0, 128
        %1845 = vxpose.xlu0.c.b16.cont [5/8] 0, 128
        %1846 = vxpose.xlu0.c.b16.cont [6/8] 0, 128
        %1847 = vxpose.xlu0.c.b16.cont [7/8] 0, 128
        %1848 = vxpose.xlu0.c.b16.end [8/8] 0, 128
        %v1849 = vpop.trf.xlu0
        %v1850 = vpop.trf.xlu0
        %v1851 = vpop.trf.xlu0
        %v1852 = vpop.trf.xlu0
        %v1853 = vpop.trf.xlu0
        %v1854 = vpop.trf.xlu0
        %v1855 = vpop.trf.xlu0
        %v1856 = vpop.trf.xlu0
        %1857 = vxpose.xlu0.c.b16.start [1/8] %v1422, 128
        %1858 = vxpose.xlu0.c.b16.cont [2/8] 0, 128
        %1859 = vxpose.xlu0.c.b16.cont [3/8] 0, 128
        %1860 = vxpose.xlu0.c.b16.cont [4/8] 0, 128
        %1861 = vxpose.xlu0.c.b16.cont [5/8] 0, 128
        %1862 = vxpose.xlu0.c.b16.cont [6/8] 0, 128
        %1863 = vxpose.xlu0.c.b16.cont [7/8] 0, 128
        %1864 = vxpose.xlu0.c.b16.end [8/8] 0, 128
        %v1865 = vpop.trf.xlu0
        %v1866 = vpop.trf.xlu0
        %v1867 = vpop.trf.xlu0
        %v1868 = vpop.trf.xlu0
        %v1869 = vpop.trf.xlu0
        %v1870 = vpop.trf.xlu0
        %v1871 = vpop.trf.xlu0
        %v1872 = vpop.trf.xlu0
        %1873 = vxpose.xlu0.c.b16.start [1/8] %v1423, 128
        %1874 = vxpose.xlu0.c.b16.cont [2/8] 0, 128
        %1875 = vxpose.xlu0.c.b16.cont [3/8] 0, 128
        %1876 = vxpose.xlu0.c.b16.cont [4/8] 0, 128
        %1877 = vxpose.xlu0.c.b16.cont [5/8] 0, 128
        %1878 = vxpose.xlu0.c.b16.cont [6/8] 0, 128
        %1879 = vxpose.xlu0.c.b16.cont [7/8] 0, 128
        %1880 = vxpose.xlu0.c.b16.end [8/8] 0, 128
        %v1881 = vpop.trf.xlu0
        %v1882 = vpop.trf.xlu0
        %v1883 = vpop.trf.xlu0
        %v1884 = vpop.trf.xlu0
        %v1885 = vpop.trf.xlu0
        %v1886 = vpop.trf.xlu0
        %v1887 = vpop.trf.xlu0
        %v1888 = vpop.trf.xlu0
        %1889 = vxpose.xlu0.c.b16.start [1/8] %v1424, 128
        %1890 = vxpose.xlu0.c.b16.cont [2/8] 0, 128
        %1891 = vxpose.xlu0.c.b16.cont [3/8] 0, 128
        %1892 = vxpose.xlu0.c.b16.cont [4/8] 0, 128
        %1893 = vxpose.xlu0.c.b16.cont [5/8] 0, 128
        %1894 = vxpose.xlu0.c.b16.cont [6/8] 0, 128
        %1895 = vxpose.xlu0.c.b16.cont [7/8] 0, 128
        %1896 = vxpose.xlu0.c.b16.end [8/8] 0, 128
        %v1897 = vpop.trf.xlu0
        %v1898 = vpop.trf.xlu0
        %v1899 = vpop.trf.xlu0
        %v1900 = vpop.trf.xlu0
        %v1901 = vpop.trf.xlu0
        %v1902 = vpop.trf.xlu0
        %v1903 = vpop.trf.xlu0
        %v1904 = vpop.trf.xlu0
        %1905 = vxpose.xlu0.c.b16.start [1/8] %v1425, 128
        %1906 = vxpose.xlu0.c.b16.cont [2/8] 0, 128
        %1907 = vxpose.xlu0.c.b16.cont [3/8] 0, 128
        %1908 = vxpose.xlu0.c.b16.cont [4/8] 0, 128
        %1909 = vxpose.xlu0.c.b16.cont [5/8] 0, 128
        %1910 = vxpose.xlu0.c.b16.cont [6/8] 0, 128
        %1911 = vxpose.xlu0.c.b16.cont [7/8] 0, 128
        %1912 = vxpose.xlu0.c.b16.end [8/8] 0, 128
        %v1913 = vpop.trf.xlu0
        %v1914 = vpop.trf.xlu0
        %v1915 = vpop.trf.xlu0
        %v1916 = vpop.trf.xlu0
        %v1917 = vpop.trf.xlu0
        %v1918 = vpop.trf.xlu0
        %v1919 = vpop.trf.xlu0
        %v1920 = vpop.trf.xlu0
        %1921 = vxpose.xlu0.c.b16.start [1/8] %v1426, 128
        %1922 = vxpose.xlu0.c.b16.cont [2/8] 0, 128
        %1923 = vxpose.xlu0.c.b16.cont [3/8] 0, 128
        %1924 = vxpose.xlu0.c.b16.cont [4/8] 0, 128
        %1925 = vxpose.xlu0.c.b16.cont [5/8] 0, 128
        %1926 = vxpose.xlu0.c.b16.cont [6/8] 0, 128
        %1927 = vxpose.xlu0.c.b16.cont [7/8] 0, 128
        %1928 = vxpose.xlu0.c.b16.end [8/8] 0, 128
        %v1929 = vpop.trf.xlu0
        %v1930 = vpop.trf.xlu0
        %v1931 = vpop.trf.xlu0
        %v1932 = vpop.trf.xlu0
        %v1933 = vpop.trf.xlu0
        %v1934 = vpop.trf.xlu0
        %v1935 = vpop.trf.xlu0
        %v1936 = vpop.trf.xlu0
        %1937 = vxpose.xlu0.c.b16.start [1/8] %v1427, 128
        %1938 = vxpose.xlu0.c.b16.cont [2/8] 0, 128
        %1939 = vxpose.xlu0.c.b16.cont [3/8] 0, 128
        %1940 = vxpose.xlu0.c.b16.cont [4/8] 0, 128
        %1941 = vxpose.xlu0.c.b16.cont [5/8] 0, 128
        %1942 = vxpose.xlu0.c.b16.cont [6/8] 0, 128
        %1943 = vxpose.xlu0.c.b16.cont [7/8] 0, 128
        %1944 = vxpose.xlu0.c.b16.end [8/8] 0, 128
        %v1945 = vpop.trf.xlu0
        %v1946 = vpop.trf.xlu0
        %v1947 = vpop.trf.xlu0
        %v1948 = vpop.trf.xlu0
        %v1949 = vpop.trf.xlu0
        %v1950 = vpop.trf.xlu0
        %v1951 = vpop.trf.xlu0
        %v1952 = vpop.trf.xlu0
        %1953 = vxpose.xlu0.c.b16.start [1/8] %v1428, 128
        %1954 = vxpose.xlu0.c.b16.cont [2/8] 0, 128
        %1955 = vxpose.xlu0.c.b16.cont [3/8] 0, 128
        %1956 = vxpose.xlu0.c.b16.cont [4/8] 0, 128
        %1957 = vxpose.xlu0.c.b16.cont [5/8] 0, 128
        %1958 = vxpose.xlu0.c.b16.cont [6/8] 0, 128
        %1959 = vxpose.xlu0.c.b16.cont [7/8] 0, 128
        %1960 = vxpose.xlu0.c.b16.end [8/8] 0, 128
        %v1961 = vpop.trf.xlu0
        %v1962 = vpop.trf.xlu0
        %v1963 = vpop.trf.xlu0
        %v1964 = vpop.trf.xlu0
        %v1965 = vpop.trf.xlu0
        %v1966 = vpop.trf.xlu0
        %v1967 = vpop.trf.xlu0
        %v1968 = vpop.trf.xlu0
        %v1969 = vcombine.low %v1721, %v1785
        %v1970 = vcombine.high %v1721, %v1785
        %v1972 = vunpack.c.l.s4 1983009808
        %v1973 = vunpack.c.0.s8 %v1972
        %v1974 = vlaneseq
        %v1975 = vshrl.u32 %v1974, 7
        %v1976 = vsub.s32 %v1973, %v1975
        %v1977 = vrot.slane %v1969, %v1976
        %v1979 = vunpack.c.l.s4 1983009808
        %v1980 = vunpack.c.0.s8 %v1979
        %v1981 = vlaneseq
        %v1982 = vshrl.u32 %v1981, 7
        %v1983 = vsub.s32 %v1980, %v1982
        %v1984 = vrot.slane %v1970, %v1983
        %v1985 = vcombine.low %v1753, %v1817
        %v1986 = vcombine.high %v1753, %v1817
        %v1988 = vunpack.c.l.s4 1983009808
        %v1989 = vunpack.c.0.s8 %v1988
        %v1990 = vlaneseq
        %v1991 = vshrl.u32 %v1990, 7
        %v1992 = vsub.s32 %v1989, %v1991
        %v1993 = vrot.slane %v1985, %v1992
        %v1995 = vunpack.c.l.s4 1983009808
        %v1996 = vunpack.c.0.s8 %v1995
        %v1997 = vlaneseq
        %v1998 = vshrl.u32 %v1997, 7
        %v1999 = vsub.s32 %v1996, %v1998
        %v2000 = vrot.slane %v1986, %v1999
        %v2001 = vcombine.low %v1849, %v1913
        %v2002 = vcombine.high %v1849, %v1913
        %v2004 = vunpack.c.l.s4 1983009808
        %v2005 = vunpack.c.0.s8 %v2004
        %v2006 = vlaneseq
        %v2007 = vshrl.u32 %v2006, 7
        %v2008 = vsub.s32 %v2005, %v2007
        %v2009 = vrot.slane %v2001, %v2008
        %v2011 = vunpack.c.l.s4 1983009808
        %v2012 = vunpack.c.0.s8 %v2011
        %v2013 = vlaneseq
        %v2014 = vshrl.u32 %v2013, 7
        %v2015 = vsub.s32 %v2012, %v2014
        %v2016 = vrot.slane %v2002, %v2015
        %v2017 = vcombine.low %v1881, %v1945
        %v2018 = vcombine.high %v1881, %v1945
        %v2020 = vunpack.c.l.s4 1983009808
        %v2021 = vunpack.c.0.s8 %v2020
        %v2022 = vlaneseq
        %v2023 = vshrl.u32 %v2022, 7
        %v2024 = vsub.s32 %v2021, %v2023
        %v2025 = vrot.slane %v2017, %v2024
        %v2027 = vunpack.c.l.s4 1983009808
        %v2028 = vunpack.c.0.s8 %v2027
        %v2029 = vlaneseq
        %v2030 = vshrl.u32 %v2029, 7
        %v2031 = vsub.s32 %v2028, %v2030
        %v2032 = vrot.slane %v2018, %v2031
        %v2033 = vcombine.low %v1977, %v1993
        %v2034 = vcombine.high %v1977, %v1993
        %v2036 = vunpack.c.l.s4 1934713408
        %v2037 = vunpack.c.0.s8 %v2036
        %v2038 = vlaneseq
        %v2039 = vshrl.u32 %v2038, 7
        %v2040 = vsub.s32 %v2037, %v2039
        %v2041 = vrot.slane %v2033, %v2040
        %v2043 = vunpack.c.l.s4 1934713408
        %v2044 = vunpack.c.0.s8 %v2043
        %v2045 = vlaneseq
        %v2046 = vshrl.u32 %v2045, 7
        %v2047 = vsub.s32 %v2044, %v2046
        %v2048 = vrot.slane %v2034, %v2047
        %v2049 = vcombine.low %v1984, %v2000
        %v2050 = vcombine.high %v1984, %v2000
        %v2052 = vunpack.c.l.s4 1934713408
        %v2053 = vunpack.c.0.s8 %v2052
        %v2054 = vlaneseq
        %v2055 = vshrl.u32 %v2054, 7
        %v2056 = vsub.s32 %v2053, %v2055
        %v2057 = vrot.slane %v2049, %v2056
        %v2059 = vunpack.c.l.s4 1934713408
        %v2060 = vunpack.c.0.s8 %v2059
        %v2061 = vlaneseq
        %v2062 = vshrl.u32 %v2061, 7
        %v2063 = vsub.s32 %v2060, %v2062
        %v2064 = vrot.slane %v2050, %v2063
        %v2065 = vcombine.low %v2009, %v2025
        %v2066 = vcombine.high %v2009, %v2025
        %v2068 = vunpack.c.l.s4 1934713408
        %v2069 = vunpack.c.0.s8 %v2068
        %v2070 = vlaneseq
        %v2071 = vshrl.u32 %v2070, 7
        %v2072 = vsub.s32 %v2069, %v2071
        %v2073 = vrot.slane %v2065, %v2072
        %v2075 = vunpack.c.l.s4 1934713408
        %v2076 = vunpack.c.0.s8 %v2075
        %v2077 = vlaneseq
        %v2078 = vshrl.u32 %v2077, 7
        %v2079 = vsub.s32 %v2076, %v2078
        %v2080 = vrot.slane %v2066, %v2079
        %v2081 = vcombine.low %v2016, %v2032
        %v2082 = vcombine.high %v2016, %v2032
        %v2084 = vunpack.c.l.s4 1934713408
        %v2085 = vunpack.c.0.s8 %v2084
        %v2086 = vlaneseq
        %v2087 = vshrl.u32 %v2086, 7
        %v2088 = vsub.s32 %v2085, %v2087
        %v2089 = vrot.slane %v2081, %v2088
        %v2091 = vunpack.c.l.s4 1934713408
        %v2092 = vunpack.c.0.s8 %v2091
        %v2093 = vlaneseq
        %v2094 = vshrl.u32 %v2093, 7
        %v2095 = vsub.s32 %v2092, %v2094
        %v2096 = vrot.slane %v2082, %v2095
        %v2097 = vcombine.low %v2041, %v2073
        %v2098 = vcombine.high %v2041, %v2073
        %v2099 = vcombine.low %v2048, %v2080
        %v2100 = vcombine.high %v2048, %v2080
        %v2101 = vcombine.low %v2057, %v2089
        %v2102 = vcombine.high %v2057, %v2089
        %v2103 = vcombine.low %v2064, %v2096
        %v2104 = vcombine.high %v2064, %v2096
        %v2105 = vcombine.low %v1737, %v1801
        %v2106 = vcombine.high %v1737, %v1801
        %v2108 = vunpack.c.l.s4 1983009808
        %v2109 = vunpack.c.0.s8 %v2108
        %v2110 = vlaneseq
        %v2111 = vshrl.u32 %v2110, 7
        %v2112 = vsub.s32 %v2109, %v2111
        %v2113 = vrot.slane %v2105, %v2112
        %v2115 = vunpack.c.l.s4 1983009808
        %v2116 = vunpack.c.0.s8 %v2115
        %v2117 = vlaneseq
        %v2118 = vshrl.u32 %v2117, 7
        %v2119 = vsub.s32 %v2116, %v2118
        %v2120 = vrot.slane %v2106, %v2119
        %v2121 = vcombine.low %v1769, %v1833
        %v2122 = vcombine.high %v1769, %v1833
        %v2124 = vunpack.c.l.s4 1983009808
        %v2125 = vunpack.c.0.s8 %v2124
        %v2126 = vlaneseq
        %v2127 = vshrl.u32 %v2126, 7
        %v2128 = vsub.s32 %v2125, %v2127
        %v2129 = vrot.slane %v2121, %v2128
        %v2131 = vunpack.c.l.s4 1983009808
        %v2132 = vunpack.c.0.s8 %v2131
        %v2133 = vlaneseq
        %v2134 = vshrl.u32 %v2133, 7
        %v2135 = vsub.s32 %v2132, %v2134
        %v2136 = vrot.slane %v2122, %v2135
        %v2137 = vcombine.low %v1865, %v1929
        %v2138 = vcombine.high %v1865, %v1929
        %v2140 = vunpack.c.l.s4 1983009808
        %v2141 = vunpack.c.0.s8 %v2140
        %v2142 = vlaneseq
        %v2143 = vshrl.u32 %v2142, 7
        %v2144 = vsub.s32 %v2141, %v2143
        %v2145 = vrot.slane %v2137, %v2144
        %v2147 = vunpack.c.l.s4 1983009808
        %v2148 = vunpack.c.0.s8 %v2147
        %v2149 = vlaneseq
        %v2150 = vshrl.u32 %v2149, 7
        %v2151 = vsub.s32 %v2148, %v2150
        %v2152 = vrot.slane %v2138, %v2151
        %v2153 = vcombine.low %v1897, %v1961
        %v2154 = vcombine.high %v1897, %v1961
        %v2156 = vunpack.c.l.s4 1983009808
        %v2157 = vunpack.c.0.s8 %v2156
        %v2158 = vlaneseq
        %v2159 = vshrl.u32 %v2158, 7
        %v2160 = vsub.s32 %v2157, %v2159
        %v2161 = vrot.slane %v2153, %v2160
        %v2163 = vunpack.c.l.s4 1983009808
        %v2164 = vunpack.c.0.s8 %v2163
        %v2165 = vlaneseq
        %v2166 = vshrl.u32 %v2165, 7
        %v2167 = vsub.s32 %v2164, %v2166
        %v2168 = vrot.slane %v2154, %v2167
        %v2169 = vcombine.low %v2113, %v2129
        %v2170 = vcombine.high %v2113, %v2129
        %v2172 = vunpack.c.l.s4 1934713408
        %v2173 = vunpack.c.0.s8 %v2172
        %v2174 = vlaneseq
        %v2175 = vshrl.u32 %v2174, 7
        %v2176 = vsub.s32 %v2173, %v2175
        %v2177 = vrot.slane %v2169, %v2176
        %v2179 = vunpack.c.l.s4 1934713408
        %v2180 = vunpack.c.0.s8 %v2179
        %v2181 = vlaneseq
        %v2182 = vshrl.u32 %v2181, 7
        %v2183 = vsub.s32 %v2180, %v2182
        %v2184 = vrot.slane %v2170, %v2183
        %v2185 = vcombine.low %v2120, %v2136
        %v2186 = vcombine.high %v2120, %v2136
        %v2188 = vunpack.c.l.s4 1934713408
        %v2189 = vunpack.c.0.s8 %v2188
        %v2190 = vlaneseq
        %v2191 = vshrl.u32 %v2190, 7
        %v2192 = vsub.s32 %v2189, %v2191
        %v2193 = vrot.slane %v2185, %v2192
        %v2195 = vunpack.c.l.s4 1934713408
        %v2196 = vunpack.c.0.s8 %v2195
        %v2197 = vlaneseq
        %v2198 = vshrl.u32 %v2197, 7
        %v2199 = vsub.s32 %v2196, %v2198
        %v2200 = vrot.slane %v2186, %v2199
        %v2201 = vcombine.low %v2145, %v2161
        %v2202 = vcombine.high %v2145, %v2161
        %v2204 = vunpack.c.l.s4 1934713408
        %v2205 = vunpack.c.0.s8 %v2204
        %v2206 = vlaneseq
        %v2207 = vshrl.u32 %v2206, 7
        %v2208 = vsub.s32 %v2205, %v2207
        %v2209 = vrot.slane %v2201, %v2208
        %v2211 = vunpack.c.l.s4 1934713408
        %v2212 = vunpack.c.0.s8 %v2211
        %v2213 = vlaneseq
        %v2214 = vshrl.u32 %v2213, 7
        %v2215 = vsub.s32 %v2212, %v2214
        %v2216 = vrot.slane %v2202, %v2215
        %v2217 = vcombine.low %v2152, %v2168
        %v2218 = vcombine.high %v2152, %v2168
        %v2220 = vunpack.c.l.s4 1934713408
        %v2221 = vunpack.c.0.s8 %v2220
        %v2222 = vlaneseq
        %v2223 = vshrl.u32 %v2222, 7
        %v2224 = vsub.s32 %v2221, %v2223
        %v2225 = vrot.slane %v2217, %v2224
        %v2227 = vunpack.c.l.s4 1934713408
        %v2228 = vunpack.c.0.s8 %v2227
        %v2229 = vlaneseq
        %v2230 = vshrl.u32 %v2229, 7
        %v2231 = vsub.s32 %v2228, %v2230
        %v2232 = vrot.slane %v2218, %v2231
        %v2233 = vcombine.low %v2177, %v2209
        %v2234 = vcombine.high %v2177, %v2209
        %v2235 = vcombine.low %v2184, %v2216
        %v2236 = vcombine.high %v2184, %v2216
        %v2237 = vcombine.low %v2193, %v2225
        %v2238 = vcombine.high %v2193, %v2225
        %v2239 = vcombine.low %v2200, %v2232
        %v2240 = vcombine.high %v2200, %v2232
        %v2241 = vcombine.low %v1722, %v1786
        %v2242 = vcombine.high %v1722, %v1786
        %v2244 = vunpack.c.l.s4 1983009808
        %v2245 = vunpack.c.0.s8 %v2244
        %v2246 = vlaneseq
        %v2247 = vshrl.u32 %v2246, 7
        %v2248 = vsub.s32 %v2245, %v2247
        %v2249 = vrot.slane %v2241, %v2248
        %v2251 = vunpack.c.l.s4 1983009808
        %v2252 = vunpack.c.0.s8 %v2251
        %v2253 = vlaneseq
        %v2254 = vshrl.u32 %v2253, 7
        %v2255 = vsub.s32 %v2252, %v2254
        %v2256 = vrot.slane %v2242, %v2255
        %v2257 = vcombine.low %v1754, %v1818
        %v2258 = vcombine.high %v1754, %v1818
        %v2260 = vunpack.c.l.s4 1983009808
        %v2261 = vunpack.c.0.s8 %v2260
        %v2262 = vlaneseq
        %v2263 = vshrl.u32 %v2262, 7
        %v2264 = vsub.s32 %v2261, %v2263
        %v2265 = vrot.slane %v2257, %v2264
        %v2267 = vunpack.c.l.s4 1983009808
        %v2268 = vunpack.c.0.s8 %v2267
        %v2269 = vlaneseq
        %v2270 = vshrl.u32 %v2269, 7
        %v2271 = vsub.s32 %v2268, %v2270
        %v2272 = vrot.slane %v2258, %v2271
        %v2273 = vcombine.low %v1850, %v1914
        %v2274 = vcombine.high %v1850, %v1914
        %v2276 = vunpack.c.l.s4 1983009808
        %v2277 = vunpack.c.0.s8 %v2276
        %v2278 = vlaneseq
        %v2279 = vshrl.u32 %v2278, 7
        %v2280 = vsub.s32 %v2277, %v2279
        %v2281 = vrot.slane %v2273, %v2280
        %v2283 = vunpack.c.l.s4 1983009808
        %v2284 = vunpack.c.0.s8 %v2283
        %v2285 = vlaneseq
        %v2286 = vshrl.u32 %v2285, 7
        %v2287 = vsub.s32 %v2284, %v2286
        %v2288 = vrot.slane %v2274, %v2287
        %v2289 = vcombine.low %v1882, %v1946
        %v2290 = vcombine.high %v1882, %v1946
        %v2292 = vunpack.c.l.s4 1983009808
        %v2293 = vunpack.c.0.s8 %v2292
        %v2294 = vlaneseq
        %v2295 = vshrl.u32 %v2294, 7
        %v2296 = vsub.s32 %v2293, %v2295
        %v2297 = vrot.slane %v2289, %v2296
        %v2299 = vunpack.c.l.s4 1983009808
        %v2300 = vunpack.c.0.s8 %v2299
        %v2301 = vlaneseq
        %v2302 = vshrl.u32 %v2301, 7
        %v2303 = vsub.s32 %v2300, %v2302
        %v2304 = vrot.slane %v2290, %v2303
        %v2305 = vcombine.low %v2249, %v2265
        %v2306 = vcombine.high %v2249, %v2265
        %v2308 = vunpack.c.l.s4 1934713408
        %v2309 = vunpack.c.0.s8 %v2308
        %v2310 = vlaneseq
        %v2311 = vshrl.u32 %v2310, 7
        %v2312 = vsub.s32 %v2309, %v2311
        %v2313 = vrot.slane %v2305, %v2312
        %v2315 = vunpack.c.l.s4 1934713408
        %v2316 = vunpack.c.0.s8 %v2315
        %v2317 = vlaneseq
        %v2318 = vshrl.u32 %v2317, 7
        %v2319 = vsub.s32 %v2316, %v2318
        %v2320 = vrot.slane %v2306, %v2319
        %v2321 = vcombine.low %v2256, %v2272
        %v2322 = vcombine.high %v2256, %v2272
        %v2324 = vunpack.c.l.s4 1934713408
        %v2325 = vunpack.c.0.s8 %v2324
        %v2326 = vlaneseq
        %v2327 = vshrl.u32 %v2326, 7
        %v2328 = vsub.s32 %v2325, %v2327
        %v2329 = vrot.slane %v2321, %v2328
        %v2331 = vunpack.c.l.s4 1934713408
        %v2332 = vunpack.c.0.s8 %v2331
        %v2333 = vlaneseq
        %v2334 = vshrl.u32 %v2333, 7
        %v2335 = vsub.s32 %v2332, %v2334
        %v2336 = vrot.slane %v2322, %v2335
        %v2337 = vcombine.low %v2281, %v2297
        %v2338 = vcombine.high %v2281, %v2297
        %v2340 = vunpack.c.l.s4 1934713408
        %v2341 = vunpack.c.0.s8 %v2340
        %v2342 = vlaneseq
        %v2343 = vshrl.u32 %v2342, 7
        %v2344 = vsub.s32 %v2341, %v2343
        %v2345 = vrot.slane %v2337, %v2344
        %v2347 = vunpack.c.l.s4 1934713408
        %v2348 = vunpack.c.0.s8 %v2347
        %v2349 = vlaneseq
        %v2350 = vshrl.u32 %v2349, 7
        %v2351 = vsub.s32 %v2348, %v2350
        %v2352 = vrot.slane %v2338, %v2351
        %v2353 = vcombine.low %v2288, %v2304
        %v2354 = vcombine.high %v2288, %v2304
        %v2356 = vunpack.c.l.s4 1934713408
        %v2357 = vunpack.c.0.s8 %v2356
        %v2358 = vlaneseq
        %v2359 = vshrl.u32 %v2358, 7
        %v2360 = vsub.s32 %v2357, %v2359
        %v2361 = vrot.slane %v2353, %v2360
        %v2363 = vunpack.c.l.s4 1934713408
        %v2364 = vunpack.c.0.s8 %v2363
        %v2365 = vlaneseq
        %v2366 = vshrl.u32 %v2365, 7
        %v2367 = vsub.s32 %v2364, %v2366
        %v2368 = vrot.slane %v2354, %v2367
        %v2369 = vcombine.low %v2313, %v2345
        %v2370 = vcombine.high %v2313, %v2345
        %v2371 = vcombine.low %v2320, %v2352
        %v2372 = vcombine.high %v2320, %v2352
        %v2373 = vcombine.low %v2329, %v2361
        %v2374 = vcombine.high %v2329, %v2361
        %v2375 = vcombine.low %v2336, %v2368
        %v2376 = vcombine.high %v2336, %v2368
        %v2377 = vcombine.low %v1738, %v1802
        %v2378 = vcombine.high %v1738, %v1802
        %v2380 = vunpack.c.l.s4 1983009808
        %v2381 = vunpack.c.0.s8 %v2380
        %v2382 = vlaneseq
        %v2383 = vshrl.u32 %v2382, 7
        %v2384 = vsub.s32 %v2381, %v2383
        %v2385 = vrot.slane %v2377, %v2384
        %v2387 = vunpack.c.l.s4 1983009808
        %v2388 = vunpack.c.0.s8 %v2387
        %v2389 = vlaneseq
        %v2390 = vshrl.u32 %v2389, 7
        %v2391 = vsub.s32 %v2388, %v2390
        %v2392 = vrot.slane %v2378, %v2391
        %v2393 = vcombine.low %v1770, %v1834
        %v2394 = vcombine.high %v1770, %v1834
        %v2396 = vunpack.c.l.s4 1983009808
        %v2397 = vunpack.c.0.s8 %v2396
        %v2398 = vlaneseq
        %v2399 = vshrl.u32 %v2398, 7
        %v2400 = vsub.s32 %v2397, %v2399
        %v2401 = vrot.slane %v2393, %v2400
        %v2403 = vunpack.c.l.s4 1983009808
        %v2404 = vunpack.c.0.s8 %v2403
        %v2405 = vlaneseq
        %v2406 = vshrl.u32 %v2405, 7
        %v2407 = vsub.s32 %v2404, %v2406
        %v2408 = vrot.slane %v2394, %v2407
        %v2409 = vcombine.low %v1866, %v1930
        %v2410 = vcombine.high %v1866, %v1930
        %v2412 = vunpack.c.l.s4 1983009808
        %v2413 = vunpack.c.0.s8 %v2412
        %v2414 = vlaneseq
        %v2415 = vshrl.u32 %v2414, 7
        %v2416 = vsub.s32 %v2413, %v2415
        %v2417 = vrot.slane %v2409, %v2416
        %v2419 = vunpack.c.l.s4 1983009808
        %v2420 = vunpack.c.0.s8 %v2419
        %v2421 = vlaneseq
        %v2422 = vshrl.u32 %v2421, 7
        %v2423 = vsub.s32 %v2420, %v2422
        %v2424 = vrot.slane %v2410, %v2423
        %v2425 = vcombine.low %v1898, %v1962
        %v2426 = vcombine.high %v1898, %v1962
        %v2428 = vunpack.c.l.s4 1983009808
        %v2429 = vunpack.c.0.s8 %v2428
        %v2430 = vlaneseq
        %v2431 = vshrl.u32 %v2430, 7
        %v2432 = vsub.s32 %v2429, %v2431
        %v2433 = vrot.slane %v2425, %v2432
        %v2435 = vunpack.c.l.s4 1983009808
        %v2436 = vunpack.c.0.s8 %v2435
        %v2437 = vlaneseq
        %v2438 = vshrl.u32 %v2437, 7
        %v2439 = vsub.s32 %v2436, %v2438
        %v2440 = vrot.slane %v2426, %v2439
        %v2441 = vcombine.low %v2385, %v2401
        %v2442 = vcombine.high %v2385, %v2401
        %v2444 = vunpack.c.l.s4 1934713408
        %v2445 = vunpack.c.0.s8 %v2444
        %v2446 = vlaneseq
        %v2447 = vshrl.u32 %v2446, 7
        %v2448 = vsub.s32 %v2445, %v2447
        %v2449 = vrot.slane %v2441, %v2448
        %v2451 = vunpack.c.l.s4 1934713408
        %v2452 = vunpack.c.0.s8 %v2451
        %v2453 = vlaneseq
        %v2454 = vshrl.u32 %v2453, 7
        %v2455 = vsub.s32 %v2452, %v2454
        %v2456 = vrot.slane %v2442, %v2455
        %v2457 = vcombine.low %v2392, %v2408
        %v2458 = vcombine.high %v2392, %v2408
        %v2460 = vunpack.c.l.s4 1934713408
        %v2461 = vunpack.c.0.s8 %v2460
        %v2462 = vlaneseq
        %v2463 = vshrl.u32 %v2462, 7
        %v2464 = vsub.s32 %v2461, %v2463
        %v2465 = vrot.slane %v2457, %v2464
        %v2467 = vunpack.c.l.s4 1934713408
        %v2468 = vunpack.c.0.s8 %v2467
        %v2469 = vlaneseq
        %v2470 = vshrl.u32 %v2469, 7
        %v2471 = vsub.s32 %v2468, %v2470
        %v2472 = vrot.slane %v2458, %v2471
        %v2473 = vcombine.low %v2417, %v2433
        %v2474 = vcombine.high %v2417, %v2433
        %v2476 = vunpack.c.l.s4 1934713408
        %v2477 = vunpack.c.0.s8 %v2476
        %v2478 = vlaneseq
        %v2479 = vshrl.u32 %v2478, 7
        %v2480 = vsub.s32 %v2477, %v2479
        %v2481 = vrot.slane %v2473, %v2480
        %v2483 = vunpack.c.l.s4 1934713408
        %v2484 = vunpack.c.0.s8 %v2483
        %v2485 = vlaneseq
        %v2486 = vshrl.u32 %v2485, 7
        %v2487 = vsub.s32 %v2484, %v2486
        %v2488 = vrot.slane %v2474, %v2487
        %v2489 = vcombine.low %v2424, %v2440
        %v2490 = vcombine.high %v2424, %v2440
        %v2492 = vunpack.c.l.s4 1934713408
        %v2493 = vunpack.c.0.s8 %v2492
        %v2494 = vlaneseq
        %v2495 = vshrl.u32 %v2494, 7
        %v2496 = vsub.s32 %v2493, %v2495
        %v2497 = vrot.slane %v2489, %v2496
        %v2499 = vunpack.c.l.s4 1934713408
        %v2500 = vunpack.c.0.s8 %v2499
        %v2501 = vlaneseq
        %v2502 = vshrl.u32 %v2501, 7
        %v2503 = vsub.s32 %v2500, %v2502
        %v2504 = vrot.slane %v2490, %v2503
        %v2505 = vcombine.low %v2449, %v2481
        %v2506 = vcombine.high %v2449, %v2481
        %v2507 = vcombine.low %v2456, %v2488
        %v2508 = vcombine.high %v2456, %v2488
        %v2509 = vcombine.low %v2465, %v2497
        %v2510 = vcombine.high %v2465, %v2497
        %v2511 = vcombine.low %v2472, %v2504
        %v2512 = vcombine.high %v2472, %v2504
        %v2515 = vpack.i.b16 %v2233, %v2097
        %v2517 = vshrl.u32 %v2097, 16
        %v2518 = vshrl.u32 %v2233, 16
        %v2519 = vpack.i.b16 %v2518, %v2517
        %v2523 = vpack.i.b16 %v2234, %v2098
        %v2525 = vshrl.u32 %v2098, 16
        %v2526 = vshrl.u32 %v2234, 16
        %v2527 = vpack.i.b16 %v2526, %v2525
        %v2531 = vpack.i.b16 %v2235, %v2099
        %v2533 = vshrl.u32 %v2099, 16
        %v2534 = vshrl.u32 %v2235, 16
        %v2535 = vpack.i.b16 %v2534, %v2533
        %v2539 = vpack.i.b16 %v2236, %v2100
        %v2541 = vshrl.u32 %v2100, 16
        %v2542 = vshrl.u32 %v2236, 16
        %v2543 = vpack.i.b16 %v2542, %v2541
        %v2547 = vpack.i.b16 %v2237, %v2101
        %v2549 = vshrl.u32 %v2101, 16
        %v2550 = vshrl.u32 %v2237, 16
        %v2551 = vpack.i.b16 %v2550, %v2549
        %v2555 = vpack.i.b16 %v2238, %v2102
        %v2557 = vshrl.u32 %v2102, 16
        %v2558 = vshrl.u32 %v2238, 16
        %v2559 = vpack.i.b16 %v2558, %v2557
        %v2563 = vpack.i.b16 %v2239, %v2103
        %v2565 = vshrl.u32 %v2103, 16
        %v2566 = vshrl.u32 %v2239, 16
        %v2567 = vpack.i.b16 %v2566, %v2565
        %v2571 = vpack.i.b16 %v2240, %v2104
        %v2573 = vshrl.u32 %v2104, 16
        %v2574 = vshrl.u32 %v2240, 16
        %v2575 = vpack.i.b16 %v2574, %v2573
        %v2579 = vpack.i.b16 %v2505, %v2369
        %v2581 = vshrl.u32 %v2369, 16
        %v2582 = vshrl.u32 %v2505, 16
        %v2583 = vpack.i.b16 %v2582, %v2581
        %v2587 = vpack.i.b16 %v2506, %v2370
        %v2589 = vshrl.u32 %v2370, 16
        %v2590 = vshrl.u32 %v2506, 16
        %v2591 = vpack.i.b16 %v2590, %v2589
        %v2595 = vpack.i.b16 %v2507, %v2371
        %v2597 = vshrl.u32 %v2371, 16
        %v2598 = vshrl.u32 %v2507, 16
        %v2599 = vpack.i.b16 %v2598, %v2597
        %v2603 = vpack.i.b16 %v2508, %v2372
        %v2605 = vshrl.u32 %v2372, 16
        %v2606 = vshrl.u32 %v2508, 16
        %v2607 = vpack.i.b16 %v2606, %v2605
        %v2611 = vpack.i.b16 %v2509, %v2373
        %v2613 = vshrl.u32 %v2373, 16
        %v2614 = vshrl.u32 %v2509, 16
        %v2615 = vpack.i.b16 %v2614, %v2613
        %v2619 = vpack.i.b16 %v2510, %v2374
        %v2621 = vshrl.u32 %v2374, 16
        %v2622 = vshrl.u32 %v2510, 16
        %v2623 = vpack.i.b16 %v2622, %v2621
        %v2627 = vpack.i.b16 %v2511, %v2375
        %v2629 = vshrl.u32 %v2375, 16
        %v2630 = vshrl.u32 %v2511, 16
        %v2631 = vpack.i.b16 %v2630, %v2629
        %v2635 = vpack.i.b16 %v2512, %v2376
        %v2637 = vshrl.u32 %v2376, 16
        %v2638 = vshrl.u32 %v2512, 16
        %v2639 = vpack.i.b16 %v2638, %v2637
        %2641 = vxpose.xlu0.c.b16.start [1/8] %v2515, 128
        %2642 = vxpose.xlu0.c.b16.cont [2/8] 0, 128
        %2643 = vxpose.xlu0.c.b16.cont [3/8] 0, 128
        %2644 = vxpose.xlu0.c.b16.cont [4/8] 0, 128
        %2645 = vxpose.xlu0.c.b16.cont [5/8] 0, 128
        %2646 = vxpose.xlu0.c.b16.cont [6/8] 0, 128
        %2647 = vxpose.xlu0.c.b16.cont [7/8] 0, 128
        %2648 = vxpose.xlu0.c.b16.end [8/8] 0, 128
        %v2649 = vpop.trf.xlu0
        %v2650 = vpop.trf.xlu0
        %v2651 = vpop.trf.xlu0
        %v2652 = vpop.trf.xlu0
        %v2653 = vpop.trf.xlu0
        %v2654 = vpop.trf.xlu0
        %v2655 = vpop.trf.xlu0
        %v2656 = vpop.trf.xlu0
        %2657 = vxpose.xlu0.c.b16.start [1/8] %v2519, 128
        %2658 = vxpose.xlu0.c.b16.cont [2/8] 0, 128
        %2659 = vxpose.xlu0.c.b16.cont [3/8] 0, 128
        %2660 = vxpose.xlu0.c.b16.cont [4/8] 0, 128
        %2661 = vxpose.xlu0.c.b16.cont [5/8] 0, 128
        %2662 = vxpose.xlu0.c.b16.cont [6/8] 0, 128
        %2663 = vxpose.xlu0.c.b16.cont [7/8] 0, 128
        %2664 = vxpose.xlu0.c.b16.end [8/8] 0, 128
        %v2665 = vpop.trf.xlu0
        %v2666 = vpop.trf.xlu0
        %v2667 = vpop.trf.xlu0
        %v2668 = vpop.trf.xlu0
        %v2669 = vpop.trf.xlu0
        %v2670 = vpop.trf.xlu0
        %v2671 = vpop.trf.xlu0
        %v2672 = vpop.trf.xlu0
        %2673 = vxpose.xlu0.c.b16.start [1/8] %v2523, 128
        %2674 = vxpose.xlu0.c.b16.cont [2/8] 0, 128
        %2675 = vxpose.xlu0.c.b16.cont [3/8] 0, 128
        %2676 = vxpose.xlu0.c.b16.cont [4/8] 0, 128
        %2677 = vxpose.xlu0.c.b16.cont [5/8] 0, 128
        %2678 = vxpose.xlu0.c.b16.cont [6/8] 0, 128
        %2679 = vxpose.xlu0.c.b16.cont [7/8] 0, 128
        %2680 = vxpose.xlu0.c.b16.end [8/8] 0, 128
        %v2681 = vpop.trf.xlu0
        %v2682 = vpop.trf.xlu0
        %v2683 = vpop.trf.xlu0
        %v2684 = vpop.trf.xlu0
        %v2685 = vpop.trf.xlu0
        %v2686 = vpop.trf.xlu0
        %v2687 = vpop.trf.xlu0
        %v2688 = vpop.trf.xlu0
        %2689 = vxpose.xlu0.c.b16.start [1/8] %v2527, 128
        %2690 = vxpose.xlu0.c.b16.cont [2/8] 0, 128
        %2691 = vxpose.xlu0.c.b16.cont [3/8] 0, 128
        %2692 = vxpose.xlu0.c.b16.cont [4/8] 0, 128
        %2693 = vxpose.xlu0.c.b16.cont [5/8] 0, 128
        %2694 = vxpose.xlu0.c.b16.cont [6/8] 0, 128
        %2695 = vxpose.xlu0.c.b16.cont [7/8] 0, 128
        %2696 = vxpose.xlu0.c.b16.end [8/8] 0, 128
        %v2697 = vpop.trf.xlu0
        %v2698 = vpop.trf.xlu0
        %v2699 = vpop.trf.xlu0
        %v2700 = vpop.trf.xlu0
        %v2701 = vpop.trf.xlu0
        %v2702 = vpop.trf.xlu0
        %v2703 = vpop.trf.xlu0
        %v2704 = vpop.trf.xlu0
        %2705 = vxpose.xlu0.c.b16.start [1/8] %v2531, 128
        %2706 = vxpose.xlu0.c.b16.cont [2/8] 0, 128
        %2707 = vxpose.xlu0.c.b16.cont [3/8] 0, 128
        %2708 = vxpose.xlu0.c.b16.cont [4/8] 0, 128
        %2709 = vxpose.xlu0.c.b16.cont [5/8] 0, 128
        %2710 = vxpose.xlu0.c.b16.cont [6/8] 0, 128
        %2711 = vxpose.xlu0.c.b16.cont [7/8] 0, 128
        %2712 = vxpose.xlu0.c.b16.end [8/8] 0, 128
        %v2713 = vpop.trf.xlu0
        %v2714 = vpop.trf.xlu0
        %v2715 = vpop.trf.xlu0
        %v2716 = vpop.trf.xlu0
        %v2717 = vpop.trf.xlu0
        %v2718 = vpop.trf.xlu0
        %v2719 = vpop.trf.xlu0
        %v2720 = vpop.trf.xlu0
        %2721 = vxpose.xlu0.c.b16.start [1/8] %v2535, 128
        %2722 = vxpose.xlu0.c.b16.cont [2/8] 0, 128
        %2723 = vxpose.xlu0.c.b16.cont [3/8] 0, 128
        %2724 = vxpose.xlu0.c.b16.cont [4/8] 0, 128
        %2725 = vxpose.xlu0.c.b16.cont [5/8] 0, 128
        %2726 = vxpose.xlu0.c.b16.cont [6/8] 0, 128
        %2727 = vxpose.xlu0.c.b16.cont [7/8] 0, 128
        %2728 = vxpose.xlu0.c.b16.end [8/8] 0, 128
        %v2729 = vpop.trf.xlu0
        %v2730 = vpop.trf.xlu0
        %v2731 = vpop.trf.xlu0
        %v2732 = vpop.trf.xlu0
        %v2733 = vpop.trf.xlu0
        %v2734 = vpop.trf.xlu0
        %v2735 = vpop.trf.xlu0
        %v2736 = vpop.trf.xlu0
        %2737 = vxpose.xlu0.c.b16.start [1/8] %v2539, 128
        %2738 = vxpose.xlu0.c.b16.cont [2/8] 0, 128
        %2739 = vxpose.xlu0.c.b16.cont [3/8] 0, 128
        %2740 = vxpose.xlu0.c.b16.cont [4/8] 0, 128
        %2741 = vxpose.xlu0.c.b16.cont [5/8] 0, 128
        %2742 = vxpose.xlu0.c.b16.cont [6/8] 0, 128
        %2743 = vxpose.xlu0.c.b16.cont [7/8] 0, 128
        %2744 = vxpose.xlu0.c.b16.end [8/8] 0, 128
        %v2745 = vpop.trf.xlu0
        %v2746 = vpop.trf.xlu0
        %v2747 = vpop.trf.xlu0
        %v2748 = vpop.trf.xlu0
        %v2749 = vpop.trf.xlu0
        %v2750 = vpop.trf.xlu0
        %v2751 = vpop.trf.xlu0
        %v2752 = vpop.trf.xlu0
        %2753 = vxpose.xlu0.c.b16.start [1/8] %v2543, 128
        %2754 = vxpose.xlu0.c.b16.cont [2/8] 0, 128
        %2755 = vxpose.xlu0.c.b16.cont [3/8] 0, 128
        %2756 = vxpose.xlu0.c.b16.cont [4/8] 0, 128
        %2757 = vxpose.xlu0.c.b16.cont [5/8] 0, 128
        %2758 = vxpose.xlu0.c.b16.cont [6/8] 0, 128
        %2759 = vxpose.xlu0.c.b16.cont [7/8] 0, 128
        %2760 = vxpose.xlu0.c.b16.end [8/8] 0, 128
        %v2761 = vpop.trf.xlu0
        %v2762 = vpop.trf.xlu0
        %v2763 = vpop.trf.xlu0
        %v2764 = vpop.trf.xlu0
        %v2765 = vpop.trf.xlu0
        %v2766 = vpop.trf.xlu0
        %v2767 = vpop.trf.xlu0
        %v2768 = vpop.trf.xlu0
        %2769 = vxpose.xlu0.c.b16.start [1/8] %v2547, 128
        %2770 = vxpose.xlu0.c.b16.cont [2/8] 0, 128
        %2771 = vxpose.xlu0.c.b16.cont [3/8] 0, 128
        %2772 = vxpose.xlu0.c.b16.cont [4/8] 0, 128
        %2773 = vxpose.xlu0.c.b16.cont [5/8] 0, 128
        %2774 = vxpose.xlu0.c.b16.cont [6/8] 0, 128
        %2775 = vxpose.xlu0.c.b16.cont [7/8] 0, 128
        %2776 = vxpose.xlu0.c.b16.end [8/8] 0, 128
        %v2777 = vpop.trf.xlu0
        %v2778 = vpop.trf.xlu0
        %v2779 = vpop.trf.xlu0
        %v2780 = vpop.trf.xlu0
        %v2781 = vpop.trf.xlu0
        %v2782 = vpop.trf.xlu0
        %v2783 = vpop.trf.xlu0
        %v2784 = vpop.trf.xlu0
        %2785 = vxpose.xlu0.c.b16.start [1/8] %v2551, 128
        %2786 = vxpose.xlu0.c.b16.cont [2/8] 0, 128
        %2787 = vxpose.xlu0.c.b16.cont [3/8] 0, 128
        %2788 = vxpose.xlu0.c.b16.cont [4/8] 0, 128
        %2789 = vxpose.xlu0.c.b16.cont [5/8] 0, 128
        %2790 = vxpose.xlu0.c.b16.cont [6/8] 0, 128
        %2791 = vxpose.xlu0.c.b16.cont [7/8] 0, 128
        %2792 = vxpose.xlu0.c.b16.end [8/8] 0, 128
        %v2793 = vpop.trf.xlu0
        %v2794 = vpop.trf.xlu0
        %v2795 = vpop.trf.xlu0
        %v2796 = vpop.trf.xlu0
        %v2797 = vpop.trf.xlu0
        %v2798 = vpop.trf.xlu0
        %v2799 = vpop.trf.xlu0
        %v2800 = vpop.trf.xlu0
        %2801 = vxpose.xlu0.c.b16.start [1/8] %v2555, 128
        %2802 = vxpose.xlu0.c.b16.cont [2/8] 0, 128
        %2803 = vxpose.xlu0.c.b16.cont [3/8] 0, 128
        %2804 = vxpose.xlu0.c.b16.cont [4/8] 0, 128
        %2805 = vxpose.xlu0.c.b16.cont [5/8] 0, 128
        %2806 = vxpose.xlu0.c.b16.cont [6/8] 0, 128
        %2807 = vxpose.xlu0.c.b16.cont [7/8] 0, 128
        %2808 = vxpose.xlu0.c.b16.end [8/8] 0, 128
        %v2809 = vpop.trf.xlu0
        %v2810 = vpop.trf.xlu0
        %v2811 = vpop.trf.xlu0
        %v2812 = vpop.trf.xlu0
        %v2813 = vpop.trf.xlu0
        %v2814 = vpop.trf.xlu0
        %v2815 = vpop.trf.xlu0
        %v2816 = vpop.trf.xlu0
        %2817 = vxpose.xlu0.c.b16.start [1/8] %v2559, 128
        %2818 = vxpose.xlu0.c.b16.cont [2/8] 0, 128
        %2819 = vxpose.xlu0.c.b16.cont [3/8] 0, 128
        %2820 = vxpose.xlu0.c.b16.cont [4/8] 0, 128
        %2821 = vxpose.xlu0.c.b16.cont [5/8] 0, 128
        %2822 = vxpose.xlu0.c.b16.cont [6/8] 0, 128
        %2823 = vxpose.xlu0.c.b16.cont [7/8] 0, 128
        %2824 = vxpose.xlu0.c.b16.end [8/8] 0, 128
        %v2825 = vpop.trf.xlu0
        %v2826 = vpop.trf.xlu0
        %v2827 = vpop.trf.xlu0
        %v2828 = vpop.trf.xlu0
        %v2829 = vpop.trf.xlu0
        %v2830 = vpop.trf.xlu0
        %v2831 = vpop.trf.xlu0
        %v2832 = vpop.trf.xlu0
        %2833 = vxpose.xlu0.c.b16.start [1/8] %v2563, 128
        %2834 = vxpose.xlu0.c.b16.cont [2/8] 0, 128
        %2835 = vxpose.xlu0.c.b16.cont [3/8] 0, 128
        %2836 = vxpose.xlu0.c.b16.cont [4/8] 0, 128
        %2837 = vxpose.xlu0.c.b16.cont [5/8] 0, 128
        %2838 = vxpose.xlu0.c.b16.cont [6/8] 0, 128
        %2839 = vxpose.xlu0.c.b16.cont [7/8] 0, 128
        %2840 = vxpose.xlu0.c.b16.end [8/8] 0, 128
        %v2841 = vpop.trf.xlu0
        %v2842 = vpop.trf.xlu0
        %v2843 = vpop.trf.xlu0
        %v2844 = vpop.trf.xlu0
        %v2845 = vpop.trf.xlu0
        %v2846 = vpop.trf.xlu0
        %v2847 = vpop.trf.xlu0
        %v2848 = vpop.trf.xlu0
        %2849 = vxpose.xlu0.c.b16.start [1/8] %v2567, 128
        %2850 = vxpose.xlu0.c.b16.cont [2/8] 0, 128
        %2851 = vxpose.xlu0.c.b16.cont [3/8] 0, 128
        %2852 = vxpose.xlu0.c.b16.cont [4/8] 0, 128
        %2853 = vxpose.xlu0.c.b16.cont [5/8] 0, 128
        %2854 = vxpose.xlu0.c.b16.cont [6/8] 0, 128
        %2855 = vxpose.xlu0.c.b16.cont [7/8] 0, 128
        %2856 = vxpose.xlu0.c.b16.end [8/8] 0, 128
        %v2857 = vpop.trf.xlu0
        %v2858 = vpop.trf.xlu0
        %v2859 = vpop.trf.xlu0
        %v2860 = vpop.trf.xlu0
        %v2861 = vpop.trf.xlu0
        %v2862 = vpop.trf.xlu0
        %v2863 = vpop.trf.xlu0
        %v2864 = vpop.trf.xlu0
        %2865 = vxpose.xlu0.c.b16.start [1/8] %v2571, 128
        %2866 = vxpose.xlu0.c.b16.cont [2/8] 0, 128
        %2867 = vxpose.xlu0.c.b16.cont [3/8] 0, 128
        %2868 = vxpose.xlu0.c.b16.cont [4/8] 0, 128
        %2869 = vxpose.xlu0.c.b16.cont [5/8] 0, 128
        %2870 = vxpose.xlu0.c.b16.cont [6/8] 0, 128
        %2871 = vxpose.xlu0.c.b16.cont [7/8] 0, 128
        %2872 = vxpose.xlu0.c.b16.end [8/8] 0, 128
        %v2873 = vpop.trf.xlu0
        %v2874 = vpop.trf.xlu0
        %v2875 = vpop.trf.xlu0
        %v2876 = vpop.trf.xlu0
        %v2877 = vpop.trf.xlu0
        %v2878 = vpop.trf.xlu0
        %v2879 = vpop.trf.xlu0
        %v2880 = vpop.trf.xlu0
        %2881 = vxpose.xlu0.c.b16.start [1/8] %v2575, 128
        %2882 = vxpose.xlu0.c.b16.cont [2/8] 0, 128
        %2883 = vxpose.xlu0.c.b16.cont [3/8] 0, 128
        %2884 = vxpose.xlu0.c.b16.cont [4/8] 0, 128
        %2885 = vxpose.xlu0.c.b16.cont [5/8] 0, 128
        %2886 = vxpose.xlu0.c.b16.cont [6/8] 0, 128
        %2887 = vxpose.xlu0.c.b16.cont [7/8] 0, 128
        %2888 = vxpose.xlu0.c.b16.end [8/8] 0, 128
        %v2889 = vpop.trf.xlu0
        %v2890 = vpop.trf.xlu0
        %v2891 = vpop.trf.xlu0
        %v2892 = vpop.trf.xlu0
        %v2893 = vpop.trf.xlu0
        %v2894 = vpop.trf.xlu0
        %v2895 = vpop.trf.xlu0
        %v2896 = vpop.trf.xlu0
        %2897 = vxpose.xlu0.c.b16.start [1/8] %v2579, 128
        %2898 = vxpose.xlu0.c.b16.cont [2/8] 0, 128
        %2899 = vxpose.xlu0.c.b16.cont [3/8] 0, 128
        %2900 = vxpose.xlu0.c.b16.cont [4/8] 0, 128
        %2901 = vxpose.xlu0.c.b16.cont [5/8] 0, 128
        %2902 = vxpose.xlu0.c.b16.cont [6/8] 0, 128
        %2903 = vxpose.xlu0.c.b16.cont [7/8] 0, 128
        %2904 = vxpose.xlu0.c.b16.end [8/8] 0, 128
        %v2905 = vpop.trf.xlu0
        %v2906 = vpop.trf.xlu0
        %v2907 = vpop.trf.xlu0
        %v2908 = vpop.trf.xlu0
        %v2909 = vpop.trf.xlu0
        %v2910 = vpop.trf.xlu0
        %v2911 = vpop.trf.xlu0
        %v2912 = vpop.trf.xlu0
        %2913 = vxpose.xlu0.c.b16.start [1/8] %v2583, 128
        %2914 = vxpose.xlu0.c.b16.cont [2/8] 0, 128
        %2915 = vxpose.xlu0.c.b16.cont [3/8] 0, 128
        %2916 = vxpose.xlu0.c.b16.cont [4/8] 0, 128
        %2917 = vxpose.xlu0.c.b16.cont [5/8] 0, 128
        %2918 = vxpose.xlu0.c.b16.cont [6/8] 0, 128
        %2919 = vxpose.xlu0.c.b16.cont [7/8] 0, 128
        %2920 = vxpose.xlu0.c.b16.end [8/8] 0, 128
        %v2921 = vpop.trf.xlu0
        %v2922 = vpop.trf.xlu0
        %v2923 = vpop.trf.xlu0
        %v2924 = vpop.trf.xlu0
        %v2925 = vpop.trf.xlu0
        %v2926 = vpop.trf.xlu0
        %v2927 = vpop.trf.xlu0
        %v2928 = vpop.trf.xlu0
        %2929 = vxpose.xlu0.c.b16.start [1/8] %v2587, 128
        %2930 = vxpose.xlu0.c.b16.cont [2/8] 0, 128
        %2931 = vxpose.xlu0.c.b16.cont [3/8] 0, 128
        %2932 = vxpose.xlu0.c.b16.cont [4/8] 0, 128
        %2933 = vxpose.xlu0.c.b16.cont [5/8] 0, 128
        %2934 = vxpose.xlu0.c.b16.cont [6/8] 0, 128
        %2935 = vxpose.xlu0.c.b16.cont [7/8] 0, 128
        %2936 = vxpose.xlu0.c.b16.end [8/8] 0, 128
        %v2937 = vpop.trf.xlu0
        %v2938 = vpop.trf.xlu0
        %v2939 = vpop.trf.xlu0
        %v2940 = vpop.trf.xlu0
        %v2941 = vpop.trf.xlu0
        %v2942 = vpop.trf.xlu0
        %v2943 = vpop.trf.xlu0
        %v2944 = vpop.trf.xlu0
        %2945 = vxpose.xlu0.c.b16.start [1/8] %v2591, 128
        %2946 = vxpose.xlu0.c.b16.cont [2/8] 0, 128
        %2947 = vxpose.xlu0.c.b16.cont [3/8] 0, 128
        %2948 = vxpose.xlu0.c.b16.cont [4/8] 0, 128
        %2949 = vxpose.xlu0.c.b16.cont [5/8] 0, 128
        %2950 = vxpose.xlu0.c.b16.cont [6/8] 0, 128
        %2951 = vxpose.xlu0.c.b16.cont [7/8] 0, 128
        %2952 = vxpose.xlu0.c.b16.end [8/8] 0, 128
        %v2953 = vpop.trf.xlu0
        %v2954 = vpop.trf.xlu0
        %v2955 = vpop.trf.xlu0
        %v2956 = vpop.trf.xlu0
        %v2957 = vpop.trf.xlu0
        %v2958 = vpop.trf.xlu0
        %v2959 = vpop.trf.xlu0
        %v2960 = vpop.trf.xlu0
        %2961 = vxpose.xlu0.c.b16.start [1/8] %v2595, 128
        %2962 = vxpose.xlu0.c.b16.cont [2/8] 0, 128
        %2963 = vxpose.xlu0.c.b16.cont [3/8] 0, 128
        %2964 = vxpose.xlu0.c.b16.cont [4/8] 0, 128
        %2965 = vxpose.xlu0.c.b16.cont [5/8] 0, 128
        %2966 = vxpose.xlu0.c.b16.cont [6/8] 0, 128
        %2967 = vxpose.xlu0.c.b16.cont [7/8] 0, 128
        %2968 = vxpose.xlu0.c.b16.end [8/8] 0, 128
        %v2969 = vpop.trf.xlu0
        %v2970 = vpop.trf.xlu0
        %v2971 = vpop.trf.xlu0
        %v2972 = vpop.trf.xlu0
        %v2973 = vpop.trf.xlu0
        %v2974 = vpop.trf.xlu0
        %v2975 = vpop.trf.xlu0
        %v2976 = vpop.trf.xlu0
        %2977 = vxpose.xlu0.c.b16.start [1/8] %v2599, 128
        %2978 = vxpose.xlu0.c.b16.cont [2/8] 0, 128
        %2979 = vxpose.xlu0.c.b16.cont [3/8] 0, 128
        %2980 = vxpose.xlu0.c.b16.cont [4/8] 0, 128
        %2981 = vxpose.xlu0.c.b16.cont [5/8] 0, 128
        %2982 = vxpose.xlu0.c.b16.cont [6/8] 0, 128
        %2983 = vxpose.xlu0.c.b16.cont [7/8] 0, 128
        %2984 = vxpose.xlu0.c.b16.end [8/8] 0, 128
        %v2985 = vpop.trf.xlu0
        %v2986 = vpop.trf.xlu0
        %v2987 = vpop.trf.xlu0
        %v2988 = vpop.trf.xlu0
        %v2989 = vpop.trf.xlu0
        %v2990 = vpop.trf.xlu0
        %v2991 = vpop.trf.xlu0
        %v2992 = vpop.trf.xlu0
        %2993 = vxpose.xlu0.c.b16.start [1/8] %v2603, 128
        %2994 = vxpose.xlu0.c.b16.cont [2/8] 0, 128
        %2995 = vxpose.xlu0.c.b16.cont [3/8] 0, 128
        %2996 = vxpose.xlu0.c.b16.cont [4/8] 0, 128
        %2997 = vxpose.xlu0.c.b16.cont [5/8] 0, 128
        %2998 = vxpose.xlu0.c.b16.cont [6/8] 0, 128
        %2999 = vxpose.xlu0.c.b16.cont [7/8] 0, 128
        %3000 = vxpose.xlu0.c.b16.end [8/8] 0, 128
        %v3001 = vpop.trf.xlu0
        %v3002 = vpop.trf.xlu0
        %v3003 = vpop.trf.xlu0
        %v3004 = vpop.trf.xlu0
        %v3005 = vpop.trf.xlu0
        %v3006 = vpop.trf.xlu0
        %v3007 = vpop.trf.xlu0
        %v3008 = vpop.trf.xlu0
        %3009 = vxpose.xlu0.c.b16.start [1/8] %v2607, 128
        %3010 = vxpose.xlu0.c.b16.cont [2/8] 0, 128
        %3011 = vxpose.xlu0.c.b16.cont [3/8] 0, 128
        %3012 = vxpose.xlu0.c.b16.cont [4/8] 0, 128
        %3013 = vxpose.xlu0.c.b16.cont [5/8] 0, 128
        %3014 = vxpose.xlu0.c.b16.cont [6/8] 0, 128
        %3015 = vxpose.xlu0.c.b16.cont [7/8] 0, 128
        %3016 = vxpose.xlu0.c.b16.end [8/8] 0, 128
        %v3017 = vpop.trf.xlu0
        %v3018 = vpop.trf.xlu0
        %v3019 = vpop.trf.xlu0
        %v3020 = vpop.trf.xlu0
        %v3021 = vpop.trf.xlu0
        %v3022 = vpop.trf.xlu0
        %v3023 = vpop.trf.xlu0
        %v3024 = vpop.trf.xlu0
        %3025 = vxpose.xlu0.c.b16.start [1/8] %v2611, 128
        %3026 = vxpose.xlu0.c.b16.cont [2/8] 0, 128
        %3027 = vxpose.xlu0.c.b16.cont [3/8] 0, 128
        %3028 = vxpose.xlu0.c.b16.cont [4/8] 0, 128
        %3029 = vxpose.xlu0.c.b16.cont [5/8] 0, 128
        %3030 = vxpose.xlu0.c.b16.cont [6/8] 0, 128
        %3031 = vxpose.xlu0.c.b16.cont [7/8] 0, 128
        %3032 = vxpose.xlu0.c.b16.end [8/8] 0, 128
        %v3033 = vpop.trf.xlu0
        %v3034 = vpop.trf.xlu0
        %v3035 = vpop.trf.xlu0
        %v3036 = vpop.trf.xlu0
        %v3037 = vpop.trf.xlu0
        %v3038 = vpop.trf.xlu0
        %v3039 = vpop.trf.xlu0
        %v3040 = vpop.trf.xlu0
        %3041 = vxpose.xlu0.c.b16.start [1/8] %v2615, 128
        %3042 = vxpose.xlu0.c.b16.cont [2/8] 0, 128
        %3043 = vxpose.xlu0.c.b16.cont [3/8] 0, 128
        %3044 = vxpose.xlu0.c.b16.cont [4/8] 0, 128
        %3045 = vxpose.xlu0.c.b16.cont [5/8] 0, 128
        %3046 = vxpose.xlu0.c.b16.cont [6/8] 0, 128
        %3047 = vxpose.xlu0.c.b16.cont [7/8] 0, 128
        %3048 = vxpose.xlu0.c.b16.end [8/8] 0, 128
        %v3049 = vpop.trf.xlu0
        %v3050 = vpop.trf.xlu0
        %v3051 = vpop.trf.xlu0
        %v3052 = vpop.trf.xlu0
        %v3053 = vpop.trf.xlu0
        %v3054 = vpop.trf.xlu0
        %v3055 = vpop.trf.xlu0
        %v3056 = vpop.trf.xlu0
        %3057 = vxpose.xlu0.c.b16.start [1/8] %v2619, 128
        %3058 = vxpose.xlu0.c.b16.cont [2/8] 0, 128
        %3059 = vxpose.xlu0.c.b16.cont [3/8] 0, 128
        %3060 = vxpose.xlu0.c.b16.cont [4/8] 0, 128
        %3061 = vxpose.xlu0.c.b16.cont [5/8] 0, 128
        %3062 = vxpose.xlu0.c.b16.cont [6/8] 0, 128
        %3063 = vxpose.xlu0.c.b16.cont [7/8] 0, 128
        %3064 = vxpose.xlu0.c.b16.end [8/8] 0, 128
        %v3065 = vpop.trf.xlu0
        %v3066 = vpop.trf.xlu0
        %v3067 = vpop.trf.xlu0
        %v3068 = vpop.trf.xlu0
        %v3069 = vpop.trf.xlu0
        %v3070 = vpop.trf.xlu0
        %v3071 = vpop.trf.xlu0
        %v3072 = vpop.trf.xlu0
        %3073 = vxpose.xlu0.c.b16.start [1/8] %v2623, 128
        %3074 = vxpose.xlu0.c.b16.cont [2/8] 0, 128
        %3075 = vxpose.xlu0.c.b16.cont [3/8] 0, 128
        %3076 = vxpose.xlu0.c.b16.cont [4/8] 0, 128
        %3077 = vxpose.xlu0.c.b16.cont [5/8] 0, 128
        %3078 = vxpose.xlu0.c.b16.cont [6/8] 0, 128
        %3079 = vxpose.xlu0.c.b16.cont [7/8] 0, 128
        %3080 = vxpose.xlu0.c.b16.end [8/8] 0, 128
        %v3081 = vpop.trf.xlu0
        %v3082 = vpop.trf.xlu0
        %v3083 = vpop.trf.xlu0
        %v3084 = vpop.trf.xlu0
        %v3085 = vpop.trf.xlu0
        %v3086 = vpop.trf.xlu0
        %v3087 = vpop.trf.xlu0
        %v3088 = vpop.trf.xlu0
        %3089 = vxpose.xlu0.c.b16.start [1/8] %v2627, 128
        %3090 = vxpose.xlu0.c.b16.cont [2/8] 0, 128
        %3091 = vxpose.xlu0.c.b16.cont [3/8] 0, 128
        %3092 = vxpose.xlu0.c.b16.cont [4/8] 0, 128
        %3093 = vxpose.xlu0.c.b16.cont [5/8] 0, 128
        %3094 = vxpose.xlu0.c.b16.cont [6/8] 0, 128
        %3095 = vxpose.xlu0.c.b16.cont [7/8] 0, 128
        %3096 = vxpose.xlu0.c.b16.end [8/8] 0, 128
        %v3097 = vpop.trf.xlu0
        %v3098 = vpop.trf.xlu0
        %v3099 = vpop.trf.xlu0
        %v3100 = vpop.trf.xlu0
        %v3101 = vpop.trf.xlu0
        %v3102 = vpop.trf.xlu0
        %v3103 = vpop.trf.xlu0
        %v3104 = vpop.trf.xlu0
        %3105 = vxpose.xlu0.c.b16.start [1/8] %v2631, 128
        %3106 = vxpose.xlu0.c.b16.cont [2/8] 0, 128
        %3107 = vxpose.xlu0.c.b16.cont [3/8] 0, 128
        %3108 = vxpose.xlu0.c.b16.cont [4/8] 0, 128
        %3109 = vxpose.xlu0.c.b16.cont [5/8] 0, 128
        %3110 = vxpose.xlu0.c.b16.cont [6/8] 0, 128
        %3111 = vxpose.xlu0.c.b16.cont [7/8] 0, 128
        %3112 = vxpose.xlu0.c.b16.end [8/8] 0, 128
        %v3113 = vpop.trf.xlu0
        %v3114 = vpop.trf.xlu0
        %v3115 = vpop.trf.xlu0
        %v3116 = vpop.trf.xlu0
        %v3117 = vpop.trf.xlu0
        %v3118 = vpop.trf.xlu0
        %v3119 = vpop.trf.xlu0
        %v3120 = vpop.trf.xlu0
        %3121 = vxpose.xlu0.c.b16.start [1/8] %v2635, 128
        %3122 = vxpose.xlu0.c.b16.cont [2/8] 0, 128
        %3123 = vxpose.xlu0.c.b16.cont [3/8] 0, 128
        %3124 = vxpose.xlu0.c.b16.cont [4/8] 0, 128
        %3125 = vxpose.xlu0.c.b16.cont [5/8] 0, 128
        %3126 = vxpose.xlu0.c.b16.cont [6/8] 0, 128
        %3127 = vxpose.xlu0.c.b16.cont [7/8] 0, 128
        %3128 = vxpose.xlu0.c.b16.end [8/8] 0, 128
        %v3129 = vpop.trf.xlu0
        %v3130 = vpop.trf.xlu0
        %v3131 = vpop.trf.xlu0
        %v3132 = vpop.trf.xlu0
        %v3133 = vpop.trf.xlu0
        %v3134 = vpop.trf.xlu0
        %v3135 = vpop.trf.xlu0
        %v3136 = vpop.trf.xlu0
        %3137 = vxpose.xlu0.c.b16.start [1/8] %v2639, 128
        %3138 = vxpose.xlu0.c.b16.cont [2/8] 0, 128
        %3139 = vxpose.xlu0.c.b16.cont [3/8] 0, 128
        %3140 = vxpose.xlu0.c.b16.cont [4/8] 0, 128
        %3141 = vxpose.xlu0.c.b16.cont [5/8] 0, 128
        %3142 = vxpose.xlu0.c.b16.cont [6/8] 0, 128
        %3143 = vxpose.xlu0.c.b16.cont [7/8] 0, 128
        %3144 = vxpose.xlu0.c.b16.end [8/8] 0, 128
        %v3145 = vpop.trf.xlu0
        %v3146 = vpop.trf.xlu0
        %v3147 = vpop.trf.xlu0
        %v3148 = vpop.trf.xlu0
        %v3149 = vpop.trf.xlu0
        %v3150 = vpop.trf.xlu0
        %v3151 = vpop.trf.xlu0
        %v3152 = vpop.trf.xlu0
        %v3153 = vcombine.low %v2649, %v2713
        %v3155 = vunpack.c.l.s4 1983009808
        %v3156 = vunpack.c.0.s8 %v3155
        %v3157 = vlaneseq
        %v3158 = vshrl.u32 %v3157, 7
        %v3159 = vsub.s32 %v3156, %v3158
        %v3160 = vrot.slane %v3153, %v3159
        %v3161 = vcombine.low %v2681, %v2745
        %v3163 = vunpack.c.l.s4 1983009808
        %v3164 = vunpack.c.0.s8 %v3163
        %v3165 = vlaneseq
        %v3166 = vshrl.u32 %v3165, 7
        %v3167 = vsub.s32 %v3164, %v3166
        %v3168 = vrot.slane %v3161, %v3167
        %v3169 = vcombine.low %v2777, %v2841
        %v3171 = vunpack.c.l.s4 1983009808
        %v3172 = vunpack.c.0.s8 %v3171
        %v3173 = vlaneseq
        %v3174 = vshrl.u32 %v3173, 7
        %v3175 = vsub.s32 %v3172, %v3174
        %v3176 = vrot.slane %v3169, %v3175
        %v3177 = vcombine.low %v2809, %v2873
        %v3179 = vunpack.c.l.s4 1983009808
        %v3180 = vunpack.c.0.s8 %v3179
        %v3181 = vlaneseq
        %v3182 = vshrl.u32 %v3181, 7
        %v3183 = vsub.s32 %v3180, %v3182
        %v3184 = vrot.slane %v3177, %v3183
        %v3185 = vcombine.low %v3160, %v3168
        %v3187 = vunpack.c.l.s4 1934713408
        %v3188 = vunpack.c.0.s8 %v3187
        %v3189 = vlaneseq
        %v3190 = vshrl.u32 %v3189, 7
        %v3191 = vsub.s32 %v3188, %v3190
        %v3192 = vrot.slane %v3185, %v3191
        %v3193 = vcombine.low %v3176, %v3184
        %v3195 = vunpack.c.l.s4 1934713408
        %v3196 = vunpack.c.0.s8 %v3195
        %v3197 = vlaneseq
        %v3198 = vshrl.u32 %v3197, 7
        %v3199 = vsub.s32 %v3196, %v3198
        %v3200 = vrot.slane %v3193, %v3199
        %v3201 = vcombine.low %v3192, %v3200
        %v3202 = vcombine.high %v3192, %v3200
        %v3203 = vcombine.low %v2665, %v2729
        %v3205 = vunpack.c.l.s4 1983009808
        %v3206 = vunpack.c.0.s8 %v3205
        %v3207 = vlaneseq
        %v3208 = vshrl.u32 %v3207, 7
        %v3209 = vsub.s32 %v3206, %v3208
        %v3210 = vrot.slane %v3203, %v3209
        %v3211 = vcombine.low %v2697, %v2761
        %v3213 = vunpack.c.l.s4 1983009808
        %v3214 = vunpack.c.0.s8 %v3213
        %v3215 = vlaneseq
        %v3216 = vshrl.u32 %v3215, 7
        %v3217 = vsub.s32 %v3214, %v3216
        %v3218 = vrot.slane %v3211, %v3217
        %v3219 = vcombine.low %v2793, %v2857
        %v3221 = vunpack.c.l.s4 1983009808
        %v3222 = vunpack.c.0.s8 %v3221
        %v3223 = vlaneseq
        %v3224 = vshrl.u32 %v3223, 7
        %v3225 = vsub.s32 %v3222, %v3224
        %v3226 = vrot.slane %v3219, %v3225
        %v3227 = vcombine.low %v2825, %v2889
        %v3229 = vunpack.c.l.s4 1983009808
        %v3230 = vunpack.c.0.s8 %v3229
        %v3231 = vlaneseq
        %v3232 = vshrl.u32 %v3231, 7
        %v3233 = vsub.s32 %v3230, %v3232
        %v3234 = vrot.slane %v3227, %v3233
        %v3235 = vcombine.low %v3210, %v3218
        %v3237 = vunpack.c.l.s4 1934713408
        %v3238 = vunpack.c.0.s8 %v3237
        %v3239 = vlaneseq
        %v3240 = vshrl.u32 %v3239, 7
        %v3241 = vsub.s32 %v3238, %v3240
        %v3242 = vrot.slane %v3235, %v3241
        %v3243 = vcombine.low %v3226, %v3234
        %v3245 = vunpack.c.l.s4 1934713408
        %v3246 = vunpack.c.0.s8 %v3245
        %v3247 = vlaneseq
        %v3248 = vshrl.u32 %v3247, 7
        %v3249 = vsub.s32 %v3246, %v3248
        %v3250 = vrot.slane %v3243, %v3249
        %v3251 = vcombine.low %v3242, %v3250
        %v3252 = vcombine.high %v3242, %v3250
        %v3253 = vcombine.low %v2905, %v2969
        %v3255 = vunpack.c.l.s4 1983009808
        %v3256 = vunpack.c.0.s8 %v3255
        %v3257 = vlaneseq
        %v3258 = vshrl.u32 %v3257, 7
        %v3259 = vsub.s32 %v3256, %v3258
        %v3260 = vrot.slane %v3253, %v3259
        %v3261 = vcombine.low %v2937, %v3001
        %v3263 = vunpack.c.l.s4 1983009808
        %v3264 = vunpack.c.0.s8 %v3263
        %v3265 = vlaneseq
        %v3266 = vshrl.u32 %v3265, 7
        %v3267 = vsub.s32 %v3264, %v3266
        %v3268 = vrot.slane %v3261, %v3267
        %v3269 = vcombine.low %v3033, %v3097
        %v3271 = vunpack.c.l.s4 1983009808
        %v3272 = vunpack.c.0.s8 %v3271
        %v3273 = vlaneseq
        %v3274 = vshrl.u32 %v3273, 7
        %v3275 = vsub.s32 %v3272, %v3274
        %v3276 = vrot.slane %v3269, %v3275
        %v3277 = vcombine.low %v3065, %v3129
        %v3279 = vunpack.c.l.s4 1983009808
        %v3280 = vunpack.c.0.s8 %v3279
        %v3281 = vlaneseq
        %v3282 = vshrl.u32 %v3281, 7
        %v3283 = vsub.s32 %v3280, %v3282
        %v3284 = vrot.slane %v3277, %v3283
        %v3285 = vcombine.low %v3260, %v3268
        %v3287 = vunpack.c.l.s4 1934713408
        %v3288 = vunpack.c.0.s8 %v3287
        %v3289 = vlaneseq
        %v3290 = vshrl.u32 %v3289, 7
        %v3291 = vsub.s32 %v3288, %v3290
        %v3292 = vrot.slane %v3285, %v3291
        %v3293 = vcombine.low %v3276, %v3284
        %v3295 = vunpack.c.l.s4 1934713408
        %v3296 = vunpack.c.0.s8 %v3295
        %v3297 = vlaneseq
        %v3298 = vshrl.u32 %v3297, 7
        %v3299 = vsub.s32 %v3296, %v3298
        %v3300 = vrot.slane %v3293, %v3299
        %v3301 = vcombine.low %v3292, %v3300
        %v3302 = vcombine.high %v3292, %v3300
        %v3303 = vcombine.low %v2921, %v2985
        %v3305 = vunpack.c.l.s4 1983009808
        %v3306 = vunpack.c.0.s8 %v3305
        %v3307 = vlaneseq
        %v3308 = vshrl.u32 %v3307, 7
        %v3309 = vsub.s32 %v3306, %v3308
        %v3310 = vrot.slane %v3303, %v3309
        %v3311 = vcombine.low %v2953, %v3017
        %v3313 = vunpack.c.l.s4 1983009808
        %v3314 = vunpack.c.0.s8 %v3313
        %v3315 = vlaneseq
        %v3316 = vshrl.u32 %v3315, 7
        %v3317 = vsub.s32 %v3314, %v3316
        %v3318 = vrot.slane %v3311, %v3317
        %v3319 = vcombine.low %v3049, %v3113
        %v3321 = vunpack.c.l.s4 1983009808
        %v3322 = vunpack.c.0.s8 %v3321
        %v3323 = vlaneseq
        %v3324 = vshrl.u32 %v3323, 7
        %v3325 = vsub.s32 %v3322, %v3324
        %v3326 = vrot.slane %v3319, %v3325
        %v3327 = vcombine.low %v3081, %v3145
        %v3329 = vunpack.c.l.s4 1983009808
        %v3330 = vunpack.c.0.s8 %v3329
        %v3331 = vlaneseq
        %v3332 = vshrl.u32 %v3331, 7
        %v3333 = vsub.s32 %v3330, %v3332
        %v3334 = vrot.slane %v3327, %v3333
        %v3335 = vcombine.low %v3310, %v3318
        %v3337 = vunpack.c.l.s4 1934713408
        %v3338 = vunpack.c.0.s8 %v3337
        %v3339 = vlaneseq
        %v3340 = vshrl.u32 %v3339, 7
        %v3341 = vsub.s32 %v3338, %v3340
        %v3342 = vrot.slane %v3335, %v3341
        %v3343 = vcombine.low %v3326, %v3334
        %v3345 = vunpack.c.l.s4 1934713408
        %v3346 = vunpack.c.0.s8 %v3345
        %v3347 = vlaneseq
        %v3348 = vshrl.u32 %v3347, 7
        %v3349 = vsub.s32 %v3346, %v3348
        %v3350 = vrot.slane %v3343, %v3349
        %v3351 = vcombine.low %v3342, %v3350
        %v3352 = vcombine.high %v3342, %v3350
        %v3355 = vpack.i.b16 %v3251, %v3201
        %v3357 = vshrl.u32 %v3201, 16
        %v3358 = vshrl.u32 %v3251, 16
        %v3359 = vpack.i.b16 %v3358, %v3357
        %v3363 = vpack.i.b16 %v3252, %v3202
        %v3365 = vshrl.u32 %v3202, 16
        %v3366 = vshrl.u32 %v3252, 16
        %v3367 = vpack.i.b16 %v3366, %v3365
        %v3371 = vpack.i.b16 %v3351, %v3301
        %v3373 = vshrl.u32 %v3301, 16
        %v3374 = vshrl.u32 %v3351, 16
        %v3375 = vpack.i.b16 %v3374, %v3373
        %v3379 = vpack.i.b16 %v3352, %v3302
        %v3381 = vshrl.u32 %v3302, 16
        %v3382 = vshrl.u32 %v3352, 16
        %v3383 = vpack.i.b16 %v3382, %v3381
        %vm3385 = vcmask 261120
        %v3387 = vsel %vm3385, %v1703, 0
        %3389 = vmatprep.subr.bf16.mxu0 0
        %3390 = vmatpush1.bf16.msra.mxu0 0
        %3391 = vmatprep.subr.bf16.mxu0 0
        %3392 = vmatpush1.bf16.msra.mxu0 0
        %3393 = vmatprep.subr.bf16.mxu0 0
        %3394 = vmatpush1.bf16.msra.mxu0 0
        %3395 = vmatprep.subr.bf16.mxu0 0
        %3396 = vmatpush1.bf16.msra.mxu0 0
        %3397 = vmatprep.subr.bf16.mxu0 0
        %3398 = vmatpush1.bf16.msra.mxu0 0
        %3399 = vmatprep.subr.bf16.mxu0 0
        %3400 = vmatpush1.bf16.msra.mxu0 0
        %3401 = vmatprep.subr.bf16.mxu0 0
        %3402 = vmatpush1.bf16.msra.mxu0 %v3371
        %3403 = vmatprep.subr.bf16.mxu0 0
        %3404 = vmatpush1.bf16.msra.mxu0 %v3355
        %3405 = vmatprep.subr.bf16.mxu0 0
        %3406 = vmatpush2.bf16.msra.mxu0 0
        %3407 = vmatprep.subr.bf16.mxu0 0
        %3408 = vmatpush2.bf16.msra.mxu0 0
        %3409 = vmatprep.subr.bf16.mxu0 0
        %3410 = vmatpush2.bf16.msra.mxu0 0
        %3411 = vmatprep.subr.bf16.mxu0 0
        %3412 = vmatpush2.bf16.msra.mxu0 0
        %3413 = vmatprep.subr.bf16.mxu0 0
        %3414 = vmatpush2.bf16.msra.mxu0 0
        %3415 = vmatprep.subr.bf16.mxu0 0
        %3416 = vmatpush2.bf16.msra.mxu0 0
        %3417 = vmatprep.subr.bf16.mxu0 0
        %3418 = vmatpush2.bf16.msra.mxu0 0
        %3419 = vmatprep.subr.bf16.mxu0 0
        %3420 = vmatpush2.bf16.msra.mxu0 0
        %3421 = vmatprep.mubr.bf16.mxu0 0
        %3422 = vmatmul.mubr.bf16.gmra.mxu0 %v3387
        %v3423 = vpop.f32.mrf.mxu0
        %v3424 = vadd.f32 0.0, %v3423
        %v3425 = vpop.f32.mrf.mxu0
        %v3426 = vpop.f32.mrf.mxu0
        %v3427 = vadd.f32 0.0, %v3426
        %v3428 = vpop.f32.mrf.mxu0
        %3429 = vdwg.mxu0
        %v3431 = vsel %vm3385, %v1706, 0
        %3433 = vmatprep.subr.bf16.mxu0 0
        %3434 = vmatpush1.bf16.msra.mxu0 0
        %3435 = vmatprep.subr.bf16.mxu0 0
        %3436 = vmatpush1.bf16.msra.mxu0 0
        %3437 = vmatprep.subr.bf16.mxu0 0
        %3438 = vmatpush1.bf16.msra.mxu0 0
        %3439 = vmatprep.subr.bf16.mxu0 0
        %3440 = vmatpush1.bf16.msra.mxu0 0
        %3441 = vmatprep.subr.bf16.mxu0 0
        %3442 = vmatpush1.bf16.msra.mxu0 0
        %3443 = vmatprep.subr.bf16.mxu0 0
        %3444 = vmatpush1.bf16.msra.mxu0 0
        %3445 = vmatprep.subr.bf16.mxu0 0
        %3446 = vmatpush1.bf16.msra.mxu0 %v3375
        %3447 = vmatprep.subr.bf16.mxu0 0
        %3448 = vmatpush1.bf16.msra.mxu0 %v3359
        %3449 = vmatprep.subr.bf16.mxu0 0
        %3450 = vmatpush2.bf16.msra.mxu0 0
        %3451 = vmatprep.subr.bf16.mxu0 0
        %3452 = vmatpush2.bf16.msra.mxu0 0
        %3453 = vmatprep.subr.bf16.mxu0 0
        %3454 = vmatpush2.bf16.msra.mxu0 0
        %3455 = vmatprep.subr.bf16.mxu0 0
        %3456 = vmatpush2.bf16.msra.mxu0 0
        %3457 = vmatprep.subr.bf16.mxu0 0
        %3458 = vmatpush2.bf16.msra.mxu0 0
        %3459 = vmatprep.subr.bf16.mxu0 0
        %3460 = vmatpush2.bf16.msra.mxu0 0
        %3461 = vmatprep.subr.bf16.mxu0 0
        %3462 = vmatpush2.bf16.msra.mxu0 0
        %3463 = vmatprep.subr.bf16.mxu0 0
        %3464 = vmatpush2.bf16.msra.mxu0 0
        %3465 = vmatprep.mubr.bf16.mxu0 0
        %3466 = vmatmul.mubr.bf16.gmra.mxu0 %v3431
        %v3467 = vpop.f32.mrf.mxu0
        %v3468 = vadd.f32 0.0, %v3467
        %v3469 = vpop.f32.mrf.mxu0
        %v3470 = vpop.f32.mrf.mxu0
        %v3471 = vadd.f32 0.0, %v3470
        %v3472 = vpop.f32.mrf.mxu0
        %3473 = vdwg.mxu0
        %v3475 = vsel %vm3385, %v1709, 0
        %3477 = vmatprep.subr.bf16.mxu0 0
        %3478 = vmatpush1.bf16.msra.mxu0 0
        %3479 = vmatprep.subr.bf16.mxu0 0
        %3480 = vmatpush1.bf16.msra.mxu0 0
        %3481 = vmatprep.subr.bf16.mxu0 0
        %3482 = vmatpush1.bf16.msra.mxu0 0
        %3483 = vmatprep.subr.bf16.mxu0 0
        %3484 = vmatpush1.bf16.msra.mxu0 0
        %3485 = vmatprep.subr.bf16.mxu0 0
        %3486 = vmatpush1.bf16.msra.mxu0 0
        %3487 = vmatprep.subr.bf16.mxu0 0
        %3488 = vmatpush1.bf16.msra.mxu0 0
        %3489 = vmatprep.subr.bf16.mxu0 0
        %3490 = vmatpush1.bf16.msra.mxu0 %v3379
        %3491 = vmatprep.subr.bf16.mxu0 0
        %3492 = vmatpush1.bf16.msra.mxu0 %v3363
        %3493 = vmatprep.subr.bf16.mxu0 0
        %3494 = vmatpush2.bf16.msra.mxu0 0
        %3495 = vmatprep.subr.bf16.mxu0 0
        %3496 = vmatpush2.bf16.msra.mxu0 0
        %3497 = vmatprep.subr.bf16.mxu0 0
        %3498 = vmatpush2.bf16.msra.mxu0 0
        %3499 = vmatprep.subr.bf16.mxu0 0
        %3500 = vmatpush2.bf16.msra.mxu0 0
        %3501 = vmatprep.subr.bf16.mxu0 0
        %3502 = vmatpush2.bf16.msra.mxu0 0
        %3503 = vmatprep.subr.bf16.mxu0 0
        %3504 = vmatpush2.bf16.msra.mxu0 0
        %3505 = vmatprep.subr.bf16.mxu0 0
        %3506 = vmatpush2.bf16.msra.mxu0 0
        %3507 = vmatprep.subr.bf16.mxu0 0
        %3508 = vmatpush2.bf16.msra.mxu0 0
        %3509 = vmatprep.mubr.bf16.mxu0 0
        %3510 = vmatmul.mubr.bf16.gmra.mxu0 %v3475
        %v3511 = vpop.f32.mrf.mxu0
        %v3512 = vadd.f32 0.0, %v3511
        %v3513 = vpop.f32.mrf.mxu0
        %v3514 = vpop.f32.mrf.mxu0
        %v3515 = vadd.f32 0.0, %v3514
        %v3516 = vpop.f32.mrf.mxu0
        %3517 = vdwg.mxu0
        %v3519 = vsel %vm3385, %v1712, 0
        %3521 = vmatprep.subr.bf16.mxu0 0
        %3522 = vmatpush1.bf16.msra.mxu0 0
        %3523 = vmatprep.subr.bf16.mxu0 0
        %3524 = vmatpush1.bf16.msra.mxu0 0
        %3525 = vmatprep.subr.bf16.mxu0 0
        %3526 = vmatpush1.bf16.msra.mxu0 0
        %3527 = vmatprep.subr.bf16.mxu0 0
        %3528 = vmatpush1.bf16.msra.mxu0 0
        %3529 = vmatprep.subr.bf16.mxu0 0
        %3530 = vmatpush1.bf16.msra.mxu0 0
        %3531 = vmatprep.subr.bf16.mxu0 0
        %3532 = vmatpush1.bf16.msra.mxu0 0
        %3533 = vmatprep.subr.bf16.mxu0 0
        %3534 = vmatpush1.bf16.msra.mxu0 %v3383
        %3535 = vmatprep.subr.bf16.mxu0 0
        %3536 = vmatpush1.bf16.msra.mxu0 %v3367
        %3537 = vmatprep.subr.bf16.mxu0 0
        %3538 = vmatpush2.bf16.msra.mxu0 0
        %3539 = vmatprep.subr.bf16.mxu0 0
        %3540 = vmatpush2.bf16.msra.mxu0 0
        %3541 = vmatprep.subr.bf16.mxu0 0
        %3542 = vmatpush2.bf16.msra.mxu0 0
        %3543 = vmatprep.subr.bf16.mxu0 0
        %3544 = vmatpush2.bf16.msra.mxu0 0
        %3545 = vmatprep.subr.bf16.mxu0 0
        %3546 = vmatpush2.bf16.msra.mxu0 0
        %3547 = vmatprep.subr.bf16.mxu0 0
        %3548 = vmatpush2.bf16.msra.mxu0 0
        %3549 = vmatprep.subr.bf16.mxu0 0
        %3550 = vmatpush2.bf16.msra.mxu0 0
        %3551 = vmatprep.subr.bf16.mxu0 0
        %3552 = vmatpush2.bf16.msra.mxu0 0
        %3553 = vmatprep.mubr.bf16.mxu0 0
        %3554 = vmatmul.mubr.bf16.gmra.mxu0 %v3519
        %v3555 = vpop.f32.mrf.mxu0
        %v3556 = vadd.f32 0.0, %v3555
        %v3557 = vpop.f32.mrf.mxu0
        %v3558 = vpop.f32.mrf.mxu0
        %v3559 = vadd.f32 0.0, %v3558
        %v3560 = vpop.f32.mrf.mxu0
        %3561 = vdwg.mxu0
        %v3562 = vmul.f32 %v3424, 0.17677669
        %v3563 = vmul.f32 %v3427, 0.17677669
        %v3564 = vmul.f32 %v3468, 0.17677669
        %v3565 = vmul.f32 %v3471, 0.17677669
        %v3566 = vmul.f32 %v3512, 0.17677669
        %v3567 = vmul.f32 %v3515, 0.17677669
        %v3568 = vmul.f32 %v3556, 0.17677669
        %v3569 = vmul.f32 %v3559, 0.17677669
        %v3570 = vadd.f32 %v3562, %v780
        %v3571 = vadd.f32 %v3563, %v781
        %v3572 = vadd.f32 %v3564, %v780
        %v3573 = vadd.f32 %v3565, %v781
        %v3574 = vadd.f32 %v3566, %v780
        %v3575 = vadd.f32 %v3567, %v781
        %v3576 = vadd.f32 %v3568, %v780
        %v3577 = vadd.f32 %v3569, %v781
        %vm3578 = vcmask 130048
        %v3579 = vsel %vm3578, %v3570, -inf
        %3580 = vmax.xlane.f32.xlu0 %v3579
        %v3581 = vpop.xlane.xlu0 %3580
        %v3582 = vsel %vm3578, %v3571, -inf
        %3583 = vmax.xlane.f32.xlu0 %v3582
        %v3584 = vpop.xlane.xlu0 %3583
        %v3585 = vsel %vm3578, %v3572, -inf
        %3586 = vmax.xlane.f32.xlu0 %v3585
        %v3587 = vpop.xlane.xlu0 %3586
        %v3588 = vsel %vm3578, %v3573, -inf
        %3589 = vmax.xlane.f32.xlu0 %v3588
        %v3590 = vpop.xlane.xlu0 %3589
        %v3591 = vsel %vm3578, %v3574, -inf
        %3592 = vmax.xlane.f32.xlu0 %v3591
        %v3593 = vpop.xlane.xlu0 %3592
        %v3594 = vsel %vm3578, %v3575, -inf
        %3595 = vmax.xlane.f32.xlu0 %v3594
        %v3596 = vpop.xlane.xlu0 %3595
        %v3597 = vsel %vm3578, %v3576, -inf
        %3598 = vmax.xlane.f32.xlu0 %v3597
        %v3599 = vpop.xlane.xlu0 %3598
        %v3600 = vsel %vm3578, %v3577, -inf
        %3601 = vmax.xlane.f32.xlu0 %v3600
        %v3602 = vpop.xlane.xlu0 %3601
        %v3603 = vsub.f32 %v3570, %v3581
        %v3604 = vsub.f32 %v3571, %v3584
        %v3605 = vsub.f32 %v3572, %v3587
        %v3606 = vsub.f32 %v3573, %v3590
        %v3607 = vsub.f32 %v3574, %v3593
        %v3608 = vsub.f32 %v3575, %v3596
        %v3609 = vsub.f32 %v3576, %v3599
        %v3610 = vsub.f32 %v3577, %v3602
        %v3611 = vmul.f32 %v3603, 1.442695
        %v3612 = vpow.pop %v3611
        %v3613 = vmul.f32 %v3604, 1.442695
        %v3614 = vpow.pop %v3613
        %v3615 = vmul.f32 %v3605, 1.442695
        %v3616 = vpow.pop %v3615
        %v3617 = vmul.f32 %v3606, 1.442695
        %v3618 = vpow.pop %v3617
        %v3619 = vmul.f32 %v3607, 1.442695
        %v3620 = vpow.pop %v3619
        %v3621 = vmul.f32 %v3608, 1.442695
        %v3622 = vpow.pop %v3621
        %v3623 = vmul.f32 %v3609, 1.442695
        %v3624 = vpow.pop %v3623
        %v3625 = vmul.f32 %v3610, 1.442695
        %v3626 = vpow.pop %v3625
        %v3627 = vsel %vm3578, %v3612, 0.0
        %3628 = vadd.xlane.f32.xlu0 %v3627
        %v3629 = vpop.xlane.xlu0 %3628
        %v3630 = vsel %vm3578, %v3614, 0.0
        %3631 = vadd.xlane.f32.xlu0 %v3630
        %v3632 = vpop.xlane.xlu0 %3631
        %v3633 = vsel %vm3578, %v3616, 0.0
        %3634 = vadd.xlane.f32.xlu0 %v3633
        %v3635 = vpop.xlane.xlu0 %3634
        %v3636 = vsel %vm3578, %v3618, 0.0
        %3637 = vadd.xlane.f32.xlu0 %v3636
        %v3638 = vpop.xlane.xlu0 %3637
        %v3639 = vsel %vm3578, %v3620, 0.0
        %3640 = vadd.xlane.f32.xlu0 %v3639
        %v3641 = vpop.xlane.xlu0 %3640
        %v3642 = vsel %vm3578, %v3622, 0.0
        %3643 = vadd.xlane.f32.xlu0 %v3642
        %v3644 = vpop.xlane.xlu0 %3643
        %v3645 = vsel %vm3578, %v3624, 0.0
        %3646 = vadd.xlane.f32.xlu0 %v3645
        %v3647 = vpop.xlane.xlu0 %3646
        %v3648 = vsel %vm3578, %v3626, 0.0
        %3649 = vadd.xlane.f32.xlu0 %v3648
        %v3650 = vpop.xlane.xlu0 %3649
        %v3651 = vrcp.pop %v3629
        %v3652 = vrcp.pop %v3632
        %v3653 = vrcp.pop %v3635
        %v3654 = vrcp.pop %v3638
        %v3655 = vrcp.pop %v3641
        %v3656 = vrcp.pop %v3644
        %v3657 = vrcp.pop %v3647
        %v3658 = vrcp.pop %v3650
        %v3659 = vmul.f32 %v3612, %v3651
        %v3660 = vmul.f32 %v3614, %v3652
        %v3661 = vmul.f32 %v3616, %v3653
        %v3662 = vmul.f32 %v3618, %v3654
        %v3663 = vmul.f32 %v3620, %v3655
        %v3664 = vmul.f32 %v3622, %v3656
        %v3665 = vmul.f32 %v3624, %v3657
        %v3666 = vmul.f32 %v3626, %v3658
        %v3667 = vpack.c.bf16 %v3660, %v3659
        %v3668 = vpack.c.bf16 %v3662, %v3661
        %v3669 = vpack.c.bf16 %v3664, %v3663
        %v3670 = vpack.c.bf16 %v3666, %v3665
        %3671 = vxpose.xlu0.c.b16.start [1/8] %v1585, 128
        %3672 = vxpose.xlu0.c.b16.cont [2/8] 0, 128
        %3673 = vxpose.xlu0.c.b16.cont [3/8] 0, 128
        %3674 = vxpose.xlu0.c.b16.cont [4/8] 0, 128
        %3675 = vxpose.xlu0.c.b16.cont [5/8] 0, 128
        %3676 = vxpose.xlu0.c.b16.cont [6/8] 0, 128
        %3677 = vxpose.xlu0.c.b16.cont [7/8] 0, 128
        %3678 = vxpose.xlu0.c.b16.end [8/8] 0, 128
        %v3679 = vpop.trf.xlu0
        %v3680 = vpop.trf.xlu0
        %v3681 = vpop.trf.xlu0
        %v3682 = vpop.trf.xlu0
        %v3683 = vpop.trf.xlu0
        %v3684 = vpop.trf.xlu0
        %v3685 = vpop.trf.xlu0
        %v3686 = vpop.trf.xlu0
        %3687 = vxpose.xlu0.c.b16.start [1/8] %v1586, 128
        %3688 = vxpose.xlu0.c.b16.cont [2/8] 0, 128
        %3689 = vxpose.xlu0.c.b16.cont [3/8] 0, 128
        %3690 = vxpose.xlu0.c.b16.cont [4/8] 0, 128
        %3691 = vxpose.xlu0.c.b16.cont [5/8] 0, 128
        %3692 = vxpose.xlu0.c.b16.cont [6/8] 0, 128
        %3693 = vxpose.xlu0.c.b16.cont [7/8] 0, 128
        %3694 = vxpose.xlu0.c.b16.end [8/8] 0, 128
        %v3695 = vpop.trf.xlu0
        %v3696 = vpop.trf.xlu0
        %v3697 = vpop.trf.xlu0
        %v3698 = vpop.trf.xlu0
        %v3699 = vpop.trf.xlu0
        %v3700 = vpop.trf.xlu0
        %v3701 = vpop.trf.xlu0
        %v3702 = vpop.trf.xlu0
        %3703 = vxpose.xlu0.c.b16.start [1/8] %v1587, 128
        %3704 = vxpose.xlu0.c.b16.cont [2/8] 0, 128
        %3705 = vxpose.xlu0.c.b16.cont [3/8] 0, 128
        %3706 = vxpose.xlu0.c.b16.cont [4/8] 0, 128
        %3707 = vxpose.xlu0.c.b16.cont [5/8] 0, 128
        %3708 = vxpose.xlu0.c.b16.cont [6/8] 0, 128
        %3709 = vxpose.xlu0.c.b16.cont [7/8] 0, 128
        %3710 = vxpose.xlu0.c.b16.end [8/8] 0, 128
        %v3711 = vpop.trf.xlu0
        %v3712 = vpop.trf.xlu0
        %v3713 = vpop.trf.xlu0
        %v3714 = vpop.trf.xlu0
        %v3715 = vpop.trf.xlu0
        %v3716 = vpop.trf.xlu0
        %v3717 = vpop.trf.xlu0
        %v3718 = vpop.trf.xlu0
        %3719 = vxpose.xlu0.c.b16.start [1/8] %v1588, 128
        %3720 = vxpose.xlu0.c.b16.cont [2/8] 0, 128
        %3721 = vxpose.xlu0.c.b16.cont [3/8] 0, 128
        %3722 = vxpose.xlu0.c.b16.cont [4/8] 0, 128
        %3723 = vxpose.xlu0.c.b16.cont [5/8] 0, 128
        %3724 = vxpose.xlu0.c.b16.cont [6/8] 0, 128
        %3725 = vxpose.xlu0.c.b16.cont [7/8] 0, 128
        %3726 = vxpose.xlu0.c.b16.end [8/8] 0, 128
        %v3727 = vpop.trf.xlu0
        %v3728 = vpop.trf.xlu0
        %v3729 = vpop.trf.xlu0
        %v3730 = vpop.trf.xlu0
        %v3731 = vpop.trf.xlu0
        %v3732 = vpop.trf.xlu0
        %v3733 = vpop.trf.xlu0
        %v3734 = vpop.trf.xlu0
        %3735 = vxpose.xlu0.c.b16.start [1/8] %v1589, 128
        %3736 = vxpose.xlu0.c.b16.cont [2/8] 0, 128
        %3737 = vxpose.xlu0.c.b16.cont [3/8] 0, 128
        %3738 = vxpose.xlu0.c.b16.cont [4/8] 0, 128
        %3739 = vxpose.xlu0.c.b16.cont [5/8] 0, 128
        %3740 = vxpose.xlu0.c.b16.cont [6/8] 0, 128
        %3741 = vxpose.xlu0.c.b16.cont [7/8] 0, 128
        %3742 = vxpose.xlu0.c.b16.end [8/8] 0, 128
        %v3743 = vpop.trf.xlu0
        %v3744 = vpop.trf.xlu0
        %v3745 = vpop.trf.xlu0
        %v3746 = vpop.trf.xlu0
        %v3747 = vpop.trf.xlu0
        %v3748 = vpop.trf.xlu0
        %v3749 = vpop.trf.xlu0
        %v3750 = vpop.trf.xlu0
        %3751 = vxpose.xlu0.c.b16.start [1/8] %v1590, 128
        %3752 = vxpose.xlu0.c.b16.cont [2/8] 0, 128
        %3753 = vxpose.xlu0.c.b16.cont [3/8] 0, 128
        %3754 = vxpose.xlu0.c.b16.cont [4/8] 0, 128
        %3755 = vxpose.xlu0.c.b16.cont [5/8] 0, 128
        %3756 = vxpose.xlu0.c.b16.cont [6/8] 0, 128
        %3757 = vxpose.xlu0.c.b16.cont [7/8] 0, 128
        %3758 = vxpose.xlu0.c.b16.end [8/8] 0, 128
        %v3759 = vpop.trf.xlu0
        %v3760 = vpop.trf.xlu0
        %v3761 = vpop.trf.xlu0
        %v3762 = vpop.trf.xlu0
        %v3763 = vpop.trf.xlu0
        %v3764 = vpop.trf.xlu0
        %v3765 = vpop.trf.xlu0
        %v3766 = vpop.trf.xlu0
        %3767 = vxpose.xlu0.c.b16.start [1/8] %v1591, 128
        %3768 = vxpose.xlu0.c.b16.cont [2/8] 0, 128
        %3769 = vxpose.xlu0.c.b16.cont [3/8] 0, 128
        %3770 = vxpose.xlu0.c.b16.cont [4/8] 0, 128
        %3771 = vxpose.xlu0.c.b16.cont [5/8] 0, 128
        %3772 = vxpose.xlu0.c.b16.cont [6/8] 0, 128
        %3773 = vxpose.xlu0.c.b16.cont [7/8] 0, 128
        %3774 = vxpose.xlu0.c.b16.end [8/8] 0, 128
        %v3775 = vpop.trf.xlu0
        %v3776 = vpop.trf.xlu0
        %v3777 = vpop.trf.xlu0
        %v3778 = vpop.trf.xlu0
        %v3779 = vpop.trf.xlu0
        %v3780 = vpop.trf.xlu0
        %v3781 = vpop.trf.xlu0
        %v3782 = vpop.trf.xlu0
        %3783 = vxpose.xlu0.c.b16.start [1/8] %v1592, 128
        %3784 = vxpose.xlu0.c.b16.cont [2/8] 0, 128
        %3785 = vxpose.xlu0.c.b16.cont [3/8] 0, 128
        %3786 = vxpose.xlu0.c.b16.cont [4/8] 0, 128
        %3787 = vxpose.xlu0.c.b16.cont [5/8] 0, 128
        %3788 = vxpose.xlu0.c.b16.cont [6/8] 0, 128
        %3789 = vxpose.xlu0.c.b16.cont [7/8] 0, 128
        %3790 = vxpose.xlu0.c.b16.end [8/8] 0, 128
        %v3791 = vpop.trf.xlu0
        %v3792 = vpop.trf.xlu0
        %v3793 = vpop.trf.xlu0
        %v3794 = vpop.trf.xlu0
        %v3795 = vpop.trf.xlu0
        %v3796 = vpop.trf.xlu0
        %v3797 = vpop.trf.xlu0
        %v3798 = vpop.trf.xlu0
        %3799 = vxpose.xlu0.c.b16.start [1/8] %v1593, 128
        %3800 = vxpose.xlu0.c.b16.cont [2/8] 0, 128
        %3801 = vxpose.xlu0.c.b16.cont [3/8] 0, 128
        %3802 = vxpose.xlu0.c.b16.cont [4/8] 0, 128
        %3803 = vxpose.xlu0.c.b16.cont [5/8] 0, 128
        %3804 = vxpose.xlu0.c.b16.cont [6/8] 0, 128
        %3805 = vxpose.xlu0.c.b16.cont [7/8] 0, 128
        %3806 = vxpose.xlu0.c.b16.end [8/8] 0, 128
        %v3807 = vpop.trf.xlu0
        %v3808 = vpop.trf.xlu0
        %v3809 = vpop.trf.xlu0
        %v3810 = vpop.trf.xlu0
        %v3811 = vpop.trf.xlu0
        %v3812 = vpop.trf.xlu0
        %v3813 = vpop.trf.xlu0
        %v3814 = vpop.trf.xlu0
        %3815 = vxpose.xlu0.c.b16.start [1/8] %v1594, 128
        %3816 = vxpose.xlu0.c.b16.cont [2/8] 0, 128
        %3817 = vxpose.xlu0.c.b16.cont [3/8] 0, 128
        %3818 = vxpose.xlu0.c.b16.cont [4/8] 0, 128
        %3819 = vxpose.xlu0.c.b16.cont [5/8] 0, 128
        %3820 = vxpose.xlu0.c.b16.cont [6/8] 0, 128
        %3821 = vxpose.xlu0.c.b16.cont [7/8] 0, 128
        %3822 = vxpose.xlu0.c.b16.end [8/8] 0, 128
        %v3823 = vpop.trf.xlu0
        %v3824 = vpop.trf.xlu0
        %v3825 = vpop.trf.xlu0
        %v3826 = vpop.trf.xlu0
        %v3827 = vpop.trf.xlu0
        %v3828 = vpop.trf.xlu0
        %v3829 = vpop.trf.xlu0
        %v3830 = vpop.trf.xlu0
        %3831 = vxpose.xlu0.c.b16.start [1/8] %v1595, 128
        %3832 = vxpose.xlu0.c.b16.cont [2/8] 0, 128
        %3833 = vxpose.xlu0.c.b16.cont [3/8] 0, 128
        %3834 = vxpose.xlu0.c.b16.cont [4/8] 0, 128
        %3835 = vxpose.xlu0.c.b16.cont [5/8] 0, 128
        %3836 = vxpose.xlu0.c.b16.cont [6/8] 0, 128
        %3837 = vxpose.xlu0.c.b16.cont [7/8] 0, 128
        %3838 = vxpose.xlu0.c.b16.end [8/8] 0, 128
        %v3839 = vpop.trf.xlu0
        %v3840 = vpop.trf.xlu0
        %v3841 = vpop.trf.xlu0
        %v3842 = vpop.trf.xlu0
        %v3843 = vpop.trf.xlu0
        %v3844 = vpop.trf.xlu0
        %v3845 = vpop.trf.xlu0
        %v3846 = vpop.trf.xlu0
        %3847 = vxpose.xlu0.c.b16.start [1/8] %v1596, 128
        %3848 = vxpose.xlu0.c.b16.cont [2/8] 0, 128
        %3849 = vxpose.xlu0.c.b16.cont [3/8] 0, 128
        %3850 = vxpose.xlu0.c.b16.cont [4/8] 0, 128
        %3851 = vxpose.xlu0.c.b16.cont [5/8] 0, 128
        %3852 = vxpose.xlu0.c.b16.cont [6/8] 0, 128
        %3853 = vxpose.xlu0.c.b16.cont [7/8] 0, 128
        %3854 = vxpose.xlu0.c.b16.end [8/8] 0, 128
        %v3855 = vpop.trf.xlu0
        %v3856 = vpop.trf.xlu0
        %v3857 = vpop.trf.xlu0
        %v3858 = vpop.trf.xlu0
        %v3859 = vpop.trf.xlu0
        %v3860 = vpop.trf.xlu0
        %v3861 = vpop.trf.xlu0
        %v3862 = vpop.trf.xlu0
        %3863 = vxpose.xlu0.c.b16.start [1/8] %v1597, 128
        %3864 = vxpose.xlu0.c.b16.cont [2/8] 0, 128
        %3865 = vxpose.xlu0.c.b16.cont [3/8] 0, 128
        %3866 = vxpose.xlu0.c.b16.cont [4/8] 0, 128
        %3867 = vxpose.xlu0.c.b16.cont [5/8] 0, 128
        %3868 = vxpose.xlu0.c.b16.cont [6/8] 0, 128
        %3869 = vxpose.xlu0.c.b16.cont [7/8] 0, 128
        %3870 = vxpose.xlu0.c.b16.end [8/8] 0, 128
        %v3871 = vpop.trf.xlu0
        %v3872 = vpop.trf.xlu0
        %v3873 = vpop.trf.xlu0
        %v3874 = vpop.trf.xlu0
        %v3875 = vpop.trf.xlu0
        %v3876 = vpop.trf.xlu0
        %v3877 = vpop.trf.xlu0
        %v3878 = vpop.trf.xlu0
        %3879 = vxpose.xlu0.c.b16.start [1/8] %v1598, 128
        %3880 = vxpose.xlu0.c.b16.cont [2/8] 0, 128
        %3881 = vxpose.xlu0.c.b16.cont [3/8] 0, 128
        %3882 = vxpose.xlu0.c.b16.cont [4/8] 0, 128
        %3883 = vxpose.xlu0.c.b16.cont [5/8] 0, 128
        %3884 = vxpose.xlu0.c.b16.cont [6/8] 0, 128
        %3885 = vxpose.xlu0.c.b16.cont [7/8] 0, 128
        %3886 = vxpose.xlu0.c.b16.end [8/8] 0, 128
        %v3887 = vpop.trf.xlu0
        %v3888 = vpop.trf.xlu0
        %v3889 = vpop.trf.xlu0
        %v3890 = vpop.trf.xlu0
        %v3891 = vpop.trf.xlu0
        %v3892 = vpop.trf.xlu0
        %v3893 = vpop.trf.xlu0
        %v3894 = vpop.trf.xlu0
        %3895 = vxpose.xlu0.c.b16.start [1/8] %v1599, 128
        %3896 = vxpose.xlu0.c.b16.cont [2/8] 0, 128
        %3897 = vxpose.xlu0.c.b16.cont [3/8] 0, 128
        %3898 = vxpose.xlu0.c.b16.cont [4/8] 0, 128
        %3899 = vxpose.xlu0.c.b16.cont [5/8] 0, 128
        %3900 = vxpose.xlu0.c.b16.cont [6/8] 0, 128
        %3901 = vxpose.xlu0.c.b16.cont [7/8] 0, 128
        %3902 = vxpose.xlu0.c.b16.end [8/8] 0, 128
        %v3903 = vpop.trf.xlu0
        %v3904 = vpop.trf.xlu0
        %v3905 = vpop.trf.xlu0
        %v3906 = vpop.trf.xlu0
        %v3907 = vpop.trf.xlu0
        %v3908 = vpop.trf.xlu0
        %v3909 = vpop.trf.xlu0
        %v3910 = vpop.trf.xlu0
        %3911 = vxpose.xlu0.c.b16.start [1/8] %v1600, 128
        %3912 = vxpose.xlu0.c.b16.cont [2/8] 0, 128
        %3913 = vxpose.xlu0.c.b16.cont [3/8] 0, 128
        %3914 = vxpose.xlu0.c.b16.cont [4/8] 0, 128
        %3915 = vxpose.xlu0.c.b16.cont [5/8] 0, 128
        %3916 = vxpose.xlu0.c.b16.cont [6/8] 0, 128
        %3917 = vxpose.xlu0.c.b16.cont [7/8] 0, 128
        %3918 = vxpose.xlu0.c.b16.end [8/8] 0, 128
        %v3919 = vpop.trf.xlu0
        %v3920 = vpop.trf.xlu0
        %v3921 = vpop.trf.xlu0
        %v3922 = vpop.trf.xlu0
        %v3923 = vpop.trf.xlu0
        %v3924 = vpop.trf.xlu0
        %v3925 = vpop.trf.xlu0
        %v3926 = vpop.trf.xlu0
        %v3927 = vcombine.low %v3679, %v3743
        %v3928 = vcombine.high %v3679, %v3743
        %v3930 = vunpack.c.l.s4 1983009808
        %v3931 = vunpack.c.0.s8 %v3930
        %v3932 = vlaneseq
        %v3933 = vshrl.u32 %v3932, 7
        %v3934 = vsub.s32 %v3931, %v3933
        %v3935 = vrot.slane %v3927, %v3934
        %v3937 = vunpack.c.l.s4 1983009808
        %v3938 = vunpack.c.0.s8 %v3937
        %v3939 = vlaneseq
        %v3940 = vshrl.u32 %v3939, 7
        %v3941 = vsub.s32 %v3938, %v3940
        %v3942 = vrot.slane %v3928, %v3941
        %v3943 = vcombine.low %v3711, %v3775
        %v3944 = vcombine.high %v3711, %v3775
        %v3946 = vunpack.c.l.s4 1983009808
        %v3947 = vunpack.c.0.s8 %v3946
        %v3948 = vlaneseq
        %v3949 = vshrl.u32 %v3948, 7
        %v3950 = vsub.s32 %v3947, %v3949
        %v3951 = vrot.slane %v3943, %v3950
        %v3953 = vunpack.c.l.s4 1983009808
        %v3954 = vunpack.c.0.s8 %v3953
        %v3955 = vlaneseq
        %v3956 = vshrl.u32 %v3955, 7
        %v3957 = vsub.s32 %v3954, %v3956
        %v3958 = vrot.slane %v3944, %v3957
        %v3959 = vcombine.low %v3807, %v3871
        %v3960 = vcombine.high %v3807, %v3871
        %v3962 = vunpack.c.l.s4 1983009808
        %v3963 = vunpack.c.0.s8 %v3962
        %v3964 = vlaneseq
        %v3965 = vshrl.u32 %v3964, 7
        %v3966 = vsub.s32 %v3963, %v3965
        %v3967 = vrot.slane %v3959, %v3966
        %v3969 = vunpack.c.l.s4 1983009808
        %v3970 = vunpack.c.0.s8 %v3969
        %v3971 = vlaneseq
        %v3972 = vshrl.u32 %v3971, 7
        %v3973 = vsub.s32 %v3970, %v3972
        %v3974 = vrot.slane %v3960, %v3973
        %v3975 = vcombine.low %v3839, %v3903
        %v3976 = vcombine.high %v3839, %v3903
        %v3978 = vunpack.c.l.s4 1983009808
        %v3979 = vunpack.c.0.s8 %v3978
        %v3980 = vlaneseq
        %v3981 = vshrl.u32 %v3980, 7
        %v3982 = vsub.s32 %v3979, %v3981
        %v3983 = vrot.slane %v3975, %v3982
        %v3985 = vunpack.c.l.s4 1983009808
        %v3986 = vunpack.c.0.s8 %v3985
        %v3987 = vlaneseq
        %v3988 = vshrl.u32 %v3987, 7
        %v3989 = vsub.s32 %v3986, %v3988
        %v3990 = vrot.slane %v3976, %v3989
        %v3991 = vcombine.low %v3935, %v3951
        %v3992 = vcombine.high %v3935, %v3951
        %v3994 = vunpack.c.l.s4 1934713408
        %v3995 = vunpack.c.0.s8 %v3994
        %v3996 = vlaneseq
        %v3997 = vshrl.u32 %v3996, 7
        %v3998 = vsub.s32 %v3995, %v3997
        %v3999 = vrot.slane %v3991, %v3998
        %v4001 = vunpack.c.l.s4 1934713408
        %v4002 = vunpack.c.0.s8 %v4001
        %v4003 = vlaneseq
        %v4004 = vshrl.u32 %v4003, 7
        %v4005 = vsub.s32 %v4002, %v4004
        %v4006 = vrot.slane %v3992, %v4005
        %v4007 = vcombine.low %v3942, %v3958
        %v4008 = vcombine.high %v3942, %v3958
        %v4010 = vunpack.c.l.s4 1934713408
        %v4011 = vunpack.c.0.s8 %v4010
        %v4012 = vlaneseq
        %v4013 = vshrl.u32 %v4012, 7
        %v4014 = vsub.s32 %v4011, %v4013
        %v4015 = vrot.slane %v4007, %v4014
        %v4017 = vunpack.c.l.s4 1934713408
        %v4018 = vunpack.c.0.s8 %v4017
        %v4019 = vlaneseq
        %v4020 = vshrl.u32 %v4019, 7
        %v4021 = vsub.s32 %v4018, %v4020
        %v4022 = vrot.slane %v4008, %v4021
        %v4023 = vcombine.low %v3967, %v3983
        %v4024 = vcombine.high %v3967, %v3983
        %v4026 = vunpack.c.l.s4 1934713408
        %v4027 = vunpack.c.0.s8 %v4026
        %v4028 = vlaneseq
        %v4029 = vshrl.u32 %v4028, 7
        %v4030 = vsub.s32 %v4027, %v4029
        %v4031 = vrot.slane %v4023, %v4030
        %v4033 = vunpack.c.l.s4 1934713408
        %v4034 = vunpack.c.0.s8 %v4033
        %v4035 = vlaneseq
        %v4036 = vshrl.u32 %v4035, 7
        %v4037 = vsub.s32 %v4034, %v4036
        %v4038 = vrot.slane %v4024, %v4037
        %v4039 = vcombine.low %v3974, %v3990
        %v4040 = vcombine.high %v3974, %v3990
        %v4042 = vunpack.c.l.s4 1934713408
        %v4043 = vunpack.c.0.s8 %v4042
        %v4044 = vlaneseq
        %v4045 = vshrl.u32 %v4044, 7
        %v4046 = vsub.s32 %v4043, %v4045
        %v4047 = vrot.slane %v4039, %v4046
        %v4049 = vunpack.c.l.s4 1934713408
        %v4050 = vunpack.c.0.s8 %v4049
        %v4051 = vlaneseq
        %v4052 = vshrl.u32 %v4051, 7
        %v4053 = vsub.s32 %v4050, %v4052
        %v4054 = vrot.slane %v4040, %v4053
        %v4055 = vcombine.low %v3999, %v4031
        %v4056 = vcombine.high %v3999, %v4031
        %v4057 = vcombine.low %v4006, %v4038
        %v4058 = vcombine.high %v4006, %v4038
        %v4059 = vcombine.low %v4015, %v4047
        %v4060 = vcombine.high %v4015, %v4047
        %v4061 = vcombine.low %v4022, %v4054
        %v4062 = vcombine.high %v4022, %v4054
        %v4063 = vcombine.low %v3695, %v3759
        %v4064 = vcombine.high %v3695, %v3759
        %v4066 = vunpack.c.l.s4 1983009808
        %v4067 = vunpack.c.0.s8 %v4066
        %v4068 = vlaneseq
        %v4069 = vshrl.u32 %v4068, 7
        %v4070 = vsub.s32 %v4067, %v4069
        %v4071 = vrot.slane %v4063, %v4070
        %v4073 = vunpack.c.l.s4 1983009808
        %v4074 = vunpack.c.0.s8 %v4073
        %v4075 = vlaneseq
        %v4076 = vshrl.u32 %v4075, 7
        %v4077 = vsub.s32 %v4074, %v4076
        %v4078 = vrot.slane %v4064, %v4077
        %v4079 = vcombine.low %v3727, %v3791
        %v4080 = vcombine.high %v3727, %v3791
        %v4082 = vunpack.c.l.s4 1983009808
        %v4083 = vunpack.c.0.s8 %v4082
        %v4084 = vlaneseq
        %v4085 = vshrl.u32 %v4084, 7
        %v4086 = vsub.s32 %v4083, %v4085
        %v4087 = vrot.slane %v4079, %v4086
        %v4089 = vunpack.c.l.s4 1983009808
        %v4090 = vunpack.c.0.s8 %v4089
        %v4091 = vlaneseq
        %v4092 = vshrl.u32 %v4091, 7
        %v4093 = vsub.s32 %v4090, %v4092
        %v4094 = vrot.slane %v4080, %v4093
        %v4095 = vcombine.low %v3823, %v3887
        %v4096 = vcombine.high %v3823, %v3887
        %v4098 = vunpack.c.l.s4 1983009808
        %v4099 = vunpack.c.0.s8 %v4098
        %v4100 = vlaneseq
        %v4101 = vshrl.u32 %v4100, 7
        %v4102 = vsub.s32 %v4099, %v4101
        %v4103 = vrot.slane %v4095, %v4102
        %v4105 = vunpack.c.l.s4 1983009808
        %v4106 = vunpack.c.0.s8 %v4105
        %v4107 = vlaneseq
        %v4108 = vshrl.u32 %v4107, 7
        %v4109 = vsub.s32 %v4106, %v4108
        %v4110 = vrot.slane %v4096, %v4109
        %v4111 = vcombine.low %v3855, %v3919
        %v4112 = vcombine.high %v3855, %v3919
        %v4114 = vunpack.c.l.s4 1983009808
        %v4115 = vunpack.c.0.s8 %v4114
        %v4116 = vlaneseq
        %v4117 = vshrl.u32 %v4116, 7
        %v4118 = vsub.s32 %v4115, %v4117
        %v4119 = vrot.slane %v4111, %v4118
        %v4121 = vunpack.c.l.s4 1983009808
        %v4122 = vunpack.c.0.s8 %v4121
        %v4123 = vlaneseq
        %v4124 = vshrl.u32 %v4123, 7
        %v4125 = vsub.s32 %v4122, %v4124
        %v4126 = vrot.slane %v4112, %v4125
        %v4127 = vcombine.low %v4071, %v4087
        %v4128 = vcombine.high %v4071, %v4087
        %v4130 = vunpack.c.l.s4 1934713408
        %v4131 = vunpack.c.0.s8 %v4130
        %v4132 = vlaneseq
        %v4133 = vshrl.u32 %v4132, 7
        %v4134 = vsub.s32 %v4131, %v4133
        %v4135 = vrot.slane %v4127, %v4134
        %v4137 = vunpack.c.l.s4 1934713408
        %v4138 = vunpack.c.0.s8 %v4137
        %v4139 = vlaneseq
        %v4140 = vshrl.u32 %v4139, 7
        %v4141 = vsub.s32 %v4138, %v4140
        %v4142 = vrot.slane %v4128, %v4141
        %v4143 = vcombine.low %v4078, %v4094
        %v4144 = vcombine.high %v4078, %v4094
        %v4146 = vunpack.c.l.s4 1934713408
        %v4147 = vunpack.c.0.s8 %v4146
        %v4148 = vlaneseq
        %v4149 = vshrl.u32 %v4148, 7
        %v4150 = vsub.s32 %v4147, %v4149
        %v4151 = vrot.slane %v4143, %v4150
        %v4153 = vunpack.c.l.s4 1934713408
        %v4154 = vunpack.c.0.s8 %v4153
        %v4155 = vlaneseq
        %v4156 = vshrl.u32 %v4155, 7
        %v4157 = vsub.s32 %v4154, %v4156
        %v4158 = vrot.slane %v4144, %v4157
        %v4159 = vcombine.low %v4103, %v4119
        %v4160 = vcombine.high %v4103, %v4119
        %v4162 = vunpack.c.l.s4 1934713408
        %v4163 = vunpack.c.0.s8 %v4162
        %v4164 = vlaneseq
        %v4165 = vshrl.u32 %v4164, 7
        %v4166 = vsub.s32 %v4163, %v4165
        %v4167 = vrot.slane %v4159, %v4166
        %v4169 = vunpack.c.l.s4 1934713408
        %v4170 = vunpack.c.0.s8 %v4169
        %v4171 = vlaneseq
        %v4172 = vshrl.u32 %v4171, 7
        %v4173 = vsub.s32 %v4170, %v4172
        %v4174 = vrot.slane %v4160, %v4173
        %v4175 = vcombine.low %v4110, %v4126
        %v4176 = vcombine.high %v4110, %v4126
        %v4178 = vunpack.c.l.s4 1934713408
        %v4179 = vunpack.c.0.s8 %v4178
        %v4180 = vlaneseq
        %v4181 = vshrl.u32 %v4180, 7
        %v4182 = vsub.s32 %v4179, %v4181
        %v4183 = vrot.slane %v4175, %v4182
        %v4185 = vunpack.c.l.s4 1934713408
        %v4186 = vunpack.c.0.s8 %v4185
        %v4187 = vlaneseq
        %v4188 = vshrl.u32 %v4187, 7
        %v4189 = vsub.s32 %v4186, %v4188
        %v4190 = vrot.slane %v4176, %v4189
        %v4191 = vcombine.low %v4135, %v4167
        %v4192 = vcombine.high %v4135, %v4167
        %v4193 = vcombine.low %v4142, %v4174
        %v4194 = vcombine.high %v4142, %v4174
        %v4195 = vcombine.low %v4151, %v4183
        %v4196 = vcombine.high %v4151, %v4183
        %v4197 = vcombine.low %v4158, %v4190
        %v4198 = vcombine.high %v4158, %v4190
        %v4199 = vcombine.low %v3680, %v3744
        %v4200 = vcombine.high %v3680, %v3744
        %v4202 = vunpack.c.l.s4 1983009808
        %v4203 = vunpack.c.0.s8 %v4202
        %v4204 = vlaneseq
        %v4205 = vshrl.u32 %v4204, 7
        %v4206 = vsub.s32 %v4203, %v4205
        %v4207 = vrot.slane %v4199, %v4206
        %v4209 = vunpack.c.l.s4 1983009808
        %v4210 = vunpack.c.0.s8 %v4209
        %v4211 = vlaneseq
        %v4212 = vshrl.u32 %v4211, 7
        %v4213 = vsub.s32 %v4210, %v4212
        %v4214 = vrot.slane %v4200, %v4213
        %v4215 = vcombine.low %v3712, %v3776
        %v4216 = vcombine.high %v3712, %v3776
        %v4218 = vunpack.c.l.s4 1983009808
        %v4219 = vunpack.c.0.s8 %v4218
        %v4220 = vlaneseq
        %v4221 = vshrl.u32 %v4220, 7
        %v4222 = vsub.s32 %v4219, %v4221
        %v4223 = vrot.slane %v4215, %v4222
        %v4225 = vunpack.c.l.s4 1983009808
        %v4226 = vunpack.c.0.s8 %v4225
        %v4227 = vlaneseq
        %v4228 = vshrl.u32 %v4227, 7
        %v4229 = vsub.s32 %v4226, %v4228
        %v4230 = vrot.slane %v4216, %v4229
        %v4231 = vcombine.low %v3808, %v3872
        %v4232 = vcombine.high %v3808, %v3872
        %v4234 = vunpack.c.l.s4 1983009808
        %v4235 = vunpack.c.0.s8 %v4234
        %v4236 = vlaneseq
        %v4237 = vshrl.u32 %v4236, 7
        %v4238 = vsub.s32 %v4235, %v4237
        %v4239 = vrot.slane %v4231, %v4238
        %v4241 = vunpack.c.l.s4 1983009808
        %v4242 = vunpack.c.0.s8 %v4241
        %v4243 = vlaneseq
        %v4244 = vshrl.u32 %v4243, 7
        %v4245 = vsub.s32 %v4242, %v4244
        %v4246 = vrot.slane %v4232, %v4245
        %v4247 = vcombine.low %v3840, %v3904
        %v4248 = vcombine.high %v3840, %v3904
        %v4250 = vunpack.c.l.s4 1983009808
        %v4251 = vunpack.c.0.s8 %v4250
        %v4252 = vlaneseq
        %v4253 = vshrl.u32 %v4252, 7
        %v4254 = vsub.s32 %v4251, %v4253
        %v4255 = vrot.slane %v4247, %v4254
        %v4257 = vunpack.c.l.s4 1983009808
        %v4258 = vunpack.c.0.s8 %v4257
        %v4259 = vlaneseq
        %v4260 = vshrl.u32 %v4259, 7
        %v4261 = vsub.s32 %v4258, %v4260
        %v4262 = vrot.slane %v4248, %v4261
        %v4263 = vcombine.low %v4207, %v4223
        %v4264 = vcombine.high %v4207, %v4223
        %v4266 = vunpack.c.l.s4 1934713408
        %v4267 = vunpack.c.0.s8 %v4266
        %v4268 = vlaneseq
        %v4269 = vshrl.u32 %v4268, 7
        %v4270 = vsub.s32 %v4267, %v4269
        %v4271 = vrot.slane %v4263, %v4270
        %v4273 = vunpack.c.l.s4 1934713408
        %v4274 = vunpack.c.0.s8 %v4273
        %v4275 = vlaneseq
        %v4276 = vshrl.u32 %v4275, 7
        %v4277 = vsub.s32 %v4274, %v4276
        %v4278 = vrot.slane %v4264, %v4277
        %v4279 = vcombine.low %v4214, %v4230
        %v4280 = vcombine.high %v4214, %v4230
        %v4282 = vunpack.c.l.s4 1934713408
        %v4283 = vunpack.c.0.s8 %v4282
        %v4284 = vlaneseq
        %v4285 = vshrl.u32 %v4284, 7
        %v4286 = vsub.s32 %v4283, %v4285
        %v4287 = vrot.slane %v4279, %v4286
        %v4289 = vunpack.c.l.s4 1934713408
        %v4290 = vunpack.c.0.s8 %v4289
        %v4291 = vlaneseq
        %v4292 = vshrl.u32 %v4291, 7
        %v4293 = vsub.s32 %v4290, %v4292
        %v4294 = vrot.slane %v4280, %v4293
        %v4295 = vcombine.low %v4239, %v4255
        %v4296 = vcombine.high %v4239, %v4255
        %v4298 = vunpack.c.l.s4 1934713408
        %v4299 = vunpack.c.0.s8 %v4298
        %v4300 = vlaneseq
        %v4301 = vshrl.u32 %v4300, 7
        %v4302 = vsub.s32 %v4299, %v4301
        %v4303 = vrot.slane %v4295, %v4302
        %v4305 = vunpack.c.l.s4 1934713408
        %v4306 = vunpack.c.0.s8 %v4305
        %v4307 = vlaneseq
        %v4308 = vshrl.u32 %v4307, 7
        %v4309 = vsub.s32 %v4306, %v4308
        %v4310 = vrot.slane %v4296, %v4309
        %v4311 = vcombine.low %v4246, %v4262
        %v4312 = vcombine.high %v4246, %v4262
        %v4314 = vunpack.c.l.s4 1934713408
        %v4315 = vunpack.c.0.s8 %v4314
        %v4316 = vlaneseq
        %v4317 = vshrl.u32 %v4316, 7
        %v4318 = vsub.s32 %v4315, %v4317
        %v4319 = vrot.slane %v4311, %v4318
        %v4321 = vunpack.c.l.s4 1934713408
        %v4322 = vunpack.c.0.s8 %v4321
        %v4323 = vlaneseq
        %v4324 = vshrl.u32 %v4323, 7
        %v4325 = vsub.s32 %v4322, %v4324
        %v4326 = vrot.slane %v4312, %v4325
        %v4327 = vcombine.low %v4271, %v4303
        %v4328 = vcombine.high %v4271, %v4303
        %v4329 = vcombine.low %v4278, %v4310
        %v4330 = vcombine.high %v4278, %v4310
        %v4331 = vcombine.low %v4287, %v4319
        %v4332 = vcombine.high %v4287, %v4319
        %v4333 = vcombine.low %v4294, %v4326
        %v4334 = vcombine.high %v4294, %v4326
        %v4335 = vcombine.low %v3696, %v3760
        %v4336 = vcombine.high %v3696, %v3760
        %v4338 = vunpack.c.l.s4 1983009808
        %v4339 = vunpack.c.0.s8 %v4338
        %v4340 = vlaneseq
        %v4341 = vshrl.u32 %v4340, 7
        %v4342 = vsub.s32 %v4339, %v4341
        %v4343 = vrot.slane %v4335, %v4342
        %v4345 = vunpack.c.l.s4 1983009808
        %v4346 = vunpack.c.0.s8 %v4345
        %v4347 = vlaneseq
        %v4348 = vshrl.u32 %v4347, 7
        %v4349 = vsub.s32 %v4346, %v4348
        %v4350 = vrot.slane %v4336, %v4349
        %v4351 = vcombine.low %v3728, %v3792
        %v4352 = vcombine.high %v3728, %v3792
        %v4354 = vunpack.c.l.s4 1983009808
        %v4355 = vunpack.c.0.s8 %v4354
        %v4356 = vlaneseq
        %v4357 = vshrl.u32 %v4356, 7
        %v4358 = vsub.s32 %v4355, %v4357
        %v4359 = vrot.slane %v4351, %v4358
        %v4361 = vunpack.c.l.s4 1983009808
        %v4362 = vunpack.c.0.s8 %v4361
        %v4363 = vlaneseq
        %v4364 = vshrl.u32 %v4363, 7
        %v4365 = vsub.s32 %v4362, %v4364
        %v4366 = vrot.slane %v4352, %v4365
        %v4367 = vcombine.low %v3824, %v3888
        %v4368 = vcombine.high %v3824, %v3888
        %v4370 = vunpack.c.l.s4 1983009808
        %v4371 = vunpack.c.0.s8 %v4370
        %v4372 = vlaneseq
        %v4373 = vshrl.u32 %v4372, 7
        %v4374 = vsub.s32 %v4371, %v4373
        %v4375 = vrot.slane %v4367, %v4374
        %v4377 = vunpack.c.l.s4 1983009808
        %v4378 = vunpack.c.0.s8 %v4377
        %v4379 = vlaneseq
        %v4380 = vshrl.u32 %v4379, 7
        %v4381 = vsub.s32 %v4378, %v4380
        %v4382 = vrot.slane %v4368, %v4381
        %v4383 = vcombine.low %v3856, %v3920
        %v4384 = vcombine.high %v3856, %v3920
        %v4386 = vunpack.c.l.s4 1983009808
        %v4387 = vunpack.c.0.s8 %v4386
        %v4388 = vlaneseq
        %v4389 = vshrl.u32 %v4388, 7
        %v4390 = vsub.s32 %v4387, %v4389
        %v4391 = vrot.slane %v4383, %v4390
        %v4393 = vunpack.c.l.s4 1983009808
        %v4394 = vunpack.c.0.s8 %v4393
        %v4395 = vlaneseq
        %v4396 = vshrl.u32 %v4395, 7
        %v4397 = vsub.s32 %v4394, %v4396
        %v4398 = vrot.slane %v4384, %v4397
        %v4399 = vcombine.low %v4343, %v4359
        %v4400 = vcombine.high %v4343, %v4359
        %v4402 = vunpack.c.l.s4 1934713408
        %v4403 = vunpack.c.0.s8 %v4402
        %v4404 = vlaneseq
        %v4405 = vshrl.u32 %v4404, 7
        %v4406 = vsub.s32 %v4403, %v4405
        %v4407 = vrot.slane %v4399, %v4406
        %v4409 = vunpack.c.l.s4 1934713408
        %v4410 = vunpack.c.0.s8 %v4409
        %v4411 = vlaneseq
        %v4412 = vshrl.u32 %v4411, 7
        %v4413 = vsub.s32 %v4410, %v4412
        %v4414 = vrot.slane %v4400, %v4413
        %v4415 = vcombine.low %v4350, %v4366
        %v4416 = vcombine.high %v4350, %v4366
        %v4418 = vunpack.c.l.s4 1934713408
        %v4419 = vunpack.c.0.s8 %v4418
        %v4420 = vlaneseq
        %v4421 = vshrl.u32 %v4420, 7
        %v4422 = vsub.s32 %v4419, %v4421
        %v4423 = vrot.slane %v4415, %v4422
        %v4425 = vunpack.c.l.s4 1934713408
        %v4426 = vunpack.c.0.s8 %v4425
        %v4427 = vlaneseq
        %v4428 = vshrl.u32 %v4427, 7
        %v4429 = vsub.s32 %v4426, %v4428
        %v4430 = vrot.slane %v4416, %v4429
        %v4431 = vcombine.low %v4375, %v4391
        %v4432 = vcombine.high %v4375, %v4391
        %v4434 = vunpack.c.l.s4 1934713408
        %v4435 = vunpack.c.0.s8 %v4434
        %v4436 = vlaneseq
        %v4437 = vshrl.u32 %v4436, 7
        %v4438 = vsub.s32 %v4435, %v4437
        %v4439 = vrot.slane %v4431, %v4438
        %v4441 = vunpack.c.l.s4 1934713408
        %v4442 = vunpack.c.0.s8 %v4441
        %v4443 = vlaneseq
        %v4444 = vshrl.u32 %v4443, 7
        %v4445 = vsub.s32 %v4442, %v4444
        %v4446 = vrot.slane %v4432, %v4445
        %v4447 = vcombine.low %v4382, %v4398
        %v4448 = vcombine.high %v4382, %v4398
        %v4450 = vunpack.c.l.s4 1934713408
        %v4451 = vunpack.c.0.s8 %v4450
        %v4452 = vlaneseq
        %v4453 = vshrl.u32 %v4452, 7
        %v4454 = vsub.s32 %v4451, %v4453
        %v4455 = vrot.slane %v4447, %v4454
        %v4457 = vunpack.c.l.s4 1934713408
        %v4458 = vunpack.c.0.s8 %v4457
        %v4459 = vlaneseq
        %v4460 = vshrl.u32 %v4459, 7
        %v4461 = vsub.s32 %v4458, %v4460
        %v4462 = vrot.slane %v4448, %v4461
        %v4463 = vcombine.low %v4407, %v4439
        %v4464 = vcombine.high %v4407, %v4439
        %v4465 = vcombine.low %v4414, %v4446
        %v4466 = vcombine.high %v4414, %v4446
        %v4467 = vcombine.low %v4423, %v4455
        %v4468 = vcombine.high %v4423, %v4455
        %v4469 = vcombine.low %v4430, %v4462
        %v4470 = vcombine.high %v4430, %v4462
        %v4473 = vpack.i.b16 %v4191, %v4055
        %v4475 = vshrl.u32 %v4055, 16
        %v4476 = vshrl.u32 %v4191, 16
        %v4477 = vpack.i.b16 %v4476, %v4475
        %v4481 = vpack.i.b16 %v4192, %v4056
        %v4483 = vshrl.u32 %v4056, 16
        %v4484 = vshrl.u32 %v4192, 16
        %v4485 = vpack.i.b16 %v4484, %v4483
        %v4489 = vpack.i.b16 %v4193, %v4057
        %v4491 = vshrl.u32 %v4057, 16
        %v4492 = vshrl.u32 %v4193, 16
        %v4493 = vpack.i.b16 %v4492, %v4491
        %v4497 = vpack.i.b16 %v4194, %v4058
        %v4499 = vshrl.u32 %v4058, 16
        %v4500 = vshrl.u32 %v4194, 16
        %v4501 = vpack.i.b16 %v4500, %v4499
        %v4505 = vpack.i.b16 %v4195, %v4059
        %v4507 = vshrl.u32 %v4059, 16
        %v4508 = vshrl.u32 %v4195, 16
        %v4509 = vpack.i.b16 %v4508, %v4507
        %v4513 = vpack.i.b16 %v4196, %v4060
        %v4515 = vshrl.u32 %v4060, 16
        %v4516 = vshrl.u32 %v4196, 16
        %v4517 = vpack.i.b16 %v4516, %v4515
        %v4521 = vpack.i.b16 %v4197, %v4061
        %v4523 = vshrl.u32 %v4061, 16
        %v4524 = vshrl.u32 %v4197, 16
        %v4525 = vpack.i.b16 %v4524, %v4523
        %v4529 = vpack.i.b16 %v4198, %v4062
        %v4531 = vshrl.u32 %v4062, 16
        %v4532 = vshrl.u32 %v4198, 16
        %v4533 = vpack.i.b16 %v4532, %v4531
        %v4537 = vpack.i.b16 %v4463, %v4327
        %v4539 = vshrl.u32 %v4327, 16
        %v4540 = vshrl.u32 %v4463, 16
        %v4541 = vpack.i.b16 %v4540, %v4539
        %v4545 = vpack.i.b16 %v4464, %v4328
        %v4547 = vshrl.u32 %v4328, 16
        %v4548 = vshrl.u32 %v4464, 16
        %v4549 = vpack.i.b16 %v4548, %v4547
        %v4553 = vpack.i.b16 %v4465, %v4329
        %v4555 = vshrl.u32 %v4329, 16
        %v4556 = vshrl.u32 %v4465, 16
        %v4557 = vpack.i.b16 %v4556, %v4555
        %v4561 = vpack.i.b16 %v4466, %v4330
        %v4563 = vshrl.u32 %v4330, 16
        %v4564 = vshrl.u32 %v4466, 16
        %v4565 = vpack.i.b16 %v4564, %v4563
        %v4569 = vpack.i.b16 %v4467, %v4331
        %v4571 = vshrl.u32 %v4331, 16
        %v4572 = vshrl.u32 %v4467, 16
        %v4573 = vpack.i.b16 %v4572, %v4571
        %v4577 = vpack.i.b16 %v4468, %v4332
        %v4579 = vshrl.u32 %v4332, 16
        %v4580 = vshrl.u32 %v4468, 16
        %v4581 = vpack.i.b16 %v4580, %v4579
        %v4585 = vpack.i.b16 %v4469, %v4333
        %v4587 = vshrl.u32 %v4333, 16
        %v4588 = vshrl.u32 %v4469, 16
        %v4589 = vpack.i.b16 %v4588, %v4587
        %v4593 = vpack.i.b16 %v4470, %v4334
        %v4595 = vshrl.u32 %v4334, 16
        %v4596 = vshrl.u32 %v4470, 16
        %v4597 = vpack.i.b16 %v4596, %v4595
        %4599 = vxpose.xlu0.c.b16.start [1/8] %v4473, 128
        %4600 = vxpose.xlu0.c.b16.cont [2/8] 0, 128
        %4601 = vxpose.xlu0.c.b16.cont [3/8] 0, 128
        %4602 = vxpose.xlu0.c.b16.cont [4/8] 0, 128
        %4603 = vxpose.xlu0.c.b16.cont [5/8] 0, 128
        %4604 = vxpose.xlu0.c.b16.cont [6/8] 0, 128
        %4605 = vxpose.xlu0.c.b16.cont [7/8] 0, 128
        %4606 = vxpose.xlu0.c.b16.end [8/8] 0, 128
        %v4607 = vpop.trf.xlu0
        %v4608 = vpop.trf.xlu0
        %v4609 = vpop.trf.xlu0
        %v4610 = vpop.trf.xlu0
        %v4611 = vpop.trf.xlu0
        %v4612 = vpop.trf.xlu0
        %v4613 = vpop.trf.xlu0
        %v4614 = vpop.trf.xlu0
        %4615 = vxpose.xlu0.c.b16.start [1/8] %v4477, 128
        %4616 = vxpose.xlu0.c.b16.cont [2/8] 0, 128
        %4617 = vxpose.xlu0.c.b16.cont [3/8] 0, 128
        %4618 = vxpose.xlu0.c.b16.cont [4/8] 0, 128
        %4619 = vxpose.xlu0.c.b16.cont [5/8] 0, 128
        %4620 = vxpose.xlu0.c.b16.cont [6/8] 0, 128
        %4621 = vxpose.xlu0.c.b16.cont [7/8] 0, 128
        %4622 = vxpose.xlu0.c.b16.end [8/8] 0, 128
        %v4623 = vpop.trf.xlu0
        %v4624 = vpop.trf.xlu0
        %v4625 = vpop.trf.xlu0
        %v4626 = vpop.trf.xlu0
        %v4627 = vpop.trf.xlu0
        %v4628 = vpop.trf.xlu0
        %v4629 = vpop.trf.xlu0
        %v4630 = vpop.trf.xlu0
        %4631 = vxpose.xlu0.c.b16.start [1/8] %v4481, 128
        %4632 = vxpose.xlu0.c.b16.cont [2/8] 0, 128
        %4633 = vxpose.xlu0.c.b16.cont [3/8] 0, 128
        %4634 = vxpose.xlu0.c.b16.cont [4/8] 0, 128
        %4635 = vxpose.xlu0.c.b16.cont [5/8] 0, 128
        %4636 = vxpose.xlu0.c.b16.cont [6/8] 0, 128
        %4637 = vxpose.xlu0.c.b16.cont [7/8] 0, 128
        %4638 = vxpose.xlu0.c.b16.end [8/8] 0, 128
        %v4639 = vpop.trf.xlu0
        %v4640 = vpop.trf.xlu0
        %v4641 = vpop.trf.xlu0
        %v4642 = vpop.trf.xlu0
        %v4643 = vpop.trf.xlu0
        %v4644 = vpop.trf.xlu0
        %v4645 = vpop.trf.xlu0
        %v4646 = vpop.trf.xlu0
        %4647 = vxpose.xlu0.c.b16.start [1/8] %v4485, 128
        %4648 = vxpose.xlu0.c.b16.cont [2/8] 0, 128
        %4649 = vxpose.xlu0.c.b16.cont [3/8] 0, 128
        %4650 = vxpose.xlu0.c.b16.cont [4/8] 0, 128
        %4651 = vxpose.xlu0.c.b16.cont [5/8] 0, 128
        %4652 = vxpose.xlu0.c.b16.cont [6/8] 0, 128
        %4653 = vxpose.xlu0.c.b16.cont [7/8] 0, 128
        %4654 = vxpose.xlu0.c.b16.end [8/8] 0, 128
        %v4655 = vpop.trf.xlu0
        %v4656 = vpop.trf.xlu0
        %v4657 = vpop.trf.xlu0
        %v4658 = vpop.trf.xlu0
        %v4659 = vpop.trf.xlu0
        %v4660 = vpop.trf.xlu0
        %v4661 = vpop.trf.xlu0
        %v4662 = vpop.trf.xlu0
        %4663 = vxpose.xlu0.c.b16.start [1/8] %v4489, 128
        %4664 = vxpose.xlu0.c.b16.cont [2/8] 0, 128
        %4665 = vxpose.xlu0.c.b16.cont [3/8] 0, 128
        %4666 = vxpose.xlu0.c.b16.cont [4/8] 0, 128
        %4667 = vxpose.xlu0.c.b16.cont [5/8] 0, 128
        %4668 = vxpose.xlu0.c.b16.cont [6/8] 0, 128
        %4669 = vxpose.xlu0.c.b16.cont [7/8] 0, 128
        %4670 = vxpose.xlu0.c.b16.end [8/8] 0, 128
        %v4671 = vpop.trf.xlu0
        %v4672 = vpop.trf.xlu0
        %v4673 = vpop.trf.xlu0
        %v4674 = vpop.trf.xlu0
        %v4675 = vpop.trf.xlu0
        %v4676 = vpop.trf.xlu0
        %v4677 = vpop.trf.xlu0
        %v4678 = vpop.trf.xlu0
        %4679 = vxpose.xlu0.c.b16.start [1/8] %v4493, 128
        %4680 = vxpose.xlu0.c.b16.cont [2/8] 0, 128
        %4681 = vxpose.xlu0.c.b16.cont [3/8] 0, 128
        %4682 = vxpose.xlu0.c.b16.cont [4/8] 0, 128
        %4683 = vxpose.xlu0.c.b16.cont [5/8] 0, 128
        %4684 = vxpose.xlu0.c.b16.cont [6/8] 0, 128
        %4685 = vxpose.xlu0.c.b16.cont [7/8] 0, 128
        %4686 = vxpose.xlu0.c.b16.end [8/8] 0, 128
        %v4687 = vpop.trf.xlu0
        %v4688 = vpop.trf.xlu0
        %v4689 = vpop.trf.xlu0
        %v4690 = vpop.trf.xlu0
        %v4691 = vpop.trf.xlu0
        %v4692 = vpop.trf.xlu0
        %v4693 = vpop.trf.xlu0
        %v4694 = vpop.trf.xlu0
        %4695 = vxpose.xlu0.c.b16.start [1/8] %v4497, 128
        %4696 = vxpose.xlu0.c.b16.cont [2/8] 0, 128
        %4697 = vxpose.xlu0.c.b16.cont [3/8] 0, 128
        %4698 = vxpose.xlu0.c.b16.cont [4/8] 0, 128
        %4699 = vxpose.xlu0.c.b16.cont [5/8] 0, 128
        %4700 = vxpose.xlu0.c.b16.cont [6/8] 0, 128
        %4701 = vxpose.xlu0.c.b16.cont [7/8] 0, 128
        %4702 = vxpose.xlu0.c.b16.end [8/8] 0, 128
        %v4703 = vpop.trf.xlu0
        %v4704 = vpop.trf.xlu0
        %v4705 = vpop.trf.xlu0
        %v4706 = vpop.trf.xlu0
        %v4707 = vpop.trf.xlu0
        %v4708 = vpop.trf.xlu0
        %v4709 = vpop.trf.xlu0
        %v4710 = vpop.trf.xlu0
        %4711 = vxpose.xlu0.c.b16.start [1/8] %v4501, 128
        %4712 = vxpose.xlu0.c.b16.cont [2/8] 0, 128
        %4713 = vxpose.xlu0.c.b16.cont [3/8] 0, 128
        %4714 = vxpose.xlu0.c.b16.cont [4/8] 0, 128
        %4715 = vxpose.xlu0.c.b16.cont [5/8] 0, 128
        %4716 = vxpose.xlu0.c.b16.cont [6/8] 0, 128
        %4717 = vxpose.xlu0.c.b16.cont [7/8] 0, 128
        %4718 = vxpose.xlu0.c.b16.end [8/8] 0, 128
        %v4719 = vpop.trf.xlu0
        %v4720 = vpop.trf.xlu0
        %v4721 = vpop.trf.xlu0
        %v4722 = vpop.trf.xlu0
        %v4723 = vpop.trf.xlu0
        %v4724 = vpop.trf.xlu0
        %v4725 = vpop.trf.xlu0
        %v4726 = vpop.trf.xlu0
        %4727 = vxpose.xlu0.c.b16.start [1/8] %v4505, 128
        %4728 = vxpose.xlu0.c.b16.cont [2/8] 0, 128
        %4729 = vxpose.xlu0.c.b16.cont [3/8] 0, 128
        %4730 = vxpose.xlu0.c.b16.cont [4/8] 0, 128
        %4731 = vxpose.xlu0.c.b16.cont [5/8] 0, 128
        %4732 = vxpose.xlu0.c.b16.cont [6/8] 0, 128
        %4733 = vxpose.xlu0.c.b16.cont [7/8] 0, 128
        %4734 = vxpose.xlu0.c.b16.end [8/8] 0, 128
        %v4735 = vpop.trf.xlu0
        %v4736 = vpop.trf.xlu0
        %v4737 = vpop.trf.xlu0
        %v4738 = vpop.trf.xlu0
        %v4739 = vpop.trf.xlu0
        %v4740 = vpop.trf.xlu0
        %v4741 = vpop.trf.xlu0
        %v4742 = vpop.trf.xlu0
        %4743 = vxpose.xlu0.c.b16.start [1/8] %v4509, 128
        %4744 = vxpose.xlu0.c.b16.cont [2/8] 0, 128
        %4745 = vxpose.xlu0.c.b16.cont [3/8] 0, 128
        %4746 = vxpose.xlu0.c.b16.cont [4/8] 0, 128
        %4747 = vxpose.xlu0.c.b16.cont [5/8] 0, 128
        %4748 = vxpose.xlu0.c.b16.cont [6/8] 0, 128
        %4749 = vxpose.xlu0.c.b16.cont [7/8] 0, 128
        %4750 = vxpose.xlu0.c.b16.end [8/8] 0, 128
        %v4751 = vpop.trf.xlu0
        %v4752 = vpop.trf.xlu0
        %v4753 = vpop.trf.xlu0
        %v4754 = vpop.trf.xlu0
        %v4755 = vpop.trf.xlu0
        %v4756 = vpop.trf.xlu0
        %v4757 = vpop.trf.xlu0
        %v4758 = vpop.trf.xlu0
        %4759 = vxpose.xlu0.c.b16.start [1/8] %v4513, 128
        %4760 = vxpose.xlu0.c.b16.cont [2/8] 0, 128
        %4761 = vxpose.xlu0.c.b16.cont [3/8] 0, 128
        %4762 = vxpose.xlu0.c.b16.cont [4/8] 0, 128
        %4763 = vxpose.xlu0.c.b16.cont [5/8] 0, 128
        %4764 = vxpose.xlu0.c.b16.cont [6/8] 0, 128
        %4765 = vxpose.xlu0.c.b16.cont [7/8] 0, 128
        %4766 = vxpose.xlu0.c.b16.end [8/8] 0, 128
        %v4767 = vpop.trf.xlu0
        %v4768 = vpop.trf.xlu0
        %v4769 = vpop.trf.xlu0
        %v4770 = vpop.trf.xlu0
        %v4771 = vpop.trf.xlu0
        %v4772 = vpop.trf.xlu0
        %v4773 = vpop.trf.xlu0
        %v4774 = vpop.trf.xlu0
        %4775 = vxpose.xlu0.c.b16.start [1/8] %v4517, 128
        %4776 = vxpose.xlu0.c.b16.cont [2/8] 0, 128
        %4777 = vxpose.xlu0.c.b16.cont [3/8] 0, 128
        %4778 = vxpose.xlu0.c.b16.cont [4/8] 0, 128
        %4779 = vxpose.xlu0.c.b16.cont [5/8] 0, 128
        %4780 = vxpose.xlu0.c.b16.cont [6/8] 0, 128
        %4781 = vxpose.xlu0.c.b16.cont [7/8] 0, 128
        %4782 = vxpose.xlu0.c.b16.end [8/8] 0, 128
        %v4783 = vpop.trf.xlu0
        %v4784 = vpop.trf.xlu0
        %v4785 = vpop.trf.xlu0
        %v4786 = vpop.trf.xlu0
        %v4787 = vpop.trf.xlu0
        %v4788 = vpop.trf.xlu0
        %v4789 = vpop.trf.xlu0
        %v4790 = vpop.trf.xlu0
        %4791 = vxpose.xlu0.c.b16.start [1/8] %v4521, 128
        %4792 = vxpose.xlu0.c.b16.cont [2/8] 0, 128
        %4793 = vxpose.xlu0.c.b16.cont [3/8] 0, 128
        %4794 = vxpose.xlu0.c.b16.cont [4/8] 0, 128
        %4795 = vxpose.xlu0.c.b16.cont [5/8] 0, 128
        %4796 = vxpose.xlu0.c.b16.cont [6/8] 0, 128
        %4797 = vxpose.xlu0.c.b16.cont [7/8] 0, 128
        %4798 = vxpose.xlu0.c.b16.end [8/8] 0, 128
        %v4799 = vpop.trf.xlu0
        %v4800 = vpop.trf.xlu0
        %v4801 = vpop.trf.xlu0
        %v4802 = vpop.trf.xlu0
        %v4803 = vpop.trf.xlu0
        %v4804 = vpop.trf.xlu0
        %v4805 = vpop.trf.xlu0
        %v4806 = vpop.trf.xlu0
        %4807 = vxpose.xlu0.c.b16.start [1/8] %v4525, 128
        %4808 = vxpose.xlu0.c.b16.cont [2/8] 0, 128
        %4809 = vxpose.xlu0.c.b16.cont [3/8] 0, 128
        %4810 = vxpose.xlu0.c.b16.cont [4/8] 0, 128
        %4811 = vxpose.xlu0.c.b16.cont [5/8] 0, 128
        %4812 = vxpose.xlu0.c.b16.cont [6/8] 0, 128
        %4813 = vxpose.xlu0.c.b16.cont [7/8] 0, 128
        %4814 = vxpose.xlu0.c.b16.end [8/8] 0, 128
        %v4815 = vpop.trf.xlu0
        %v4816 = vpop.trf.xlu0
        %v4817 = vpop.trf.xlu0
        %v4818 = vpop.trf.xlu0
        %v4819 = vpop.trf.xlu0
        %v4820 = vpop.trf.xlu0
        %v4821 = vpop.trf.xlu0
        %v4822 = vpop.trf.xlu0
        %4823 = vxpose.xlu0.c.b16.start [1/8] %v4529, 128
        %4824 = vxpose.xlu0.c.b16.cont [2/8] 0, 128
        %4825 = vxpose.xlu0.c.b16.cont [3/8] 0, 128
        %4826 = vxpose.xlu0.c.b16.cont [4/8] 0, 128
        %4827 = vxpose.xlu0.c.b16.cont [5/8] 0, 128
        %4828 = vxpose.xlu0.c.b16.cont [6/8] 0, 128
        %4829 = vxpose.xlu0.c.b16.cont [7/8] 0, 128
        %4830 = vxpose.xlu0.c.b16.end [8/8] 0, 128
        %v4831 = vpop.trf.xlu0
        %v4832 = vpop.trf.xlu0
        %v4833 = vpop.trf.xlu0
        %v4834 = vpop.trf.xlu0
        %v4835 = vpop.trf.xlu0
        %v4836 = vpop.trf.xlu0
        %v4837 = vpop.trf.xlu0
        %v4838 = vpop.trf.xlu0
        %4839 = vxpose.xlu0.c.b16.start [1/8] %v4533, 128
        %4840 = vxpose.xlu0.c.b16.cont [2/8] 0, 128
        %4841 = vxpose.xlu0.c.b16.cont [3/8] 0, 128
        %4842 = vxpose.xlu0.c.b16.cont [4/8] 0, 128
        %4843 = vxpose.xlu0.c.b16.cont [5/8] 0, 128
        %4844 = vxpose.xlu0.c.b16.cont [6/8] 0, 128
        %4845 = vxpose.xlu0.c.b16.cont [7/8] 0, 128
        %4846 = vxpose.xlu0.c.b16.end [8/8] 0, 128
        %v4847 = vpop.trf.xlu0
        %v4848 = vpop.trf.xlu0
        %v4849 = vpop.trf.xlu0
        %v4850 = vpop.trf.xlu0
        %v4851 = vpop.trf.xlu0
        %v4852 = vpop.trf.xlu0
        %v4853 = vpop.trf.xlu0
        %v4854 = vpop.trf.xlu0
        %4855 = vxpose.xlu0.c.b16.start [1/8] %v4537, 128
        %4856 = vxpose.xlu0.c.b16.cont [2/8] 0, 128
        %4857 = vxpose.xlu0.c.b16.cont [3/8] 0, 128
        %4858 = vxpose.xlu0.c.b16.cont [4/8] 0, 128
        %4859 = vxpose.xlu0.c.b16.cont [5/8] 0, 128
        %4860 = vxpose.xlu0.c.b16.cont [6/8] 0, 128
        %4861 = vxpose.xlu0.c.b16.cont [7/8] 0, 128
        %4862 = vxpose.xlu0.c.b16.end [8/8] 0, 128
        %v4863 = vpop.trf.xlu0
        %v4864 = vpop.trf.xlu0
        %v4865 = vpop.trf.xlu0
        %v4866 = vpop.trf.xlu0
        %v4867 = vpop.trf.xlu0
        %v4868 = vpop.trf.xlu0
        %v4869 = vpop.trf.xlu0
        %v4870 = vpop.trf.xlu0
        %4871 = vxpose.xlu0.c.b16.start [1/8] %v4541, 128
        %4872 = vxpose.xlu0.c.b16.cont [2/8] 0, 128
        %4873 = vxpose.xlu0.c.b16.cont [3/8] 0, 128
        %4874 = vxpose.xlu0.c.b16.cont [4/8] 0, 128
        %4875 = vxpose.xlu0.c.b16.cont [5/8] 0, 128
        %4876 = vxpose.xlu0.c.b16.cont [6/8] 0, 128
        %4877 = vxpose.xlu0.c.b16.cont [7/8] 0, 128
        %4878 = vxpose.xlu0.c.b16.end [8/8] 0, 128
        %v4879 = vpop.trf.xlu0
        %v4880 = vpop.trf.xlu0
        %v4881 = vpop.trf.xlu0
        %v4882 = vpop.trf.xlu0
        %v4883 = vpop.trf.xlu0
        %v4884 = vpop.trf.xlu0
        %v4885 = vpop.trf.xlu0
        %v4886 = vpop.trf.xlu0
        %4887 = vxpose.xlu0.c.b16.start [1/8] %v4545, 128
        %4888 = vxpose.xlu0.c.b16.cont [2/8] 0, 128
        %4889 = vxpose.xlu0.c.b16.cont [3/8] 0, 128
        %4890 = vxpose.xlu0.c.b16.cont [4/8] 0, 128
        %4891 = vxpose.xlu0.c.b16.cont [5/8] 0, 128
        %4892 = vxpose.xlu0.c.b16.cont [6/8] 0, 128
        %4893 = vxpose.xlu0.c.b16.cont [7/8] 0, 128
        %4894 = vxpose.xlu0.c.b16.end [8/8] 0, 128
        %v4895 = vpop.trf.xlu0
        %v4896 = vpop.trf.xlu0
        %v4897 = vpop.trf.xlu0
        %v4898 = vpop.trf.xlu0
        %v4899 = vpop.trf.xlu0
        %v4900 = vpop.trf.xlu0
        %v4901 = vpop.trf.xlu0
        %v4902 = vpop.trf.xlu0
        %4903 = vxpose.xlu0.c.b16.start [1/8] %v4549, 128
        %4904 = vxpose.xlu0.c.b16.cont [2/8] 0, 128
        %4905 = vxpose.xlu0.c.b16.cont [3/8] 0, 128
        %4906 = vxpose.xlu0.c.b16.cont [4/8] 0, 128
        %4907 = vxpose.xlu0.c.b16.cont [5/8] 0, 128
        %4908 = vxpose.xlu0.c.b16.cont [6/8] 0, 128
        %4909 = vxpose.xlu0.c.b16.cont [7/8] 0, 128
        %4910 = vxpose.xlu0.c.b16.end [8/8] 0, 128
        %v4911 = vpop.trf.xlu0
        %v4912 = vpop.trf.xlu0
        %v4913 = vpop.trf.xlu0
        %v4914 = vpop.trf.xlu0
        %v4915 = vpop.trf.xlu0
        %v4916 = vpop.trf.xlu0
        %v4917 = vpop.trf.xlu0
        %v4918 = vpop.trf.xlu0
        %4919 = vxpose.xlu0.c.b16.start [1/8] %v4553, 128
        %4920 = vxpose.xlu0.c.b16.cont [2/8] 0, 128
        %4921 = vxpose.xlu0.c.b16.cont [3/8] 0, 128
        %4922 = vxpose.xlu0.c.b16.cont [4/8] 0, 128
        %4923 = vxpose.xlu0.c.b16.cont [5/8] 0, 128
        %4924 = vxpose.xlu0.c.b16.cont [6/8] 0, 128
        %4925 = vxpose.xlu0.c.b16.cont [7/8] 0, 128
        %4926 = vxpose.xlu0.c.b16.end [8/8] 0, 128
        %v4927 = vpop.trf.xlu0
        %v4928 = vpop.trf.xlu0
        %v4929 = vpop.trf.xlu0
        %v4930 = vpop.trf.xlu0
        %v4931 = vpop.trf.xlu0
        %v4932 = vpop.trf.xlu0
        %v4933 = vpop.trf.xlu0
        %v4934 = vpop.trf.xlu0
        %4935 = vxpose.xlu0.c.b16.start [1/8] %v4557, 128
        %4936 = vxpose.xlu0.c.b16.cont [2/8] 0, 128
        %4937 = vxpose.xlu0.c.b16.cont [3/8] 0, 128
        %4938 = vxpose.xlu0.c.b16.cont [4/8] 0, 128
        %4939 = vxpose.xlu0.c.b16.cont [5/8] 0, 128
        %4940 = vxpose.xlu0.c.b16.cont [6/8] 0, 128
        %4941 = vxpose.xlu0.c.b16.cont [7/8] 0, 128
        %4942 = vxpose.xlu0.c.b16.end [8/8] 0, 128
        %v4943 = vpop.trf.xlu0
        %v4944 = vpop.trf.xlu0
        %v4945 = vpop.trf.xlu0
        %v4946 = vpop.trf.xlu0
        %v4947 = vpop.trf.xlu0
        %v4948 = vpop.trf.xlu0
        %v4949 = vpop.trf.xlu0
        %v4950 = vpop.trf.xlu0
        %4951 = vxpose.xlu0.c.b16.start [1/8] %v4561, 128
        %4952 = vxpose.xlu0.c.b16.cont [2/8] 0, 128
        %4953 = vxpose.xlu0.c.b16.cont [3/8] 0, 128
        %4954 = vxpose.xlu0.c.b16.cont [4/8] 0, 128
        %4955 = vxpose.xlu0.c.b16.cont [5/8] 0, 128
        %4956 = vxpose.xlu0.c.b16.cont [6/8] 0, 128
        %4957 = vxpose.xlu0.c.b16.cont [7/8] 0, 128
        %4958 = vxpose.xlu0.c.b16.end [8/8] 0, 128
        %v4959 = vpop.trf.xlu0
        %v4960 = vpop.trf.xlu0
        %v4961 = vpop.trf.xlu0
        %v4962 = vpop.trf.xlu0
        %v4963 = vpop.trf.xlu0
        %v4964 = vpop.trf.xlu0
        %v4965 = vpop.trf.xlu0
        %v4966 = vpop.trf.xlu0
        %4967 = vxpose.xlu0.c.b16.start [1/8] %v4565, 128
        %4968 = vxpose.xlu0.c.b16.cont [2/8] 0, 128
        %4969 = vxpose.xlu0.c.b16.cont [3/8] 0, 128
        %4970 = vxpose.xlu0.c.b16.cont [4/8] 0, 128
        %4971 = vxpose.xlu0.c.b16.cont [5/8] 0, 128
        %4972 = vxpose.xlu0.c.b16.cont [6/8] 0, 128
        %4973 = vxpose.xlu0.c.b16.cont [7/8] 0, 128
        %4974 = vxpose.xlu0.c.b16.end [8/8] 0, 128
        %v4975 = vpop.trf.xlu0
        %v4976 = vpop.trf.xlu0
        %v4977 = vpop.trf.xlu0
        %v4978 = vpop.trf.xlu0
        %v4979 = vpop.trf.xlu0
        %v4980 = vpop.trf.xlu0
        %v4981 = vpop.trf.xlu0
        %v4982 = vpop.trf.xlu0
        %4983 = vxpose.xlu0.c.b16.start [1/8] %v4569, 128
        %4984 = vxpose.xlu0.c.b16.cont [2/8] 0, 128
        %4985 = vxpose.xlu0.c.b16.cont [3/8] 0, 128
        %4986 = vxpose.xlu0.c.b16.cont [4/8] 0, 128
        %4987 = vxpose.xlu0.c.b16.cont [5/8] 0, 128
        %4988 = vxpose.xlu0.c.b16.cont [6/8] 0, 128
        %4989 = vxpose.xlu0.c.b16.cont [7/8] 0, 128
        %4990 = vxpose.xlu0.c.b16.end [8/8] 0, 128
        %v4991 = vpop.trf.xlu0
        %v4992 = vpop.trf.xlu0
        %v4993 = vpop.trf.xlu0
        %v4994 = vpop.trf.xlu0
        %v4995 = vpop.trf.xlu0
        %v4996 = vpop.trf.xlu0
        %v4997 = vpop.trf.xlu0
        %v4998 = vpop.trf.xlu0
        %4999 = vxpose.xlu0.c.b16.start [1/8] %v4573, 128
        %5000 = vxpose.xlu0.c.b16.cont [2/8] 0, 128
        %5001 = vxpose.xlu0.c.b16.cont [3/8] 0, 128
        %5002 = vxpose.xlu0.c.b16.cont [4/8] 0, 128
        %5003 = vxpose.xlu0.c.b16.cont [5/8] 0, 128
        %5004 = vxpose.xlu0.c.b16.cont [6/8] 0, 128
        %5005 = vxpose.xlu0.c.b16.cont [7/8] 0, 128
        %5006 = vxpose.xlu0.c.b16.end [8/8] 0, 128
        %v5007 = vpop.trf.xlu0
        %v5008 = vpop.trf.xlu0
        %v5009 = vpop.trf.xlu0
        %v5010 = vpop.trf.xlu0
        %v5011 = vpop.trf.xlu0
        %v5012 = vpop.trf.xlu0
        %v5013 = vpop.trf.xlu0
        %v5014 = vpop.trf.xlu0
        %5015 = vxpose.xlu0.c.b16.start [1/8] %v4577, 128
        %5016 = vxpose.xlu0.c.b16.cont [2/8] 0, 128
        %5017 = vxpose.xlu0.c.b16.cont [3/8] 0, 128
        %5018 = vxpose.xlu0.c.b16.cont [4/8] 0, 128
        %5019 = vxpose.xlu0.c.b16.cont [5/8] 0, 128
        %5020 = vxpose.xlu0.c.b16.cont [6/8] 0, 128
        %5021 = vxpose.xlu0.c.b16.cont [7/8] 0, 128
        %5022 = vxpose.xlu0.c.b16.end [8/8] 0, 128
        %v5023 = vpop.trf.xlu0
        %v5024 = vpop.trf.xlu0
        %v5025 = vpop.trf.xlu0
        %v5026 = vpop.trf.xlu0
        %v5027 = vpop.trf.xlu0
        %v5028 = vpop.trf.xlu0
        %v5029 = vpop.trf.xlu0
        %v5030 = vpop.trf.xlu0
        %5031 = vxpose.xlu0.c.b16.start [1/8] %v4581, 128
        %5032 = vxpose.xlu0.c.b16.cont [2/8] 0, 128
        %5033 = vxpose.xlu0.c.b16.cont [3/8] 0, 128
        %5034 = vxpose.xlu0.c.b16.cont [4/8] 0, 128
        %5035 = vxpose.xlu0.c.b16.cont [5/8] 0, 128
        %5036 = vxpose.xlu0.c.b16.cont [6/8] 0, 128
        %5037 = vxpose.xlu0.c.b16.cont [7/8] 0, 128
        %5038 = vxpose.xlu0.c.b16.end [8/8] 0, 128
        %v5039 = vpop.trf.xlu0
        %v5040 = vpop.trf.xlu0
        %v5041 = vpop.trf.xlu0
        %v5042 = vpop.trf.xlu0
        %v5043 = vpop.trf.xlu0
        %v5044 = vpop.trf.xlu0
        %v5045 = vpop.trf.xlu0
        %v5046 = vpop.trf.xlu0
        %5047 = vxpose.xlu0.c.b16.start [1/8] %v4585, 128
        %5048 = vxpose.xlu0.c.b16.cont [2/8] 0, 128
        %5049 = vxpose.xlu0.c.b16.cont [3/8] 0, 128
        %5050 = vxpose.xlu0.c.b16.cont [4/8] 0, 128
        %5051 = vxpose.xlu0.c.b16.cont [5/8] 0, 128
        %5052 = vxpose.xlu0.c.b16.cont [6/8] 0, 128
        %5053 = vxpose.xlu0.c.b16.cont [7/8] 0, 128
        %5054 = vxpose.xlu0.c.b16.end [8/8] 0, 128
        %v5055 = vpop.trf.xlu0
        %v5056 = vpop.trf.xlu0
        %v5057 = vpop.trf.xlu0
        %v5058 = vpop.trf.xlu0
        %v5059 = vpop.trf.xlu0
        %v5060 = vpop.trf.xlu0
        %v5061 = vpop.trf.xlu0
        %v5062 = vpop.trf.xlu0
        %5063 = vxpose.xlu0.c.b16.start [1/8] %v4589, 128
        %5064 = vxpose.xlu0.c.b16.cont [2/8] 0, 128
        %5065 = vxpose.xlu0.c.b16.cont [3/8] 0, 128
        %5066 = vxpose.xlu0.c.b16.cont [4/8] 0, 128
        %5067 = vxpose.xlu0.c.b16.cont [5/8] 0, 128
        %5068 = vxpose.xlu0.c.b16.cont [6/8] 0, 128
        %5069 = vxpose.xlu0.c.b16.cont [7/8] 0, 128
        %5070 = vxpose.xlu0.c.b16.end [8/8] 0, 128
        %v5071 = vpop.trf.xlu0
        %v5072 = vpop.trf.xlu0
        %v5073 = vpop.trf.xlu0
        %v5074 = vpop.trf.xlu0
        %v5075 = vpop.trf.xlu0
        %v5076 = vpop.trf.xlu0
        %v5077 = vpop.trf.xlu0
        %v5078 = vpop.trf.xlu0
        %5079 = vxpose.xlu0.c.b16.start [1/8] %v4593, 128
        %5080 = vxpose.xlu0.c.b16.cont [2/8] 0, 128
        %5081 = vxpose.xlu0.c.b16.cont [3/8] 0, 128
        %5082 = vxpose.xlu0.c.b16.cont [4/8] 0, 128
        %5083 = vxpose.xlu0.c.b16.cont [5/8] 0, 128
        %5084 = vxpose.xlu0.c.b16.cont [6/8] 0, 128
        %5085 = vxpose.xlu0.c.b16.cont [7/8] 0, 128
        %5086 = vxpose.xlu0.c.b16.end [8/8] 0, 128
        %v5087 = vpop.trf.xlu0
        %v5088 = vpop.trf.xlu0
        %v5089 = vpop.trf.xlu0
        %v5090 = vpop.trf.xlu0
        %v5091 = vpop.trf.xlu0
        %v5092 = vpop.trf.xlu0
        %v5093 = vpop.trf.xlu0
        %v5094 = vpop.trf.xlu0
        %5095 = vxpose.xlu0.c.b16.start [1/8] %v4597, 128
        %5096 = vxpose.xlu0.c.b16.cont [2/8] 0, 128
        %5097 = vxpose.xlu0.c.b16.cont [3/8] 0, 128
        %5098 = vxpose.xlu0.c.b16.cont [4/8] 0, 128
        %5099 = vxpose.xlu0.c.b16.cont [5/8] 0, 128
        %5100 = vxpose.xlu0.c.b16.cont [6/8] 0, 128
        %5101 = vxpose.xlu0.c.b16.cont [7/8] 0, 128
        %5102 = vxpose.xlu0.c.b16.end [8/8] 0, 128
        %v5103 = vpop.trf.xlu0
        %v5104 = vpop.trf.xlu0
        %v5105 = vpop.trf.xlu0
        %v5106 = vpop.trf.xlu0
        %v5107 = vpop.trf.xlu0
        %v5108 = vpop.trf.xlu0
        %v5109 = vpop.trf.xlu0
        %v5110 = vpop.trf.xlu0
        %v5111 = vcombine.low %v4607, %v4671
        %v5113 = vunpack.c.l.s4 1983009808
        %v5114 = vunpack.c.0.s8 %v5113
        %v5115 = vlaneseq
        %v5116 = vshrl.u32 %v5115, 7
        %v5117 = vsub.s32 %v5114, %v5116
        %v5118 = vrot.slane %v5111, %v5117
        %v5119 = vcombine.low %v4639, %v4703
        %v5121 = vunpack.c.l.s4 1983009808
        %v5122 = vunpack.c.0.s8 %v5121
        %v5123 = vlaneseq
        %v5124 = vshrl.u32 %v5123, 7
        %v5125 = vsub.s32 %v5122, %v5124
        %v5126 = vrot.slane %v5119, %v5125
        %v5127 = vcombine.low %v4735, %v4799
        %v5129 = vunpack.c.l.s4 1983009808
        %v5130 = vunpack.c.0.s8 %v5129
        %v5131 = vlaneseq
        %v5132 = vshrl.u32 %v5131, 7
        %v5133 = vsub.s32 %v5130, %v5132
        %v5134 = vrot.slane %v5127, %v5133
        %v5135 = vcombine.low %v4767, %v4831
        %v5137 = vunpack.c.l.s4 1983009808
        %v5138 = vunpack.c.0.s8 %v5137
        %v5139 = vlaneseq
        %v5140 = vshrl.u32 %v5139, 7
        %v5141 = vsub.s32 %v5138, %v5140
        %v5142 = vrot.slane %v5135, %v5141
        %v5143 = vcombine.low %v5118, %v5126
        %v5145 = vunpack.c.l.s4 1934713408
        %v5146 = vunpack.c.0.s8 %v5145
        %v5147 = vlaneseq
        %v5148 = vshrl.u32 %v5147, 7
        %v5149 = vsub.s32 %v5146, %v5148
        %v5150 = vrot.slane %v5143, %v5149
        %v5151 = vcombine.low %v5134, %v5142
        %v5153 = vunpack.c.l.s4 1934713408
        %v5154 = vunpack.c.0.s8 %v5153
        %v5155 = vlaneseq
        %v5156 = vshrl.u32 %v5155, 7
        %v5157 = vsub.s32 %v5154, %v5156
        %v5158 = vrot.slane %v5151, %v5157
        %v5159 = vcombine.low %v5150, %v5158
        %v5160 = vcombine.high %v5150, %v5158
        %v5161 = vcombine.low %v4623, %v4687
        %v5163 = vunpack.c.l.s4 1983009808
        %v5164 = vunpack.c.0.s8 %v5163
        %v5165 = vlaneseq
        %v5166 = vshrl.u32 %v5165, 7
        %v5167 = vsub.s32 %v5164, %v5166
        %v5168 = vrot.slane %v5161, %v5167
        %v5169 = vcombine.low %v4655, %v4719
        %v5171 = vunpack.c.l.s4 1983009808
        %v5172 = vunpack.c.0.s8 %v5171
        %v5173 = vlaneseq
        %v5174 = vshrl.u32 %v5173, 7
        %v5175 = vsub.s32 %v5172, %v5174
        %v5176 = vrot.slane %v5169, %v5175
        %v5177 = vcombine.low %v4751, %v4815
        %v5179 = vunpack.c.l.s4 1983009808
        %v5180 = vunpack.c.0.s8 %v5179
        %v5181 = vlaneseq
        %v5182 = vshrl.u32 %v5181, 7
        %v5183 = vsub.s32 %v5180, %v5182
        %v5184 = vrot.slane %v5177, %v5183
        %v5185 = vcombine.low %v4783, %v4847
        %v5187 = vunpack.c.l.s4 1983009808
        %v5188 = vunpack.c.0.s8 %v5187
        %v5189 = vlaneseq
        %v5190 = vshrl.u32 %v5189, 7
        %v5191 = vsub.s32 %v5188, %v5190
        %v5192 = vrot.slane %v5185, %v5191
        %v5193 = vcombine.low %v5168, %v5176
        %v5195 = vunpack.c.l.s4 1934713408
        %v5196 = vunpack.c.0.s8 %v5195
        %v5197 = vlaneseq
        %v5198 = vshrl.u32 %v5197, 7
        %v5199 = vsub.s32 %v5196, %v5198
        %v5200 = vrot.slane %v5193, %v5199
        %v5201 = vcombine.low %v5184, %v5192
        %v5203 = vunpack.c.l.s4 1934713408
        %v5204 = vunpack.c.0.s8 %v5203
        %v5205 = vlaneseq
        %v5206 = vshrl.u32 %v5205, 7
        %v5207 = vsub.s32 %v5204, %v5206
        %v5208 = vrot.slane %v5201, %v5207
        %v5209 = vcombine.low %v5200, %v5208
        %v5210 = vcombine.high %v5200, %v5208
        %v5211 = vcombine.low %v4863, %v4927
        %v5213 = vunpack.c.l.s4 1983009808
        %v5214 = vunpack.c.0.s8 %v5213
        %v5215 = vlaneseq
        %v5216 = vshrl.u32 %v5215, 7
        %v5217 = vsub.s32 %v5214, %v5216
        %v5218 = vrot.slane %v5211, %v5217
        %v5219 = vcombine.low %v4895, %v4959
        %v5221 = vunpack.c.l.s4 1983009808
        %v5222 = vunpack.c.0.s8 %v5221
        %v5223 = vlaneseq
        %v5224 = vshrl.u32 %v5223, 7
        %v5225 = vsub.s32 %v5222, %v5224
        %v5226 = vrot.slane %v5219, %v5225
        %v5227 = vcombine.low %v4991, %v5055
        %v5229 = vunpack.c.l.s4 1983009808
        %v5230 = vunpack.c.0.s8 %v5229
        %v5231 = vlaneseq
        %v5232 = vshrl.u32 %v5231, 7
        %v5233 = vsub.s32 %v5230, %v5232
        %v5234 = vrot.slane %v5227, %v5233
        %v5235 = vcombine.low %v5023, %v5087
        %v5237 = vunpack.c.l.s4 1983009808
        %v5238 = vunpack.c.0.s8 %v5237
        %v5239 = vlaneseq
        %v5240 = vshrl.u32 %v5239, 7
        %v5241 = vsub.s32 %v5238, %v5240
        %v5242 = vrot.slane %v5235, %v5241
        %v5243 = vcombine.low %v5218, %v5226
        %v5245 = vunpack.c.l.s4 1934713408
        %v5246 = vunpack.c.0.s8 %v5245
        %v5247 = vlaneseq
        %v5248 = vshrl.u32 %v5247, 7
        %v5249 = vsub.s32 %v5246, %v5248
        %v5250 = vrot.slane %v5243, %v5249
        %v5251 = vcombine.low %v5234, %v5242
        %v5253 = vunpack.c.l.s4 1934713408
        %v5254 = vunpack.c.0.s8 %v5253
        %v5255 = vlaneseq
        %v5256 = vshrl.u32 %v5255, 7
        %v5257 = vsub.s32 %v5254, %v5256
        %v5258 = vrot.slane %v5251, %v5257
        %v5259 = vcombine.low %v5250, %v5258
        %v5260 = vcombine.high %v5250, %v5258
        %v5261 = vcombine.low %v4879, %v4943
        %v5263 = vunpack.c.l.s4 1983009808
        %v5264 = vunpack.c.0.s8 %v5263
        %v5265 = vlaneseq
        %v5266 = vshrl.u32 %v5265, 7
        %v5267 = vsub.s32 %v5264, %v5266
        %v5268 = vrot.slane %v5261, %v5267
        %v5269 = vcombine.low %v4911, %v4975
        %v5271 = vunpack.c.l.s4 1983009808
        %v5272 = vunpack.c.0.s8 %v5271
        %v5273 = vlaneseq
        %v5274 = vshrl.u32 %v5273, 7
        %v5275 = vsub.s32 %v5272, %v5274
        %v5276 = vrot.slane %v5269, %v5275
        %v5277 = vcombine.low %v5007, %v5071
        %v5279 = vunpack.c.l.s4 1983009808
        %v5280 = vunpack.c.0.s8 %v5279
        %v5281 = vlaneseq
        %v5282 = vshrl.u32 %v5281, 7
        %v5283 = vsub.s32 %v5280, %v5282
        %v5284 = vrot.slane %v5277, %v5283
        %v5285 = vcombine.low %v5039, %v5103
        %v5287 = vunpack.c.l.s4 1983009808
        %v5288 = vunpack.c.0.s8 %v5287
        %v5289 = vlaneseq
        %v5290 = vshrl.u32 %v5289, 7
        %v5291 = vsub.s32 %v5288, %v5290
        %v5292 = vrot.slane %v5285, %v5291
        %v5293 = vcombine.low %v5268, %v5276
        %v5295 = vunpack.c.l.s4 1934713408
        %v5296 = vunpack.c.0.s8 %v5295
        %v5297 = vlaneseq
        %v5298 = vshrl.u32 %v5297, 7
        %v5299 = vsub.s32 %v5296, %v5298
        %v5300 = vrot.slane %v5293, %v5299
        %v5301 = vcombine.low %v5284, %v5292
        %v5303 = vunpack.c.l.s4 1934713408
        %v5304 = vunpack.c.0.s8 %v5303
        %v5305 = vlaneseq
        %v5306 = vshrl.u32 %v5305, 7
        %v5307 = vsub.s32 %v5304, %v5306
        %v5308 = vrot.slane %v5301, %v5307
        %v5309 = vcombine.low %v5300, %v5308
        %v5310 = vcombine.high %v5300, %v5308
        %v5313 = vpack.i.b16 %v5209, %v5159
        %v5314 = vshrl.u32 %v5159, 16
        %v5315 = vshrl.u32 %v5209, 16
        %v5316 = vpack.i.b16 %v5315, %v5314
        %v5319 = vpack.i.b16 %v5210, %v5160
        %v5320 = vshrl.u32 %v5160, 16
        %v5321 = vshrl.u32 %v5210, 16
        %v5322 = vpack.i.b16 %v5321, %v5320
        %v5325 = vpack.i.b16 %v5309, %v5259
        %v5326 = vshrl.u32 %v5259, 16
        %v5327 = vshrl.u32 %v5309, 16
        %v5328 = vpack.i.b16 %v5327, %v5326
        %v5331 = vpack.i.b16 %v5310, %v5260
        %v5332 = vshrl.u32 %v5260, 16
        %v5333 = vshrl.u32 %v5310, 16
        %v5334 = vpack.i.b16 %v5333, %v5332
        %v5336 = vsel %vm3578, %v5313, 0
        %v5339 = vsel %vm3578, %v5325, 0
        %v5342 = vsel %vm3578, %v3667, 0
        %5344 = vmatprep.subr.bf16.mxu0 0
        %5345 = vmatpush1.bf16.xpose.msra.mxu0 0
        %5346 = vmatprep.subr.bf16.mxu0 0
        %5347 = vmatpush1.bf16.xpose.msra.mxu0 0
        %5348 = vmatprep.subr.bf16.mxu0 0
        %5349 = vmatpush1.bf16.xpose.msra.mxu0 0
        %5350 = vmatprep.subr.bf16.mxu0 0
        %5351 = vmatpush1.bf16.xpose.msra.mxu0 0
        %5352 = vmatprep.subr.bf16.mxu0 0
        %5353 = vmatpush1.bf16.xpose.msra.mxu0 0
        %5354 = vmatprep.subr.bf16.mxu0 0
        %5355 = vmatpush1.bf16.xpose.msra.mxu0 0
        %5356 = vmatprep.subr.bf16.mxu0 0
        %5357 = vmatpush1.bf16.xpose.msra.mxu0 0
        %5358 = vmatprep.subr.bf16.mxu0 0
        %5359 = vmatpush1.bf16.xpose.msra.mxu0 %v5342
        %5360 = vmatprep.subr.bf16.mxu0 0
        %5361 = vmatpush2.bf16.xpose.msra.mxu0 0
        %5362 = vmatprep.subr.bf16.mxu0 0
        %5363 = vmatpush2.bf16.xpose.msra.mxu0 0
        %5364 = vmatprep.subr.bf16.mxu0 0
        %5365 = vmatpush2.bf16.xpose.msra.mxu0 0
        %5366 = vmatprep.subr.bf16.mxu0 0
        %5367 = vmatpush2.bf16.xpose.msra.mxu0 0
        %5368 = vmatprep.subr.bf16.mxu0 0
        %5369 = vmatpush2.bf16.xpose.msra.mxu0 0
        %5370 = vmatprep.subr.bf16.mxu0 0
        %5371 = vmatpush2.bf16.xpose.msra.mxu0 0
        %5372 = vmatprep.subr.bf16.mxu0 0
        %5373 = vmatpush2.bf16.xpose.msra.mxu0 0
        %5374 = vmatprep.subr.bf16.mxu0 0
        %5375 = vmatpush2.bf16.xpose.msra.mxu0 0
        %5376 = vmatprep.mubr.bf16.mxu0 0
        %5377 = vmatmul.mubr.bf16.gmra.mxu0 %v5336
        %v5378 = vpop.f32.mrf.mxu0
        %v5379 = vadd.f32 0.0, %v5378
        %v5380 = vpop.f32.mrf.mxu0
        %v5381 = vpop.f32.mrf.mxu0
        %v5382 = vadd.f32 0.0, %v5381
        %v5383 = vpop.f32.mrf.mxu0
        %5384 = vmatprep.mubr.bf16.mxu0 0
        %5385 = vmatmul.mubr.bf16.gmra.mxu0 %v5339
        %v5386 = vpop.f32.mrf.mxu0
        %v5387 = vadd.f32 0.0, %v5386
        %v5388 = vpop.f32.mrf.mxu0
        %v5389 = vpop.f32.mrf.mxu0
        %v5390 = vadd.f32 0.0, %v5389
        %v5391 = vpop.f32.mrf.mxu0
        %5392 = vdwg.mxu0
        %v5394 = vsel %vm3578, %v5316, 0
        %v5397 = vsel %vm3578, %v5328, 0
        %v5400 = vsel %vm3578, %v3668, 0
        %5402 = vmatprep.subr.bf16.mxu0 0
        %5403 = vmatpush1.bf16.xpose.msra.mxu0 0
        %5404 = vmatprep.subr.bf16.mxu0 0
        %5405 = vmatpush1.bf16.xpose.msra.mxu0 0
        %5406 = vmatprep.subr.bf16.mxu0 0
        %5407 = vmatpush1.bf16.xpose.msra.mxu0 0
        %5408 = vmatprep.subr.bf16.mxu0 0
        %5409 = vmatpush1.bf16.xpose.msra.mxu0 0
        %5410 = vmatprep.subr.bf16.mxu0 0
        %5411 = vmatpush1.bf16.xpose.msra.mxu0 0
        %5412 = vmatprep.subr.bf16.mxu0 0
        %5413 = vmatpush1.bf16.xpose.msra.mxu0 0
        %5414 = vmatprep.subr.bf16.mxu0 0
        %5415 = vmatpush1.bf16.xpose.msra.mxu0 0
        %5416 = vmatprep.subr.bf16.mxu0 0
        %5417 = vmatpush1.bf16.xpose.msra.mxu0 %v5400
        %5418 = vmatprep.subr.bf16.mxu0 0
        %5419 = vmatpush2.bf16.xpose.msra.mxu0 0
        %5420 = vmatprep.subr.bf16.mxu0 0
        %5421 = vmatpush2.bf16.xpose.msra.mxu0 0
        %5422 = vmatprep.subr.bf16.mxu0 0
        %5423 = vmatpush2.bf16.xpose.msra.mxu0 0
        %5424 = vmatprep.subr.bf16.mxu0 0
        %5425 = vmatpush2.bf16.xpose.msra.mxu0 0
        %5426 = vmatprep.subr.bf16.mxu0 0
        %5427 = vmatpush2.bf16.xpose.msra.mxu0 0
        %5428 = vmatprep.subr.bf16.mxu0 0
        %5429 = vmatpush2.bf16.xpose.msra.mxu0 0
        %5430 = vmatprep.subr.bf16.mxu0 0
        %5431 = vmatpush2.bf16.xpose.msra.mxu0 0
        %5432 = vmatprep.subr.bf16.mxu0 0
        %5433 = vmatpush2.bf16.xpose.msra.mxu0 0
        %5434 = vmatprep.mubr.bf16.mxu0 0
        %5435 = vmatmul.mubr.bf16.gmra.mxu0 %v5394
        %v5436 = vpop.f32.mrf.mxu0
        %v5437 = vadd.f32 0.0, %v5436
        %v5438 = vpop.f32.mrf.mxu0
        %v5439 = vpop.f32.mrf.mxu0
        %v5440 = vadd.f32 0.0, %v5439
        %v5441 = vpop.f32.mrf.mxu0
        %5442 = vmatprep.mubr.bf16.mxu0 0
        %5443 = vmatmul.mubr.bf16.gmra.mxu0 %v5397
        %v5444 = vpop.f32.mrf.mxu0
        %v5445 = vadd.f32 0.0, %v5444
        %v5446 = vpop.f32.mrf.mxu0
        %v5447 = vpop.f32.mrf.mxu0
        %v5448 = vadd.f32 0.0, %v5447
        %v5449 = vpop.f32.mrf.mxu0
        %5450 = vdwg.mxu0
        %v5452 = vsel %vm3578, %v5319, 0
        %v5455 = vsel %vm3578, %v5331, 0
        %v5458 = vsel %vm3578, %v3669, 0
        %5460 = vmatprep.subr.bf16.mxu0 0
        %5461 = vmatpush1.bf16.xpose.msra.mxu0 0
        %5462 = vmatprep.subr.bf16.mxu0 0
        %5463 = vmatpush1.bf16.xpose.msra.mxu0 0
        %5464 = vmatprep.subr.bf16.mxu0 0
        %5465 = vmatpush1.bf16.xpose.msra.mxu0 0
        %5466 = vmatprep.subr.bf16.mxu0 0
        %5467 = vmatpush1.bf16.xpose.msra.mxu0 0
        %5468 = vmatprep.subr.bf16.mxu0 0
        %5469 = vmatpush1.bf16.xpose.msra.mxu0 0
        %5470 = vmatprep.subr.bf16.mxu0 0
        %5471 = vmatpush1.bf16.xpose.msra.mxu0 0
        %5472 = vmatprep.subr.bf16.mxu0 0
        %5473 = vmatpush1.bf16.xpose.msra.mxu0 0
        %5474 = vmatprep.subr.bf16.mxu0 0
        %5475 = vmatpush1.bf16.xpose.msra.mxu0 %v5458
        %5476 = vmatprep.subr.bf16.mxu0 0
        %5477 = vmatpush2.bf16.xpose.msra.mxu0 0
        %5478 = vmatprep.subr.bf16.mxu0 0
        %5479 = vmatpush2.bf16.xpose.msra.mxu0 0
        %5480 = vmatprep.subr.bf16.mxu0 0
        %5481 = vmatpush2.bf16.xpose.msra.mxu0 0
        %5482 = vmatprep.subr.bf16.mxu0 0
        %5483 = vmatpush2.bf16.xpose.msra.mxu0 0
        %5484 = vmatprep.subr.bf16.mxu0 0
        %5485 = vmatpush2.bf16.xpose.msra.mxu0 0
        %5486 = vmatprep.subr.bf16.mxu0 0
        %5487 = vmatpush2.bf16.xpose.msra.mxu0 0
        %5488 = vmatprep.subr.bf16.mxu0 0
        %5489 = vmatpush2.bf16.xpose.msra.mxu0 0
        %5490 = vmatprep.subr.bf16.mxu0 0
        %5491 = vmatpush2.bf16.xpose.msra.mxu0 0
        %5492 = vmatprep.mubr.bf16.mxu0 0
        %5493 = vmatmul.mubr.bf16.gmra.mxu0 %v5452
        %v5494 = vpop.f32.mrf.mxu0
        %v5495 = vadd.f32 0.0, %v5494
        %v5496 = vpop.f32.mrf.mxu0
        %v5497 = vpop.f32.mrf.mxu0
        %v5498 = vadd.f32 0.0, %v5497
        %v5499 = vpop.f32.mrf.mxu0
        %5500 = vmatprep.mubr.bf16.mxu0 0
        %5501 = vmatmul.mubr.bf16.gmra.mxu0 %v5455
        %v5502 = vpop.f32.mrf.mxu0
        %v5503 = vadd.f32 0.0, %v5502
        %v5504 = vpop.f32.mrf.mxu0
        %v5505 = vpop.f32.mrf.mxu0
        %v5506 = vadd.f32 0.0, %v5505
        %v5507 = vpop.f32.mrf.mxu0
        %5508 = vdwg.mxu0
        %v5510 = vsel %vm3578, %v5322, 0
        %v5513 = vsel %vm3578, %v5334, 0
        %v5516 = vsel %vm3578, %v3670, 0
        %5518 = vmatprep.subr.bf16.mxu0 0
        %5519 = vmatpush1.bf16.xpose.msra.mxu0 0
        %5520 = vmatprep.subr.bf16.mxu0 0
        %5521 = vmatpush1.bf16.xpose.msra.mxu0 0
        %5522 = vmatprep.subr.bf16.mxu0 0
        %5523 = vmatpush1.bf16.xpose.msra.mxu0 0
        %5524 = vmatprep.subr.bf16.mxu0 0
        %5525 = vmatpush1.bf16.xpose.msra.mxu0 0
        %5526 = vmatprep.subr.bf16.mxu0 0
        %5527 = vmatpush1.bf16.xpose.msra.mxu0 0
        %5528 = vmatprep.subr.bf16.mxu0 0
        %5529 = vmatpush1.bf16.xpose.msra.mxu0 0
        %5530 = vmatprep.subr.bf16.mxu0 0
        %5531 = vmatpush1.bf16.xpose.msra.mxu0 0
        %5532 = vmatprep.subr.bf16.mxu0 0
        %5533 = vmatpush1.bf16.xpose.msra.mxu0 %v5516
        %5534 = vmatprep.subr.bf16.mxu0 0
        %5535 = vmatpush2.bf16.xpose.msra.mxu0 0
        %5536 = vmatprep.subr.bf16.mxu0 0
        %5537 = vmatpush2.bf16.xpose.msra.mxu0 0
        %5538 = vmatprep.subr.bf16.mxu0 0
        %5539 = vmatpush2.bf16.xpose.msra.mxu0 0
        %5540 = vmatprep.subr.bf16.mxu0 0
        %5541 = vmatpush2.bf16.xpose.msra.mxu0 0
        %5542 = vmatprep.subr.bf16.mxu0 0
        %5543 = vmatpush2.bf16.xpose.msra.mxu0 0
        %5544 = vmatprep.subr.bf16.mxu0 0
        %5545 = vmatpush2.bf16.xpose.msra.mxu0 0
        %5546 = vmatprep.subr.bf16.mxu0 0
        %5547 = vmatpush2.bf16.xpose.msra.mxu0 0
        %5548 = vmatprep.subr.bf16.mxu0 0
        %5549 = vmatpush2.bf16.xpose.msra.mxu0 0
        %5550 = vmatprep.mubr.bf16.mxu0 0
        %5551 = vmatmul.mubr.bf16.gmra.mxu0 %v5510
        %v5552 = vpop.f32.mrf.mxu0
        %v5553 = vadd.f32 0.0, %v5552
        %v5554 = vpop.f32.mrf.mxu0
        %v5555 = vpop.f32.mrf.mxu0
        %v5556 = vadd.f32 0.0, %v5555
        %v5557 = vpop.f32.mrf.mxu0
        %5558 = vmatprep.mubr.bf16.mxu0 0
        %5559 = vmatmul.mubr.bf16.gmra.mxu0 %v5513
        %v5560 = vpop.f32.mrf.mxu0
        %v5561 = vadd.f32 0.0, %v5560
        %v5562 = vpop.f32.mrf.mxu0
        %v5563 = vpop.f32.mrf.mxu0
        %v5564 = vadd.f32 0.0, %v5563
        %v5565 = vpop.f32.mrf.mxu0
        %5566 = vdwg.mxu0
        %5567 = vxpose.xlu0.b32.start [1/16] %v5379, 128
        %5568 = vxpose.xlu0.b32.cont [2/16] %v5382, 128
        %5569 = vxpose.xlu0.b32.cont [3/16] %v5387, 128
        %5570 = vxpose.xlu0.b32.cont [4/16] %v5390, 128
        %5571 = vxpose.xlu0.b32.cont [5/16] 0.0, 128
        %5572 = vxpose.xlu0.b32.cont [6/16] 0.0, 128
        %5573 = vxpose.xlu0.b32.cont [7/16] 0.0, 128
        %5574 = vxpose.xlu0.b32.cont [8/16] 0.0, 128
        %5575 = vxpose.xlu0.b32.cont [9/16] 0.0, 128
        %5576 = vxpose.xlu0.b32.cont [10/16] 0.0, 128
        %5577 = vxpose.xlu0.b32.cont [11/16] 0.0, 128
        %5578 = vxpose.xlu0.b32.cont [12/16] 0.0, 128
        %5579 = vxpose.xlu0.b32.cont [13/16] 0.0, 128
        %5580 = vxpose.xlu0.b32.cont [14/16] 0.0, 128
        %5581 = vxpose.xlu0.b32.cont [15/16] 0.0, 128
        %5582 = vxpose.xlu0.b32.end [16/16] 0.0, 128
        %v5583 = vpop.trf.xlu0
        %v5584 = vpop.trf.xlu0
        %v5585 = vpop.trf.xlu0
        %v5586 = vpop.trf.xlu0
        %v5587 = vpop.trf.xlu0
        %v5588 = vpop.trf.xlu0
        %v5589 = vpop.trf.xlu0
        %v5590 = vpop.trf.xlu0
        %v5591 = vpop.trf.xlu0
        %v5592 = vpop.trf.xlu0
        %v5593 = vpop.trf.xlu0
        %v5594 = vpop.trf.xlu0
        %v5595 = vpop.trf.xlu0
        %v5596 = vpop.trf.xlu0
        %v5597 = vpop.trf.xlu0
        %v5598 = vpop.trf.xlu0
        %5599 = vxpose.xlu0.b32.start [1/16] %v5437, 128
        %5600 = vxpose.xlu0.b32.cont [2/16] %v5440, 128
        %5601 = vxpose.xlu0.b32.cont [3/16] %v5445, 128
        %5602 = vxpose.xlu0.b32.cont [4/16] %v5448, 128
        %5603 = vxpose.xlu0.b32.cont [5/16] 0.0, 128
        %5604 = vxpose.xlu0.b32.cont [6/16] 0.0, 128
        %5605 = vxpose.xlu0.b32.cont [7/16] 0.0, 128
        %5606 = vxpose.xlu0.b32.cont [8/16] 0.0, 128
        %5607 = vxpose.xlu0.b32.cont [9/16] 0.0, 128
        %5608 = vxpose.xlu0.b32.cont [10/16] 0.0, 128
        %5609 = vxpose.xlu0.b32.cont [11/16] 0.0, 128
        %5610 = vxpose.xlu0.b32.cont [12/16] 0.0, 128
        %5611 = vxpose.xlu0.b32.cont [13/16] 0.0, 128
        %5612 = vxpose.xlu0.b32.cont [14/16] 0.0, 128
        %5613 = vxpose.xlu0.b32.cont [15/16] 0.0, 128
        %5614 = vxpose.xlu0.b32.end [16/16] 0.0, 128
        %v5615 = vpop.trf.xlu0
        %v5616 = vpop.trf.xlu0
        %v5617 = vpop.trf.xlu0
        %v5618 = vpop.trf.xlu0
        %v5619 = vpop.trf.xlu0
        %v5620 = vpop.trf.xlu0
        %v5621 = vpop.trf.xlu0
        %v5622 = vpop.trf.xlu0
        %v5623 = vpop.trf.xlu0
        %v5624 = vpop.trf.xlu0
        %v5625 = vpop.trf.xlu0
        %v5626 = vpop.trf.xlu0
        %v5627 = vpop.trf.xlu0
        %v5628 = vpop.trf.xlu0
        %v5629 = vpop.trf.xlu0
        %v5630 = vpop.trf.xlu0
        %5631 = vxpose.xlu0.b32.start [1/16] %v5495, 128
        %5632 = vxpose.xlu0.b32.cont [2/16] %v5498, 128
        %5633 = vxpose.xlu0.b32.cont [3/16] %v5503, 128
        %5634 = vxpose.xlu0.b32.cont [4/16] %v5506, 128
        %5635 = vxpose.xlu0.b32.cont [5/16] 0.0, 128
        %5636 = vxpose.xlu0.b32.cont [6/16] 0.0, 128
        %5637 = vxpose.xlu0.b32.cont [7/16] 0.0, 128
        %5638 = vxpose.xlu0.b32.cont [8/16] 0.0, 128
        %5639 = vxpose.xlu0.b32.cont [9/16] 0.0, 128
        %5640 = vxpose.xlu0.b32.cont [10/16] 0.0, 128
        %5641 = vxpose.xlu0.b32.cont [11/16] 0.0, 128
        %5642 = vxpose.xlu0.b32.cont [12/16] 0.0, 128
        %5643 = vxpose.xlu0.b32.cont [13/16] 0.0, 128
        %5644 = vxpose.xlu0.b32.cont [14/16] 0.0, 128
        %5645 = vxpose.xlu0.b32.cont [15/16] 0.0, 128
        %5646 = vxpose.xlu0.b32.end [16/16] 0.0, 128
        %v5647 = vpop.trf.xlu0
        %v5648 = vpop.trf.xlu0
        %v5649 = vpop.trf.xlu0
        %v5650 = vpop.trf.xlu0
        %v5651 = vpop.trf.xlu0
        %v5652 = vpop.trf.xlu0
        %v5653 = vpop.trf.xlu0
        %v5654 = vpop.trf.xlu0
        %v5655 = vpop.trf.xlu0
        %v5656 = vpop.trf.xlu0
        %v5657 = vpop.trf.xlu0
        %v5658 = vpop.trf.xlu0
        %v5659 = vpop.trf.xlu0
        %v5660 = vpop.trf.xlu0
        %v5661 = vpop.trf.xlu0
        %v5662 = vpop.trf.xlu0
        %5663 = vxpose.xlu0.b32.start [1/16] %v5553, 128
        %5664 = vxpose.xlu0.b32.cont [2/16] %v5556, 128
        %5665 = vxpose.xlu0.b32.cont [3/16] %v5561, 128
        %5666 = vxpose.xlu0.b32.cont [4/16] %v5564, 128
        %5667 = vxpose.xlu0.b32.cont [5/16] 0.0, 128
        %5668 = vxpose.xlu0.b32.cont [6/16] 0.0, 128
        %5669 = vxpose.xlu0.b32.cont [7/16] 0.0, 128
        %5670 = vxpose.xlu0.b32.cont [8/16] 0.0, 128
        %5671 = vxpose.xlu0.b32.cont [9/16] 0.0, 128
        %5672 = vxpose.xlu0.b32.cont [10/16] 0.0, 128
        %5673 = vxpose.xlu0.b32.cont [11/16] 0.0, 128
        %5674 = vxpose.xlu0.b32.cont [12/16] 0.0, 128
        %5675 = vxpose.xlu0.b32.cont [13/16] 0.0, 128
        %5676 = vxpose.xlu0.b32.cont [14/16] 0.0, 128
        %5677 = vxpose.xlu0.b32.cont [15/16] 0.0, 128
        %5678 = vxpose.xlu0.b32.end [16/16] 0.0, 128
        %v5679 = vpop.trf.xlu0
        %v5680 = vpop.trf.xlu0
        %v5681 = vpop.trf.xlu0
        %v5682 = vpop.trf.xlu0
        %v5683 = vpop.trf.xlu0
        %v5684 = vpop.trf.xlu0
        %v5685 = vpop.trf.xlu0
        %v5686 = vpop.trf.xlu0
        %v5687 = vpop.trf.xlu0
        %v5688 = vpop.trf.xlu0
        %v5689 = vpop.trf.xlu0
        %v5690 = vpop.trf.xlu0
        %v5691 = vpop.trf.xlu0
        %v5692 = vpop.trf.xlu0
        %v5693 = vpop.trf.xlu0
        %v5694 = vpop.trf.xlu0
        %v5695 = vcombine.low %v5583, %v5647
        %v5696 = vcombine.high %v5583, %v5647
        %v5698 = vunpack.c.l.s4 1983009808
        %v5699 = vunpack.c.0.s8 %v5698
        %v5700 = vlaneseq
        %v5701 = vshrl.u32 %v5700, 7
        %v5702 = vsub.s32 %v5699, %v5701
        %v5703 = vrot.slane %v5695, %v5702
        %v5705 = vunpack.c.l.s4 1983009808
        %v5706 = vunpack.c.0.s8 %v5705
        %v5707 = vlaneseq
        %v5708 = vshrl.u32 %v5707, 7
        %v5709 = vsub.s32 %v5706, %v5708
        %v5710 = vrot.slane %v5696, %v5709
        %v5711 = vcombine.low %v5615, %v5679
        %v5712 = vcombine.high %v5615, %v5679
        %v5714 = vunpack.c.l.s4 1983009808
        %v5715 = vunpack.c.0.s8 %v5714
        %v5716 = vlaneseq
        %v5717 = vshrl.u32 %v5716, 7
        %v5718 = vsub.s32 %v5715, %v5717
        %v5719 = vrot.slane %v5711, %v5718
        %v5721 = vunpack.c.l.s4 1983009808
        %v5722 = vunpack.c.0.s8 %v5721
        %v5723 = vlaneseq
        %v5724 = vshrl.u32 %v5723, 7
        %v5725 = vsub.s32 %v5722, %v5724
        %v5726 = vrot.slane %v5712, %v5725
        %v5727 = vcombine.low %v5703, %v5719
        %v5728 = vcombine.high %v5703, %v5719
        %v5730 = vunpack.c.l.s4 1934713408
        %v5731 = vunpack.c.0.s8 %v5730
        %v5732 = vlaneseq
        %v5733 = vshrl.u32 %v5732, 7
        %v5734 = vsub.s32 %v5731, %v5733
        %v5735 = vrot.slane %v5727, %v5734
        %v5737 = vunpack.c.l.s4 1934713408
        %v5738 = vunpack.c.0.s8 %v5737
        %v5739 = vlaneseq
        %v5740 = vshrl.u32 %v5739, 7
        %v5741 = vsub.s32 %v5738, %v5740
        %v5742 = vrot.slane %v5728, %v5741
        %v5743 = vcombine.low %v5710, %v5726
        %v5744 = vcombine.high %v5710, %v5726
        %v5746 = vunpack.c.l.s4 1934713408
        %v5747 = vunpack.c.0.s8 %v5746
        %v5748 = vlaneseq
        %v5749 = vshrl.u32 %v5748, 7
        %v5750 = vsub.s32 %v5747, %v5749
        %v5751 = vrot.slane %v5743, %v5750
        %v5753 = vunpack.c.l.s4 1934713408
        %v5754 = vunpack.c.0.s8 %v5753
        %v5755 = vlaneseq
        %v5756 = vshrl.u32 %v5755, 7
        %v5757 = vsub.s32 %v5754, %v5756
        %v5758 = vrot.slane %v5744, %v5757
        %v5759 = vcombine.high %v5735, 0.0
        %v5760 = vcombine.high %v5742, 0.0
        %v5761 = vcombine.high %v5751, 0.0
        %v5762 = vcombine.high %v5758, 0.0
        %v5763 = vcombine.low %v5584, %v5648
        %v5764 = vcombine.high %v5584, %v5648
        %v5766 = vunpack.c.l.s4 1983009808
        %v5767 = vunpack.c.0.s8 %v5766
        %v5768 = vlaneseq
        %v5769 = vshrl.u32 %v5768, 7
        %v5770 = vsub.s32 %v5767, %v5769
        %v5771 = vrot.slane %v5763, %v5770
        %v5773 = vunpack.c.l.s4 1983009808
        %v5774 = vunpack.c.0.s8 %v5773
        %v5775 = vlaneseq
        %v5776 = vshrl.u32 %v5775, 7
        %v5777 = vsub.s32 %v5774, %v5776
        %v5778 = vrot.slane %v5764, %v5777
        %v5779 = vcombine.low %v5616, %v5680
        %v5780 = vcombine.high %v5616, %v5680
        %v5782 = vunpack.c.l.s4 1983009808
        %v5783 = vunpack.c.0.s8 %v5782
        %v5784 = vlaneseq
        %v5785 = vshrl.u32 %v5784, 7
        %v5786 = vsub.s32 %v5783, %v5785
        %v5787 = vrot.slane %v5779, %v5786
        %v5789 = vunpack.c.l.s4 1983009808
        %v5790 = vunpack.c.0.s8 %v5789
        %v5791 = vlaneseq
        %v5792 = vshrl.u32 %v5791, 7
        %v5793 = vsub.s32 %v5790, %v5792
        %v5794 = vrot.slane %v5780, %v5793
        %v5795 = vcombine.low %v5771, %v5787
        %v5796 = vcombine.high %v5771, %v5787
        %v5798 = vunpack.c.l.s4 1934713408
        %v5799 = vunpack.c.0.s8 %v5798
        %v5800 = vlaneseq
        %v5801 = vshrl.u32 %v5800, 7
        %v5802 = vsub.s32 %v5799, %v5801
        %v5803 = vrot.slane %v5795, %v5802
        %v5805 = vunpack.c.l.s4 1934713408
        %v5806 = vunpack.c.0.s8 %v5805
        %v5807 = vlaneseq
        %v5808 = vshrl.u32 %v5807, 7
        %v5809 = vsub.s32 %v5806, %v5808
        %v5810 = vrot.slane %v5796, %v5809
        %v5811 = vcombine.low %v5778, %v5794
        %v5812 = vcombine.high %v5778, %v5794
        %v5814 = vunpack.c.l.s4 1934713408
        %v5815 = vunpack.c.0.s8 %v5814
        %v5816 = vlaneseq
        %v5817 = vshrl.u32 %v5816, 7
        %v5818 = vsub.s32 %v5815, %v5817
        %v5819 = vrot.slane %v5811, %v5818
        %v5821 = vunpack.c.l.s4 1934713408
        %v5822 = vunpack.c.0.s8 %v5821
        %v5823 = vlaneseq
        %v5824 = vshrl.u32 %v5823, 7
        %v5825 = vsub.s32 %v5822, %v5824
        %v5826 = vrot.slane %v5812, %v5825
        %v5827 = vcombine.high %v5803, 0.0
        %v5828 = vcombine.high %v5810, 0.0
        %v5829 = vcombine.high %v5819, 0.0
        %v5830 = vcombine.high %v5826, 0.0
        %v5831 = vcombine.low %v5735, %v5742
        %v5833 = vunpack.c.l.s4 1983009808
        %v5834 = vunpack.c.0.s8 %v5833
        %v5835 = vlaneseq
        %v5836 = vshrl.u32 %v5835, 7
        %v5837 = vsub.s32 %v5834, %v5836
        %v5838 = vrot.slane %v5831, %v5837
        %v5839 = vcombine.low %v5759, %v5760
        %v5841 = vunpack.c.l.s4 1983009808
        %v5842 = vunpack.c.0.s8 %v5841
        %v5843 = vlaneseq
        %v5844 = vshrl.u32 %v5843, 7
        %v5845 = vsub.s32 %v5842, %v5844
        %v5846 = vrot.slane %v5839, %v5845
        %v5847 = vcombine.low %v5751, %v5758
        %v5849 = vunpack.c.l.s4 1983009808
        %v5850 = vunpack.c.0.s8 %v5849
        %v5851 = vlaneseq
        %v5852 = vshrl.u32 %v5851, 7
        %v5853 = vsub.s32 %v5850, %v5852
        %v5854 = vrot.slane %v5847, %v5853
        %v5855 = vcombine.low %v5761, %v5762
        %v5857 = vunpack.c.l.s4 1983009808
        %v5858 = vunpack.c.0.s8 %v5857
        %v5859 = vlaneseq
        %v5860 = vshrl.u32 %v5859, 7
        %v5861 = vsub.s32 %v5858, %v5860
        %v5862 = vrot.slane %v5855, %v5861
        %v5863 = vcombine.low %v5838, %v5846
        %v5864 = vcombine.high %v5838, %v5846
        %v5866 = vunpack.c.l.s4 1934713408
        %v5867 = vunpack.c.0.s8 %v5866
        %v5868 = vlaneseq
        %v5869 = vshrl.u32 %v5868, 7
        %v5870 = vsub.s32 %v5867, %v5869
        %v5871 = vrot.slane %v5863, %v5870
        %v5873 = vunpack.c.l.s4 1934713408
        %v5874 = vunpack.c.0.s8 %v5873
        %v5875 = vlaneseq
        %v5876 = vshrl.u32 %v5875, 7
        %v5877 = vsub.s32 %v5874, %v5876
        %v5878 = vrot.slane %v5864, %v5877
        %v5879 = vcombine.low %v5854, %v5862
        %v5880 = vcombine.high %v5854, %v5862
        %v5882 = vunpack.c.l.s4 1934713408
        %v5883 = vunpack.c.0.s8 %v5882
        %v5884 = vlaneseq
        %v5885 = vshrl.u32 %v5884, 7
        %v5886 = vsub.s32 %v5883, %v5885
        %v5887 = vrot.slane %v5879, %v5886
        %v5889 = vunpack.c.l.s4 1934713408
        %v5890 = vunpack.c.0.s8 %v5889
        %v5891 = vlaneseq
        %v5892 = vshrl.u32 %v5891, 7
        %v5893 = vsub.s32 %v5890, %v5892
        %v5894 = vrot.slane %v5880, %v5893
        %v5895 = vcombine.low %v5871, %v5887
        %v5896 = vcombine.high %v5871, %v5887
        %v5897 = vcombine.low %v5878, %v5894
        %v5898 = vcombine.high %v5878, %v5894
        %v5899 = vcombine.low %v5803, %v5810
        %v5901 = vunpack.c.l.s4 1983009808
        %v5902 = vunpack.c.0.s8 %v5901
        %v5903 = vlaneseq
        %v5904 = vshrl.u32 %v5903, 7
        %v5905 = vsub.s32 %v5902, %v5904
        %v5906 = vrot.slane %v5899, %v5905
        %v5907 = vcombine.low %v5827, %v5828
        %v5909 = vunpack.c.l.s4 1983009808
        %v5910 = vunpack.c.0.s8 %v5909
        %v5911 = vlaneseq
        %v5912 = vshrl.u32 %v5911, 7
        %v5913 = vsub.s32 %v5910, %v5912
        %v5914 = vrot.slane %v5907, %v5913
        %v5915 = vcombine.low %v5819, %v5826
        %v5917 = vunpack.c.l.s4 1983009808
        %v5918 = vunpack.c.0.s8 %v5917
        %v5919 = vlaneseq
        %v5920 = vshrl.u32 %v5919, 7
        %v5921 = vsub.s32 %v5918, %v5920
        %v5922 = vrot.slane %v5915, %v5921
        %v5923 = vcombine.low %v5829, %v5830
        %v5925 = vunpack.c.l.s4 1983009808
        %v5926 = vunpack.c.0.s8 %v5925
        %v5927 = vlaneseq
        %v5928 = vshrl.u32 %v5927, 7
        %v5929 = vsub.s32 %v5926, %v5928
        %v5930 = vrot.slane %v5923, %v5929
        %v5931 = vcombine.low %v5906, %v5914
        %v5932 = vcombine.high %v5906, %v5914
        %v5934 = vunpack.c.l.s4 1934713408
        %v5935 = vunpack.c.0.s8 %v5934
        %v5936 = vlaneseq
        %v5937 = vshrl.u32 %v5936, 7
        %v5938 = vsub.s32 %v5935, %v5937
        %v5939 = vrot.slane %v5931, %v5938
        %v5941 = vunpack.c.l.s4 1934713408
        %v5942 = vunpack.c.0.s8 %v5941
        %v5943 = vlaneseq
        %v5944 = vshrl.u32 %v5943, 7
        %v5945 = vsub.s32 %v5942, %v5944
        %v5946 = vrot.slane %v5932, %v5945
        %v5947 = vcombine.low %v5922, %v5930
        %v5948 = vcombine.high %v5922, %v5930
        %v5950 = vunpack.c.l.s4 1934713408
        %v5951 = vunpack.c.0.s8 %v5950
        %v5952 = vlaneseq
        %v5953 = vshrl.u32 %v5952, 7
        %v5954 = vsub.s32 %v5951, %v5953
        %v5955 = vrot.slane %v5947, %v5954
        %v5957 = vunpack.c.l.s4 1934713408
        %v5958 = vunpack.c.0.s8 %v5957
        %v5959 = vlaneseq
        %v5960 = vshrl.u32 %v5959, 7
        %v5961 = vsub.s32 %v5958, %v5960
        %v5962 = vrot.slane %v5948, %v5961
        %v5963 = vcombine.low %v5939, %v5955
        %v5964 = vcombine.high %v5939, %v5955
        %v5965 = vcombine.low %v5946, %v5962
        %v5966 = vcombine.high %v5946, %v5962
        %5969 = vrot.lane.b32.xlu0 %v5896, 32
        %v5970 = vpop.permute.xlu0 %5969
        %5971 = vrot.lane.b32.xlu0 %v5964, 32
        %v5972 = vpop.permute.xlu0 %5971
        %5977 = vrot.lane.b32.xlu0 %v5897, 64
        %v5978 = vpop.permute.xlu0 %5977
        %5979 = vrot.lane.b32.xlu0 %v5965, 64
        %v5980 = vpop.permute.xlu0 %5979
        %5985 = vrot.lane.b32.xlu0 %v5898, 96
        %v5986 = vpop.permute.xlu0 %5985
        %5987 = vrot.lane.b32.xlu0 %v5966, 96
        %v5988 = vpop.permute.xlu0 %5987
        %v5991 = vsel %vm3385, %v5895, %v5970
        %v5992 = vsel %vm3385, %v5963, %v5972
        %vm5993 = vcmask 523264
        %v5994 = vsel %vm5993, %v5991, %v5978
        %v5995 = vsel %vm5993, %v5992, %v5980
        %vm5996 = vcmask 785408
        %v5997 = vsel %vm5996, %v5994, %v5986
        %v5998 = vsel %vm5996, %v5995, %v5988
        %v5999 = vld [vmem:[%s740] sm:$0xf]
        %v6000 = vld [vmem:[%s740 + $0x4] sm:$0xf]
        %v6001 = vld [vmem:[%s740 + $0x8] sm:$0xf]
        %v6002 = vld [vmem:[%s740 + $0xc] sm:$0xf]
        %v6003 = vld [vmem:[%s740 + $0x10] sm:$0xf]
        %v6004 = vld [vmem:[%s740 + $0x14] sm:$0xf]
        %v6005 = vld [vmem:[%s740 + $0x18] sm:$0xf]
        %v6006 = vld [vmem:[%s740 + $0x1c] sm:$0xf]
        %v6007 = vld [vmem:[%s740 + $0x20] sm:$0xf]
        %v6008 = vld [vmem:[%s740 + $0x24] sm:$0xf]
        %v6009 = vld [vmem:[%s740 + $0x28] sm:$0xf]
        %v6010 = vld [vmem:[%s740 + $0x2c] sm:$0xf]
        %v6011 = vld [vmem:[%s740 + $0x30] sm:$0xf]
        %v6012 = vld [vmem:[%s740 + $0x34] sm:$0xf]
        %v6013 = vld [vmem:[%s740 + $0x38] sm:$0xf]
        %v6014 = vld [vmem:[%s740 + $0x3c] sm:$0xf]
        %v6015 = vpack.c.bf16 %v5998, %v5997
        %v6032 = vunpack.c.l.b16 %v5999
        %v6033 = vunpack.c.l.b16 %v6000
        %v6034 = vunpack.c.l.b16 %v6001
        %v6035 = vunpack.c.l.b16 %v6002
        %v6036 = vunpack.c.l.b16 %v6003
        %v6037 = vunpack.c.l.b16 %v6004
        %v6038 = vunpack.c.l.b16 %v6005
        %v6039 = vunpack.c.l.b16 %v6006
        %v6040 = vunpack.c.l.b16 %v6007
        %v6041 = vunpack.c.l.b16 %v6008
        %v6042 = vunpack.c.l.b16 %v6009
        %v6043 = vunpack.c.l.b16 %v6010
        %v6044 = vunpack.c.l.b16 %v6011
        %v6045 = vunpack.c.l.b16 %v6012
        %v6046 = vunpack.c.l.b16 %v6013
        %v6047 = vunpack.c.l.b16 %v6014
        %v6048 = vpack.c.b16 %v6033, %v6032
        %v6049 = vpack.c.b16 %v6035, %v6034
        %v6050 = vpack.c.b16 %v6037, %v6036
        %v6051 = vpack.c.b16 %v6039, %v6038
        %v6052 = vpack.c.b16 %v6041, %v6040
        %v6053 = vpack.c.b16 %v6043, %v6042
        %v6054 = vpack.c.b16 %v6045, %v6044
        %v6055 = vpack.c.b16 %v6047, %v6046
        %6064 = vmatprep.subr.bf16.mxu0 0
        %6065 = vmatpush1.bf16.msra.mxu0 %v6055
        %6066 = vmatprep.subr.bf16.mxu0 0
        %6067 = vmatpush1.bf16.msra.mxu0 %v6054
        %6068 = vmatprep.subr.bf16.mxu0 0
        %6069 = vmatpush1.bf16.msra.mxu0 %v6053
        %6070 = vmatprep.subr.bf16.mxu0 0
        %6071 = vmatpush1.bf16.msra.mxu0 %v6052
        %6072 = vmatprep.subr.bf16.mxu0 0
        %6073 = vmatpush1.bf16.msra.mxu0 %v6051
        %6074 = vmatprep.subr.bf16.mxu0 0
        %6075 = vmatpush1.bf16.msra.mxu0 %v6050
        %6076 = vmatprep.subr.bf16.mxu0 0
        %6077 = vmatpush1.bf16.msra.mxu0 %v6049
        %6078 = vmatprep.subr.bf16.mxu0 0
        %6079 = vmatpush1.bf16.msra.mxu0 %v6048
        %6080 = vmatprep.subr.bf16.mxu0 0
        %6081 = vmatpush2.bf16.msra.mxu0 0
        %6082 = vmatprep.subr.bf16.mxu0 0
        %6083 = vmatpush2.bf16.msra.mxu0 0
        %6084 = vmatprep.subr.bf16.mxu0 0
        %6085 = vmatpush2.bf16.msra.mxu0 0
        %6086 = vmatprep.subr.bf16.mxu0 0
        %6087 = vmatpush2.bf16.msra.mxu0 0
        %6088 = vmatprep.subr.bf16.mxu0 0
        %6089 = vmatpush2.bf16.msra.mxu0 0
        %6090 = vmatprep.subr.bf16.mxu0 0
        %6091 = vmatpush2.bf16.msra.mxu0 0
        %6092 = vmatprep.subr.bf16.mxu0 0
        %6093 = vmatpush2.bf16.msra.mxu0 0
        %6094 = vmatprep.subr.bf16.mxu0 0
        %6095 = vmatpush2.bf16.msra.mxu0 0
        %6096 = vmatprep.mubr.bf16.mxu0 0
        %6097 = vmatmul.mubr.bf16.gmra.mxu0 %v6015
        %v6098 = vpop.f32.mrf.mxu0
        %v6099 = vadd.f32 0.0, %v6098
        %v6100 = vpop.f32.mrf.mxu0
        %v6101 = vpop.f32.mrf.mxu0
        %v6102 = vadd.f32 0.0, %v6101
        %v6103 = vpop.f32.mrf.mxu0
        %6104 = vdwg.mxu0
        %v6105 = vadd.f32 %v771, %v6099
        %v6106 = vadd.f32 %v772, %v6102
        %v6107 = vld [vmem:[%s743] sm:$0x1]
        %v6109 = vlaneseq
        %v6110 = vshrl.u32 %v6109, 7
        %v6111 = vsub.s32 0, %v6110
        %v6112 = vrot.slane %v6107, %v6111
        %v6114 = vadd.f32 %v6105, %v6112
        %v6115 = vadd.f32 %v6106, %v6112
        %v6116 = vld [vmem:[%s746] sm:$0x1]
        %v6117 = vld [vmem:[%s749] sm:$0x1]
        %6118 = vadd.xlane.f32.xlu0 %v6114
        %v6119 = vpop.xlane.xlu0 %6118
        %6120 = vadd.xlane.f32.xlu0 %v6115
        %v6121 = vpop.xlane.xlu0 %6120
        %v6122 = vmul.f32 %v6119, %v788
        %v6123 = vmul.f32 %v6121, %v788
        %v6124 = vsub.f32 %v6114, %v6122
        %v6125 = vsub.f32 %v6115, %v6123
        %v6126 = vmul.f32 %v6124, %v6124
        %v6127 = vmul.f32 %v6125, %v6125
        %6128 = vadd.xlane.f32.xlu0 %v6126
        %v6129 = vpop.xlane.xlu0 %6128
        %6130 = vadd.xlane.f32.xlu0 %v6127
        %v6131 = vpop.xlane.xlu0 %6130
        %v6132 = vmul.f32 %v6129, %v788
        %v6133 = vmul.f32 %v6131, %v788
        %v6134 = vadd.f32 %v6132, 1e-05
        %v6135 = vadd.f32 %v6133, 1e-05
        %v6136 = vrsqrt.pop %v6134
        %v6137 = vrsqrt.pop %v6135
        %v6138 = vmul.f32 %v6124, %v6136
        %v6139 = vmul.f32 %v6125, %v6137
        %v6141 = vlaneseq
        %v6142 = vshrl.u32 %v6141, 7
        %v6143 = vsub.s32 0, %v6142
        %v6144 = vrot.slane %v6116, %v6143
        %v6146 = vmul.f32 %v6138, %v6144
        %v6147 = vmul.f32 %v6139, %v6144
        %v6149 = vlaneseq
        %v6150 = vshrl.u32 %v6149, 7
        %v6151 = vsub.s32 0, %v6150
        %v6152 = vrot.slane %v6117, %v6151
        %v6154 = vadd.f32 %v6146, %v6152
        %v6155 = vadd.f32 %v6147, %v6152
        %v6156 = vld [vmem:[%s619] sm:$0xff]
        %v6157 = vld [vmem:[%s619 + $0x8] sm:$0xff]
        %v6158 = vld [vmem:[%s619 + $0x10] sm:$0xff]
        %v6159 = vld [vmem:[%s619 + $0x18] sm:$0xff]
        %v6160 = vld [vmem:[%s619 + $0x20] sm:$0xff]
        %v6161 = vld [vmem:[%s619 + $0x28] sm:$0xff]
        %v6162 = vld [vmem:[%s619 + $0x30] sm:$0xff]
        %v6163 = vld [vmem:[%s619 + $0x38] sm:$0xff]
        %v6164 = vld [vmem:[%s619 + $0x40] sm:$0xff]
        %v6165 = vld [vmem:[%s619 + $0x48] sm:$0xff]
        %v6166 = vld [vmem:[%s619 + $0x50] sm:$0xff]
        %v6167 = vld [vmem:[%s619 + $0x58] sm:$0xff]
        %v6168 = vld [vmem:[%s619 + $0x60] sm:$0xff]
        %v6169 = vld [vmem:[%s619 + $0x68] sm:$0xff]
        %v6170 = vld [vmem:[%s619 + $0x70] sm:$0xff]
        %v6171 = vld [vmem:[%s619 + $0x78] sm:$0xff]
        %v6172 = vld [vmem:[%s619 + $0x80] sm:$0xff]
        %v6173 = vld [vmem:[%s619 + $0x88] sm:$0xff]
        %v6174 = vld [vmem:[%s619 + $0x90] sm:$0xff]
        %v6175 = vld [vmem:[%s619 + $0x98] sm:$0xff]
        %v6176 = vld [vmem:[%s619 + $0xa0] sm:$0xff]
        %v6177 = vld [vmem:[%s619 + $0xa8] sm:$0xff]
        %v6178 = vld [vmem:[%s619 + $0xb0] sm:$0xff]
        %v6179 = vld [vmem:[%s619 + $0xb8] sm:$0xff]
        %v6180 = vld [vmem:[%s619 + $0xc0] sm:$0xff]
        %v6181 = vld [vmem:[%s619 + $0xc8] sm:$0xff]
        %v6182 = vld [vmem:[%s619 + $0xd0] sm:$0xff]
        %v6183 = vld [vmem:[%s619 + $0xd8] sm:$0xff]
        %v6184 = vld [vmem:[%s619 + $0xe0] sm:$0xff]
        %v6185 = vld [vmem:[%s619 + $0xe8] sm:$0xff]
        %v6186 = vld [vmem:[%s619 + $0xf0] sm:$0xff]
        %v6187 = vld [vmem:[%s619 + $0xf8] sm:$0xff]
        %v6188 = vpack.c.bf16 %v6155, %v6154
        %v6189 = vld [vmem:[%s753] sm:$0xf]
        %v6191 = vlaneseq
        %v6192 = vshrl.u32 %v6191, 7
        %v6193 = vsub.s32 0, %v6192
        %v6194 = vrot.slane %v6189, %v6193
        %v6195 = vlaneseq
        %v6196 = vshrl.u32 %v6195, 7
        %v6197 = vsub.s32 1, %v6196
        %v6198 = vrot.slane %v6189, %v6197
        %v6199 = vlaneseq
        %v6200 = vshrl.u32 %v6199, 7
        %v6201 = vsub.s32 2, %v6200
        %v6202 = vrot.slane %v6189, %v6201
        %v6203 = vlaneseq
        %v6204 = vshrl.u32 %v6203, 7
        %v6205 = vsub.s32 3, %v6204
        %v6206 = vrot.slane %v6189, %v6205
        %v6243 = vunpack.c.l.b16 %v6156
        %v6244 = vunpack.c.h.b16 %v6156
        %v6245 = vunpack.c.l.b16 %v6157
        %v6246 = vunpack.c.h.b16 %v6157
        %v6247 = vunpack.c.l.b16 %v6158
        %v6248 = vunpack.c.h.b16 %v6158
        %v6249 = vunpack.c.l.b16 %v6159
        %v6250 = vunpack.c.h.b16 %v6159
        %v6251 = vunpack.c.l.b16 %v6160
        %v6252 = vunpack.c.h.b16 %v6160
        %v6253 = vunpack.c.l.b16 %v6161
        %v6254 = vunpack.c.h.b16 %v6161
        %v6255 = vunpack.c.l.b16 %v6162
        %v6256 = vunpack.c.h.b16 %v6162
        %v6257 = vunpack.c.l.b16 %v6163
        %v6258 = vunpack.c.h.b16 %v6163
        %v6259 = vunpack.c.l.b16 %v6164
        %v6260 = vunpack.c.h.b16 %v6164
        %v6261 = vunpack.c.l.b16 %v6165
        %v6262 = vunpack.c.h.b16 %v6165
        %v6263 = vunpack.c.l.b16 %v6166
        %v6264 = vunpack.c.h.b16 %v6166
        %v6265 = vunpack.c.l.b16 %v6167
        %v6266 = vunpack.c.h.b16 %v6167
        %v6267 = vunpack.c.l.b16 %v6168
        %v6268 = vunpack.c.h.b16 %v6168
        %v6269 = vunpack.c.l.b16 %v6169
        %v6270 = vunpack.c.h.b16 %v6169
        %v6271 = vunpack.c.l.b16 %v6170
        %v6272 = vunpack.c.h.b16 %v6170
        %v6273 = vunpack.c.l.b16 %v6171
        %v6274 = vunpack.c.h.b16 %v6171
        %v6275 = vunpack.c.l.b16 %v6172
        %v6276 = vunpack.c.h.b16 %v6172
        %v6277 = vunpack.c.l.b16 %v6173
        %v6278 = vunpack.c.h.b16 %v6173
        %v6279 = vunpack.c.l.b16 %v6174
        %v6280 = vunpack.c.h.b16 %v6174
        %v6281 = vunpack.c.l.b16 %v6175
        %v6282 = vunpack.c.h.b16 %v6175
        %v6283 = vunpack.c.l.b16 %v6176
        %v6284 = vunpack.c.h.b16 %v6176
        %v6285 = vunpack.c.l.b16 %v6177
        %v6286 = vunpack.c.h.b16 %v6177
        %v6287 = vunpack.c.l.b16 %v6178
        %v6288 = vunpack.c.h.b16 %v6178
        %v6289 = vunpack.c.l.b16 %v6179
        %v6290 = vunpack.c.h.b16 %v6179
        %v6291 = vunpack.c.l.b16 %v6180
        %v6292 = vunpack.c.h.b16 %v6180
        %v6293 = vunpack.c.l.b16 %v6181
        %v6294 = vunpack.c.h.b16 %v6181
        %v6295 = vunpack.c.l.b16 %v6182
        %v6296 = vunpack.c.h.b16 %v6182
        %v6297 = vunpack.c.l.b16 %v6183
        %v6298 = vunpack.c.h.b16 %v6183
        %v6299 = vunpack.c.l.b16 %v6184
        %v6300 = vunpack.c.h.b16 %v6184
        %v6301 = vunpack.c.l.b16 %v6185
        %v6302 = vunpack.c.h.b16 %v6185
        %v6303 = vunpack.c.l.b16 %v6186
        %v6304 = vunpack.c.h.b16 %v6186
        %v6305 = vunpack.c.l.b16 %v6187
        %v6306 = vunpack.c.h.b16 %v6187
        %v6307 = vpack.c.b16 %v6247, %v6243
        %v6308 = vpack.c.b16 %v6248, %v6244
        %v6309 = vpack.c.b16 %v6249, %v6245
        %v6310 = vpack.c.b16 %v6250, %v6246
        %v6311 = vpack.c.b16 %v6255, %v6251
        %v6312 = vpack.c.b16 %v6256, %v6252
        %v6313 = vpack.c.b16 %v6257, %v6253
        %v6314 = vpack.c.b16 %v6258, %v6254
        %v6315 = vpack.c.b16 %v6263, %v6259
        %v6316 = vpack.c.b16 %v6264, %v6260
        %v6317 = vpack.c.b16 %v6265, %v6261
        %v6318 = vpack.c.b16 %v6266, %v6262
        %v6319 = vpack.c.b16 %v6271, %v6267
        %v6320 = vpack.c.b16 %v6272, %v6268
        %v6321 = vpack.c.b16 %v6273, %v6269
        %v6322 = vpack.c.b16 %v6274, %v6270
        %v6323 = vpack.c.b16 %v6279, %v6275
        %v6324 = vpack.c.b16 %v6280, %v6276
        %v6325 = vpack.c.b16 %v6281, %v6277
        %v6326 = vpack.c.b16 %v6282, %v6278
        %v6327 = vpack.c.b16 %v6287, %v6283
        %v6328 = vpack.c.b16 %v6288, %v6284
        %v6329 = vpack.c.b16 %v6289, %v6285
        %v6330 = vpack.c.b16 %v6290, %v6286
        %v6331 = vpack.c.b16 %v6295, %v6291
        %v6332 = vpack.c.b16 %v6296, %v6292
        %v6333 = vpack.c.b16 %v6297, %v6293
        %v6334 = vpack.c.b16 %v6298, %v6294
        %v6335 = vpack.c.b16 %v6303, %v6299
        %v6336 = vpack.c.b16 %v6304, %v6300
        %v6337 = vpack.c.b16 %v6305, %v6301
        %v6338 = vpack.c.b16 %v6306, %v6302
        %6371 = vmatprep.subr.bf16.mxu0 %v6336
        %6372 = vmatpush1.bf16.msra.mxu0 %v6335
        %6373 = vmatprep.subr.bf16.mxu0 %v6332
        %6374 = vmatpush1.bf16.msra.mxu0 %v6331
        %6375 = vmatprep.subr.bf16.mxu0 %v6328
        %6376 = vmatpush1.bf16.msra.mxu0 %v6327
        %6377 = vmatprep.subr.bf16.mxu0 %v6324
        %6378 = vmatpush1.bf16.msra.mxu0 %v6323
        %6379 = vmatprep.subr.bf16.mxu0 %v6320
        %6380 = vmatpush1.bf16.msra.mxu0 %v6319
        %6381 = vmatprep.subr.bf16.mxu0 %v6316
        %6382 = vmatpush1.bf16.msra.mxu0 %v6315
        %6383 = vmatprep.subr.bf16.mxu0 %v6312
        %6384 = vmatpush1.bf16.msra.mxu0 %v6311
        %6385 = vmatprep.subr.bf16.mxu0 %v6308
        %6386 = vmatpush1.bf16.msra.mxu0 %v6307
        %6387 = vmatprep.subr.bf16.mxu0 0
        %6388 = vmatpush2.bf16.msra.mxu0 0
        %6389 = vmatprep.subr.bf16.mxu0 0
        %6390 = vmatpush2.bf16.msra.mxu0 0
        %6391 = vmatprep.subr.bf16.mxu0 0
        %6392 = vmatpush2.bf16.msra.mxu0 0
        %6393 = vmatprep.subr.bf16.mxu0 0
        %6394 = vmatpush2.bf16.msra.mxu0 0
        %6395 = vmatprep.subr.bf16.mxu0 0
        %6396 = vmatpush2.bf16.msra.mxu0 0
        %6397 = vmatprep.subr.bf16.mxu0 0
        %6398 = vmatpush2.bf16.msra.mxu0 0
        %6399 = vmatprep.subr.bf16.mxu0 0
        %6400 = vmatpush2.bf16.msra.mxu0 0
        %6401 = vmatprep.subr.bf16.mxu0 0
        %6402 = vmatpush2.bf16.msra.mxu0 0
        %6403 = vmatprep.mubr.bf16.mxu0 0
        %6404 = vmatmul.mubr.bf16.gmra.mxu0 %v6188
        %v6405 = vpop.f32.mrf.mxu0
        %v6406 = vadd.f32 %v6194, %v6405
        %v6407 = vpop.f32.mrf.mxu0
        %v6408 = vadd.f32 %v6198, %v6407
        %v6409 = vpop.f32.mrf.mxu0
        %v6410 = vadd.f32 %v6194, %v6409
        %v6411 = vpop.f32.mrf.mxu0
        %v6412 = vadd.f32 %v6198, %v6411
        %6413 = vdwg.mxu0
        %6414 = vmatprep.subr.bf16.mxu0 %v6338
        %6415 = vmatpush1.bf16.msra.mxu0 %v6337
        %6416 = vmatprep.subr.bf16.mxu0 %v6334
        %6417 = vmatpush1.bf16.msra.mxu0 %v6333
        %6418 = vmatprep.subr.bf16.mxu0 %v6330
        %6419 = vmatpush1.bf16.msra.mxu0 %v6329
        %6420 = vmatprep.subr.bf16.mxu0 %v6326
        %6421 = vmatpush1.bf16.msra.mxu0 %v6325
        %6422 = vmatprep.subr.bf16.mxu0 %v6322
        %6423 = vmatpush1.bf16.msra.mxu0 %v6321
        %6424 = vmatprep.subr.bf16.mxu0 %v6318
        %6425 = vmatpush1.bf16.msra.mxu0 %v6317
        %6426 = vmatprep.subr.bf16.mxu0 %v6314
        %6427 = vmatpush1.bf16.msra.mxu0 %v6313
        %6428 = vmatprep.subr.bf16.mxu0 %v6310
        %6429 = vmatpush1.bf16.msra.mxu0 %v6309
        %6430 = vmatprep.subr.bf16.mxu0 0
        %6431 = vmatpush2.bf16.msra.mxu0 0
        %6432 = vmatprep.subr.bf16.mxu0 0
        %6433 = vmatpush2.bf16.msra.mxu0 0
        %6434 = vmatprep.subr.bf16.mxu0 0
        %6435 = vmatpush2.bf16.msra.mxu0 0
        %6436 = vmatprep.subr.bf16.mxu0 0
        %6437 = vmatpush2.bf16.msra.mxu0 0
        %6438 = vmatprep.subr.bf16.mxu0 0
        %6439 = vmatpush2.bf16.msra.mxu0 0
        %6440 = vmatprep.subr.bf16.mxu0 0
        %6441 = vmatpush2.bf16.msra.mxu0 0
        %6442 = vmatprep.subr.bf16.mxu0 0
        %6443 = vmatpush2.bf16.msra.mxu0 0
        %6444 = vmatprep.subr.bf16.mxu0 0
        %6445 = vmatpush2.bf16.msra.mxu0 0
        %6446 = vmatprep.mubr.bf16.mxu0 0
        %6447 = vmatmul.mubr.bf16.gmra.mxu0 %v6188
        %v6448 = vpop.f32.mrf.mxu0
        %v6449 = vadd.f32 %v6202, %v6448
        %v6450 = vpop.f32.mrf.mxu0
        %v6451 = vadd.f32 %v6206, %v6450
        %v6452 = vpop.f32.mrf.mxu0
        %v6453 = vadd.f32 %v6202, %v6452
        %v6454 = vpop.f32.mrf.mxu0
        %v6455 = vadd.f32 %v6206, %v6454
        %6456 = vdwg.mxu0
        %v6457 = vmul.f32 %v6406, 0.5
        %v6458 = vmul.f32 %v6408, 0.5
        %v6459 = vmul.f32 %v6449, 0.5
        %v6460 = vmul.f32 %v6451, 0.5
        %v6461 = vmul.f32 %v6410, 0.5
        %v6462 = vmul.f32 %v6412, 0.5
        %v6463 = vmul.f32 %v6453, 0.5
        %v6464 = vmul.f32 %v6455, 0.5
        %v6465 = vmul.f32 %v6406, %v6406
        %v6466 = vmul.f32 %v6408, %v6408
        %v6467 = vmul.f32 %v6449, %v6449
        %v6468 = vmul.f32 %v6451, %v6451
        %v6469 = vmul.f32 %v6410, %v6410
        %v6470 = vmul.f32 %v6412, %v6412
        %v6471 = vmul.f32 %v6453, %v6453
        %v6472 = vmul.f32 %v6455, %v6455
        %v6473 = vmul.f32 %v6406, %v6465
        %v6474 = vmul.f32 %v6408, %v6466
        %v6475 = vmul.f32 %v6449, %v6467
        %v6476 = vmul.f32 %v6451, %v6468
        %v6477 = vmul.f32 %v6410, %v6469
        %v6478 = vmul.f32 %v6412, %v6470
        %v6479 = vmul.f32 %v6453, %v6471
        %v6480 = vmul.f32 %v6455, %v6472
        %v6481 = vmul.f32 %v6473, 0.044715
        %v6482 = vmul.f32 %v6474, 0.044715
        %v6483 = vmul.f32 %v6475, 0.044715
        %v6484 = vmul.f32 %v6476, 0.044715
        %v6485 = vmul.f32 %v6477, 0.044715
        %v6486 = vmul.f32 %v6478, 0.044715
        %v6487 = vmul.f32 %v6479, 0.044715
        %v6488 = vmul.f32 %v6480, 0.044715
        %v6489 = vadd.f32 %v6406, %v6481
        %v6490 = vadd.f32 %v6408, %v6482
        %v6491 = vadd.f32 %v6449, %v6483
        %v6492 = vadd.f32 %v6451, %v6484
        %v6493 = vadd.f32 %v6410, %v6485
        %v6494 = vadd.f32 %v6412, %v6486
        %v6495 = vadd.f32 %v6453, %v6487
        %v6496 = vadd.f32 %v6455, %v6488
        %v6497 = vmul.f32 %v6489, 0.7978846
        %v6498 = vmul.f32 %v6490, 0.7978846
        %v6499 = vmul.f32 %v6491, 0.7978846
        %v6500 = vmul.f32 %v6492, 0.7978846
        %v6501 = vmul.f32 %v6493, 0.7978846
        %v6502 = vmul.f32 %v6494, 0.7978846
        %v6503 = vmul.f32 %v6495, 0.7978846
        %v6504 = vmul.f32 %v6496, 0.7978846
        %v6505 = vtanh.pop %v6497
        %v6506 = vtanh.pop %v6498
        %v6507 = vtanh.pop %v6499
        %v6508 = vtanh.pop %v6500
        %v6509 = vtanh.pop %v6501
        %v6510 = vtanh.pop %v6502
        %v6511 = vtanh.pop %v6503
        %v6512 = vtanh.pop %v6504
        %v6513 = vadd.f32 %v6505, 1.0
        %v6514 = vadd.f32 %v6506, 1.0
        %v6515 = vadd.f32 %v6507, 1.0
        %v6516 = vadd.f32 %v6508, 1.0
        %v6517 = vadd.f32 %v6509, 1.0
        %v6518 = vadd.f32 %v6510, 1.0
        %v6519 = vadd.f32 %v6511, 1.0
        %v6520 = vadd.f32 %v6512, 1.0
        %v6521 = vmul.f32 %v6457, %v6513
        %v6522 = vmul.f32 %v6458, %v6514
        %v6523 = vmul.f32 %v6459, %v6515
        %v6524 = vmul.f32 %v6460, %v6516
        %v6525 = vmul.f32 %v6461, %v6517
        %v6526 = vmul.f32 %v6462, %v6518
        %v6527 = vmul.f32 %v6463, %v6519
        %v6528 = vmul.f32 %v6464, %v6520
        %v6529 = vld [vmem:[%s628] sm:$0xf]
        %v6530 = vld [vmem:[%s628 + $0x4] sm:$0xf]
        %v6531 = vld [vmem:[%s628 + $0x8] sm:$0xf]
        %v6532 = vld [vmem:[%s628 + $0xc] sm:$0xf]
        %v6533 = vld [vmem:[%s628 + $0x10] sm:$0xf]
        %v6534 = vld [vmem:[%s628 + $0x14] sm:$0xf]
        %v6535 = vld [vmem:[%s628 + $0x18] sm:$0xf]
        %v6536 = vld [vmem:[%s628 + $0x1c] sm:$0xf]
        %v6537 = vld [vmem:[%s628 + $0x20] sm:$0xf]
        %v6538 = vld [vmem:[%s628 + $0x24] sm:$0xf]
        %v6539 = vld [vmem:[%s628 + $0x28] sm:$0xf]
        %v6540 = vld [vmem:[%s628 + $0x2c] sm:$0xf]
        %v6541 = vld [vmem:[%s628 + $0x30] sm:$0xf]
        %v6542 = vld [vmem:[%s628 + $0x34] sm:$0xf]
        %v6543 = vld [vmem:[%s628 + $0x38] sm:$0xf]
        %v6544 = vld [vmem:[%s628 + $0x3c] sm:$0xf]
        %v6545 = vld [vmem:[%s628 + $0x40] sm:$0xf]
        %v6546 = vld [vmem:[%s628 + $0x44] sm:$0xf]
        %v6547 = vld [vmem:[%s628 + $0x48] sm:$0xf]
        %v6548 = vld [vmem:[%s628 + $0x4c] sm:$0xf]
        %v6549 = vld [vmem:[%s628 + $0x50] sm:$0xf]
        %v6550 = vld [vmem:[%s628 + $0x54] sm:$0xf]
        %v6551 = vld [vmem:[%s628 + $0x58] sm:$0xf]
        %v6552 = vld [vmem:[%s628 + $0x5c] sm:$0xf]
        %v6553 = vld [vmem:[%s628 + $0x60] sm:$0xf]
        %v6554 = vld [vmem:[%s628 + $0x64] sm:$0xf]
        %v6555 = vld [vmem:[%s628 + $0x68] sm:$0xf]
        %v6556 = vld [vmem:[%s628 + $0x6c] sm:$0xf]
        %v6557 = vld [vmem:[%s628 + $0x70] sm:$0xf]
        %v6558 = vld [vmem:[%s628 + $0x74] sm:$0xf]
        %v6559 = vld [vmem:[%s628 + $0x78] sm:$0xf]
        %v6560 = vld [vmem:[%s628 + $0x7c] sm:$0xf]
        %v6561 = vld [vmem:[%s628 + $0x80] sm:$0xf]
        %v6562 = vld [vmem:[%s628 + $0x84] sm:$0xf]
        %v6563 = vld [vmem:[%s628 + $0x88] sm:$0xf]
        %v6564 = vld [vmem:[%s628 + $0x8c] sm:$0xf]
        %v6565 = vld [vmem:[%s628 + $0x90] sm:$0xf]
        %v6566 = vld [vmem:[%s628 + $0x94] sm:$0xf]
        %v6567 = vld [vmem:[%s628 + $0x98] sm:$0xf]
        %v6568 = vld [vmem:[%s628 + $0x9c] sm:$0xf]
        %v6569 = vld [vmem:[%s628 + $0xa0] sm:$0xf]
        %v6570 = vld [vmem:[%s628 + $0xa4] sm:$0xf]
        %v6571 = vld [vmem:[%s628 + $0xa8] sm:$0xf]
        %v6572 = vld [vmem:[%s628 + $0xac] sm:$0xf]
        %v6573 = vld [vmem:[%s628 + $0xb0] sm:$0xf]
        %v6574 = vld [vmem:[%s628 + $0xb4] sm:$0xf]
        %v6575 = vld [vmem:[%s628 + $0xb8] sm:$0xf]
        %v6576 = vld [vmem:[%s628 + $0xbc] sm:$0xf]
        %v6577 = vld [vmem:[%s628 + $0xc0] sm:$0xf]
        %v6578 = vld [vmem:[%s628 + $0xc4] sm:$0xf]
        %v6579 = vld [vmem:[%s628 + $0xc8] sm:$0xf]
        %v6580 = vld [vmem:[%s628 + $0xcc] sm:$0xf]
        %v6581 = vld [vmem:[%s628 + $0xd0] sm:$0xf]
        %v6582 = vld [vmem:[%s628 + $0xd4] sm:$0xf]
        %v6583 = vld [vmem:[%s628 + $0xd8] sm:$0xf]
        %v6584 = vld [vmem:[%s628 + $0xdc] sm:$0xf]
        %v6585 = vld [vmem:[%s628 + $0xe0] sm:$0xf]
        %v6586 = vld [vmem:[%s628 + $0xe4] sm:$0xf]
        %v6587 = vld [vmem:[%s628 + $0xe8] sm:$0xf]
        %v6588 = vld [vmem:[%s628 + $0xec] sm:$0xf]
        %v6589 = vld [vmem:[%s628 + $0xf0] sm:$0xf]
        %v6590 = vld [vmem:[%s628 + $0xf4] sm:$0xf]
        %v6591 = vld [vmem:[%s628 + $0xf8] sm:$0xf]
        %v6592 = vld [vmem:[%s628 + $0xfc] sm:$0xf]
        %v6593 = vpack.c.bf16 %v6525, %v6521
        %v6594 = vpack.c.bf16 %v6526, %v6522
        %v6595 = vpack.c.bf16 %v6527, %v6523
        %v6596 = vpack.c.bf16 %v6528, %v6524
        %v6661 = vunpack.c.l.b16 %v6529
        %v6662 = vunpack.c.l.b16 %v6530
        %v6663 = vunpack.c.l.b16 %v6531
        %v6664 = vunpack.c.l.b16 %v6532
        %v6665 = vunpack.c.l.b16 %v6533
        %v6666 = vunpack.c.l.b16 %v6534
        %v6667 = vunpack.c.l.b16 %v6535
        %v6668 = vunpack.c.l.b16 %v6536
        %v6669 = vunpack.c.l.b16 %v6537
        %v6670 = vunpack.c.l.b16 %v6538
        %v6671 = vunpack.c.l.b16 %v6539
        %v6672 = vunpack.c.l.b16 %v6540
        %v6673 = vunpack.c.l.b16 %v6541
        %v6674 = vunpack.c.l.b16 %v6542
        %v6675 = vunpack.c.l.b16 %v6543
        %v6676 = vunpack.c.l.b16 %v6544
        %v6677 = vunpack.c.l.b16 %v6545
        %v6678 = vunpack.c.l.b16 %v6546
        %v6679 = vunpack.c.l.b16 %v6547
        %v6680 = vunpack.c.l.b16 %v6548
        %v6681 = vunpack.c.l.b16 %v6549
        %v6682 = vunpack.c.l.b16 %v6550
        %v6683 = vunpack.c.l.b16 %v6551
        %v6684 = vunpack.c.l.b16 %v6552
        %v6685 = vunpack.c.l.b16 %v6553
        %v6686 = vunpack.c.l.b16 %v6554
        %v6687 = vunpack.c.l.b16 %v6555
        %v6688 = vunpack.c.l.b16 %v6556
        %v6689 = vunpack.c.l.b16 %v6557
        %v6690 = vunpack.c.l.b16 %v6558
        %v6691 = vunpack.c.l.b16 %v6559
        %v6692 = vunpack.c.l.b16 %v6560
        %v6693 = vunpack.c.l.b16 %v6561
        %v6694 = vunpack.c.l.b16 %v6562
        %v6695 = vunpack.c.l.b16 %v6563
        %v6696 = vunpack.c.l.b16 %v6564
        %v6697 = vunpack.c.l.b16 %v6565
        %v6698 = vunpack.c.l.b16 %v6566
        %v6699 = vunpack.c.l.b16 %v6567
        %v6700 = vunpack.c.l.b16 %v6568
        %v6701 = vunpack.c.l.b16 %v6569
        %v6702 = vunpack.c.l.b16 %v6570
        %v6703 = vunpack.c.l.b16 %v6571
        %v6704 = vunpack.c.l.b16 %v6572
        %v6705 = vunpack.c.l.b16 %v6573
        %v6706 = vunpack.c.l.b16 %v6574
        %v6707 = vunpack.c.l.b16 %v6575
        %v6708 = vunpack.c.l.b16 %v6576
        %v6709 = vunpack.c.l.b16 %v6577
        %v6710 = vunpack.c.l.b16 %v6578
        %v6711 = vunpack.c.l.b16 %v6579
        %v6712 = vunpack.c.l.b16 %v6580
        %v6713 = vunpack.c.l.b16 %v6581
        %v6714 = vunpack.c.l.b16 %v6582
        %v6715 = vunpack.c.l.b16 %v6583
        %v6716 = vunpack.c.l.b16 %v6584
        %v6717 = vunpack.c.l.b16 %v6585
        %v6718 = vunpack.c.l.b16 %v6586
        %v6719 = vunpack.c.l.b16 %v6587
        %v6720 = vunpack.c.l.b16 %v6588
        %v6721 = vunpack.c.l.b16 %v6589
        %v6722 = vunpack.c.l.b16 %v6590
        %v6723 = vunpack.c.l.b16 %v6591
        %v6724 = vunpack.c.l.b16 %v6592
        %v6725 = vpack.c.b16 %v6662, %v6661
        %v6726 = vpack.c.b16 %v6664, %v6663
        %v6727 = vpack.c.b16 %v6666, %v6665
        %v6728 = vpack.c.b16 %v6668, %v6667
        %v6729 = vpack.c.b16 %v6670, %v6669
        %v6730 = vpack.c.b16 %v6672, %v6671
        %v6731 = vpack.c.b16 %v6674, %v6673
        %v6732 = vpack.c.b16 %v6676, %v6675
        %v6733 = vpack.c.b16 %v6678, %v6677
        %v6734 = vpack.c.b16 %v6680, %v6679
        %v6735 = vpack.c.b16 %v6682, %v6681
        %v6736 = vpack.c.b16 %v6684, %v6683
        %v6737 = vpack.c.b16 %v6686, %v6685
        %v6738 = vpack.c.b16 %v6688, %v6687
        %v6739 = vpack.c.b16 %v6690, %v6689
        %v6740 = vpack.c.b16 %v6692, %v6691
        %v6741 = vpack.c.b16 %v6694, %v6693
        %v6742 = vpack.c.b16 %v6696, %v6695
        %v6743 = vpack.c.b16 %v6698, %v6697
        %v6744 = vpack.c.b16 %v6700, %v6699
        %v6745 = vpack.c.b16 %v6702, %v6701
        %v6746 = vpack.c.b16 %v6704, %v6703
        %v6747 = vpack.c.b16 %v6706, %v6705
        %v6748 = vpack.c.b16 %v6708, %v6707
        %v6749 = vpack.c.b16 %v6710, %v6709
        %v6750 = vpack.c.b16 %v6712, %v6711
        %v6751 = vpack.c.b16 %v6714, %v6713
        %v6752 = vpack.c.b16 %v6716, %v6715
        %v6753 = vpack.c.b16 %v6718, %v6717
        %v6754 = vpack.c.b16 %v6720, %v6719
        %v6755 = vpack.c.b16 %v6722, %v6721
        %v6756 = vpack.c.b16 %v6724, %v6723
        %6789 = vmatprep.subr.bf16.mxu0 0
        %6790 = vmatpush1.bf16.msra.mxu0 %v6732
        %6791 = vmatprep.subr.bf16.mxu0 0
        %6792 = vmatpush1.bf16.msra.mxu0 %v6731
        %6793 = vmatprep.subr.bf16.mxu0 0
        %6794 = vmatpush1.bf16.msra.mxu0 %v6730
        %6795 = vmatprep.subr.bf16.mxu0 0
        %6796 = vmatpush1.bf16.msra.mxu0 %v6729
        %6797 = vmatprep.subr.bf16.mxu0 0
        %6798 = vmatpush1.bf16.msra.mxu0 %v6728
        %6799 = vmatprep.subr.bf16.mxu0 0
        %6800 = vmatpush1.bf16.msra.mxu0 %v6727
        %6801 = vmatprep.subr.bf16.mxu0 0
        %6802 = vmatpush1.bf16.msra.mxu0 %v6726
        %6803 = vmatprep.subr.bf16.mxu0 0
        %6804 = vmatpush1.bf16.msra.mxu0 %v6725
        %6805 = vmatprep.subr.bf16.mxu0 0
        %6806 = vmatpush2.bf16.msra.mxu0 %v6740
        %6807 = vmatprep.subr.bf16.mxu0 0
        %6808 = vmatpush2.bf16.msra.mxu0 %v6739
        %6809 = vmatprep.subr.bf16.mxu0 0
        %6810 = vmatpush2.bf16.msra.mxu0 %v6738
        %6811 = vmatprep.subr.bf16.mxu0 0
        %6812 = vmatpush2.bf16.msra.mxu0 %v6737
        %6813 = vmatprep.subr.bf16.mxu0 0
        %6814 = vmatpush2.bf16.msra.mxu0 %v6736
        %6815 = vmatprep.subr.bf16.mxu0 0
        %6816 = vmatpush2.bf16.msra.mxu0 %v6735
        %6817 = vmatprep.subr.bf16.mxu0 0
        %6818 = vmatpush2.bf16.msra.mxu0 %v6734
        %6819 = vmatprep.subr.bf16.mxu0 0
        %6820 = vmatpush2.bf16.msra.mxu0 %v6733
        %6821 = vmatprep.mubr.bf16.mxu0 %v6594
        %6822 = vmatmul.mubr.bf16.gmra.mxu0 %v6593
        %v6823 = vpop.f32.mrf.mxu0
        %v6824 = vadd.f32 0.0, %v6823
        %v6825 = vpop.f32.mrf.mxu0
        %v6826 = vpop.f32.mrf.mxu0
        %v6827 = vadd.f32 0.0, %v6826
        %v6828 = vpop.f32.mrf.mxu0
        %6829 = vdwg.mxu0
        %6830 = vmatprep.subr.bf16.mxu0 0
        %6831 = vmatpush1.bf16.msra.mxu0 %v6748
        %6832 = vmatprep.subr.bf16.mxu0 0
        %6833 = vmatpush1.bf16.msra.mxu0 %v6747
        %6834 = vmatprep.subr.bf16.mxu0 0
        %6835 = vmatpush1.bf16.msra.mxu0 %v6746
        %6836 = vmatprep.subr.bf16.mxu0 0
        %6837 = vmatpush1.bf16.msra.mxu0 %v6745
        %6838 = vmatprep.subr.bf16.mxu0 0
        %6839 = vmatpush1.bf16.msra.mxu0 %v6744
        %6840 = vmatprep.subr.bf16.mxu0 0
        %6841 = vmatpush1.bf16.msra.mxu0 %v6743
        %6842 = vmatprep.subr.bf16.mxu0 0
        %6843 = vmatpush1.bf16.msra.mxu0 %v6742
        %6844 = vmatprep.subr.bf16.mxu0 0
        %6845 = vmatpush1.bf16.msra.mxu0 %v6741
        %6846 = vmatprep.subr.bf16.mxu0 0
        %6847 = vmatpush2.bf16.msra.mxu0 %v6756
        %6848 = vmatprep.subr.bf16.mxu0 0
        %6849 = vmatpush2.bf16.msra.mxu0 %v6755
        %6850 = vmatprep.subr.bf16.mxu0 0
        %6851 = vmatpush2.bf16.msra.mxu0 %v6754
        %6852 = vmatprep.subr.bf16.mxu0 0
        %6853 = vmatpush2.bf16.msra.mxu0 %v6753
        %6854 = vmatprep.subr.bf16.mxu0 0
        %6855 = vmatpush2.bf16.msra.mxu0 %v6752
        %6856 = vmatprep.subr.bf16.mxu0 0
        %6857 = vmatpush2.bf16.msra.mxu0 %v6751
        %6858 = vmatprep.subr.bf16.mxu0 0
        %6859 = vmatpush2.bf16.msra.mxu0 %v6750
        %6860 = vmatprep.subr.bf16.mxu0 0
        %6861 = vmatpush2.bf16.msra.mxu0 %v6749
        %6862 = vmatprep.mubr.bf16.mxu0 %v6596
        %6863 = vmatmul.mubr.bf16.gmra.mxu0 %v6595
        %v6864 = vpop.f32.mrf.mxu0
        %v6865 = vadd.f32 %v6824, %v6864
        %v6866 = vpop.f32.mrf.mxu0
        %v6867 = vpop.f32.mrf.mxu0
        %v6868 = vadd.f32 %v6827, %v6867
        %v6869 = vpop.f32.mrf.mxu0
        %6870 = vdwg.mxu0
        %v6871 = vadd.f32 %v6114, %v6865
        %v6872 = vadd.f32 %v6115, %v6868
        %v6873 = vld [vmem:[%s756] sm:$0x1]
        %v6875 = vlaneseq
        %v6876 = vshrl.u32 %v6875, 7
        %v6877 = vsub.s32 0, %v6876
        %v6878 = vrot.slane %v6873, %v6877
        %v6880 = vadd.f32 %v6871, %v6878
        %v6881 = vadd.f32 %v6872, %v6878
        %6882 = vst [vmem:[#allocation2] sm:$0xff] %v6880
        %6883 = vst [vmem:[#allocation2 + $0x8] sm:$0xff] %v6881
        %p6884 = scmp.eq.s32.totalorder %s37, 1
        // Predicated region
        $region97: #{_lambda_.4} parent=79 // pred_check
          %p6885 = pneg %p6884
        $region98: #{_lambda_.4} parent=79 // pred_check_branch
          %6887 = sbr.rel (%p6885) target = $region100
        $region99: #{_lambda_.4} parent=79 // pred_region
          %v6888 = vld [vmem:[%s13] sm:$0x1]
          %v6889 = vld [vmem:[%s14] sm:$0x1]
          %6890 = vadd.xlane.f32.xlu0 %v6880
          %v6891 = vpop.xlane.xlu0 %6890
          %6892 = vadd.xlane.f32.xlu0 %v6881
          %v6893 = vpop.xlane.xlu0 %6892
          %v6894 = vmul.f32 %v6891, %v788
          %v6895 = vmul.f32 %v6893, %v788
          %v6896 = vsub.f32 %v6880, %v6894
          %v6897 = vsub.f32 %v6881, %v6895
          %v6898 = vmul.f32 %v6896, %v6896
          %v6899 = vmul.f32 %v6897, %v6897
          %6900 = vadd.xlane.f32.xlu0 %v6898
          %v6901 = vpop.xlane.xlu0 %6900
          %6902 = vadd.xlane.f32.xlu0 %v6899
          %v6903 = vpop.xlane.xlu0 %6902
          %v6904 = vmul.f32 %v6901, %v788
          %v6905 = vmul.f32 %v6903, %v788
          %v6906 = vadd.f32 %v6904, 1e-05
          %v6907 = vadd.f32 %v6905, 1e-05
          %v6908 = vrsqrt.pop %v6906
          %v6909 = vrsqrt.pop %v6907
          %v6910 = vmul.f32 %v6896, %v6908
          %v6911 = vmul.f32 %v6897, %v6909
          %v6913 = vlaneseq
          %v6914 = vshrl.u32 %v6913, 7
          %v6915 = vsub.s32 0, %v6914
          %v6916 = vrot.slane %v6888, %v6915
          %v6918 = vmul.f32 %v6910, %v6916
          %v6919 = vmul.f32 %v6911, %v6916
          %v6921 = vlaneseq
          %v6922 = vshrl.u32 %v6921, 7
          %v6923 = vsub.s32 0, %v6922
          %v6924 = vrot.slane %v6889, %v6923
          %v6926 = vadd.f32 %v6918, %v6924
          %v6927 = vadd.f32 %v6919, %v6924
          %6928 = vst [vmem:[%s761] sm:$0xff] %v6926
          %6929 = vst [vmem:[%s761 + $0x8] sm:$0xff] %v6927
        $region100: #{_lambda_.4} parent=79 // pred_fallthru
          _
        %p6930 = scmp.lt.s32.totalorder %s36, 1
        %s6931 = scalar_select %p6930, %s36, 1
        %s6932 = smul.addr %s6931, 2
        %s6933 = smul.addr %s6932, 8
        %s6934 = scalar_lea.vmem %s15, %s6933
        // Predicated region
        $region101: #{_lambda_.4} parent=79 // pred_check
          %p6935 = pneg %p442
        $region102: #{_lambda_.4} parent=79 // pred_check_branch
          %6937 = sbr.rel (%p6935) target = $region104
        $region103: #{_lambda_.4} parent=79 // pred_region
          _
        $region104: #{_lambda_.4} parent=79 // pred_fallthru
          _
      $region80: #{_lambda_.4} parent=5 // pred_fallthru
        _
      %p6938 = scmp.le.s32.totalorder 2, %s27
      // Predicated region
      $region105: #{_lambda_.4} parent=5 // pred_check
        %p6939 = pneg %p6938
      $region106: #{_lambda_.4} parent=5 // pred_check_branch
        %6941 = sbr.rel (%p6939) target = $region108
      $region107: #{_lambda_.4} parent=5 // pred_region
        %s6942 = ssub.s32 %s27, 2
        // Predicated region
        $region109: #{_lambda_.4} parent=107 // pred_check
          %p6943 = pneg %p448
        $region110: #{_lambda_.4} parent=107 // pred_check_branch
          %6945 = sbr.rel (%p6943) target = $region112
        $region111: #{_lambda_.4} parent=107 // pred_region
          %p6946 = scmp.lt.s32.totalorder %s38, 1
          %s6947 = scalar_select %p6946, %s38, 1
          %s6948 = smul.addr %s6947, 2
          %s6949 = smul.addr %s6948, 8
          %s6950 = scalar_lea.vmem %s15, %s6949
        $region112: #{_lambda_.4} parent=107 // pred_fallthru
          _
      $region108: #{_lambda_.4} parent=5 // pred_fallthru
        _
    $region6: #{_lambda_.4} parent=1 // loop_footer
      %s31 = sadd.s32 1, %s27
    $region7: #{_lambda_.4} parent=1 // loop_footer_branch
      %26 = sbr.rel target = $region3
    $region8: #{_lambda_.4} parent=1 // loop_exit
      _
    %6951 = vsyncpa [#allocation4], 1
    %s6952 = scalar_lea.sflag [#allocation4], 1
    %6953 = vsyncpa %s6952, 1
    %6954 = vsyncpa [#allocation6], 1
    %s6955 = scalar_lea.sflag [#allocation6], 1
    %6956 = vsyncpa %s6955, 1

</llo_original>
